<compile_context>
chip_gen: v6e
topology: v6e:2x2x1
jax: 0.10.0
libtpu: 0.0.40
codegen_flags: <defaults>
</compile_context>

<pallas_src>
import functools

import numpy as np
import jax
import jax.numpy as jnp
from jax.experimental import pallas as pl
from jax.experimental.pallas import tpu as pltpu


_G = 32        # GroupNorm group count (fixed by the module)
_GPAD = 128    # group axis padded to a full lane width (lane-dense small matmuls)


def _pad128(c):
    return ((c + 127) // 128) * 128


# ----------------------------- in-kernel GroupNorm epilogue ---------------------------

def _gn_apply(y, gamma, beta, cmap, gmap, inv_cnt, eps):
    """GroupNorm on a (HW, C_pad) f32 conv accumulator.

    cmap: (C_pad, 128) constant 0/1 channel->group scatter (0 rows for pad channels)
    gmap: (128, C_pad) constant 0/1 group->channel broadcast (0 cols for pad channels)
    inv_cnt = 1 / (HW * real_group_size)
    """
    s1 = jnp.sum(y, axis=0, keepdims=True)            # (1, C_pad) per-channel sums (XLU)
    s2 = jnp.sum(y * y, axis=0, keepdims=True)
    gmean = jnp.dot(s1, cmap, preferred_element_type=jnp.float32) * inv_cnt   # (1, 128)
    gmsq = jnp.dot(s2, cmap, preferred_element_type=jnp.float32) * inv_cnt
    var = jnp.maximum(gmsq - gmean * gmean, 0.0)       # clamp: cancellation safety
    ginv = jax.lax.rsqrt(var + eps)
    mean_c = jnp.dot(gmean, gmap, preferred_element_type=jnp.float32)         # (1, C_pad)
    inv_c = jnp.dot(ginv, gmap, preferred_element_type=jnp.float32)
    # padded channels: mean_c = inv_c = gamma = beta = 0  ->  output stays exactly 0
    return (y - mean_c) * (inv_c * gamma) + beta


# ----------------------------- fused conv kernels -------------------------------------

def _conv1x1_gn_kernel(x_ref, w_ref, g_ref, b_ref, cmap_ref, gmap_ref, o_ref,
                       *, inv_cnt, eps, relu):
    # x: (1, HW, Cin_p) bf16 ; w: (Cin_p, Cout_p) bf16
    y = jnp.dot(x_ref[0], w_ref[...], preferred_element_type=jnp.float32)
    y = _gn_apply(y, g_ref[...], b_ref[...], cmap_ref[...], gmap_ref[...], inv_cnt, eps)
    if relu:
        y = jnp.maximum(y, 0.0)
    o_ref[0] = y.astype(o_ref.dtype)


def _conv1x1_gn_add_relu_kernel(x_ref, r_ref, w_ref, g_ref, b_ref, cmap_ref, gmap_ref,
                                o_ref, *, inv_cnt, eps):
    # conv3 -> gn3 -> += residual -> ReLU, fully fused
    y = jnp.dot(x_ref[0], w_ref[...], preferred_element_type=jnp.float32)
    y = _gn_apply(y, g_ref[...], b_ref[...], cmap_ref[...], gmap_ref[...], inv_cnt, eps)
    y = y + r_ref[0].astype(jnp.float32)
    o_ref[0] = jnp.maximum(y, 0.0).astype(o_ref.dtype)


def _conv3x3_gn_relu_kernel(x_ref, w_ref, g_ref, b_ref, cmap_ref, gmap_ref, o_ref,
                            *, stride, hout, wout, ph, inv_cnt, eps):
    # x: (1, n_phase*ph, pw, Cin_p) bf16 spatially padded (phase-split for stride 2)
    # w: (9, Cin_p, Cout_p) bf16
    cin = x_ref.shape[-1]
    cout = w_ref.shape[-1]
    acc = jnp.zeros((hout * wout, cout), jnp.float32)
    for kh in range(3):
        for kw in range(3):
            if stride == 1:
                base, r0, c0 = 0, kh, kw
            else:  # stride 2: tap (kh,kw) is a stride-1 window of phase (kh%2, kw%2)
                base = ((kh % 2) * 2 + (kw % 2)) * ph
                r0, c0 = kh // 2, kw // 2
            tap = x_ref[0, base + r0:base + r0 + hout, c0:c0 + wout, :]
            acc = acc + jnp.dot(tap.reshape(hout * wout, cin), w_ref[kh * 3 + kw],
                                preferred_element_type=jnp.float32)
    y = _gn_apply(acc, g_ref[...], b_ref[...], cmap_ref[...], gmap_ref[...], inv_cnt, eps)
    o_ref[0] = jnp.maximum(y, 0.0).astype(o_ref.dtype)


# ----------------------------- layer wrappers (one pallas_call per conv) --------------

_PAR = pltpu.CompilerParams(dimension_semantics=("parallel",))


def conv1x1_gn(x, w, gamma, beta, cmap, gmap, gs_real, *, stride=(1, 1),
               relu=False, residual=None, eps=1e-5):
    sh, sw = stride
    if (sh, sw) != (1, 1):
        x = x[:, ::sh, ::sw, :]
    N, H, W, cin_p = x.shape
    cout_p = w.shape[1]
    HW = H * W
    x3 = x.reshape(N, HW, cin_p)
    inv_cnt = 1.0 / float(HW * gs_real)

    xspec = pl.BlockSpec((1, HW, cin_p), lambda n: (n, 0, 0))
    wspec = pl.BlockSpec((cin_p, cout_p), lambda n: (0, 0))
    vspec = pl.BlockSpec((1, cout_p), lambda n: (0, 0))
    cspec = pl.BlockSpec((cout_p, _GPAD), lambda n: (0, 0))
    gspec = pl.BlockSpec((_GPAD, cout_p), lambda n: (0, 0))
    ospec = pl.BlockSpec((1, HW, cout_p), lambda n: (n, 0, 0))
    oshape = jax.ShapeDtypeStruct((N, HW, cout_p), jnp.bfloat16)

    if residual is None:
        kern = functools.partial(_conv1x1_gn_kernel, inv_cnt=inv_cnt, eps=eps, relu=relu)
        out = pl.pallas_call(
            kern, out_shape=oshape, grid=(N,),
            in_specs=[xspec, wspec, vspec, vspec, cspec, gspec],
            out_specs=ospec, compiler_params=_PAR,
        )(x3, w, gamma, beta, cmap, gmap)
    else:
        r3 = residual.reshape(N, HW, cout_p)
        kern = functools.partial(_conv1x1_gn_add_relu_kernel, inv_cnt=inv_cnt, eps=eps)
        out = pl.pallas_call(
            kern, out_shape=oshape, grid=(N,),
            in_specs=[xspec, ospec, wspec, vspec, vspec, cspec, gspec],
            out_specs=ospec, compiler_params=_PAR,
        )(x3, r3, w, gamma, beta, cmap, gmap)
    return out.reshape(N, H, W, cout_p)


def conv3x3_gn_relu(x, w, gamma, beta, cmap, gmap, gs_real, *, stride=(1, 1), eps=1e-5):
    N, H, W, cin_p = x.shape
    cout_p = w.shape[-1]
    sh, sw = stride
    hout = (H - 1) // sh + 1
    wout = (W - 1) // sw + 1
    xp = jnp.pad(x, ((0, 0), (1, 1), (1, 1), (0, 0)))          # spatial halo only (+2)
    if (sh, sw) == (1, 1):
        phases = xp
        ph, pw, s = H + 2, W + 2, 1
    else:
        assert (sh, sw) == (2, 2) and H % 2 == 0 and W % 2 == 0
        ph, pw, s = (H + 2) // 2, (W + 2) // 2, 2
        plist = [xp[:, a::2, b::2, :] for a in (0, 1) for b in (0, 1)]
        phases = jnp.concatenate(plist, axis=1)                 # (N, 4*ph, pw, Cin_p)
    ph_tot = phases.shape[1]
    hw = hout * wout
    inv_cnt = 1.0 / float(hw * gs_real)

    kern = functools.partial(_conv3x3_gn_relu_kernel, stride=s, hout=hout, wout=wout,
                             ph=ph, inv_cnt=inv_cnt, eps=eps)
    out = pl.pallas_call(
        kern,
        out_shape=jax.ShapeDtypeStruct((N, hw, cout_p), jnp.bfloat16),
        grid=(N,),
        in_specs=[pl.BlockSpec((1, ph_tot, pw, cin_p), lambda n: (n, 0, 0, 0)),
                  pl.BlockSpec((9, cin_p, cout_p), lambda n: (0, 0, 0)),
                  pl.BlockSpec((1, cout_p), lambda n: (0, 0)),
                  pl.BlockSpec((1, cout_p), lambda n: (0, 0)),
                  pl.BlockSpec((cout_p, _GPAD), lambda n: (0, 0)),
                  pl.BlockSpec((_GPAD, cout_p), lambda n: (0, 0))],
        out_specs=pl.BlockSpec((1, hw, cout_p), lambda n: (n, 0, 0)),
        compiler_params=_PAR,
    )(phases, w, gamma, beta, cmap, gmap)
    return out.reshape(N, hout, wout, cout_p)


# ----------------------------- params (all layout work hoisted to init) ---------------

def std_conv_weight(w, eps=1e-5):
    # matches weight_standardize(w, axis=[0,1,2], eps): torch.std is unbiased (ddof=1),
    # eps added to std.  Applied once at init, exactly like StdConv.reset_parameters.
    mean = jnp.mean(w, axis=(0, 1, 2), keepdims=True)
    std = jnp.std(w, axis=(0, 1, 2), keepdims=True, ddof=1)
    return (w - mean) / (std + eps)


def _to_matmul_layout(w_oihw, cin_p, cout_p):
    O, I, KH, KW = w_oihw.shape
    w = jnp.transpose(w_oihw, (2, 3, 1, 0)).reshape(KH * KW, I, O)   # (k, I, O)
    w = jnp.pad(w, ((0, 0), (0, cin_p - I), (0, cout_p - O))).astype(jnp.bfloat16)
    return w[0] if KH * KW == 1 else w


def _group_maps(c_real, c_pad):
    gs = c_real // _G
    cmap = np.zeros((c_pad, _GPAD), np.float32)
    for c in range(c_real):
        cmap[c, c // gs] = 1.0
    gmap = np.ascontiguousarray(cmap.T)
    return jnp.asarray(cmap), jnp.asarray(gmap), gs


def init_residual_unit(key, in_channels, features, strides):
    needs_projection = in_channels != features * 4 or strides != (1, 1)
    keys = jax.random.split(key, 8)
    cin_p, cf_p, co_p = _pad128(in_channels), _pad128(features), _pad128(features * 4)

    def conv_w(k, o, i, kh, kw, ip, op):
        w = 0.05 * jax.random.normal(k, (o, i, kh, kw), jnp.float32)
        return _to_matmul_layout(std_conv_weight(w), ip, op)

    def gn_p(k, c, cp):
        kg, kb = jax.random.split(k)
        gamma = 1.0 + 0.1 * jax.random.normal(kg, (c,), jnp.float32)
        beta = 0.1 * jax.random.normal(kb, (c,), jnp.float32)
        g = jnp.zeros((1, cp), jnp.float32).at[0, :c].set(gamma)   # pad lanes = 0
        b = jnp.zeros((1, cp), jnp.float32).at[0, :c].set(beta)
        return g, b

    p = {"strides": strides, "needs_projection": needs_projection,
         "cin_p": cin_p, "c_out": features * 4}
    p["cmap_f"], p["gmap_f"], p["gs_f"] = _group_maps(features, cf_p)
    p["cmap_o"], p["gmap_o"], p["gs_o"] = _group_maps(features * 4, co_p)
    if needs_projection:
        p["w_proj"] = conv_w(keys[0], features * 4, in_channels, 1, 1, cin_p, co_p)
        p["gn_proj"] = gn_p(keys[1], features * 4, co_p)
    p["w1"] = conv_w(keys[2], features, in_channels, 1, 1, cin_p, cf_p)
    p["gn1"] = gn_p(keys[3], features, cf_p)
    p["w2"] = conv_w(keys[4], features, features, 3, 3, cf_p, cf_p)
    p["gn2"] = gn_p(keys[5], features, cf_p)
    p["w3"] = conv_w(keys[6], features * 4, features, 1, 1, cf_p, co_p)
    p["gn3"] = gn_p(keys[7], features * 4, co_p)
    return p


# ----------------------------- ResidualUnit / ResNetStage forward ---------------------

def residual_unit_forward(p, x):
    strides = p["strides"]
    if p["needs_projection"]:
        g, b = p["gn_proj"]
        residual = conv1x1_gn(x, p["w_proj"], g, b, p["cmap_o"], p["gmap_o"], p["gs_o"],
                              stride=strides, relu=False)
    else:
        residual = x
    g, b = p["gn1"]
    y = conv1x1_gn(x, p["w1"], g, b, p["cmap_f"], p["gmap_f"], p["gs_f"], relu=True)
    g, b = p["gn2"]
    y = conv3x3_gn_relu(y, p["w2"], g, b, p["cmap_f"], p["gmap_f"], p["gs_f"],
                        stride=strides)
    g, b = p["gn3"]
    y = conv1x1_gn(y, p["w3"], g, b, p["cmap_o"], p["gmap_o"], p["gs_o"],
                   residual=residual)            # gn3 -> += residual -> ReLU (fused)
    return y


def init_resnet_stage(key, in_channels, block_size, nout, first_stride):
    keys = jax.random.split(key, block_size)
    blocks = [init_residual_unit(keys[0], in_channels, nout, first_stride)]
    for i in range(1, block_size):
        blocks.append(init_residual_unit(keys[i], nout * 4, nout, (1, 1)))
    return blocks


def resnet_stage_forward(blocks, x_nchw):
    N, C, H, W = x_nchw.shape
    cin_p = blocks[0]["cin_p"]
    x = jnp.transpose(x_nchw, (0, 2, 3, 1))                          # NCHW -> NHWC
    x = jnp.pad(x, ((0, 0), (0, 0), (0, 0), (0, cin_p - C)))         # pad channels once
    x = x.astype(jnp.bfloat16)
    for p in blocks:
        x = residual_unit_forward(p, x)
    c_out = blocks[-1]["c_out"]
    x = x[..., :c_out].astype(jnp.float32)                           # drop channel pad
    return jnp.transpose(x, (0, 3, 1, 2))                            # NHWC -> NCHW


if __name__ == "__main__":
    key = jax.random.PRNGKey(0)
    k_param, k_x = jax.random.split(key)

    # GroupNorm(32, ...) requires channel counts that are multiples of 32.
    in_channels, block_size, nout, first_stride = 64, 2, 32, (2, 2)
    blocks = init_resnet_stage(k_param, in_channels, block_size, nout, first_stride)

    x = jax.random.normal(k_x, (2, in_channels, 16, 16), jnp.float32)  # NCHW like PyTorch
    fwd = jax.jit(lambda xx: resnet_stage_forward(blocks, xx))
    y = jax.block_until_ready(fwd(x))
    assert y.shape == (2, nout * 4, 8, 8), y.shape
    assert bool(jnp.all(jnp.isfinite(y)))
    print("KERNEL_OK")
</pallas_src>

<mosaic_0001>
module attributes {stable_mosaic.version = 11 : i64} {
  func.func @_conv1x1_gn_kernel(%arg0: i32, %arg1: memref<1x64x128xbf16, #tpu.memory_space<vmem>>, %arg2: memref<128x128xbf16, #tpu.memory_space<vmem>>, %arg3: memref<1x128xf32, #tpu.memory_space<vmem>>, %arg4: memref<1x128xf32, #tpu.memory_space<vmem>>, %arg5: memref<128x128xf32, #tpu.memory_space<vmem>>, %arg6: memref<128x128xf32, #tpu.memory_space<vmem>>, %arg7: memref<1x64x128xbf16, #tpu.memory_space<vmem>>) attributes {dimension_semantics = [#tpu.dimension_semantics<parallel>], iteration_bounds = array<i64: 2>, scalar_prefetch = 0 : i64, scratch_operands = 0 : i64, tpu.core_type = #tpu.core_type<tc>, window_params = [{transform_indices = @transform_0, window_bounds = array<i64: 1, 64, 128>}, {pipeline_mode = #tpu.pipeline_mode<synchronous>, transform_indices = @transform_1, window_bounds = array<i64: 128, 128>}, {pipeline_mode = #tpu.pipeline_mode<synchronous>, transform_indices = @transform_2, window_bounds = array<i64: 1, 128>}, {pipeline_mode = #tpu.pipeline_mode<synchronous>, transform_indices = @transform_3, window_bounds = array<i64: 1, 128>}, {pipeline_mode = #tpu.pipeline_mode<synchronous>, transform_indices = @transform_4, window_bounds = array<i64: 128, 128>}, {pipeline_mode = #tpu.pipeline_mode<synchronous>, transform_indices = @transform_5, window_bounds = array<i64: 128, 128>}, {transform_indices = @transform_6, window_bounds = array<i64: 1, 64, 128>}]} {
    %c0 = arith.constant 0 : index
    %c0_0 = arith.constant 0 : index
    %c0_1 = arith.constant 0 : index
    %0 = vector.load %arg1[%c0, %c0_0, %c0_1] : memref<1x64x128xbf16, #tpu.memory_space<vmem>>, vector<1x64x128xbf16>
    %1 = vector.shape_cast %0 : vector<1x64x128xbf16> to vector<64x128xbf16>
    %c0_2 = arith.constant 0 : index
    %c0_3 = arith.constant 0 : index
    %2 = vector.load %arg2[%c0_2, %c0_3] : memref<128x128xbf16, #tpu.memory_space<vmem>>, vector<128x128xbf16>
    %cst = arith.constant dense<0.000000e+00> : vector<64x128xf32>
    %3 = tpu.matmul %1, %2, %cst {dimension_numbers = #tpu.dot_dimension_numbers<[1], [0], [0], [1], [0, 0, 1, 1], [], []>} : vector<64x128xbf16>, vector<128x128xbf16>, vector<64x128xf32> -> vector<64x128xf32>
    %c0_4 = arith.constant 0 : index
    %c0_5 = arith.constant 0 : index
    %4 = vector.load %arg3[%c0_4, %c0_5] : memref<1x128xf32, #tpu.memory_space<vmem>>, vector<1x128xf32>
    %c0_6 = arith.constant 0 : index
    %c0_7 = arith.constant 0 : index
    %5 = vector.load %arg4[%c0_6, %c0_7] : memref<1x128xf32, #tpu.memory_space<vmem>>, vector<1x128xf32>
    %c0_8 = arith.constant 0 : index
    %c0_9 = arith.constant 0 : index
    %6 = vector.load %arg5[%c0_8, %c0_9] : memref<128x128xf32, #tpu.memory_space<vmem>>, vector<128x128xf32>
    %c0_10 = arith.constant 0 : index
    %c0_11 = arith.constant 0 : index
    %7 = vector.load %arg6[%c0_10, %c0_11] : memref<128x128xf32, #tpu.memory_space<vmem>>, vector<128x128xf32>
    %cst_12 = arith.constant dense<0.000000e+00> : vector<128xf32>
    %8 = vector.multi_reduction <add>, %3, %cst_12 [0] : vector<64x128xf32> to vector<128xf32>
    %9 = vector.shape_cast %8 : vector<128xf32> to vector<1x128xf32>
    %10 = arith.mulf %3, %3 : vector<64x128xf32>
    %cst_13 = arith.constant dense<0.000000e+00> : vector<128xf32>
    %11 = vector.multi_reduction <add>, %10, %cst_13 [0] : vector<64x128xf32> to vector<128xf32>
    %12 = vector.shape_cast %11 : vector<128xf32> to vector<1x128xf32>
    %cst_14 = arith.constant dense<0.000000e+00> : vector<1x128xf32>
    %13 = tpu.matmul %9, %6, %cst_14 {dimension_numbers = #tpu.dot_dimension_numbers<[1], [0], [0], [1], [0, 0, 1, 1], [], []>} : vector<1x128xf32>, vector<128x128xf32>, vector<1x128xf32> -> vector<1x128xf32>
    %cst_15 = arith.constant 3.906250e-03 : f32
    %14 = vector.broadcast %cst_15 : f32 to vector<1x128xf32>
    %15 = arith.mulf %13, %14 : vector<1x128xf32>
    %cst_16 = arith.constant dense<0.000000e+00> : vector<1x128xf32>
    %16 = tpu.matmul %12, %6, %cst_16 {dimension_numbers = #tpu.dot_dimension_numbers<[1], [0], [0], [1], [0, 0, 1, 1], [], []>} : vector<1x128xf32>, vector<128x128xf32>, vector<1x128xf32> -> vector<1x128xf32>
    %cst_17 = arith.constant 3.906250e-03 : f32
    %17 = vector.broadcast %cst_17 : f32 to vector<1x128xf32>
    %18 = arith.mulf %16, %17 : vector<1x128xf32>
    %19 = arith.mulf %15, %15 : vector<1x128xf32>
    %20 = arith.subf %18, %19 : vector<1x128xf32>
    %cst_18 = arith.constant 0.000000e+00 : f32
    %21 = vector.broadcast %cst_18 : f32 to vector<1x128xf32>
    %22 = arith.maximumf %20, %21 : vector<1x128xf32>
    %cst_19 = arith.constant 9.99999974E-6 : f32
    %23 = vector.broadcast %cst_19 : f32 to vector<1x128xf32>
    %24 = arith.addf %22, %23 : vector<1x128xf32>
    %25 = math.rsqrt %24 : vector<1x128xf32>
    %cst_20 = arith.constant dense<0.000000e+00> : vector<1x128xf32>
    %26 = tpu.matmul %15, %7, %cst_20 {dimension_numbers = #tpu.dot_dimension_numbers<[1], [0], [0], [1], [0, 0, 1, 1], [], []>} : vector<1x128xf32>, vector<128x128xf32>, vector<1x128xf32> -> vector<1x128xf32>
    %cst_21 = arith.constant dense<0.000000e+00> : vector<1x128xf32>
    %27 = tpu.matmul %25, %7, %cst_21 {dimension_numbers = #tpu.dot_dimension_numbers<[1], [0], [0], [1], [0, 0, 1, 1], [], []>} : vector<1x128xf32>, vector<128x128xf32>, vector<1x128xf32> -> vector<1x128xf32>
    %28 = vector.broadcast %26 : vector<1x128xf32> to vector<64x128xf32>
    %29 = arith.subf %3, %28 : vector<64x128xf32>
    %30 = arith.mulf %27, %4 : vector<1x128xf32>
    %31 = vector.broadcast %30 : vector<1x128xf32> to vector<64x128xf32>
    %32 = arith.mulf %29, %31 : vector<64x128xf32>
    %33 = vector.broadcast %5 : vector<1x128xf32> to vector<64x128xf32>
    %34 = arith.addf %32, %33 : vector<64x128xf32>
    %35 = arith.truncf %34 : vector<64x128xf32> to vector<64x128xbf16>
    %c0_22 = arith.constant 0 : index
    %c0_23 = arith.constant 0 : index
    %c0_24 = arith.constant 0 : index
    %36 = vector.load %arg7[%c0_22, %c0_23, %c0_24] : memref<1x64x128xbf16, #tpu.memory_space<vmem>>, vector<1x64x128xbf16>
    %37 = vector.shape_cast %36 : vector<1x64x128xbf16> to vector<64x128xbf16>
    %38 = vector.shape_cast %35 : vector<64x128xbf16> to vector<1x64x128xbf16>
    tpu.vector_store %arg7[%c0_22, %c0_23, %c0_24], %38 {strides = array<i32>} : memref<1x64x128xbf16, #tpu.memory_space<vmem>>, vector<1x64x128xbf16>,
    return
  }
  func.func @transform_0(%arg0: i32) -> (i32, i32, i32) {
    %c0_i32 = arith.constant 0 : i32
    %c0_i32_0 = arith.constant 0 : i32
    %c0_i32_1 = arith.constant 0 : i32
    return %arg0, %c0_i32, %c0_i32_0 : i32, i32, i32
  }
  func.func @transform_1(%arg0: i32) -> (i32, i32) {
    %c0_i32 = arith.constant 0 : i32
    %c0_i32_0 = arith.constant 0 : i32
    %c0_i32_1 = arith.constant 0 : i32
    return %c0_i32, %c0_i32_0 : i32, i32
  }
  func.func @transform_2(%arg0: i32) -> (i32, i32) {
    %c0_i32 = arith.constant 0 : i32
    %c0_i32_0 = arith.constant 0 : i32
    %c0_i32_1 = arith.constant 0 : i32
    return %c0_i32, %c0_i32_0 : i32, i32
  }
  func.func @transform_3(%arg0: i32) -> (i32, i32) {
    %c0_i32 = arith.constant 0 : i32
    %c0_i32_0 = arith.constant 0 : i32
    %c0_i32_1 = arith.constant 0 : i32
    return %c0_i32, %c0_i32_0 : i32, i32
  }
  func.func @transform_4(%arg0: i32) -> (i32, i32) {
    %c0_i32 = arith.constant 0 : i32
    %c0_i32_0 = arith.constant 0 : i32
    %c0_i32_1 = arith.constant 0 : i32
    return %c0_i32, %c0_i32_0 : i32, i32
  }
  func.func @transform_5(%arg0: i32) -> (i32, i32) {
    %c0_i32 = arith.constant 0 : i32
    %c0_i32_0 = arith.constant 0 : i32
    %c0_i32_1 = arith.constant 0 : i32
    return %c0_i32, %c0_i32_0 : i32, i32
  }
  func.func @transform_6(%arg0: i32) -> (i32, i32, i32) {
    %c0_i32 = arith.constant 0 : i32
    %c0_i32_0 = arith.constant 0 : i32
    %c0_i32_1 = arith.constant 0 : i32
    return %arg0, %c0_i32, %c0_i32_0 : i32, i32, i32
  }
}

module attributes {stable_mosaic.version = 11 : i64} {
  func.func @_conv1x1_gn_kernel(%arg0: i32, %arg1: memref<1x256x128xbf16, #tpu.memory_space<vmem>>, %arg2: memref<128x128xbf16, #tpu.memory_space<vmem>>, %arg3: memref<1x128xf32, #tpu.memory_space<vmem>>, %arg4: memref<1x128xf32, #tpu.memory_space<vmem>>, %arg5: memref<128x128xf32, #tpu.memory_space<vmem>>, %arg6: memref<128x128xf32, #tpu.memory_space<vmem>>, %arg7: memref<1x256x128xbf16, #tpu.memory_space<vmem>>) attributes {dimension_semantics = [#tpu.dimension_semantics<parallel>], iteration_bounds = array<i64: 2>, scalar_prefetch = 0 : i64, scratch_operands = 0 : i64, tpu.core_type = #tpu.core_type<tc>, window_params = [{transform_indices = @transform_0, window_bounds = array<i64: 1, 256, 128>}, {pipeline_mode = #tpu.pipeline_mode<synchronous>, transform_indices = @transform_1, window_bounds = array<i64: 128, 128>}, {pipeline_mode = #tpu.pipeline_mode<synchronous>, transform_indices = @transform_2, window_bounds = array<i64: 1, 128>}, {pipeline_mode = #tpu.pipeline_mode<synchronous>, transform_indices = @transform_3, window_bounds = array<i64: 1, 128>}, {pipeline_mode = #tpu.pipeline_mode<synchronous>, transform_indices = @transform_4, window_bounds = array<i64: 128, 128>}, {pipeline_mode = #tpu.pipeline_mode<synchronous>, transform_indices = @transform_5, window_bounds = array<i64: 128, 128>}, {transform_indices = @transform_6, window_bounds = array<i64: 1, 256, 128>}]} {
    %c0 = arith.constant 0 : index
    %c0_0 = arith.constant 0 : index
    %c0_1 = arith.constant 0 : index
    %0 = vector.load %arg1[%c0, %c0_0, %c0_1] : memref<1x256x128xbf16, #tpu.memory_space<vmem>>, vector<1x256x128xbf16>
    %1 = vector.shape_cast %0 : vector<1x256x128xbf16> to vector<256x128xbf16>
    %c0_2 = arith.constant 0 : index
    %c0_3 = arith.constant 0 : index
    %2 = vector.load %arg2[%c0_2, %c0_3] : memref<128x128xbf16, #tpu.memory_space<vmem>>, vector<128x128xbf16>
    %cst = arith.constant dense<0.000000e+00> : vector<256x128xf32>
    %3 = tpu.matmul %1, %2, %cst {dimension_numbers = #tpu.dot_dimension_numbers<[1], [0], [0], [1], [0, 0, 1, 1], [], []>} : vector<256x128xbf16>, vector<128x128xbf16>, vector<256x128xf32> -> vector<256x128xf32>
    %c0_4 = arith.constant 0 : index
    %c0_5 = arith.constant 0 : index
    %4 = vector.load %arg3[%c0_4, %c0_5] : memref<1x128xf32, #tpu.memory_space<vmem>>, vector<1x128xf32>
    %c0_6 = arith.constant 0 : index
    %c0_7 = arith.constant 0 : index
    %5 = vector.load %arg4[%c0_6, %c0_7] : memref<1x128xf32, #tpu.memory_space<vmem>>, vector<1x128xf32>
    %c0_8 = arith.constant 0 : index
    %c0_9 = arith.constant 0 : index
    %6 = vector.load %arg5[%c0_8, %c0_9] : memref<128x128xf32, #tpu.memory_space<vmem>>, vector<128x128xf32>
    %c0_10 = arith.constant 0 : index
    %c0_11 = arith.constant 0 : index
    %7 = vector.load %arg6[%c0_10, %c0_11] : memref<128x128xf32, #tpu.memory_space<vmem>>, vector<128x128xf32>
    %cst_12 = arith.constant dense<0.000000e+00> : vector<128xf32>
    %8 = vector.multi_reduction <add>, %3, %cst_12 [0] : vector<256x128xf32> to vector<128xf32>
    %9 = vector.shape_cast %8 : vector<128xf32> to vector<1x128xf32>
    %10 = arith.mulf %3, %3 : vector<256x128xf32>
    %cst_13 = arith.constant dense<0.000000e+00> : vector<128xf32>
    %11 = vector.multi_reduction <add>, %10, %cst_13 [0] : vector<256x128xf32> to vector<128xf32>
    %12 = vector.shape_cast %11 : vector<128xf32> to vector<1x128xf32>
    %cst_14 = arith.constant dense<0.000000e+00> : vector<1x128xf32>
    %13 = tpu.matmul %9, %6, %cst_14 {dimension_numbers = #tpu.dot_dimension_numbers<[1], [0], [0], [1], [0, 0, 1, 1], [], []>} : vector<1x128xf32>, vector<128x128xf32>, vector<1x128xf32> -> vector<1x128xf32>
    %cst_15 = arith.constant 3.906250e-03 : f32
    %14 = vector.broadcast %cst_15 : f32 to vector<1x128xf32>
    %15 = arith.mulf %13, %14 : vector<1x128xf32>
    %cst_16 = arith.constant dense<0.000000e+00> : vector<1x128xf32>
    %16 = tpu.matmul %12, %6, %cst_16 {dimension_numbers = #tpu.dot_dimension_numbers<[1], [0], [0], [1], [0, 0, 1, 1], [], []>} : vector<1x128xf32>, vector<128x128xf32>, vector<1x128xf32> -> vector<1x128xf32>
    %cst_17 = arith.constant 3.906250e-03 : f32
    %17 = vector.broadcast %cst_17 : f32 to vector<1x128xf32>
    %18 = arith.mulf %16, %17 : vector<1x128xf32>
    %19 = arith.mulf %15, %15 : vector<1x128xf32>
    %20 = arith.subf %18, %19 : vector<1x128xf32>
    %cst_18 = arith.constant 0.000000e+00 : f32
    %21 = vector.broadcast %cst_18 : f32 to vector<1x128xf32>
    %22 = arith.maximumf %20, %21 : vector<1x128xf32>
    %cst_19 = arith.constant 9.99999974E-6 : f32
    %23 = vector.broadcast %cst_19 : f32 to vector<1x128xf32>
    %24 = arith.addf %22, %23 : vector<1x128xf32>
    %25 = math.rsqrt %24 : vector<1x128xf32>
    %cst_20 = arith.constant dense<0.000000e+00> : vector<1x128xf32>
    %26 = tpu.matmul %15, %7, %cst_20 {dimension_numbers = #tpu.dot_dimension_numbers<[1], [0], [0], [1], [0, 0, 1, 1], [], []>} : vector<1x128xf32>, vector<128x128xf32>, vector<1x128xf32> -> vector<1x128xf32>
    %cst_21 = arith.constant dense<0.000000e+00> : vector<1x128xf32>
    %27 = tpu.matmul %25, %7, %cst_21 {dimension_numbers = #tpu.dot_dimension_numbers<[1], [0], [0], [1], [0, 0, 1, 1], [], []>} : vector<1x128xf32>, vector<128x128xf32>, vector<1x128xf32> -> vector<1x128xf32>
    %28 = vector.broadcast %26 : vector<1x128xf32> to vector<256x128xf32>
    %29 = arith.subf %3, %28 : vector<256x128xf32>
    %30 = arith.mulf %27, %4 : vector<1x128xf32>
    %31 = vector.broadcast %30 : vector<1x128xf32> to vector<256x128xf32>
    %32 = arith.mulf %29, %31 : vector<256x128xf32>
    %33 = vector.broadcast %5 : vector<1x128xf32> to vector<256x128xf32>
    %34 = arith.addf %32, %33 : vector<256x128xf32>
    %cst_22 = arith.constant 0.000000e+00 : f32
    %35 = vector.broadcast %cst_22 : f32 to vector<256x128xf32>
    %36 = arith.maximumf %34, %35 : vector<256x128xf32>
    %37 = arith.truncf %36 : vector<256x128xf32> to vector<256x128xbf16>
    %c0_23 = arith.constant 0 : index
    %c0_24 = arith.constant 0 : index
    %c0_25 = arith.constant 0 : index
    %38 = vector.load %arg7[%c0_23, %c0_24, %c0_25] : memref<1x256x128xbf16, #tpu.memory_space<vmem>>, vector<1x256x128xbf16>
    %39 = vector.shape_cast %38 : vector<1x256x128xbf16> to vector<256x128xbf16>
    %40 = vector.shape_cast %37 : vector<256x128xbf16> to vector<1x256x128xbf16>
    tpu.vector_store %arg7[%c0_23, %c0_24, %c0_25], %40 {strides = array<i32>} : memref<1x256x128xbf16, #tpu.memory_space<vmem>>, vector<1x256x128xbf16>,
    return
  }
  func.func @transform_0(%arg0: i32) -> (i32, i32, i32) {
    %c0_i32 = arith.constant 0 : i32
    %c0_i32_0 = arith.constant 0 : i32
    %c0_i32_1 = arith.constant 0 : i32
    return %arg0, %c0_i32, %c0_i32_0 : i32, i32, i32
  }
  func.func @transform_1(%arg0: i32) -> (i32, i32) {
    %c0_i32 = arith.constant 0 : i32
    %c0_i32_0 = arith.constant 0 : i32
    %c0_i32_1 = arith.constant 0 : i32
    return %c0_i32, %c0_i32_0 : i32, i32
  }
  func.func @transform_2(%arg0: i32) -> (i32, i32) {
    %c0_i32 = arith.constant 0 : i32
    %c0_i32_0 = arith.constant 0 : i32
    %c0_i32_1 = arith.constant 0 : i32
    return %c0_i32, %c0_i32_0 : i32, i32
  }
  func.func @transform_3(%arg0: i32) -> (i32, i32) {
    %c0_i32 = arith.constant 0 : i32
    %c0_i32_0 = arith.constant 0 : i32
    %c0_i32_1 = arith.constant 0 : i32
    return %c0_i32, %c0_i32_0 : i32, i32
  }
  func.func @transform_4(%arg0: i32) -> (i32, i32) {
    %c0_i32 = arith.constant 0 : i32
    %c0_i32_0 = arith.constant 0 : i32
    %c0_i32_1 = arith.constant 0 : i32
    return %c0_i32, %c0_i32_0 : i32, i32
  }
  func.func @transform_5(%arg0: i32) -> (i32, i32) {
    %c0_i32 = arith.constant 0 : i32
    %c0_i32_0 = arith.constant 0 : i32
    %c0_i32_1 = arith.constant 0 : i32
    return %c0_i32, %c0_i32_0 : i32, i32
  }
  func.func @transform_6(%arg0: i32) -> (i32, i32, i32) {
    %c0_i32 = arith.constant 0 : i32
    %c0_i32_0 = arith.constant 0 : i32
    %c0_i32_1 = arith.constant 0 : i32
    return %arg0, %c0_i32, %c0_i32_0 : i32, i32, i32
  }
}

module attributes {stable_mosaic.version = 11 : i64} {
  func.func @_conv3x3_gn_relu_kernel(%arg0: i32, %arg1: memref<1x36x9x128xbf16, #tpu.memory_space<vmem>>, %arg2: memref<9x128x128xbf16, #tpu.memory_space<vmem>>, %arg3: memref<1x128xf32, #tpu.memory_space<vmem>>, %arg4: memref<1x128xf32, #tpu.memory_space<vmem>>, %arg5: memref<128x128xf32, #tpu.memory_space<vmem>>, %arg6: memref<128x128xf32, #tpu.memory_space<vmem>>, %arg7: memref<1x64x128xbf16, #tpu.memory_space<vmem>>) attributes {dimension_semantics = [#tpu.dimension_semantics<parallel>], iteration_bounds = array<i64: 2>, scalar_prefetch = 0 : i64, scratch_operands = 0 : i64, tpu.core_type = #tpu.core_type<tc>, window_params = [{transform_indices = @transform_0, window_bounds = array<i64: 1, 36, 9, 128>}, {pipeline_mode = #tpu.pipeline_mode<synchronous>, transform_indices = @transform_1, window_bounds = array<i64: 9, 128, 128>}, {pipeline_mode = #tpu.pipeline_mode<synchronous>, transform_indices = @transform_2, window_bounds = array<i64: 1, 128>}, {pipeline_mode = #tpu.pipeline_mode<synchronous>, transform_indices = @transform_3, window_bounds = array<i64: 1, 128>}, {pipeline_mode = #tpu.pipeline_mode<synchronous>, transform_indices = @transform_4, window_bounds = array<i64: 128, 128>}, {pipeline_mode = #tpu.pipeline_mode<synchronous>, transform_indices = @transform_5, window_bounds = array<i64: 128, 128>}, {transform_indices = @transform_6, window_bounds = array<i64: 1, 64, 128>}]} {
    %cst = arith.constant 0.000000e+00 : f32
    %0 = vector.broadcast %cst : f32 to vector<64x128xf32>
    %c0 = arith.constant 0 : index
    %c0_0 = arith.constant 0 : index
    %c0_1 = arith.constant 0 : index
    %c0_2 = arith.constant 0 : index
    %1 = vector.load %arg1[%c0, %c0_0, %c0_1, %c0_2] : memref<1x36x9x128xbf16, #tpu.memory_space<vmem>>, vector<1x8x8x128xbf16>
    %2 = vector.shape_cast %1 : vector<1x8x8x128xbf16> to vector<8x8x128xbf16>
    %3 = vector.shape_cast %2 : vector<8x8x128xbf16> to vector<64x128xbf16>
    %c0_3 = arith.constant 0 : index
    %c0_4 = arith.constant 0 : index
    %c0_5 = arith.constant 0 : index
    %4 = vector.load %arg2[%c0_3, %c0_4, %c0_5] : memref<9x128x128xbf16, #tpu.memory_space<vmem>>, vector<1x128x128xbf16>
    %5 = vector.shape_cast %4 : vector<1x128x128xbf16> to vector<128x128xbf16>
    %cst_6 = arith.constant dense<0.000000e+00> : vector<64x128xf32>
    %6 = tpu.matmul %3, %5, %cst_6 {dimension_numbers = #tpu.dot_dimension_numbers<[1], [0], [0], [1], [0, 0, 1, 1], [], []>} : vector<64x128xbf16>, vector<128x128xbf16>, vector<64x128xf32> -> vector<64x128xf32>
    %7 = arith.addf %0, %6 : vector<64x128xf32>
    %c0_7 = arith.constant 0 : index
    %c9 = arith.constant 9 : index
    %c0_8 = arith.constant 0 : index
    %c0_9 = arith.constant 0 : index
    %8 = vector.load %arg1[%c0_7, %c9, %c0_8, %c0_9] : memref<1x36x9x128xbf16, #tpu.memory_space<vmem>>, vector<1x8x8x128xbf16>
    %9 = vector.shape_cast %8 : vector<1x8x8x128xbf16> to vector<8x8x128xbf16>
    %10 = vector.shape_cast %9 : vector<8x8x128xbf16> to vector<64x128xbf16>
    %c1 = arith.constant 1 : index
    %c0_10 = arith.constant 0 : index
    %c0_11 = arith.constant 0 : index
    %11 = vector.load %arg2[%c1, %c0_10, %c0_11] : memref<9x128x128xbf16, #tpu.memory_space<vmem>>, vector<1x128x128xbf16>
    %12 = vector.shape_cast %11 : vector<1x128x128xbf16> to vector<128x128xbf16>
    %cst_12 = arith.constant dense<0.000000e+00> : vector<64x128xf32>
    %13 = tpu.matmul %10, %12, %cst_12 {dimension_numbers = #tpu.dot_dimension_numbers<[1], [0], [0], [1], [0, 0, 1, 1], [], []>} : vector<64x128xbf16>, vector<128x128xbf16>, vector<64x128xf32> -> vector<64x128xf32>
    %14 = arith.addf %7, %13 : vector<64x128xf32>
    %c0_13 = arith.constant 0 : index
    %c0_14 = arith.constant 0 : index
    %c1_15 = arith.constant 1 : index
    %c0_16 = arith.constant 0 : index
    %15 = vector.load %arg1[%c0_13, %c0_14, %c1_15, %c0_16] : memref<1x36x9x128xbf16, #tpu.memory_space<vmem>>, vector<1x8x8x128xbf16>
    %16 = vector.shape_cast %15 : vector<1x8x8x128xbf16> to vector<8x8x128xbf16>
    %17 = vector.shape_cast %16 : vector<8x8x128xbf16> to vector<64x128xbf16>
    %c2 = arith.constant 2 : index
    %c0_17 = arith.constant 0 : index
    %c0_18 = arith.constant 0 : index
    %18 = vector.load %arg2[%c2, %c0_17, %c0_18] : memref<9x128x128xbf16, #tpu.memory_space<vmem>>, vector<1x128x128xbf16>
    %19 = vector.shape_cast %18 : vector<1x128x128xbf16> to vector<128x128xbf16>
    %cst_19 = arith.constant dense<0.000000e+00> : vector<64x128xf32>
    %20 = tpu.matmul %17, %19, %cst_19 {dimension_numbers = #tpu.dot_dimension_numbers<[1], [0], [0], [1], [0, 0, 1, 1], [], []>} : vector<64x128xbf16>, vector<128x128xbf16>, vector<64x128xf32> -> vector<64x128xf32>
    %21 = arith.addf %14, %20 : vector<64x128xf32>
    %c0_20 = arith.constant 0 : index
    %c18 = arith.constant 18 : index
    %c0_21 = arith.constant 0 : index
    %c0_22 = arith.constant 0 : index
    %22 = vector.load %arg1[%c0_20, %c18, %c0_21, %c0_22] : memref<1x36x9x128xbf16, #tpu.memory_space<vmem>>, vector<1x8x8x128xbf16>
    %23 = vector.shape_cast %22 : vector<1x8x8x128xbf16> to vector<8x8x128xbf16>
    %24 = vector.shape_cast %23 : vector<8x8x128xbf16> to vector<64x128xbf16>
    %c3 = arith.constant 3 : index
    %c0_23 = arith.constant 0 : index
    %c0_24 = arith.constant 0 : index
    %25 = vector.load %arg2[%c3, %c0_23, %c0_24] : memref<9x128x128xbf16, #tpu.memory_space<vmem>>, vector<1x128x128xbf16>
    %26 = vector.shape_cast %25 : vector<1x128x128xbf16> to vector<128x128xbf16>
    %cst_25 = arith.constant dense<0.000000e+00> : vector<64x128xf32>
    %27 = tpu.matmul %24, %26, %cst_25 {dimension_numbers = #tpu.dot_dimension_numbers<[1], [0], [0], [1], [0, 0, 1, 1], [], []>} : vector<64x128xbf16>, vector<128x128xbf16>, vector<64x128xf32> -> vector<64x128xf32>
    %28 = arith.addf %21, %27 : vector<64x128xf32>
    %c0_26 = arith.constant 0 : index
    %c27 = arith.constant 27 : index
    %c0_27 = arith.constant 0 : index
    %c0_28 = arith.constant 0 : index
    %29 = vector.load %arg1[%c0_26, %c27, %c0_27, %c0_28] : memref<1x36x9x128xbf16, #tpu.memory_space<vmem>>, vector<1x8x8x128xbf16>
    %30 = vector.shape_cast %29 : vector<1x8x8x128xbf16> to vector<8x8x128xbf16>
    %31 = vector.shape_cast %30 : vector<8x8x128xbf16> to vector<64x128xbf16>
    %c4 = arith.constant 4 : index
    %c0_29 = arith.constant 0 : index
    %c0_30 = arith.constant 0 : index
    %32 = vector.load %arg2[%c4, %c0_29, %c0_30] : memref<9x128x128xbf16, #tpu.memory_space<vmem>>, vector<1x128x128xbf16>
    %33 = vector.shape_cast %32 : vector<1x128x128xbf16> to vector<128x128xbf16>
    %cst_31 = arith.constant dense<0.000000e+00> : vector<64x128xf32>
    %34 = tpu.matmul %31, %33, %cst_31 {dimension_numbers = #tpu.dot_dimension_numbers<[1], [0], [0], [1], [0, 0, 1, 1], [], []>} : vector<64x128xbf16>, vector<128x128xbf16>, vector<64x128xf32> -> vector<64x128xf32>
    %35 = arith.addf %28, %34 : vector<64x128xf32>
    %c0_32 = arith.constant 0 : index
    %c18_33 = arith.constant 18 : index
    %c1_34 = arith.constant 1 : index
    %c0_35 = arith.constant 0 : index
    %36 = vector.load %arg1[%c0_32, %c18_33, %c1_34, %c0_35] : memref<1x36x9x128xbf16, #tpu.memory_space<vmem>>, vector<1x8x8x128xbf16>
    %37 = vector.shape_cast %36 : vector<1x8x8x128xbf16> to vector<8x8x128xbf16>
    %38 = vector.shape_cast %37 : vector<8x8x128xbf16> to vector<64x128xbf16>
    %c5 = arith.constant 5 : index
    %c0_36 = arith.constant 0 : index
    %c0_37 = arith.constant 0 : index
    %39 = vector.load %arg2[%c5, %c0_36, %c0_37] : memref<9x128x128xbf16, #tpu.memory_space<vmem>>, vector<1x128x128xbf16>
    %40 = vector.shape_cast %39 : vector<1x128x128xbf16> to vector<128x128xbf16>
    %cst_38 = arith.constant dense<0.000000e+00> : vector<64x128xf32>
    %41 = tpu.matmul %38, %40, %cst_38 {dimension_numbers = #tpu.dot_dimension_numbers<[1], [0], [0], [1], [0, 0, 1, 1], [], []>} : vector<64x128xbf16>, vector<128x128xbf16>, vector<64x128xf32> -> vector<64x128xf32>
    %42 = arith.addf %35, %41 : vector<64x128xf32>
    %c0_39 = arith.constant 0 : index
    %c1_40 = arith.constant 1 : index
    %c0_41 = arith.constant 0 : index
    %c0_42 = arith.constant 0 : index
    %43 = vector.load %arg1[%c0_39, %c1_40, %c0_41, %c0_42] : memref<1x36x9x128xbf16, #tpu.memory_space<vmem>>, vector<1x8x8x128xbf16>
    %44 = vector.shape_cast %43 : vector<1x8x8x128xbf16> to vector<8x8x128xbf16>
    %45 = vector.shape_cast %44 : vector<8x8x128xbf16> to vector<64x128xbf16>
    %c6 = arith.constant 6 : index
    %c0_43 = arith.constant 0 : index
    %c0_44 = arith.constant 0 : index
    %46 = vector.load %arg2[%c6, %c0_43, %c0_44] : memref<9x128x128xbf16, #tpu.memory_space<vmem>>, vector<1x128x128xbf16>
    %47 = vector.shape_cast %46 : vector<1x128x128xbf16> to vector<128x128xbf16>
    %cst_45 = arith.constant dense<0.000000e+00> : vector<64x128xf32>
    %48 = tpu.matmul %45, %47, %cst_45 {dimension_numbers = #tpu.dot_dimension_numbers<[1], [0], [0], [1], [0, 0, 1, 1], [], []>} : vector<64x128xbf16>, vector<128x128xbf16>, vector<64x128xf32> -> vector<64x128xf32>
    %49 = arith.addf %42, %48 : vector<64x128xf32>
    %c0_46 = arith.constant 0 : index
    %c10 = arith.constant 10 : index
    %c0_47 = arith.constant 0 : index
    %c0_48 = arith.constant 0 : index
    %50 = vector.load %arg1[%c0_46, %c10, %c0_47, %c0_48] : memref<1x36x9x128xbf16, #tpu.memory_space<vmem>>, vector<1x8x8x128xbf16>
    %51 = vector.shape_cast %50 : vector<1x8x8x128xbf16> to vector<8x8x128xbf16>
    %52 = vector.shape_cast %51 : vector<8x8x128xbf16> to vector<64x128xbf16>
    %c7 = arith.constant 7 : index
    %c0_49 = arith.constant 0 : index
    %c0_50 = arith.constant 0 : index
    %53 = vector.load %arg2[%c7, %c0_49, %c0_50] : memref<9x128x128xbf16, #tpu.memory_space<vmem>>, vector<1x128x128xbf16>
    %54 = vector.shape_cast %53 : vector<1x128x128xbf16> to vector<128x128xbf16>
    %cst_51 = arith.constant dense<0.000000e+00> : vector<64x128xf32>
    %55 = tpu.matmul %52, %54, %cst_51 {dimension_numbers = #tpu.dot_dimension_numbers<[1], [0], [0], [1], [0, 0, 1, 1], [], []>} : vector<64x128xbf16>, vector<128x128xbf16>, vector<64x128xf32> -> vector<64x128xf32>
    %56 = arith.addf %49, %55 : vector<64x128xf32>
    %c0_52 = arith.constant 0 : index
    %c1_53 = arith.constant 1 : index
    %c1_54 = arith.constant 1 : index
    %c0_55 = arith.constant 0 : index
    %57 = vector.load %arg1[%c0_52, %c1_53, %c1_54, %c0_55] : memref<1x36x9x128xbf16, #tpu.memory_space<vmem>>, vector<1x8x8x128xbf16>
    %58 = vector.shape_cast %57 : vector<1x8x8x128xbf16> to vector<8x8x128xbf16>
    %59 = vector.shape_cast %58 : vector<8x8x128xbf16> to vector<64x128xbf16>
    %c8 = arith.constant 8 : index
    %c0_56 = arith.constant 0 : index
    %c0_57 = arith.constant 0 : index
    %60 = vector.load %arg2[%c8, %c0_56, %c0_57] : memref<9x128x128xbf16, #tpu.memory_space<vmem>>, vector<1x128x128xbf16>
    %61 = vector.shape_cast %60 : vector<1x128x128xbf16> to vector<128x128xbf16>
    %cst_58 = arith.constant dense<0.000000e+00> : vector<64x128xf32>
    %62 = tpu.matmul %59, %61, %cst_58 {dimension_numbers = #tpu.dot_dimension_numbers<[1], [0], [0], [1], [0, 0, 1, 1], [], []>} : vector<64x128xbf16>, vector<128x128xbf16>, vector<64x128xf32> -> vector<64x128xf32>
    %63 = arith.addf %56, %62 : vector<64x128xf32>
    %c0_59 = arith.constant 0 : index
    %c0_60 = arith.constant 0 : index
    %64 = vector.load %arg3[%c0_59, %c0_60] : memref<1x128xf32, #tpu.memory_space<vmem>>, vector<1x128xf32>
    %c0_61 = arith.constant 0 : index
    %c0_62 = arith.constant 0 : index
    %65 = vector.load %arg4[%c0_61, %c0_62] : memref<1x128xf32, #tpu.memory_space<vmem>>, vector<1x128xf32>
    %c0_63 = arith.constant 0 : index
    %c0_64 = arith.constant 0 : index
    %66 = vector.load %arg5[%c0_63, %c0_64] : memref<128x128xf32, #tpu.memory_space<vmem>>, vector<128x128xf32>
    %c0_65 = arith.constant 0 : index
    %c0_66 = arith.constant 0 : index
    %67 = vector.load %arg6[%c0_65, %c0_66] : memref<128x128xf32, #tpu.memory_space<vmem>>, vector<128x128xf32>
    %cst_67 = arith.constant dense<0.000000e+00> : vector<128xf32>
    %68 = vector.multi_reduction <add>, %63, %cst_67 [0] : vector<64x128xf32> to vector<128xf32>
    %69 = vector.shape_cast %68 : vector<128xf32> to vector<1x128xf32>
    %70 = arith.mulf %63, %63 : vector<64x128xf32>
    %cst_68 = arith.constant dense<0.000000e+00> : vector<128xf32>
    %71 = vector.multi_reduction <add>, %70, %cst_68 [0] : vector<64x128xf32> to vector<128xf32>
    %72 = vector.shape_cast %71 : vector<128xf32> to vector<1x128xf32>
    %cst_69 = arith.constant dense<0.000000e+00> : vector<1x128xf32>
    %73 = tpu.matmul %69, %66, %cst_69 {dimension_numbers = #tpu.dot_dimension_numbers<[1], [0], [0], [1], [0, 0, 1, 1], [], []>} : vector<1x128xf32>, vector<128x128xf32>, vector<1x128xf32> -> vector<1x128xf32>
    %cst_70 = arith.constant 1.562500e-02 : f32
    %74 = vector.broadcast %cst_70 : f32 to vector<1x128xf32>
    %75 = arith.mulf %73, %74 : vector<1x128xf32>
    %cst_71 = arith.constant dense<0.000000e+00> : vector<1x128xf32>
    %76 = tpu.matmul %72, %66, %cst_71 {dimension_numbers = #tpu.dot_dimension_numbers<[1], [0], [0], [1], [0, 0, 1, 1], [], []>} : vector<1x128xf32>, vector<128x128xf32>, vector<1x128xf32> -> vector<1x128xf32>
    %cst_72 = arith.constant 1.562500e-02 : f32
    %77 = vector.broadcast %cst_72 : f32 to vector<1x128xf32>
    %78 = arith.mulf %76, %77 : vector<1x128xf32>
    %79 = arith.mulf %75, %75 : vector<1x128xf32>
    %80 = arith.subf %78, %79 : vector<1x128xf32>
    %cst_73 = arith.constant 0.000000e+00 : f32
    %81 = vector.broadcast %cst_73 : f32 to vector<1x128xf32>
    %82 = arith.maximumf %80, %81 : vector<1x128xf32>
    %cst_74 = arith.constant 9.99999974E-6 : f32
    %83 = vector.broadcast %cst_74 : f32 to vector<1x128xf32>
    %84 = arith.addf %82, %83 : vector<1x128xf32>
    %85 = math.rsqrt %84 : vector<1x128xf32>
    %cst_75 = arith.constant dense<0.000000e+00> : vector<1x128xf32>
    %86 = tpu.matmul %75, %67, %cst_75 {dimension_numbers = #tpu.dot_dimension_numbers<[1], [0], [0], [1], [0, 0, 1, 1], [], []>} : vector<1x128xf32>, vector<128x128xf32>, vector<1x128xf32> -> vector<1x128xf32>
    %cst_76 = arith.constant dense<0.000000e+00> : vector<1x128xf32>
    %87 = tpu.matmul %85, %67, %cst_76 {dimension_numbers = #tpu.dot_dimension_numbers<[1], [0], [0], [1], [0, 0, 1, 1], [], []>} : vector<1x128xf32>, vector<128x128xf32>, vector<1x128xf32> -> vector<1x128xf32>
    %88 = vector.broadcast %86 : vector<1x128xf32> to vector<64x128xf32>
    %89 = arith.subf %63, %88 : vector<64x128xf32>
    %90 = arith.mulf %87, %64 : vector<1x128xf32>
    %91 = vector.broadcast %90 : vector<1x128xf32> to vector<64x128xf32>
    %92 = arith.mulf %89, %91 : vector<64x128xf32>
    %93 = vector.broadcast %65 : vector<1x128xf32> to vector<64x128xf32>
    %94 = arith.addf %92, %93 : vector<64x128xf32>
    %cst_77 = arith.constant 0.000000e+00 : f32
    %95 = vector.broadcast %cst_77 : f32 to vector<64x128xf32>
    %96 = arith.maximumf %94, %95 : vector<64x128xf32>
    %97 = arith.truncf %96 : vector<64x128xf32> to vector<64x128xbf16>
    %c0_78 = arith.constant 0 : index
    %c0_79 = arith.constant 0 : index
    %c0_80 = arith.constant 0 : index
    %98 = vector.load %arg7[%c0_78, %c0_79, %c0_80] : memref<1x64x128xbf16, #tpu.memory_space<vmem>>, vector<1x64x128xbf16>
    %99 = vector.shape_cast %98 : vector<1x64x128xbf16> to vector<64x128xbf16>
    %100 = vector.shape_cast %97 : vector<64x128xbf16> to vector<1x64x128xbf16>
    tpu.vector_store %arg7[%c0_78, %c0_79, %c0_80], %100 {strides = array<i32>} : memref<1x64x128xbf16, #tpu.memory_space<vmem>>, vector<1x64x128xbf16>,
    return
  }
  func.func @transform_0(%arg0: i32) -> (i32, i32, i32, i32) {
    %c0_i32 = arith.constant 0 : i32
    %c0_i32_0 = arith.constant 0 : i32
    %c0_i32_1 = arith.constant 0 : i32
    %c0_i32_2 = arith.constant 0 : i32
    return %arg0, %c0_i32, %c0_i32_0, %c0_i32_1 : i32, i32, i32, i32
  }
  func.func @transform_1(%arg0: i32) -> (i32, i32, i32) {
    %c0_i32 = arith.constant 0 : i32
    %c0_i32_0 = arith.constant 0 : i32
    %c0_i32_1 = arith.constant 0 : i32
    %c0_i32_2 = arith.constant 0 : i32
    return %c0_i32, %c0_i32_0, %c0_i32_1 : i32, i32, i32
  }
  func.func @transform_2(%arg0: i32) -> (i32, i32) {
    %c0_i32 = arith.constant 0 : i32
    %c0_i32_0 = arith.constant 0 : i32
    %c0_i32_1 = arith.constant 0 : i32
    return %c0_i32, %c0_i32_0 : i32, i32
  }
  func.func @transform_3(%arg0: i32) -> (i32, i32) {
    %c0_i32 = arith.constant 0 : i32
    %c0_i32_0 = arith.constant 0 : i32
    %c0_i32_1 = arith.constant 0 : i32
    return %c0_i32, %c0_i32_0 : i32, i32
  }
  func.func @transform_4(%arg0: i32) -> (i32, i32) {
    %c0_i32 = arith.constant 0 : i32
    %c0_i32_0 = arith.constant 0 : i32
    %c0_i32_1 = arith.constant 0 : i32
    return %c0_i32, %c0_i32_0 : i32, i32
  }
  func.func @transform_5(%arg0: i32) -> (i32, i32) {
    %c0_i32 = arith.constant 0 : i32
    %c0_i32_0 = arith.constant 0 : i32
    %c0_i32_1 = arith.constant 0 : i32
    return %c0_i32, %c0_i32_0 : i32, i32
  }
  func.func @transform_6(%arg0: i32) -> (i32, i32, i32) {
    %c0_i32 = arith.constant 0 : i32
    %c0_i32_0 = arith.constant 0 : i32
    %c0_i32_1 = arith.constant 0 : i32
    return %arg0, %c0_i32, %c0_i32_0 : i32, i32, i32
  }
}

module attributes {stable_mosaic.version = 11 : i64} {
  func.func @_conv1x1_gn_add_relu_kernel(%arg0: i32, %arg1: memref<1x64x128xbf16, #tpu.memory_space<vmem>>, %arg2: memref<1x64x128xbf16, #tpu.memory_space<vmem>>, %arg3: memref<128x128xbf16, #tpu.memory_space<vmem>>, %arg4: memref<1x128xf32, #tpu.memory_space<vmem>>, %arg5: memref<1x128xf32, #tpu.memory_space<vmem>>, %arg6: memref<128x128xf32, #tpu.memory_space<vmem>>, %arg7: memref<128x128xf32, #tpu.memory_space<vmem>>, %arg8: memref<1x64x128xbf16, #tpu.memory_space<vmem>>) attributes {dimension_semantics = [#tpu.dimension_semantics<parallel>], iteration_bounds = array<i64: 2>, scalar_prefetch = 0 : i64, scratch_operands = 0 : i64, tpu.core_type = #tpu.core_type<tc>, window_params = [{transform_indices = @transform_0, window_bounds = array<i64: 1, 64, 128>}, {transform_indices = @transform_1, window_bounds = array<i64: 1, 64, 128>}, {pipeline_mode = #tpu.pipeline_mode<synchronous>, transform_indices = @transform_2, window_bounds = array<i64: 128, 128>}, {pipeline_mode = #tpu.pipeline_mode<synchronous>, transform_indices = @transform_3, window_bounds = array<i64: 1, 128>}, {pipeline_mode = #tpu.pipeline_mode<synchronous>, transform_indices = @transform_4, window_bounds = array<i64: 1, 128>}, {pipeline_mode = #tpu.pipeline_mode<synchronous>, transform_indices = @transform_5, window_bounds = array<i64: 128, 128>}, {pipeline_mode = #tpu.pipeline_mode<synchronous>, transform_indices = @transform_6, window_bounds = array<i64: 128, 128>}, {transform_indices = @transform_7, window_bounds = array<i64: 1, 64, 128>}]} {
    %c0 = arith.constant 0 : index
    %c0_0 = arith.constant 0 : index
    %c0_1 = arith.constant 0 : index
    %0 = vector.load %arg1[%c0, %c0_0, %c0_1] : memref<1x64x128xbf16, #tpu.memory_space<vmem>>, vector<1x64x128xbf16>
    %1 = vector.shape_cast %0 : vector<1x64x128xbf16> to vector<64x128xbf16>
    %c0_2 = arith.constant 0 : index
    %c0_3 = arith.constant 0 : index
    %2 = vector.load %arg3[%c0_2, %c0_3] : memref<128x128xbf16, #tpu.memory_space<vmem>>, vector<128x128xbf16>
    %cst = arith.constant dense<0.000000e+00> : vector<64x128xf32>
    %3 = tpu.matmul %1, %2, %cst {dimension_numbers = #tpu.dot_dimension_numbers<[1], [0], [0], [1], [0, 0, 1, 1], [], []>} : vector<64x128xbf16>, vector<128x128xbf16>, vector<64x128xf32> -> vector<64x128xf32>
    %c0_4 = arith.constant 0 : index
    %c0_5 = arith.constant 0 : index
    %4 = vector.load %arg4[%c0_4, %c0_5] : memref<1x128xf32, #tpu.memory_space<vmem>>, vector<1x128xf32>
    %c0_6 = arith.constant 0 : index
    %c0_7 = arith.constant 0 : index
    %5 = vector.load %arg5[%c0_6, %c0_7] : memref<1x128xf32, #tpu.memory_space<vmem>>, vector<1x128xf32>
    %c0_8 = arith.constant 0 : index
    %c0_9 = arith.constant 0 : index
    %6 = vector.load %arg6[%c0_8, %c0_9] : memref<128x128xf32, #tpu.memory_space<vmem>>, vector<128x128xf32>
    %c0_10 = arith.constant 0 : index
    %c0_11 = arith.constant 0 : index
    %7 = vector.load %arg7[%c0_10, %c0_11] : memref<128x128xf32, #tpu.memory_space<vmem>>, vector<128x128xf32>
    %cst_12 = arith.constant dense<0.000000e+00> : vector<128xf32>
    %8 = vector.multi_reduction <add>, %3, %cst_12 [0] : vector<64x128xf32> to vector<128xf32>
    %9 = vector.shape_cast %8 : vector<128xf32> to vector<1x128xf32>
    %10 = arith.mulf %3, %3 : vector<64x128xf32>
    %cst_13 = arith.constant dense<0.000000e+00> : vector<128xf32>
    %11 = vector.multi_reduction <add>, %10, %cst_13 [0] : vector<64x128xf32> to vector<128xf32>
    %12 = vector.shape_cast %11 : vector<128xf32> to vector<1x128xf32>
    %cst_14 = arith.constant dense<0.000000e+00> : vector<1x128xf32>
    %13 = tpu.matmul %9, %6, %cst_14 {dimension_numbers = #tpu.dot_dimension_numbers<[1], [0], [0], [1], [0, 0, 1, 1], [], []>} : vector<1x128xf32>, vector<128x128xf32>, vector<1x128xf32> -> vector<1x128xf32>
    %cst_15 = arith.constant 3.906250e-03 : f32
    %14 = vector.broadcast %cst_15 : f32 to vector<1x128xf32>
    %15 = arith.mulf %13, %14 : vector<1x128xf32>
    %cst_16 = arith.constant dense<0.000000e+00> : vector<1x128xf32>
    %16 = tpu.matmul %12, %6, %cst_16 {dimension_numbers = #tpu.dot_dimension_numbers<[1], [0], [0], [1], [0, 0, 1, 1], [], []>} : vector<1x128xf32>, vector<128x128xf32>, vector<1x128xf32> -> vector<1x128xf32>
    %cst_17 = arith.constant 3.906250e-03 : f32
    %17 = vector.broadcast %cst_17 : f32 to vector<1x128xf32>
    %18 = arith.mulf %16, %17 : vector<1x128xf32>
    %19 = arith.mulf %15, %15 : vector<1x128xf32>
    %20 = arith.subf %18, %19 : vector<1x128xf32>
    %cst_18 = arith.constant 0.000000e+00 : f32
    %21 = vector.broadcast %cst_18 : f32 to vector<1x128xf32>
    %22 = arith.maximumf %20, %21 : vector<1x128xf32>
    %cst_19 = arith.constant 9.99999974E-6 : f32
    %23 = vector.broadcast %cst_19 : f32 to vector<1x128xf32>
    %24 = arith.addf %22, %23 : vector<1x128xf32>
    %25 = math.rsqrt %24 : vector<1x128xf32>
    %cst_20 = arith.constant dense<0.000000e+00> : vector<1x128xf32>
    %26 = tpu.matmul %15, %7, %cst_20 {dimension_numbers = #tpu.dot_dimension_numbers<[1], [0], [0], [1], [0, 0, 1, 1], [], []>} : vector<1x128xf32>, vector<128x128xf32>, vector<1x128xf32> -> vector<1x128xf32>
    %cst_21 = arith.constant dense<0.000000e+00> : vector<1x128xf32>
    %27 = tpu.matmul %25, %7, %cst_21 {dimension_numbers = #tpu.dot_dimension_numbers<[1], [0], [0], [1], [0, 0, 1, 1], [], []>} : vector<1x128xf32>, vector<128x128xf32>, vector<1x128xf32> -> vector<1x128xf32>
    %28 = vector.broadcast %26 : vector<1x128xf32> to vector<64x128xf32>
    %29 = arith.subf %3, %28 : vector<64x128xf32>
    %30 = arith.mulf %27, %4 : vector<1x128xf32>
    %31 = vector.broadcast %30 : vector<1x128xf32> to vector<64x128xf32>
    %32 = arith.mulf %29, %31 : vector<64x128xf32>
    %33 = vector.broadcast %5 : vector<1x128xf32> to vector<64x128xf32>
    %34 = arith.addf %32, %33 : vector<64x128xf32>
    %c0_22 = arith.constant 0 : index
    %c0_23 = arith.constant 0 : index
    %c0_24 = arith.constant 0 : index
    %35 = vector.load %arg2[%c0_22, %c0_23, %c0_24] : memref<1x64x128xbf16, #tpu.memory_space<vmem>>, vector<1x64x128xbf16>
    %36 = vector.shape_cast %35 : vector<1x64x128xbf16> to vector<64x128xbf16>
    %37 = arith.extf %36 : vector<64x128xbf16> to vector<64x128xf32>
    %38 = arith.addf %34, %37 : vector<64x128xf32>
    %cst_25 = arith.constant 0.000000e+00 : f32
    %39 = vector.broadcast %cst_25 : f32 to vector<64x128xf32>
    %40 = arith.maximumf %38, %39 : vector<64x128xf32>
    %41 = arith.truncf %40 : vector<64x128xf32> to vector<64x128xbf16>
    %c0_26 = arith.constant 0 : index
    %c0_27 = arith.constant 0 : index
    %c0_28 = arith.constant 0 : index
    %42 = vector.load %arg8[%c0_26, %c0_27, %c0_28] : memref<1x64x128xbf16, #tpu.memory_space<vmem>>, vector<1x64x128xbf16>
    %43 = vector.shape_cast %42 : vector<1x64x128xbf16> to vector<64x128xbf16>
    %44 = vector.shape_cast %41 : vector<64x128xbf16> to vector<1x64x128xbf16>
    tpu.vector_store %arg8[%c0_26, %c0_27, %c0_28], %44 {strides = array<i32>} : memref<1x64x128xbf16, #tpu.memory_space<vmem>>, vector<1x64x128xbf16>,
    return
  }
  func.func @transform_0(%arg0: i32) -> (i32, i32, i32) {
    %c0_i32 = arith.constant 0 : i32
    %c0_i32_0 = arith.constant 0 : i32
    %c0_i32_1 = arith.constant 0 : i32
    return %arg0, %c0_i32, %c0_i32_0 : i32, i32, i32
  }
  func.func @transform_1(%arg0: i32) -> (i32, i32, i32) {
    %c0_i32 = arith.constant 0 : i32
    %c0_i32_0 = arith.constant 0 : i32
    %c0_i32_1 = arith.constant 0 : i32
    return %arg0, %c0_i32, %c0_i32_0 : i32, i32, i32
  }
  func.func @transform_2(%arg0: i32) -> (i32, i32) {
    %c0_i32 = arith.constant 0 : i32
    %c0_i32_0 = arith.constant 0 : i32
    %c0_i32_1 = arith.constant 0 : i32
    return %c0_i32, %c0_i32_0 : i32, i32
  }
  func.func @transform_3(%arg0: i32) -> (i32, i32) {
    %c0_i32 = arith.constant 0 : i32
    %c0_i32_0 = arith.constant 0 : i32
    %c0_i32_1 = arith.constant 0 : i32
    return %c0_i32, %c0_i32_0 : i32, i32
  }
  func.func @transform_4(%arg0: i32) -> (i32, i32) {
    %c0_i32 = arith.constant 0 : i32
    %c0_i32_0 = arith.constant 0 : i32
    %c0_i32_1 = arith.constant 0 : i32
    return %c0_i32, %c0_i32_0 : i32, i32
  }
  func.func @transform_5(%arg0: i32) -> (i32, i32) {
    %c0_i32 = arith.constant 0 : i32
    %c0_i32_0 = arith.constant 0 : i32
    %c0_i32_1 = arith.constant 0 : i32
    return %c0_i32, %c0_i32_0 : i32, i32
  }
  func.func @transform_6(%arg0: i32) -> (i32, i32) {
    %c0_i32 = arith.constant 0 : i32
    %c0_i32_0 = arith.constant 0 : i32
    %c0_i32_1 = arith.constant 0 : i32
    return %c0_i32, %c0_i32_0 : i32, i32
  }
  func.func @transform_7(%arg0: i32) -> (i32, i32, i32) {
    %c0_i32 = arith.constant 0 : i32
    %c0_i32_0 = arith.constant 0 : i32
    %c0_i32_1 = arith.constant 0 : i32
    return %arg0, %c0_i32, %c0_i32_0 : i32, i32, i32
  }
}

module attributes {stable_mosaic.version = 11 : i64} {
  func.func @_conv1x1_gn_kernel(%arg0: i32, %arg1: memref<1x64x128xbf16, #tpu.memory_space<vmem>>, %arg2: memref<128x128xbf16, #tpu.memory_space<vmem>>, %arg3: memref<1x128xf32, #tpu.memory_space<vmem>>, %arg4: memref<1x128xf32, #tpu.memory_space<vmem>>, %arg5: memref<128x128xf32, #tpu.memory_space<vmem>>, %arg6: memref<128x128xf32, #tpu.memory_space<vmem>>, %arg7: memref<1x64x128xbf16, #tpu.memory_space<vmem>>) attributes {dimension_semantics = [#tpu.dimension_semantics<parallel>], iteration_bounds = array<i64: 2>, scalar_prefetch = 0 : i64, scratch_operands = 0 : i64, tpu.core_type = #tpu.core_type<tc>, window_params = [{transform_indices = @transform_0, window_bounds = array<i64: 1, 64, 128>}, {pipeline_mode = #tpu.pipeline_mode<synchronous>, transform_indices = @transform_1, window_bounds = array<i64: 128, 128>}, {pipeline_mode = #tpu.pipeline_mode<synchronous>, transform_indices = @transform_2, window_bounds = array<i64: 1, 128>}, {pipeline_mode = #tpu.pipeline_mode<synchronous>, transform_indices = @transform_3, window_bounds = array<i64: 1, 128>}, {pipeline_mode = #tpu.pipeline_mode<synchronous>, transform_indices = @transform_4, window_bounds = array<i64: 128, 128>}, {pipeline_mode = #tpu.pipeline_mode<synchronous>, transform_indices = @transform_5, window_bounds = array<i64: 128, 128>}, {transform_indices = @transform_6, window_bounds = array<i64: 1, 64, 128>}]} {
    %c0 = arith.constant 0 : index
    %c0_0 = arith.constant 0 : index
    %c0_1 = arith.constant 0 : index
    %0 = vector.load %arg1[%c0, %c0_0, %c0_1] : memref<1x64x128xbf16, #tpu.memory_space<vmem>>, vector<1x64x128xbf16>
    %1 = vector.shape_cast %0 : vector<1x64x128xbf16> to vector<64x128xbf16>
    %c0_2 = arith.constant 0 : index
    %c0_3 = arith.constant 0 : index
    %2 = vector.load %arg2[%c0_2, %c0_3] : memref<128x128xbf16, #tpu.memory_space<vmem>>, vector<128x128xbf16>
    %cst = arith.constant dense<0.000000e+00> : vector<64x128xf32>
    %3 = tpu.matmul %1, %2, %cst {dimension_numbers = #tpu.dot_dimension_numbers<[1], [0], [0], [1], [0, 0, 1, 1], [], []>} : vector<64x128xbf16>, vector<128x128xbf16>, vector<64x128xf32> -> vector<64x128xf32>
    %c0_4 = arith.constant 0 : index
    %c0_5 = arith.constant 0 : index
    %4 = vector.load %arg3[%c0_4, %c0_5] : memref<1x128xf32, #tpu.memory_space<vmem>>, vector<1x128xf32>
    %c0_6 = arith.constant 0 : index
    %c0_7 = arith.constant 0 : index
    %5 = vector.load %arg4[%c0_6, %c0_7] : memref<1x128xf32, #tpu.memory_space<vmem>>, vector<1x128xf32>
    %c0_8 = arith.constant 0 : index
    %c0_9 = arith.constant 0 : index
    %6 = vector.load %arg5[%c0_8, %c0_9] : memref<128x128xf32, #tpu.memory_space<vmem>>, vector<128x128xf32>
    %c0_10 = arith.constant 0 : index
    %c0_11 = arith.constant 0 : index
    %7 = vector.load %arg6[%c0_10, %c0_11] : memref<128x128xf32, #tpu.memory_space<vmem>>, vector<128x128xf32>
    %cst_12 = arith.constant dense<0.000000e+00> : vector<128xf32>
    %8 = vector.multi_reduction <add>, %3, %cst_12 [0] : vector<64x128xf32> to vector<128xf32>
    %9 = vector.shape_cast %8 : vector<128xf32> to vector<1x128xf32>
    %10 = arith.mulf %3, %3 : vector<64x128xf32>
    %cst_13 = arith.constant dense<0.000000e+00> : vector<128xf32>
    %11 = vector.multi_reduction <add>, %10, %cst_13 [0] : vector<64x128xf32> to vector<128xf32>
    %12 = vector.shape_cast %11 : vector<128xf32> to vector<1x128xf32>
    %cst_14 = arith.constant dense<0.000000e+00> : vector<1x128xf32>
    %13 = tpu.matmul %9, %6, %cst_14 {dimension_numbers = #tpu.dot_dimension_numbers<[1], [0], [0], [1], [0, 0, 1, 1], [], []>} : vector<1x128xf32>, vector<128x128xf32>, vector<1x128xf32> -> vector<1x128xf32>
    %cst_15 = arith.constant 1.562500e-02 : f32
    %14 = vector.broadcast %cst_15 : f32 to vector<1x128xf32>
    %15 = arith.mulf %13, %14 : vector<1x128xf32>
    %cst_16 = arith.constant dense<0.000000e+00> : vector<1x128xf32>
    %16 = tpu.matmul %12, %6, %cst_16 {dimension_numbers = #tpu.dot_dimension_numbers<[1], [0], [0], [1], [0, 0, 1, 1], [], []>} : vector<1x128xf32>, vector<128x128xf32>, vector<1x128xf32> -> vector<1x128xf32>
    %cst_17 = arith.constant 1.562500e-02 : f32
    %17 = vector.broadcast %cst_17 : f32 to vector<1x128xf32>
    %18 = arith.mulf %16, %17 : vector<1x128xf32>
    %19 = arith.mulf %15, %15 : vector<1x128xf32>
    %20 = arith.subf %18, %19 : vector<1x128xf32>
    %cst_18 = arith.constant 0.000000e+00 : f32
    %21 = vector.broadcast %cst_18 : f32 to vector<1x128xf32>
    %22 = arith.maximumf %20, %21 : vector<1x128xf32>
    %cst_19 = arith.constant 9.99999974E-6 : f32
    %23 = vector.broadcast %cst_19 : f32 to vector<1x128xf32>
    %24 = arith.addf %22, %23 : vector<1x128xf32>
    %25 = math.rsqrt %24 : vector<1x128xf32>
    %cst_20 = arith.constant dense<0.000000e+00> : vector<1x128xf32>
    %26 = tpu.matmul %15, %7, %cst_20 {dimension_numbers = #tpu.dot_dimension_numbers<[1], [0], [0], [1], [0, 0, 1, 1], [], []>} : vector<1x128xf32>, vector<128x128xf32>, vector<1x128xf32> -> vector<1x128xf32>
    %cst_21 = arith.constant dense<0.000000e+00> : vector<1x128xf32>
    %27 = tpu.matmul %25, %7, %cst_21 {dimension_numbers = #tpu.dot_dimension_numbers<[1], [0], [0], [1], [0, 0, 1, 1], [], []>} : vector<1x128xf32>, vector<128x128xf32>, vector<1x128xf32> -> vector<1x128xf32>
    %28 = vector.broadcast %26 : vector<1x128xf32> to vector<64x128xf32>
    %29 = arith.subf %3, %28 : vector<64x128xf32>
    %30 = arith.mulf %27, %4 : vector<1x128xf32>
    %31 = vector.broadcast %30 : vector<1x128xf32> to vector<64x128xf32>
    %32 = arith.mulf %29, %31 : vector<64x128xf32>
    %33 = vector.broadcast %5 : vector<1x128xf32> to vector<64x128xf32>
    %34 = arith.addf %32, %33 : vector<64x128xf32>
    %cst_22 = arith.constant 0.000000e+00 : f32
    %35 = vector.broadcast %cst_22 : f32 to vector<64x128xf32>
    %36 = arith.maximumf %34, %35 : vector<64x128xf32>
    %37 = arith.truncf %36 : vector<64x128xf32> to vector<64x128xbf16>
    %c0_23 = arith.constant 0 : index
    %c0_24 = arith.constant 0 : index
    %c0_25 = arith.constant 0 : index
    %38 = vector.load %arg7[%c0_23, %c0_24, %c0_25] : memref<1x64x128xbf16, #tpu.memory_space<vmem>>, vector<1x64x128xbf16>
    %39 = vector.shape_cast %38 : vector<1x64x128xbf16> to vector<64x128xbf16>
    %40 = vector.shape_cast %37 : vector<64x128xbf16> to vector<1x64x128xbf16>
    tpu.vector_store %arg7[%c0_23, %c0_24, %c0_25], %40 {strides = array<i32>} : memref<1x64x128xbf16, #tpu.memory_space<vmem>>, vector<1x64x128xbf16>,
    return
  }
  func.func @transform_0(%arg0: i32) -> (i32, i32, i32) {
    %c0_i32 = arith.constant 0 : i32
    %c0_i32_0 = arith.constant 0 : i32
    %c0_i32_1 = arith.constant 0 : i32
    return %arg0, %c0_i32, %c0_i32_0 : i32, i32, i32
  }
  func.func @transform_1(%arg0: i32) -> (i32, i32) {
    %c0_i32 = arith.constant 0 : i32
    %c0_i32_0 = arith.constant 0 : i32
    %c0_i32_1 = arith.constant 0 : i32
    return %c0_i32, %c0_i32_0 : i32, i32
  }
  func.func @transform_2(%arg0: i32) -> (i32, i32) {
    %c0_i32 = arith.constant 0 : i32
    %c0_i32_0 = arith.constant 0 : i32
    %c0_i32_1 = arith.constant 0 : i32
    return %c0_i32, %c0_i32_0 : i32, i32
  }
  func.func @transform_3(%arg0: i32) -> (i32, i32) {
    %c0_i32 = arith.constant 0 : i32
    %c0_i32_0 = arith.constant 0 : i32
    %c0_i32_1 = arith.constant 0 : i32
    return %c0_i32, %c0_i32_0 : i32, i32
  }
  func.func @transform_4(%arg0: i32) -> (i32, i32) {
    %c0_i32 = arith.constant 0 : i32
    %c0_i32_0 = arith.constant 0 : i32
    %c0_i32_1 = arith.constant 0 : i32
    return %c0_i32, %c0_i32_0 : i32, i32
  }
  func.func @transform_5(%arg0: i32) -> (i32, i32) {
    %c0_i32 = arith.constant 0 : i32
    %c0_i32_0 = arith.constant 0 : i32
    %c0_i32_1 = arith.constant 0 : i32
    return %c0_i32, %c0_i32_0 : i32, i32
  }
  func.func @transform_6(%arg0: i32) -> (i32, i32, i32) {
    %c0_i32 = arith.constant 0 : i32
    %c0_i32_0 = arith.constant 0 : i32
    %c0_i32_1 = arith.constant 0 : i32
    return %arg0, %c0_i32, %c0_i32_0 : i32, i32, i32
  }
}

module attributes {stable_mosaic.version = 11 : i64} {
  func.func @_conv3x3_gn_relu_kernel(%arg0: i32, %arg1: memref<1x10x10x128xbf16, #tpu.memory_space<vmem>>, %arg2: memref<9x128x128xbf16, #tpu.memory_space<vmem>>, %arg3: memref<1x128xf32, #tpu.memory_space<vmem>>, %arg4: memref<1x128xf32, #tpu.memory_space<vmem>>, %arg5: memref<128x128xf32, #tpu.memory_space<vmem>>, %arg6: memref<128x128xf32, #tpu.memory_space<vmem>>, %arg7: memref<1x64x128xbf16, #tpu.memory_space<vmem>>) attributes {dimension_semantics = [#tpu.dimension_semantics<parallel>], iteration_bounds = array<i64: 2>, scalar_prefetch = 0 : i64, scratch_operands = 0 : i64, tpu.core_type = #tpu.core_type<tc>, window_params = [{transform_indices = @transform_0, window_bounds = array<i64: 1, 10, 10, 128>}, {pipeline_mode = #tpu.pipeline_mode<synchronous>, transform_indices = @transform_1, window_bounds = array<i64: 9, 128, 128>}, {pipeline_mode = #tpu.pipeline_mode<synchronous>, transform_indices = @transform_2, window_bounds = array<i64: 1, 128>}, {pipeline_mode = #tpu.pipeline_mode<synchronous>, transform_indices = @transform_3, window_bounds = array<i64: 1, 128>}, {pipeline_mode = #tpu.pipeline_mode<synchronous>, transform_indices = @transform_4, window_bounds = array<i64: 128, 128>}, {pipeline_mode = #tpu.pipeline_mode<synchronous>, transform_indices = @transform_5, window_bounds = array<i64: 128, 128>}, {transform_indices = @transform_6, window_bounds = array<i64: 1, 64, 128>}]} {
    %cst = arith.constant 0.000000e+00 : f32
    %0 = vector.broadcast %cst : f32 to vector<64x128xf32>
    %c0 = arith.constant 0 : index
    %c0_0 = arith.constant 0 : index
    %c0_1 = arith.constant 0 : index
    %c0_2 = arith.constant 0 : index
    %1 = vector.load %arg1[%c0, %c0_0, %c0_1, %c0_2] : memref<1x10x10x128xbf16, #tpu.memory_space<vmem>>, vector<1x8x8x128xbf16>
    %2 = vector.shape_cast %1 : vector<1x8x8x128xbf16> to vector<8x8x128xbf16>
    %3 = vector.shape_cast %2 : vector<8x8x128xbf16> to vector<64x128xbf16>
    %c0_3 = arith.constant 0 : index
    %c0_4 = arith.constant 0 : index
    %c0_5 = arith.constant 0 : index
    %4 = vector.load %arg2[%c0_3, %c0_4, %c0_5] : memref<9x128x128xbf16, #tpu.memory_space<vmem>>, vector<1x128x128xbf16>
    %5 = vector.shape_cast %4 : vector<1x128x128xbf16> to vector<128x128xbf16>
    %cst_6 = arith.constant dense<0.000000e+00> : vector<64x128xf32>
    %6 = tpu.matmul %3, %5, %cst_6 {dimension_numbers = #tpu.dot_dimension_numbers<[1], [0], [0], [1], [0, 0, 1, 1], [], []>} : vector<64x128xbf16>, vector<128x128xbf16>, vector<64x128xf32> -> vector<64x128xf32>
    %7 = arith.addf %0, %6 : vector<64x128xf32>
    %c0_7 = arith.constant 0 : index
    %c0_8 = arith.constant 0 : index
    %c1 = arith.constant 1 : index
    %c0_9 = arith.constant 0 : index
    %8 = vector.load %arg1[%c0_7, %c0_8, %c1, %c0_9] : memref<1x10x10x128xbf16, #tpu.memory_space<vmem>>, vector<1x8x8x128xbf16>
    %9 = vector.shape_cast %8 : vector<1x8x8x128xbf16> to vector<8x8x128xbf16>
    %10 = vector.shape_cast %9 : vector<8x8x128xbf16> to vector<64x128xbf16>
    %c1_10 = arith.constant 1 : index
    %c0_11 = arith.constant 0 : index
    %c0_12 = arith.constant 0 : index
    %11 = vector.load %arg2[%c1_10, %c0_11, %c0_12] : memref<9x128x128xbf16, #tpu.memory_space<vmem>>, vector<1x128x128xbf16>
    %12 = vector.shape_cast %11 : vector<1x128x128xbf16> to vector<128x128xbf16>
    %cst_13 = arith.constant dense<0.000000e+00> : vector<64x128xf32>
    %13 = tpu.matmul %10, %12, %cst_13 {dimension_numbers = #tpu.dot_dimension_numbers<[1], [0], [0], [1], [0, 0, 1, 1], [], []>} : vector<64x128xbf16>, vector<128x128xbf16>, vector<64x128xf32> -> vector<64x128xf32>
    %14 = arith.addf %7, %13 : vector<64x128xf32>
    %c0_14 = arith.constant 0 : index
    %c0_15 = arith.constant 0 : index
    %c2 = arith.constant 2 : index
    %c0_16 = arith.constant 0 : index
    %15 = vector.load %arg1[%c0_14, %c0_15, %c2, %c0_16] : memref<1x10x10x128xbf16, #tpu.memory_space<vmem>>, vector<1x8x8x128xbf16>
    %16 = vector.shape_cast %15 : vector<1x8x8x128xbf16> to vector<8x8x128xbf16>
    %17 = vector.shape_cast %16 : vector<8x8x128xbf16> to vector<64x128xbf16>
    %c2_17 = arith.constant 2 : index
    %c0_18 = arith.constant 0 : index
    %c0_19 = arith.constant 0 : index
    %18 = vector.load %arg2[%c2_17, %c0_18, %c0_19] : memref<9x128x128xbf16, #tpu.memory_space<vmem>>, vector<1x128x128xbf16>
    %19 = vector.shape_cast %18 : vector<1x128x128xbf16> to vector<128x128xbf16>
    %cst_20 = arith.constant dense<0.000000e+00> : vector<64x128xf32>
    %20 = tpu.matmul %17, %19, %cst_20 {dimension_numbers = #tpu.dot_dimension_numbers<[1], [0], [0], [1], [0, 0, 1, 1], [], []>} : vector<64x128xbf16>, vector<128x128xbf16>, vector<64x128xf32> -> vector<64x128xf32>
    %21 = arith.addf %14, %20 : vector<64x128xf32>
    %c0_21 = arith.constant 0 : index
    %c1_22 = arith.constant 1 : index
    %c0_23 = arith.constant 0 : index
    %c0_24 = arith.constant 0 : index
    %22 = vector.load %arg1[%c0_21, %c1_22, %c0_23, %c0_24] : memref<1x10x10x128xbf16, #tpu.memory_space<vmem>>, vector<1x8x8x128xbf16>
    %23 = vector.shape_cast %22 : vector<1x8x8x128xbf16> to vector<8x8x128xbf16>
    %24 = vector.shape_cast %23 : vector<8x8x128xbf16> to vector<64x128xbf16>
    %c3 = arith.constant 3 : index
    %c0_25 = arith.constant 0 : index
    %c0_26 = arith.constant 0 : index
    %25 = vector.load %arg2[%c3, %c0_25, %c0_26] : memref<9x128x128xbf16, #tpu.memory_space<vmem>>, vector<1x128x128xbf16>
    %26 = vector.shape_cast %25 : vector<1x128x128xbf16> to vector<128x128xbf16>
    %cst_27 = arith.constant dense<0.000000e+00> : vector<64x128xf32>
    %27 = tpu.matmul %24, %26, %cst_27 {dimension_numbers = #tpu.dot_dimension_numbers<[1], [0], [0], [1], [0, 0, 1, 1], [], []>} : vector<64x128xbf16>, vector<128x128xbf16>, vector<64x128xf32> -> vector<64x128xf32>
    %28 = arith.addf %21, %27 : vector<64x128xf32>
    %c0_28 = arith.constant 0 : index
    %c1_29 = arith.constant 1 : index
    %c1_30 = arith.constant 1 : index
    %c0_31 = arith.constant 0 : index
    %29 = vector.load %arg1[%c0_28, %c1_29, %c1_30, %c0_31] : memref<1x10x10x128xbf16, #tpu.memory_space<vmem>>, vector<1x8x8x128xbf16>
    %30 = vector.shape_cast %29 : vector<1x8x8x128xbf16> to vector<8x8x128xbf16>
    %31 = vector.shape_cast %30 : vector<8x8x128xbf16> to vector<64x128xbf16>
    %c4 = arith.constant 4 : index
    %c0_32 = arith.constant 0 : index
    %c0_33 = arith.constant 0 : index
    %32 = vector.load %arg2[%c4, %c0_32, %c0_33] : memref<9x128x128xbf16, #tpu.memory_space<vmem>>, vector<1x128x128xbf16>
    %33 = vector.shape_cast %32 : vector<1x128x128xbf16> to vector<128x128xbf16>
    %cst_34 = arith.constant dense<0.000000e+00> : vector<64x128xf32>
    %34 = tpu.matmul %31, %33, %cst_34 {dimension_numbers = #tpu.dot_dimension_numbers<[1], [0], [0], [1], [0, 0, 1, 1], [], []>} : vector<64x128xbf16>, vector<128x128xbf16>, vector<64x128xf32> -> vector<64x128xf32>
    %35 = arith.addf %28, %34 : vector<64x128xf32>
    %c0_35 = arith.constant 0 : index
    %c1_36 = arith.constant 1 : index
    %c2_37 = arith.constant 2 : index
    %c0_38 = arith.constant 0 : index
    %36 = vector.load %arg1[%c0_35, %c1_36, %c2_37, %c0_38] : memref<1x10x10x128xbf16, #tpu.memory_space<vmem>>, vector<1x8x8x128xbf16>
    %37 = vector.shape_cast %36 : vector<1x8x8x128xbf16> to vector<8x8x128xbf16>
    %38 = vector.shape_cast %37 : vector<8x8x128xbf16> to vector<64x128xbf16>
    %c5 = arith.constant 5 : index
    %c0_39 = arith.constant 0 : index
    %c0_40 = arith.constant 0 : index
    %39 = vector.load %arg2[%c5, %c0_39, %c0_40] : memref<9x128x128xbf16, #tpu.memory_space<vmem>>, vector<1x128x128xbf16>
    %40 = vector.shape_cast %39 : vector<1x128x128xbf16> to vector<128x128xbf16>
    %cst_41 = arith.constant dense<0.000000e+00> : vector<64x128xf32>
    %41 = tpu.matmul %38, %40, %cst_41 {dimension_numbers = #tpu.dot_dimension_numbers<[1], [0], [0], [1], [0, 0, 1, 1], [], []>} : vector<64x128xbf16>, vector<128x128xbf16>, vector<64x128xf32> -> vector<64x128xf32>
    %42 = arith.addf %35, %41 : vector<64x128xf32>
    %c0_42 = arith.constant 0 : index
    %c2_43 = arith.constant 2 : index
    %c0_44 = arith.constant 0 : index
    %c0_45 = arith.constant 0 : index
    %43 = vector.load %arg1[%c0_42, %c2_43, %c0_44, %c0_45] : memref<1x10x10x128xbf16, #tpu.memory_space<vmem>>, vector<1x8x8x128xbf16>
    %44 = vector.shape_cast %43 : vector<1x8x8x128xbf16> to vector<8x8x128xbf16>
    %45 = vector.shape_cast %44 : vector<8x8x128xbf16> to vector<64x128xbf16>
    %c6 = arith.constant 6 : index
    %c0_46 = arith.constant 0 : index
    %c0_47 = arith.constant 0 : index
    %46 = vector.load %arg2[%c6, %c0_46, %c0_47] : memref<9x128x128xbf16, #tpu.memory_space<vmem>>, vector<1x128x128xbf16>
    %47 = vector.shape_cast %46 : vector<1x128x128xbf16> to vector<128x128xbf16>
    %cst_48 = arith.constant dense<0.000000e+00> : vector<64x128xf32>
    %48 = tpu.matmul %45, %47, %cst_48 {dimension_numbers = #tpu.dot_dimension_numbers<[1], [0], [0], [1], [0, 0, 1, 1], [], []>} : vector<64x128xbf16>, vector<128x128xbf16>, vector<64x128xf32> -> vector<64x128xf32>
    %49 = arith.addf %42, %48 : vector<64x128xf32>
    %c0_49 = arith.constant 0 : index
    %c2_50 = arith.constant 2 : index
    %c1_51 = arith.constant 1 : index
    %c0_52 = arith.constant 0 : index
    %50 = vector.load %arg1[%c0_49, %c2_50, %c1_51, %c0_52] : memref<1x10x10x128xbf16, #tpu.memory_space<vmem>>, vector<1x8x8x128xbf16>
    %51 = vector.shape_cast %50 : vector<1x8x8x128xbf16> to vector<8x8x128xbf16>
    %52 = vector.shape_cast %51 : vector<8x8x128xbf16> to vector<64x128xbf16>
    %c7 = arith.constant 7 : index
    %c0_53 = arith.constant 0 : index
    %c0_54 = arith.constant 0 : index
    %53 = vector.load %arg2[%c7, %c0_53, %c0_54] : memref<9x128x128xbf16, #tpu.memory_space<vmem>>, vector<1x128x128xbf16>
    %54 = vector.shape_cast %53 : vector<1x128x128xbf16> to vector<128x128xbf16>
    %cst_55 = arith.constant dense<0.000000e+00> : vector<64x128xf32>
    %55 = tpu.matmul %52, %54, %cst_55 {dimension_numbers = #tpu.dot_dimension_numbers<[1], [0], [0], [1], [0, 0, 1, 1], [], []>} : vector<64x128xbf16>, vector<128x128xbf16>, vector<64x128xf32> -> vector<64x128xf32>
    %56 = arith.addf %49, %55 : vector<64x128xf32>
    %c0_56 = arith.constant 0 : index
    %c2_57 = arith.constant 2 : index
    %c2_58 = arith.constant 2 : index
    %c0_59 = arith.constant 0 : index
    %57 = vector.load %arg1[%c0_56, %c2_57, %c2_58, %c0_59] : memref<1x10x10x128xbf16, #tpu.memory_space<vmem>>, vector<1x8x8x128xbf16>
    %58 = vector.shape_cast %57 : vector<1x8x8x128xbf16> to vector<8x8x128xbf16>
    %59 = vector.shape_cast %58 : vector<8x8x128xbf16> to vector<64x128xbf16>
    %c8 = arith.constant 8 : index
    %c0_60 = arith.constant 0 : index
    %c0_61 = arith.constant 0 : index
    %60 = vector.load %arg2[%c8, %c0_60, %c0_61] : memref<9x128x128xbf16, #tpu.memory_space<vmem>>, vector<1x128x128xbf16>
    %61 = vector.shape_cast %60 : vector<1x128x128xbf16> to vector<128x128xbf16>
    %cst_62 = arith.constant dense<0.000000e+00> : vector<64x128xf32>
    %62 = tpu.matmul %59, %61, %cst_62 {dimension_numbers = #tpu.dot_dimension_numbers<[1], [0], [0], [1], [0, 0, 1, 1], [], []>} : vector<64x128xbf16>, vector<128x128xbf16>, vector<64x128xf32> -> vector<64x128xf32>
    %63 = arith.addf %56, %62 : vector<64x128xf32>
    %c0_63 = arith.constant 0 : index
    %c0_64 = arith.constant 0 : index
    %64 = vector.load %arg3[%c0_63, %c0_64] : memref<1x128xf32, #tpu.memory_space<vmem>>, vector<1x128xf32>
    %c0_65 = arith.constant 0 : index
    %c0_66 = arith.constant 0 : index
    %65 = vector.load %arg4[%c0_65, %c0_66] : memref<1x128xf32, #tpu.memory_space<vmem>>, vector<1x128xf32>
    %c0_67 = arith.constant 0 : index
    %c0_68 = arith.constant 0 : index
    %66 = vector.load %arg5[%c0_67, %c0_68] : memref<128x128xf32, #tpu.memory_space<vmem>>, vector<128x128xf32>
    %c0_69 = arith.constant 0 : index
    %c0_70 = arith.constant 0 : index
    %67 = vector.load %arg6[%c0_69, %c0_70] : memref<128x128xf32, #tpu.memory_space<vmem>>, vector<128x128xf32>
    %cst_71 = arith.constant dense<0.000000e+00> : vector<128xf32>
    %68 = vector.multi_reduction <add>, %63, %cst_71 [0] : vector<64x128xf32> to vector<128xf32>
    %69 = vector.shape_cast %68 : vector<128xf32> to vector<1x128xf32>
    %70 = arith.mulf %63, %63 : vector<64x128xf32>
    %cst_72 = arith.constant dense<0.000000e+00> : vector<128xf32>
    %71 = vector.multi_reduction <add>, %70, %cst_72 [0] : vector<64x128xf32> to vector<128xf32>
    %72 = vector.shape_cast %71 : vector<128xf32> to vector<1x128xf32>
    %cst_73 = arith.constant dense<0.000000e+00> : vector<1x128xf32>
    %73 = tpu.matmul %69, %66, %cst_73 {dimension_numbers = #tpu.dot_dimension_numbers<[1], [0], [0], [1], [0, 0, 1, 1], [], []>} : vector<1x128xf32>, vector<128x128xf32>, vector<1x128xf32> -> vector<1x128xf32>
    %cst_74 = arith.constant 1.562500e-02 : f32
    %74 = vector.broadcast %cst_74 : f32 to vector<1x128xf32>
    %75 = arith.mulf %73, %74 : vector<1x128xf32>
    %cst_75 = arith.constant dense<0.000000e+00> : vector<1x128xf32>
    %76 = tpu.matmul %72, %66, %cst_75 {dimension_numbers = #tpu.dot_dimension_numbers<[1], [0], [0], [1], [0, 0, 1, 1], [], []>} : vector<1x128xf32>, vector<128x128xf32>, vector<1x128xf32> -> vector<1x128xf32>
    %cst_76 = arith.constant 1.562500e-02 : f32
    %77 = vector.broadcast %cst_76 : f32 to vector<1x128xf32>
    %78 = arith.mulf %76, %77 : vector<1x128xf32>
    %79 = arith.mulf %75, %75 : vector<1x128xf32>
    %80 = arith.subf %78, %79 : vector<1x128xf32>
    %cst_77 = arith.constant 0.000000e+00 : f32
    %81 = vector.broadcast %cst_77 : f32 to vector<1x128xf32>
    %82 = arith.maximumf %80, %81 : vector<1x128xf32>
    %cst_78 = arith.constant 9.99999974E-6 : f32
    %83 = vector.broadcast %cst_78 : f32 to vector<1x128xf32>
    %84 = arith.addf %82, %83 : vector<1x128xf32>
    %85 = math.rsqrt %84 : vector<1x128xf32>
    %cst_79 = arith.constant dense<0.000000e+00> : vector<1x128xf32>
    %86 = tpu.matmul %75, %67, %cst_79 {dimension_numbers = #tpu.dot_dimension_numbers<[1], [0], [0], [1], [0, 0, 1, 1], [], []>} : vector<1x128xf32>, vector<128x128xf32>, vector<1x128xf32> -> vector<1x128xf32>
    %cst_80 = arith.constant dense<0.000000e+00> : vector<1x128xf32>
    %87 = tpu.matmul %85, %67, %cst_80 {dimension_numbers = #tpu.dot_dimension_numbers<[1], [0], [0], [1], [0, 0, 1, 1], [], []>} : vector<1x128xf32>, vector<128x128xf32>, vector<1x128xf32> -> vector<1x128xf32>
    %88 = vector.broadcast %86 : vector<1x128xf32> to vector<64x128xf32>
    %89 = arith.subf %63, %88 : vector<64x128xf32>
    %90 = arith.mulf %87, %64 : vector<1x128xf32>
    %91 = vector.broadcast %90 : vector<1x128xf32> to vector<64x128xf32>
    %92 = arith.mulf %89, %91 : vector<64x128xf32>
    %93 = vector.broadcast %65 : vector<1x128xf32> to vector<64x128xf32>
    %94 = arith.addf %92, %93 : vector<64x128xf32>
    %cst_81 = arith.constant 0.000000e+00 : f32
    %95 = vector.broadcast %cst_81 : f32 to vector<64x128xf32>
    %96 = arith.maximumf %94, %95 : vector<64x128xf32>
    %97 = arith.truncf %96 : vector<64x128xf32> to vector<64x128xbf16>
    %c0_82 = arith.constant 0 : index
    %c0_83 = arith.constant 0 : index
    %c0_84 = arith.constant 0 : index
    %98 = vector.load %arg7[%c0_82, %c0_83, %c0_84] : memref<1x64x128xbf16, #tpu.memory_space<vmem>>, vector<1x64x128xbf16>
    %99 = vector.shape_cast %98 : vector<1x64x128xbf16> to vector<64x128xbf16>
    %100 = vector.shape_cast %97 : vector<64x128xbf16> to vector<1x64x128xbf16>
    tpu.vector_store %arg7[%c0_82, %c0_83, %c0_84], %100 {strides = array<i32>} : memref<1x64x128xbf16, #tpu.memory_space<vmem>>, vector<1x64x128xbf16>,
    return
  }
  func.func @transform_0(%arg0: i32) -> (i32, i32, i32, i32) {
    %c0_i32 = arith.constant 0 : i32
    %c0_i32_0 = arith.constant 0 : i32
    %c0_i32_1 = arith.constant 0 : i32
    %c0_i32_2 = arith.constant 0 : i32
    return %arg0, %c0_i32, %c0_i32_0, %c0_i32_1 : i32, i32, i32, i32
  }
  func.func @transform_1(%arg0: i32) -> (i32, i32, i32) {
    %c0_i32 = arith.constant 0 : i32
    %c0_i32_0 = arith.constant 0 : i32
    %c0_i32_1 = arith.constant 0 : i32
    %c0_i32_2 = arith.constant 0 : i32
    return %c0_i32, %c0_i32_0, %c0_i32_1 : i32, i32, i32
  }
  func.func @transform_2(%arg0: i32) -> (i32, i32) {
    %c0_i32 = arith.constant 0 : i32
    %c0_i32_0 = arith.constant 0 : i32
    %c0_i32_1 = arith.constant 0 : i32
    return %c0_i32, %c0_i32_0 : i32, i32
  }
  func.func @transform_3(%arg0: i32) -> (i32, i32) {
    %c0_i32 = arith.constant 0 : i32
    %c0_i32_0 = arith.constant 0 : i32
    %c0_i32_1 = arith.constant 0 : i32
    return %c0_i32, %c0_i32_0 : i32, i32
  }
  func.func @transform_4(%arg0: i32) -> (i32, i32) {
    %c0_i32 = arith.constant 0 : i32
    %c0_i32_0 = arith.constant 0 : i32
    %c0_i32_1 = arith.constant 0 : i32
    return %c0_i32, %c0_i32_0 : i32, i32
  }
  func.func @transform_5(%arg0: i32) -> (i32, i32) {
    %c0_i32 = arith.constant 0 : i32
    %c0_i32_0 = arith.constant 0 : i32
    %c0_i32_1 = arith.constant 0 : i32
    return %c0_i32, %c0_i32_0 : i32, i32
  }
  func.func @transform_6(%arg0: i32) -> (i32, i32, i32) {
    %c0_i32 = arith.constant 0 : i32
    %c0_i32_0 = arith.constant 0 : i32
    %c0_i32_1 = arith.constant 0 : i32
    return %arg0, %c0_i32, %c0_i32_0 : i32, i32, i32
  }
}

</mosaic_0001>

<llo_original>
// kernel: _lambda_.7
$region0: #{_lambda_.7}
  #allocation0 [shape = 'u32[]', space=smem, size = 0x4, offset = 0x4, fixed_abs, tag = 'smem constant byte address 0x4 - core index']
  #allocation1 [shape = 'u32[144,128]{1,0:T(1,128)}', space=vmem, size = 0x12000, scoped, tag = 'internal scratch']
  %s0 = inlined_call_operand.vmem [shape: bf16[2,64,128], index: 0, kind: input, shape index: {}]
  %s1 = inlined_call_operand.vmem [shape: bf16[128,128], index: 1, kind: input, shape index: {}]
  %s2 = inlined_call_operand.vmem [shape: f32[1,128], index: 2, kind: input, shape index: {}]
  %s3 = inlined_call_operand.vmem [shape: f32[1,128], index: 3, kind: input, shape index: {}]
  %s4 = inlined_call_operand.vmem [shape: f32[128,128], index: 4, kind: input, shape index: {}]
  %s5 = inlined_call_operand.vmem [shape: f32[128,128], index: 5, kind: input, shape index: {}]
  %s6 = inlined_call_operand.vmem [shape: bf16[2,64,128], index: 6, kind: output, shape index: {}]
  %s7 = sld [smem:[#allocation0]]
  $region57: #{_lambda_.7} parent=0
    _
  %s9 = ssub.s32 1, %s7
  %s10 = scalar_select 0, %s9, %s7
  loop: start=0, step=1, limit=4
  $region2: #{_lambda_.7} parent=0 // loop_pre_header
    _
  $region3: #{_lambda_.7} parent=0 // loop_header
    %s12 = sphi 0, %s16
    %p13 = scmp.ge.s32.totalorder %s12, 4
    %s22 = sphi 0, %s24
    %s25 = sphi 0, %s22
    %s26 = sphi 0, %s25
    %s42 = sphi 0, %s26
    %s46 = sphi 0, %s46
    %s48 = sphi 0, %s46
    %s49 = sphi 0, %s48
    %s63 = sphi 0, %s49
    %s67 = sphi 0, %s67
    %s69 = sphi 0, %s67
    %s70 = sphi 0, %s69
    %s84 = sphi 0, %s70
    %s88 = sphi 0, %s88
    %s90 = sphi 0, %s88
    %s91 = sphi 0, %s90
    %s105 = sphi 0, %s91
    %s109 = sphi 0, %s109
    %s111 = sphi 0, %s109
    %s112 = sphi 0, %s111
    %s126 = sphi 0, %s112
    %s130 = sphi 0, %s130
    %s132 = sphi 0, %s130
    %s133 = sphi 0, %s132
    %s147 = sphi 0, %s133
    %s153 = sphi 0, %s155
    %s156 = sphi 0, %s153
    %s157 = sphi 0, %s156
    %s173 = sphi 0, %s157
  $region4: #{_lambda_.7} parent=0 // loop_header_branch
    %15 = sbr.rel (%p13) target = $region8
  $region5: #{_lambda_.7} parent=0 // loop_body
    %s17 = ssub.s32 %s12, 1
    %s18 = ssub.s32 %s12, 2
    %s19 = sadd.s32 %s12, 1
    %s20 = ssub.s32 %s12, %s19
    %p21 = scmp.eq.s32.totalorder %s20, 0
    %s23 = sadd.s32 %s22, 1
    %s24 = scalar_select %p21, %s22, %s23
    %p27 = pneg %p21
    %p28 = scmp.eq.s32.totalorder %s12, 1
    %p29 = por %p27, %p28
    %p30 = scmp.ne.s32.totalorder %s22, %s25
    %p31 = scmp.eq.s32.totalorder %s12, 0
    %p32 = por %p30, %p31
    %p33 = scmp.ne.s32.totalorder %s22, %s25
    %p34 = scmp.eq.s32.totalorder %s17, 1
    %p35 = por %p33, %p34
    %p36 = scmp.ne.s32.totalorder %s25, %s26
    %p37 = scmp.eq.s32.totalorder %s17, 0
    %p38 = por %p36, %p37
    %p39 = scmp.ne.s32.totalorder %s25, %s26
    %p40 = scmp.eq.s32.totalorder %s18, 1
    %p41 = por %p39, %p40
    %p43 = scmp.ne.s32.totalorder %s26, %s42
    %p44 = scmp.eq.s32.totalorder %s18, 0
    %p45 = por %p43, %p44
    %s47 = sadd.s32 %s46, 1
    %p50 = scmp.eq.s32.totalorder %s12, 1
    %p51 = scmp.ne.s32.totalorder %s46, %s48
    %p52 = scmp.eq.s32.totalorder %s12, 0
    %p53 = por %p51, %p52
    %p54 = scmp.ne.s32.totalorder %s46, %s48
    %p55 = scmp.eq.s32.totalorder %s17, 1
    %p56 = por %p54, %p55
    %p57 = scmp.ne.s32.totalorder %s48, %s49
    %p58 = scmp.eq.s32.totalorder %s17, 0
    %p59 = por %p57, %p58
    %p60 = scmp.ne.s32.totalorder %s48, %s49
    %p61 = scmp.eq.s32.totalorder %s18, 1
    %p62 = por %p60, %p61
    %p64 = scmp.ne.s32.totalorder %s49, %s63
    %p65 = scmp.eq.s32.totalorder %s18, 0
    %p66 = por %p64, %p65
    %s68 = sadd.s32 %s67, 1
    %p71 = scmp.eq.s32.totalorder %s12, 1
    %p72 = scmp.ne.s32.totalorder %s67, %s69
    %p73 = scmp.eq.s32.totalorder %s12, 0
    %p74 = por %p72, %p73
    %p75 = scmp.ne.s32.totalorder %s67, %s69
    %p76 = scmp.eq.s32.totalorder %s17, 1
    %p77 = por %p75, %p76
    %p78 = scmp.ne.s32.totalorder %s69, %s70
    %p79 = scmp.eq.s32.totalorder %s17, 0
    %p80 = por %p78, %p79
    %p81 = scmp.ne.s32.totalorder %s69, %s70
    %p82 = scmp.eq.s32.totalorder %s18, 1
    %p83 = por %p81, %p82
    %p85 = scmp.ne.s32.totalorder %s70, %s84
    %p86 = scmp.eq.s32.totalorder %s18, 0
    %p87 = por %p85, %p86
    %s89 = sadd.s32 %s88, 1
    %p92 = scmp.eq.s32.totalorder %s12, 1
    %p93 = scmp.ne.s32.totalorder %s88, %s90
    %p94 = scmp.eq.s32.totalorder %s12, 0
    %p95 = por %p93, %p94
    %p96 = scmp.ne.s32.totalorder %s88, %s90
    %p97 = scmp.eq.s32.totalorder %s17, 1
    %p98 = por %p96, %p97
    %p99 = scmp.ne.s32.totalorder %s90, %s91
    %p100 = scmp.eq.s32.totalorder %s17, 0
    %p101 = por %p99, %p100
    %p102 = scmp.ne.s32.totalorder %s90, %s91
    %p103 = scmp.eq.s32.totalorder %s18, 1
    %p104 = por %p102, %p103
    %p106 = scmp.ne.s32.totalorder %s91, %s105
    %p107 = scmp.eq.s32.totalorder %s18, 0
    %p108 = por %p106, %p107
    %s110 = sadd.s32 %s109, 1
    %p113 = scmp.eq.s32.totalorder %s12, 1
    %p114 = scmp.ne.s32.totalorder %s109, %s111
    %p115 = scmp.eq.s32.totalorder %s12, 0
    %p116 = por %p114, %p115
    %p117 = scmp.ne.s32.totalorder %s109, %s111
    %p118 = scmp.eq.s32.totalorder %s17, 1
    %p119 = por %p117, %p118
    %p120 = scmp.ne.s32.totalorder %s111, %s112
    %p121 = scmp.eq.s32.totalorder %s17, 0
    %p122 = por %p120, %p121
    %p123 = scmp.ne.s32.totalorder %s111, %s112
    %p124 = scmp.eq.s32.totalorder %s18, 1
    %p125 = por %p123, %p124
    %p127 = scmp.ne.s32.totalorder %s112, %s126
    %p128 = scmp.eq.s32.totalorder %s18, 0
    %p129 = por %p127, %p128
    %s131 = sadd.s32 %s130, 1
    %p134 = scmp.eq.s32.totalorder %s12, 1
    %p135 = scmp.ne.s32.totalorder %s130, %s132
    %p136 = scmp.eq.s32.totalorder %s12, 0
    %p137 = por %p135, %p136
    %p138 = scmp.ne.s32.totalorder %s130, %s132
    %p139 = scmp.eq.s32.totalorder %s17, 1
    %p140 = por %p138, %p139
    %p141 = scmp.ne.s32.totalorder %s132, %s133
    %p142 = scmp.eq.s32.totalorder %s17, 0
    %p143 = por %p141, %p142
    %p144 = scmp.ne.s32.totalorder %s132, %s133
    %p145 = scmp.eq.s32.totalorder %s18, 1
    %p146 = por %p144, %p145
    %p148 = scmp.ne.s32.totalorder %s133, %s147
    %p149 = scmp.eq.s32.totalorder %s18, 0
    %p150 = por %p148, %p149
    %s151 = ssub.s32 %s12, %s19
    %p152 = scmp.eq.s32.totalorder %s151, 0
    %s154 = sadd.s32 %s153, 1
    %s155 = scalar_select %p152, %s153, %s154
    %p158 = pneg %p152
    %p159 = scmp.eq.s32.totalorder %s12, 1
    %p160 = por %p158, %p159
    %p161 = scmp.ne.s32.totalorder %s153, %s156
    %p162 = scmp.eq.s32.totalorder %s12, 0
    %p163 = por %p161, %p162
    %p164 = scmp.ne.s32.totalorder %s153, %s156
    %p165 = scmp.eq.s32.totalorder %s17, 1
    %p166 = por %p164, %p165
    %p167 = scmp.ne.s32.totalorder %s156, %s157
    %p168 = scmp.eq.s32.totalorder %s17, 0
    %p169 = por %p167, %p168
    %p170 = scmp.ne.s32.totalorder %s156, %s157
    %p171 = scmp.eq.s32.totalorder %s18, 1
    %p172 = por %p170, %p171
    %p174 = scmp.ne.s32.totalorder %s157, %s173
    %p175 = scmp.eq.s32.totalorder %s18, 0
    %p176 = por %p174, %p175
    %p177 = scmp.le.s32.totalorder 1, %s12
    %p178 = scmp.lt.s32.totalorder %s12, 3
    %p179 = pnand %p177, %p178
    %p180 = pneg %p179
    // Predicated region
    $region9: #{_lambda_.7} parent=5 // pred_check
      _
    $region10: #{_lambda_.7} parent=5 // pred_check_branch
      %182 = sbr.rel (%p179) target = $region12
    $region11: #{_lambda_.7} parent=5 // pred_region
      %s183 = ssub.s32 %s12, 1
      // Predicated region
      $region13: #{_lambda_.7} parent=11 // pred_check
        %p184 = pneg %p59
      $region14: #{_lambda_.7} parent=11 // pred_check_branch
        %186 = sbr.rel (%p184) target = $region16
      $region15: #{_lambda_.7} parent=11 // pred_region
        _
      $region16: #{_lambda_.7} parent=11 // pred_fallthru
        _
      // Predicated region
      $region17: #{_lambda_.7} parent=11 // pred_check
        %p187 = pneg %p80
      $region18: #{_lambda_.7} parent=11 // pred_check_branch
        %189 = sbr.rel (%p187) target = $region20
      $region19: #{_lambda_.7} parent=11 // pred_region
        _
      $region20: #{_lambda_.7} parent=11 // pred_fallthru
        _
      // Predicated region
      $region21: #{_lambda_.7} parent=11 // pred_check
        %p190 = pneg %p101
      $region22: #{_lambda_.7} parent=11 // pred_check_branch
        %192 = sbr.rel (%p190) target = $region24
      $region23: #{_lambda_.7} parent=11 // pred_region
        _
      $region24: #{_lambda_.7} parent=11 // pred_fallthru
        _
      // Predicated region
      $region25: #{_lambda_.7} parent=11 // pred_check
        %p193 = pneg %p122
      $region26: #{_lambda_.7} parent=11 // pred_check_branch
        %195 = sbr.rel (%p193) target = $region28
      $region27: #{_lambda_.7} parent=11 // pred_region
        _
      $region28: #{_lambda_.7} parent=11 // pred_fallthru
        _
      // Predicated region
      $region29: #{_lambda_.7} parent=11 // pred_check
        %p196 = pneg %p143
      $region30: #{_lambda_.7} parent=11 // pred_check_branch
        %198 = sbr.rel (%p196) target = $region32
      $region31: #{_lambda_.7} parent=11 // pred_region
        _
      $region32: #{_lambda_.7} parent=11 // pred_fallthru
        _
    $region12: #{_lambda_.7} parent=5 // pred_fallthru
      _
    %p199 = scmp.lt.s32.totalorder %s12, 2
    // Predicated region
    $region33: #{_lambda_.7} parent=5 // pred_check
      %p200 = pneg %p199
    $region34: #{_lambda_.7} parent=5 // pred_check_branch
      %202 = sbr.rel (%p200) target = $region36
    $region35: #{_lambda_.7} parent=5 // pred_region
      // Predicated region
      $region37: #{_lambda_.7} parent=35 // pred_check
        %p203 = pneg %p32
      $region38: #{_lambda_.7} parent=35 // pred_check_branch
        %205 = sbr.rel (%p203) target = $region40
      $region39: #{_lambda_.7} parent=35 // pred_region
        %p206 = scmp.lt.s32.totalorder %s12, 1
        %s207 = scalar_select %p206, %s12, 1
        %s208 = smul.addr %s207, 8
        %s209 = smul.addr %s208, 4
        %s210 = scalar_lea.vmem %s0, %s209
      $region40: #{_lambda_.7} parent=35 // pred_fallthru
        _
    $region36: #{_lambda_.7} parent=5 // pred_fallthru
      _
    %p211 = scmp.le.s32.totalorder 1, %s12
    %p212 = scmp.lt.s32.totalorder %s12, 3
    %p213 = pnand %p211, %p212
    %p214 = pneg %p213
    // Predicated region
    $region41: #{_lambda_.7} parent=5 // pred_check
      _
    $region42: #{_lambda_.7} parent=5 // pred_check_branch
      %216 = sbr.rel (%p213) target = $region44
    $region43: #{_lambda_.7} parent=5 // pred_region
      %s217 = ssub.s32 %s12, 1
      %p218 = scmp.lt.s32.totalorder %s17, 1
      %s219 = scalar_select %p218, %s17, 1
      %s220 = smul.addr %s219, 8
      %s221 = smul.addr %s220, 4
      %s222 = scalar_lea.vmem %s0, %s221
      %p223 = pneg %p38
      %p224 = pneg %p35
      %p225 = pneg %p59
      %p226 = pneg %p56
      %p227 = pneg %p80
      %p228 = pneg %p77
      %p229 = pneg %p101
      %p230 = pneg %p98
      %p231 = pneg %p122
      %p232 = pneg %p119
      %p233 = pneg %p143
      %p234 = pneg %p140
      %p235 = pneg %p169
      %p236 = pneg %p166
      %p237 = scmp.lt.s32.totalorder %s17, 1
      %s238 = scalar_select %p237, %s17, 1
      %s239 = smul.addr %s238, 8
      %s240 = smul.addr %s239, 4
      %s241 = scalar_lea.vmem %s6, %s240
      %p242 = scmp.lt.s32.totalorder %s17, 1
      %s243 = scalar_select %p242, %s17, 1
      %s244 = smul.addr %s243, 8
      %s245 = smul.addr %s244, 4
      %s246 = scalar_lea.vmem %s0, %s245
      %p247 = scmp.lt.s32.totalorder %s17, 1
      %s248 = scalar_select %p247, %s17, 1
      %s249 = smul.addr %s248, 8
      %s250 = smul.addr %s249, 4
      %s251 = scalar_lea.vmem %s6, %s250
      %v253 = vld [vmem:[%s246] sm:$0xf]
      %v254 = vld [vmem:[%s246 + $0x4] sm:$0xf]
      %v255 = vld [vmem:[%s246 + $0x8] sm:$0xf]
      %v256 = vld [vmem:[%s246 + $0xc] sm:$0xf]
      %v257 = vld [vmem:[%s246 + $0x10] sm:$0xf]
      %v258 = vld [vmem:[%s246 + $0x14] sm:$0xf]
      %v259 = vld [vmem:[%s246 + $0x18] sm:$0xf]
      %v260 = vld [vmem:[%s246 + $0x1c] sm:$0xf]
      %v261 = vld [vmem:[%s1] sm:$0xf]
      %v262 = vld [vmem:[%s1 + $0x4] sm:$0xf]
      %v263 = vld [vmem:[%s1 + $0x8] sm:$0xf]
      %v264 = vld [vmem:[%s1 + $0xc] sm:$0xf]
      %v265 = vld [vmem:[%s1 + $0x10] sm:$0xf]
      %v266 = vld [vmem:[%s1 + $0x14] sm:$0xf]
      %v267 = vld [vmem:[%s1 + $0x18] sm:$0xf]
      %v268 = vld [vmem:[%s1 + $0x1c] sm:$0xf]
      %v269 = vld [vmem:[%s1 + $0x20] sm:$0xf]
      %v270 = vld [vmem:[%s1 + $0x24] sm:$0xf]
      %v271 = vld [vmem:[%s1 + $0x28] sm:$0xf]
      %v272 = vld [vmem:[%s1 + $0x2c] sm:$0xf]
      %v273 = vld [vmem:[%s1 + $0x30] sm:$0xf]
      %v274 = vld [vmem:[%s1 + $0x34] sm:$0xf]
      %v275 = vld [vmem:[%s1 + $0x38] sm:$0xf]
      %v276 = vld [vmem:[%s1 + $0x3c] sm:$0xf]
      %v285 = vunpack.c.l.b16 %v253
      %v286 = vunpack.c.l.b16 %v254
      %v287 = vunpack.c.l.b16 %v255
      %v288 = vunpack.c.l.b16 %v256
      %v289 = vunpack.c.l.b16 %v257
      %v290 = vunpack.c.l.b16 %v258
      %v291 = vunpack.c.l.b16 %v259
      %v292 = vunpack.c.l.b16 %v260
      %v293 = vpack.c.b16 %v286, %v285
      %v294 = vpack.c.b16 %v288, %v287
      %v295 = vpack.c.b16 %v290, %v289
      %v296 = vpack.c.b16 %v292, %v291
      %v317 = vunpack.c.l.b16 %v261
      %v318 = vunpack.c.l.b16 %v262
      %v319 = vunpack.c.l.b16 %v263
      %v320 = vunpack.c.l.b16 %v264
      %v321 = vunpack.c.l.b16 %v265
      %v322 = vunpack.c.l.b16 %v266
      %v323 = vunpack.c.l.b16 %v267
      %v324 = vunpack.c.l.b16 %v268
      %v325 = vunpack.c.l.b16 %v269
      %v326 = vunpack.c.l.b16 %v270
      %v327 = vunpack.c.l.b16 %v271
      %v328 = vunpack.c.l.b16 %v272
      %v329 = vunpack.c.l.b16 %v273
      %v330 = vunpack.c.l.b16 %v274
      %v331 = vunpack.c.l.b16 %v275
      %v332 = vunpack.c.l.b16 %v276
      %v333 = vpack.c.b16 %v318, %v317
      %v334 = vpack.c.b16 %v320, %v319
      %v335 = vpack.c.b16 %v322, %v321
      %v336 = vpack.c.b16 %v324, %v323
      %v337 = vpack.c.b16 %v326, %v325
      %v338 = vpack.c.b16 %v328, %v327
      %v339 = vpack.c.b16 %v330, %v329
      %v340 = vpack.c.b16 %v332, %v331
      %349 = vmatprep.subr.bf16.mxu0 0
      %350 = vmatpush1.bf16.msra.mxu0 %v340
      %351 = vmatprep.subr.bf16.mxu0 0
      %352 = vmatpush1.bf16.msra.mxu0 %v339
      %353 = vmatprep.subr.bf16.mxu0 0
      %354 = vmatpush1.bf16.msra.mxu0 %v338
      %355 = vmatprep.subr.bf16.mxu0 0
      %356 = vmatpush1.bf16.msra.mxu0 %v337
      %357 = vmatprep.subr.bf16.mxu0 0
      %358 = vmatpush1.bf16.msra.mxu0 %v336
      %359 = vmatprep.subr.bf16.mxu0 0
      %360 = vmatpush1.bf16.msra.mxu0 %v335
      %361 = vmatprep.subr.bf16.mxu0 0
      %362 = vmatpush1.bf16.msra.mxu0 %v334
      %363 = vmatprep.subr.bf16.mxu0 0
      %364 = vmatpush1.bf16.msra.mxu0 %v333
      %365 = vmatprep.subr.bf16.mxu0 0
      %366 = vmatpush2.bf16.msra.mxu0 0
      %367 = vmatprep.subr.bf16.mxu0 0
      %368 = vmatpush2.bf16.msra.mxu0 0
      %369 = vmatprep.subr.bf16.mxu0 0
      %370 = vmatpush2.bf16.msra.mxu0 0
      %371 = vmatprep.subr.bf16.mxu0 0
      %372 = vmatpush2.bf16.msra.mxu0 0
      %373 = vmatprep.subr.bf16.mxu0 0
      %374 = vmatpush2.bf16.msra.mxu0 0
      %375 = vmatprep.subr.bf16.mxu0 0
      %376 = vmatpush2.bf16.msra.mxu0 0
      %377 = vmatprep.subr.bf16.mxu0 0
      %378 = vmatpush2.bf16.msra.mxu0 0
      %379 = vmatprep.subr.bf16.mxu0 0
      %380 = vmatpush2.bf16.msra.mxu0 0
      %381 = vmatprep.mubr.bf16.mxu0 0
      %382 = vmatmul.mubr.bf16.gmra.mxu0 %v293
      %v383 = vpop.f32.mrf.mxu0
      %v384 = vadd.f32 0.0, %v383
      %v385 = vpop.f32.mrf.mxu0
      %v386 = vpop.f32.mrf.mxu0
      %v387 = vadd.f32 0.0, %v386
      %v388 = vpop.f32.mrf.mxu0
      %389 = vmatprep.mubr.bf16.mxu0 0
      %390 = vmatmul.mubr.bf16.gmra.mxu0 %v294
      %v391 = vpop.f32.mrf.mxu0
      %v392 = vadd.f32 0.0, %v391
      %v393 = vpop.f32.mrf.mxu0
      %v394 = vpop.f32.mrf.mxu0
      %v395 = vadd.f32 0.0, %v394
      %v396 = vpop.f32.mrf.mxu0
      %397 = vmatprep.mubr.bf16.mxu0 0
      %398 = vmatmul.mubr.bf16.gmra.mxu0 %v295
      %v399 = vpop.f32.mrf.mxu0
      %v400 = vadd.f32 0.0, %v399
      %v401 = vpop.f32.mrf.mxu0
      %v402 = vpop.f32.mrf.mxu0
      %v403 = vadd.f32 0.0, %v402
      %v404 = vpop.f32.mrf.mxu0
      %405 = vmatprep.mubr.bf16.mxu0 0
      %406 = vmatmul.mubr.bf16.gmra.mxu0 %v296
      %v407 = vpop.f32.mrf.mxu0
      %v408 = vadd.f32 0.0, %v407
      %v409 = vpop.f32.mrf.mxu0
      %v410 = vpop.f32.mrf.mxu0
      %v411 = vadd.f32 0.0, %v410
      %v412 = vpop.f32.mrf.mxu0
      %413 = vdwg.mxu0
      %v414 = vld [vmem:[%s2] sm:$0x1]
      %v415 = vld [vmem:[%s3] sm:$0x1]
      %v416 = vld [vmem:[%s4] sm:$0xff]
      %v417 = vld [vmem:[%s4 + $0x8] sm:$0xff]
      %v418 = vld [vmem:[%s4 + $0x10] sm:$0xff]
      %v419 = vld [vmem:[%s4 + $0x18] sm:$0xff]
      %v420 = vld [vmem:[%s4 + $0x20] sm:$0xff]
      %v421 = vld [vmem:[%s4 + $0x28] sm:$0xff]
      %v422 = vld [vmem:[%s4 + $0x30] sm:$0xff]
      %v423 = vld [vmem:[%s4 + $0x38] sm:$0xff]
      %v424 = vld [vmem:[%s4 + $0x40] sm:$0xff]
      %v425 = vld [vmem:[%s4 + $0x48] sm:$0xff]
      %v426 = vld [vmem:[%s4 + $0x50] sm:$0xff]
      %v427 = vld [vmem:[%s4 + $0x58] sm:$0xff]
      %v428 = vld [vmem:[%s4 + $0x60] sm:$0xff]
      %v429 = vld [vmem:[%s4 + $0x68] sm:$0xff]
      %v430 = vld [vmem:[%s4 + $0x70] sm:$0xff]
      %v431 = vld [vmem:[%s4 + $0x78] sm:$0xff]
      %v432 = vld [vmem:[%s5] sm:$0xff]
      %v433 = vld [vmem:[%s5 + $0x8] sm:$0xff]
      %v434 = vld [vmem:[%s5 + $0x10] sm:$0xff]
      %v435 = vld [vmem:[%s5 + $0x18] sm:$0xff]
      %v436 = vld [vmem:[%s5 + $0x20] sm:$0xff]
      %v437 = vld [vmem:[%s5 + $0x28] sm:$0xff]
      %v438 = vld [vmem:[%s5 + $0x30] sm:$0xff]
      %v439 = vld [vmem:[%s5 + $0x38] sm:$0xff]
      %v440 = vld [vmem:[%s5 + $0x40] sm:$0xff]
      %v441 = vld [vmem:[%s5 + $0x48] sm:$0xff]
      %v442 = vld [vmem:[%s5 + $0x50] sm:$0xff]
      %v443 = vld [vmem:[%s5 + $0x58] sm:$0xff]
      %v444 = vld [vmem:[%s5 + $0x60] sm:$0xff]
      %v445 = vld [vmem:[%s5 + $0x68] sm:$0xff]
      %v446 = vld [vmem:[%s5 + $0x70] sm:$0xff]
      %v447 = vld [vmem:[%s5 + $0x78] sm:$0xff]
      %v448 = vadd.f32 %v384, %v387
      %v449 = vadd.f32 %v448, %v392
      %v450 = vadd.f32 %v449, %v395
      %v451 = vadd.f32 %v450, %v400
      %v452 = vadd.f32 %v451, %v403
      %v453 = vadd.f32 %v452, %v408
      %v454 = vadd.f32 %v453, %v411
      %v455 = vrot.slane %v454, 4
      %v456 = vadd.f32 %v454, %v455
      %v457 = vrot.slane %v456, 2
      %v458 = vadd.f32 %v456, %v457
      %v459 = vrot.slane %v458, 1
      %v460 = vadd.f32 %v458, %v459
      %v461 = vmul.f32 %v384, %v384
      %v462 = vmul.f32 %v387, %v387
      %v463 = vmul.f32 %v392, %v392
      %v464 = vmul.f32 %v395, %v395
      %v465 = vmul.f32 %v400, %v400
      %v466 = vmul.f32 %v403, %v403
      %v467 = vmul.f32 %v408, %v408
      %v468 = vmul.f32 %v411, %v411
      %v469 = vadd.f32 %v461, %v462
      %v470 = vadd.f32 %v469, %v463
      %v471 = vadd.f32 %v470, %v464
      %v472 = vadd.f32 %v471, %v465
      %v473 = vadd.f32 %v472, %v466
      %v474 = vadd.f32 %v473, %v467
      %v475 = vadd.f32 %v474, %v468
      %v476 = vrot.slane %v475, 4
      %v477 = vadd.f32 %v475, %v476
      %v478 = vrot.slane %v477, 2
      %v479 = vadd.f32 %v477, %v478
      %v480 = vrot.slane %v479, 1
      %v481 = vadd.f32 %v479, %v480
      %482 = vmatprep.subr.mxu0 0.0
      %483 = vmatpush1.msra.mxu0 %v431
      %484 = vmatprep.subr.mxu0 0.0
      %485 = vmatpush1.msra.mxu0 %v430
      %486 = vmatprep.subr.mxu0 0.0
      %487 = vmatpush1.msra.mxu0 %v429
      %488 = vmatprep.subr.mxu0 0.0
      %489 = vmatpush1.msra.mxu0 %v428
      %490 = vmatprep.subr.mxu0 0.0
      %491 = vmatpush1.msra.mxu0 %v427
      %492 = vmatprep.subr.mxu0 0.0
      %493 = vmatpush1.msra.mxu0 %v426
      %494 = vmatprep.subr.mxu0 0.0
      %495 = vmatpush1.msra.mxu0 %v425
      %496 = vmatprep.subr.mxu0 0.0
      %497 = vmatpush1.msra.mxu0 %v424
      %498 = vmatprep.subr.mxu0 0.0
      %499 = vmatpush1.msra.mxu0 %v423
      %500 = vmatprep.subr.mxu0 0.0
      %501 = vmatpush1.msra.mxu0 %v422
      %502 = vmatprep.subr.mxu0 0.0
      %503 = vmatpush1.msra.mxu0 %v421
      %504 = vmatprep.subr.mxu0 0.0
      %505 = vmatpush1.msra.mxu0 %v420
      %506 = vmatprep.subr.mxu0 0.0
      %507 = vmatpush1.msra.mxu0 %v419
      %508 = vmatprep.subr.mxu0 0.0
      %509 = vmatpush1.msra.mxu0 %v418
      %510 = vmatprep.subr.mxu0 0.0
      %511 = vmatpush1.msra.mxu0 %v417
      %512 = vmatprep.subr.mxu0 0.0
      %513 = vmatpush1.msra.mxu0 %v416
      %514 = vmatprep.subr.mxu0 0.0
      %515 = vmatpush2.msra.mxu0 0.0
      %516 = vmatprep.subr.mxu0 0.0
      %517 = vmatpush2.msra.mxu0 0.0
      %518 = vmatprep.subr.mxu0 0.0
      %519 = vmatpush2.msra.mxu0 0.0
      %520 = vmatprep.subr.mxu0 0.0
      %521 = vmatpush2.msra.mxu0 0.0
      %522 = vmatprep.subr.mxu0 0.0
      %523 = vmatpush2.msra.mxu0 0.0
      %524 = vmatprep.subr.mxu0 0.0
      %525 = vmatpush2.msra.mxu0 0.0
      %526 = vmatprep.subr.mxu0 0.0
      %527 = vmatpush2.msra.mxu0 0.0
      %528 = vmatprep.subr.mxu0 0.0
      %529 = vmatpush2.msra.mxu0 0.0
      %530 = vmatprep.subr.mxu0 0.0
      %531 = vmatpush2.msra.mxu0 0.0
      %532 = vmatprep.subr.mxu0 0.0
      %533 = vmatpush2.msra.mxu0 0.0
      %534 = vmatprep.subr.mxu0 0.0
      %535 = vmatpush2.msra.mxu0 0.0
      %536 = vmatprep.subr.mxu0 0.0
      %537 = vmatpush2.msra.mxu0 0.0
      %538 = vmatprep.subr.mxu0 0.0
      %539 = vmatpush2.msra.mxu0 0.0
      %540 = vmatprep.subr.mxu0 0.0
      %541 = vmatpush2.msra.mxu0 0.0
      %542 = vmatprep.subr.mxu0 0.0
      %543 = vmatpush2.msra.mxu0 0.0
      %544 = vmatprep.subr.mxu0 0.0
      %545 = vmatpush2.msra.mxu0 0.0
      %546 = vmatprep.mubr.f32.mxu0 0.0
      %547 = vmatmul.mubr.f32.gmra.mxu0 %v460
      %v548 = vpop.f32.mrf.mxu0
      %v549 = vadd.f32 0.0, %v548
      %v550 = vpop.f32.mrf.mxu0
      %551 = vdwg.mxu0
      %v552 = vmul.f32 %v549, 0.00390625
      %553 = vmatprep.subr.mxu0 0.0
      %554 = vmatpush1.msra.mxu0 %v431
      %555 = vmatprep.subr.mxu0 0.0
      %556 = vmatpush1.msra.mxu0 %v430
      %557 = vmatprep.subr.mxu0 0.0
      %558 = vmatpush1.msra.mxu0 %v429
      %559 = vmatprep.subr.mxu0 0.0
      %560 = vmatpush1.msra.mxu0 %v428
      %561 = vmatprep.subr.mxu0 0.0
      %562 = vmatpush1.msra.mxu0 %v427
      %563 = vmatprep.subr.mxu0 0.0
      %564 = vmatpush1.msra.mxu0 %v426
      %565 = vmatprep.subr.mxu0 0.0
      %566 = vmatpush1.msra.mxu0 %v425
      %567 = vmatprep.subr.mxu0 0.0
      %568 = vmatpush1.msra.mxu0 %v424
      %569 = vmatprep.subr.mxu0 0.0
      %570 = vmatpush1.msra.mxu0 %v423
      %571 = vmatprep.subr.mxu0 0.0
      %572 = vmatpush1.msra.mxu0 %v422
      %573 = vmatprep.subr.mxu0 0.0
      %574 = vmatpush1.msra.mxu0 %v421
      %575 = vmatprep.subr.mxu0 0.0
      %576 = vmatpush1.msra.mxu0 %v420
      %577 = vmatprep.subr.mxu0 0.0
      %578 = vmatpush1.msra.mxu0 %v419
      %579 = vmatprep.subr.mxu0 0.0
      %580 = vmatpush1.msra.mxu0 %v418
      %581 = vmatprep.subr.mxu0 0.0
      %582 = vmatpush1.msra.mxu0 %v417
      %583 = vmatprep.subr.mxu0 0.0
      %584 = vmatpush1.msra.mxu0 %v416
      %585 = vmatprep.subr.mxu0 0.0
      %586 = vmatpush2.msra.mxu0 0.0
      %587 = vmatprep.subr.mxu0 0.0
      %588 = vmatpush2.msra.mxu0 0.0
      %589 = vmatprep.subr.mxu0 0.0
      %590 = vmatpush2.msra.mxu0 0.0
      %591 = vmatprep.subr.mxu0 0.0
      %592 = vmatpush2.msra.mxu0 0.0
      %593 = vmatprep.subr.mxu0 0.0
      %594 = vmatpush2.msra.mxu0 0.0
      %595 = vmatprep.subr.mxu0 0.0
      %596 = vmatpush2.msra.mxu0 0.0
      %597 = vmatprep.subr.mxu0 0.0
      %598 = vmatpush2.msra.mxu0 0.0
      %599 = vmatprep.subr.mxu0 0.0
      %600 = vmatpush2.msra.mxu0 0.0
      %601 = vmatprep.subr.mxu0 0.0
      %602 = vmatpush2.msra.mxu0 0.0
      %603 = vmatprep.subr.mxu0 0.0
      %604 = vmatpush2.msra.mxu0 0.0
      %605 = vmatprep.subr.mxu0 0.0
      %606 = vmatpush2.msra.mxu0 0.0
      %607 = vmatprep.subr.mxu0 0.0
      %608 = vmatpush2.msra.mxu0 0.0
      %609 = vmatprep.subr.mxu0 0.0
      %610 = vmatpush2.msra.mxu0 0.0
      %611 = vmatprep.subr.mxu0 0.0
      %612 = vmatpush2.msra.mxu0 0.0
      %613 = vmatprep.subr.mxu0 0.0
      %614 = vmatpush2.msra.mxu0 0.0
      %615 = vmatprep.subr.mxu0 0.0
      %616 = vmatpush2.msra.mxu0 0.0
      %617 = vmatprep.mubr.f32.mxu0 0.0
      %618 = vmatmul.mubr.f32.gmra.mxu0 %v481
      %v619 = vpop.f32.mrf.mxu0
      %v620 = vadd.f32 0.0, %v619
      %v621 = vpop.f32.mrf.mxu0
      %622 = vdwg.mxu0
      %v623 = vmul.f32 %v620, 0.00390625
      %v624 = vmul.f32 %v552, %v552
      %v625 = vsub.f32 %v623, %v624
      %v626 = vmax.f32 %v625, 0.0
      %v627 = vadd.f32 %v626, 1e-05
      %v628 = vrsqrt.pop %v627
      %629 = vmatprep.subr.mxu0 0.0
      %630 = vmatpush1.msra.mxu0 %v447
      %631 = vmatprep.subr.mxu0 0.0
      %632 = vmatpush1.msra.mxu0 %v446
      %633 = vmatprep.subr.mxu0 0.0
      %634 = vmatpush1.msra.mxu0 %v445
      %635 = vmatprep.subr.mxu0 0.0
      %636 = vmatpush1.msra.mxu0 %v444
      %637 = vmatprep.subr.mxu0 0.0
      %638 = vmatpush1.msra.mxu0 %v443
      %639 = vmatprep.subr.mxu0 0.0
      %640 = vmatpush1.msra.mxu0 %v442
      %641 = vmatprep.subr.mxu0 0.0
      %642 = vmatpush1.msra.mxu0 %v441
      %643 = vmatprep.subr.mxu0 0.0
      %644 = vmatpush1.msra.mxu0 %v440
      %645 = vmatprep.subr.mxu0 0.0
      %646 = vmatpush1.msra.mxu0 %v439
      %647 = vmatprep.subr.mxu0 0.0
      %648 = vmatpush1.msra.mxu0 %v438
      %649 = vmatprep.subr.mxu0 0.0
      %650 = vmatpush1.msra.mxu0 %v437
      %651 = vmatprep.subr.mxu0 0.0
      %652 = vmatpush1.msra.mxu0 %v436
      %653 = vmatprep.subr.mxu0 0.0
      %654 = vmatpush1.msra.mxu0 %v435
      %655 = vmatprep.subr.mxu0 0.0
      %656 = vmatpush1.msra.mxu0 %v434
      %657 = vmatprep.subr.mxu0 0.0
      %658 = vmatpush1.msra.mxu0 %v433
      %659 = vmatprep.subr.mxu0 0.0
      %660 = vmatpush1.msra.mxu0 %v432
      %661 = vmatprep.subr.mxu0 0.0
      %662 = vmatpush2.msra.mxu0 0.0
      %663 = vmatprep.subr.mxu0 0.0
      %664 = vmatpush2.msra.mxu0 0.0
      %665 = vmatprep.subr.mxu0 0.0
      %666 = vmatpush2.msra.mxu0 0.0
      %667 = vmatprep.subr.mxu0 0.0
      %668 = vmatpush2.msra.mxu0 0.0
      %669 = vmatprep.subr.mxu0 0.0
      %670 = vmatpush2.msra.mxu0 0.0
      %671 = vmatprep.subr.mxu0 0.0
      %672 = vmatpush2.msra.mxu0 0.0
      %673 = vmatprep.subr.mxu0 0.0
      %674 = vmatpush2.msra.mxu0 0.0
      %675 = vmatprep.subr.mxu0 0.0
      %676 = vmatpush2.msra.mxu0 0.0
      %677 = vmatprep.subr.mxu0 0.0
      %678 = vmatpush2.msra.mxu0 0.0
      %679 = vmatprep.subr.mxu0 0.0
      %680 = vmatpush2.msra.mxu0 0.0
      %681 = vmatprep.subr.mxu0 0.0
      %682 = vmatpush2.msra.mxu0 0.0
      %683 = vmatprep.subr.mxu0 0.0
      %684 = vmatpush2.msra.mxu0 0.0
      %685 = vmatprep.subr.mxu0 0.0
      %686 = vmatpush2.msra.mxu0 0.0
      %687 = vmatprep.subr.mxu0 0.0
      %688 = vmatpush2.msra.mxu0 0.0
      %689 = vmatprep.subr.mxu0 0.0
      %690 = vmatpush2.msra.mxu0 0.0
      %691 = vmatprep.subr.mxu0 0.0
      %692 = vmatpush2.msra.mxu0 0.0
      %693 = vmatprep.mubr.f32.mxu0 0.0
      %694 = vmatmul.mubr.f32.gmra.mxu0 %v552
      %v695 = vpop.f32.mrf.mxu0
      %v696 = vadd.f32 0.0, %v695
      %v697 = vpop.f32.mrf.mxu0
      %698 = vdwg.mxu0
      %699 = vmatprep.subr.mxu0 0.0
      %700 = vmatpush1.msra.mxu0 %v447
      %701 = vmatprep.subr.mxu0 0.0
      %702 = vmatpush1.msra.mxu0 %v446
      %703 = vmatprep.subr.mxu0 0.0
      %704 = vmatpush1.msra.mxu0 %v445
      %705 = vmatprep.subr.mxu0 0.0
      %706 = vmatpush1.msra.mxu0 %v444
      %707 = vmatprep.subr.mxu0 0.0
      %708 = vmatpush1.msra.mxu0 %v443
      %709 = vmatprep.subr.mxu0 0.0
      %710 = vmatpush1.msra.mxu0 %v442
      %711 = vmatprep.subr.mxu0 0.0
      %712 = vmatpush1.msra.mxu0 %v441
      %713 = vmatprep.subr.mxu0 0.0
      %714 = vmatpush1.msra.mxu0 %v440
      %715 = vmatprep.subr.mxu0 0.0
      %716 = vmatpush1.msra.mxu0 %v439
      %717 = vmatprep.subr.mxu0 0.0
      %718 = vmatpush1.msra.mxu0 %v438
      %719 = vmatprep.subr.mxu0 0.0
      %720 = vmatpush1.msra.mxu0 %v437
      %721 = vmatprep.subr.mxu0 0.0
      %722 = vmatpush1.msra.mxu0 %v436
      %723 = vmatprep.subr.mxu0 0.0
      %724 = vmatpush1.msra.mxu0 %v435
      %725 = vmatprep.subr.mxu0 0.0
      %726 = vmatpush1.msra.mxu0 %v434
      %727 = vmatprep.subr.mxu0 0.0
      %728 = vmatpush1.msra.mxu0 %v433
      %729 = vmatprep.subr.mxu0 0.0
      %730 = vmatpush1.msra.mxu0 %v432
      %731 = vmatprep.subr.mxu0 0.0
      %732 = vmatpush2.msra.mxu0 0.0
      %733 = vmatprep.subr.mxu0 0.0
      %734 = vmatpush2.msra.mxu0 0.0
      %735 = vmatprep.subr.mxu0 0.0
      %736 = vmatpush2.msra.mxu0 0.0
      %737 = vmatprep.subr.mxu0 0.0
      %738 = vmatpush2.msra.mxu0 0.0
      %739 = vmatprep.subr.mxu0 0.0
      %740 = vmatpush2.msra.mxu0 0.0
      %741 = vmatprep.subr.mxu0 0.0
      %742 = vmatpush2.msra.mxu0 0.0
      %743 = vmatprep.subr.mxu0 0.0
      %744 = vmatpush2.msra.mxu0 0.0
      %745 = vmatprep.subr.mxu0 0.0
      %746 = vmatpush2.msra.mxu0 0.0
      %747 = vmatprep.subr.mxu0 0.0
      %748 = vmatpush2.msra.mxu0 0.0
      %749 = vmatprep.subr.mxu0 0.0
      %750 = vmatpush2.msra.mxu0 0.0
      %751 = vmatprep.subr.mxu0 0.0
      %752 = vmatpush2.msra.mxu0 0.0
      %753 = vmatprep.subr.mxu0 0.0
      %754 = vmatpush2.msra.mxu0 0.0
      %755 = vmatprep.subr.mxu0 0.0
      %756 = vmatpush2.msra.mxu0 0.0
      %757 = vmatprep.subr.mxu0 0.0
      %758 = vmatpush2.msra.mxu0 0.0
      %759 = vmatprep.subr.mxu0 0.0
      %760 = vmatpush2.msra.mxu0 0.0
      %761 = vmatprep.subr.mxu0 0.0
      %762 = vmatpush2.msra.mxu0 0.0
      %763 = vmatprep.mubr.f32.mxu0 0.0
      %764 = vmatmul.mubr.f32.gmra.mxu0 %v628
      %v765 = vpop.f32.mrf.mxu0
      %v766 = vadd.f32 0.0, %v765
      %v767 = vpop.f32.mrf.mxu0
      %768 = vdwg.mxu0
      %v769 = vlaneseq
      %v770 = vshrl.u32 %v769, 7
      %v771 = vsub.s32 0, %v770
      %v772 = vrot.slane %v696, %v771
      %v773 = vsub.f32 %v384, %v772
      %v774 = vsub.f32 %v387, %v772
      %v775 = vsub.f32 %v392, %v772
      %v776 = vsub.f32 %v395, %v772
      %v777 = vsub.f32 %v400, %v772
      %v778 = vsub.f32 %v403, %v772
      %v779 = vsub.f32 %v408, %v772
      %v780 = vsub.f32 %v411, %v772
      %v781 = vmul.f32 %v766, %v414
      %v782 = vlaneseq
      %v783 = vshrl.u32 %v782, 7
      %v784 = vsub.s32 0, %v783
      %v785 = vrot.slane %v781, %v784
      %v786 = vmul.f32 %v773, %v785
      %v787 = vmul.f32 %v774, %v785
      %v788 = vmul.f32 %v775, %v785
      %v789 = vmul.f32 %v776, %v785
      %v790 = vmul.f32 %v777, %v785
      %v791 = vmul.f32 %v778, %v785
      %v792 = vmul.f32 %v779, %v785
      %v793 = vmul.f32 %v780, %v785
      %v795 = vlaneseq
      %v796 = vshrl.u32 %v795, 7
      %v797 = vsub.s32 0, %v796
      %v798 = vrot.slane %v415, %v797
      %v800 = vadd.f32 %v786, %v798
      %v801 = vadd.f32 %v787, %v798
      %v802 = vadd.f32 %v788, %v798
      %v803 = vadd.f32 %v789, %v798
      %v804 = vadd.f32 %v790, %v798
      %v805 = vadd.f32 %v791, %v798
      %v806 = vadd.f32 %v792, %v798
      %v807 = vadd.f32 %v793, %v798
      %v808 = vpack.c.bf16 %v801, %v800
      %v809 = vpack.c.bf16 %v803, %v802
      %v810 = vpack.c.bf16 %v805, %v804
      %v811 = vpack.c.bf16 %v807, %v806
      %v816 = vunpack.c.l.b16 %v808
      %v817 = vunpack.c.h.b16 %v808
      %v818 = vunpack.c.l.b16 %v809
      %v819 = vunpack.c.h.b16 %v809
      %v820 = vunpack.c.l.b16 %v810
      %v821 = vunpack.c.h.b16 %v810
      %v822 = vunpack.c.l.b16 %v811
      %v823 = vunpack.c.h.b16 %v811
      %v824 = vpack.c.b16 %v816, %v816
      %v825 = vpack.c.b16 %v817, %v817
      %v826 = vpack.c.b16 %v818, %v818
      %v827 = vpack.c.b16 %v819, %v819
      %v828 = vpack.c.b16 %v820, %v820
      %v829 = vpack.c.b16 %v821, %v821
      %v830 = vpack.c.b16 %v822, %v822
      %v831 = vpack.c.b16 %v823, %v823
      %840 = vst [vmem:[%s251] sm:$0xf] %v824
      %841 = vst [vmem:[%s251 + $0x4] sm:$0xf] %v825
      %842 = vst [vmem:[%s251 + $0x8] sm:$0xf] %v826
      %843 = vst [vmem:[%s251 + $0xc] sm:$0xf] %v827
      %844 = vst [vmem:[%s251 + $0x10] sm:$0xf] %v828
      %845 = vst [vmem:[%s251 + $0x14] sm:$0xf] %v829
      %846 = vst [vmem:[%s251 + $0x18] sm:$0xf] %v830
      %847 = vst [vmem:[%s251 + $0x1c] sm:$0xf] %v831
      %p848 = scmp.lt.s32.totalorder %s17, 1
      %s849 = scalar_select %p848, %s17, 1
      %s850 = smul.addr %s849, 8
      %s851 = smul.addr %s850, 4
      %s852 = scalar_lea.vmem %s6, %s851
      // Predicated region
      $region45: #{_lambda_.7} parent=43 // pred_check
        %p853 = pneg %p166
      $region46: #{_lambda_.7} parent=43 // pred_check_branch
        %855 = sbr.rel (%p853) target = $region48
      $region47: #{_lambda_.7} parent=43 // pred_region
        _
      $region48: #{_lambda_.7} parent=43 // pred_fallthru
        _
    $region44: #{_lambda_.7} parent=5 // pred_fallthru
      _
    %p856 = scmp.le.s32.totalorder 2, %s12
    // Predicated region
    $region49: #{_lambda_.7} parent=5 // pred_check
      %p857 = pneg %p856
    $region50: #{_lambda_.7} parent=5 // pred_check_branch
      %859 = sbr.rel (%p857) target = $region52
    $region51: #{_lambda_.7} parent=5 // pred_region
      %s860 = ssub.s32 %s12, 2
      // Predicated region
      $region53: #{_lambda_.7} parent=51 // pred_check
        %p861 = pneg %p172
      $region54: #{_lambda_.7} parent=51 // pred_check_branch
        %863 = sbr.rel (%p861) target = $region56
      $region55: #{_lambda_.7} parent=51 // pred_region
        %p864 = scmp.lt.s32.totalorder %s18, 1
        %s865 = scalar_select %p864, %s18, 1
        %s866 = smul.addr %s865, 8
        %s867 = smul.addr %s866, 4
        %s868 = scalar_lea.vmem %s6, %s867
      $region56: #{_lambda_.7} parent=51 // pred_fallthru
        _
    $region52: #{_lambda_.7} parent=5 // pred_fallthru
      _
  $region6: #{_lambda_.7} parent=0 // loop_footer
    %s16 = sadd.s32 1, %s12
  $region7: #{_lambda_.7} parent=0 // loop_footer_branch
    %11 = sbr.rel target = $region3
  $region8: #{_lambda_.7} parent=0 // loop_exit
    _

// kernel: _lambda_.8
$region0: #{_lambda_.8}
  #allocation0 [shape = 'u32[]', space=smem, size = 0x4, offset = 0x4, fixed_abs, tag = 'smem constant byte address 0x4 - core index']
  #allocation1 [shape = 'u32[144,128]{1,0:T(1,128)}', space=vmem, size = 0x12000, scoped, tag = 'internal scratch']
  %s0 = inlined_call_operand.vmem [shape: bf16[2,256,128], index: 0, kind: input, shape index: {}]
  %s1 = inlined_call_operand.vmem [shape: bf16[128,128], index: 1, kind: input, shape index: {}]
  %s2 = inlined_call_operand.vmem [shape: f32[1,128], index: 2, kind: input, shape index: {}]
  %s3 = inlined_call_operand.vmem [shape: f32[1,128], index: 3, kind: input, shape index: {}]
  %s4 = inlined_call_operand.vmem [shape: f32[128,128], index: 4, kind: input, shape index: {}, may-alias: {4,5}]
  %s5 = inlined_call_operand.vmem [shape: f32[128,128], index: 5, kind: input, shape index: {}, may-alias: {4,5}]
  %s6 = inlined_call_operand.vmem [shape: bf16[2,256,128], index: 6, kind: output, shape index: {}]
  %s7 = sld [smem:[#allocation0]]
  $region57: #{_lambda_.8} parent=0
    _
  %s9 = ssub.s32 1, %s7
  %s10 = scalar_select 0, %s9, %s7
  loop: start=0, step=1, limit=4
  $region2: #{_lambda_.8} parent=0 // loop_pre_header
    _
  $region3: #{_lambda_.8} parent=0 // loop_header
    %s12 = sphi 0, %s16
    %p13 = scmp.ge.s32.totalorder %s12, 4
    %s22 = sphi 0, %s24
    %s25 = sphi 0, %s22
    %s26 = sphi 0, %s25
    %s42 = sphi 0, %s26
    %s46 = sphi 0, %s46
    %s48 = sphi 0, %s46
    %s49 = sphi 0, %s48
    %s63 = sphi 0, %s49
    %s67 = sphi 0, %s67
    %s69 = sphi 0, %s67
    %s70 = sphi 0, %s69
    %s84 = sphi 0, %s70
    %s88 = sphi 0, %s88
    %s90 = sphi 0, %s88
    %s91 = sphi 0, %s90
    %s105 = sphi 0, %s91
    %s109 = sphi 0, %s109
    %s111 = sphi 0, %s109
    %s112 = sphi 0, %s111
    %s126 = sphi 0, %s112
    %s130 = sphi 0, %s130
    %s132 = sphi 0, %s130
    %s133 = sphi 0, %s132
    %s147 = sphi 0, %s133
    %s153 = sphi 0, %s155
    %s156 = sphi 0, %s153
    %s157 = sphi 0, %s156
    %s173 = sphi 0, %s157
  $region4: #{_lambda_.8} parent=0 // loop_header_branch
    %15 = sbr.rel (%p13) target = $region8
  $region5: #{_lambda_.8} parent=0 // loop_body
    %s17 = ssub.s32 %s12, 1
    %s18 = ssub.s32 %s12, 2
    %s19 = sadd.s32 %s12, 1
    %s20 = ssub.s32 %s12, %s19
    %p21 = scmp.eq.s32.totalorder %s20, 0
    %s23 = sadd.s32 %s22, 1
    %s24 = scalar_select %p21, %s22, %s23
    %p27 = pneg %p21
    %p28 = scmp.eq.s32.totalorder %s12, 1
    %p29 = por %p27, %p28
    %p30 = scmp.ne.s32.totalorder %s22, %s25
    %p31 = scmp.eq.s32.totalorder %s12, 0
    %p32 = por %p30, %p31
    %p33 = scmp.ne.s32.totalorder %s22, %s25
    %p34 = scmp.eq.s32.totalorder %s17, 1
    %p35 = por %p33, %p34
    %p36 = scmp.ne.s32.totalorder %s25, %s26
    %p37 = scmp.eq.s32.totalorder %s17, 0
    %p38 = por %p36, %p37
    %p39 = scmp.ne.s32.totalorder %s25, %s26
    %p40 = scmp.eq.s32.totalorder %s18, 1
    %p41 = por %p39, %p40
    %p43 = scmp.ne.s32.totalorder %s26, %s42
    %p44 = scmp.eq.s32.totalorder %s18, 0
    %p45 = por %p43, %p44
    %s47 = sadd.s32 %s46, 1
    %p50 = scmp.eq.s32.totalorder %s12, 1
    %p51 = scmp.ne.s32.totalorder %s46, %s48
    %p52 = scmp.eq.s32.totalorder %s12, 0
    %p53 = por %p51, %p52
    %p54 = scmp.ne.s32.totalorder %s46, %s48
    %p55 = scmp.eq.s32.totalorder %s17, 1
    %p56 = por %p54, %p55
    %p57 = scmp.ne.s32.totalorder %s48, %s49
    %p58 = scmp.eq.s32.totalorder %s17, 0
    %p59 = por %p57, %p58
    %p60 = scmp.ne.s32.totalorder %s48, %s49
    %p61 = scmp.eq.s32.totalorder %s18, 1
    %p62 = por %p60, %p61
    %p64 = scmp.ne.s32.totalorder %s49, %s63
    %p65 = scmp.eq.s32.totalorder %s18, 0
    %p66 = por %p64, %p65
    %s68 = sadd.s32 %s67, 1
    %p71 = scmp.eq.s32.totalorder %s12, 1
    %p72 = scmp.ne.s32.totalorder %s67, %s69
    %p73 = scmp.eq.s32.totalorder %s12, 0
    %p74 = por %p72, %p73
    %p75 = scmp.ne.s32.totalorder %s67, %s69
    %p76 = scmp.eq.s32.totalorder %s17, 1
    %p77 = por %p75, %p76
    %p78 = scmp.ne.s32.totalorder %s69, %s70
    %p79 = scmp.eq.s32.totalorder %s17, 0
    %p80 = por %p78, %p79
    %p81 = scmp.ne.s32.totalorder %s69, %s70
    %p82 = scmp.eq.s32.totalorder %s18, 1
    %p83 = por %p81, %p82
    %p85 = scmp.ne.s32.totalorder %s70, %s84
    %p86 = scmp.eq.s32.totalorder %s18, 0
    %p87 = por %p85, %p86
    %s89 = sadd.s32 %s88, 1
    %p92 = scmp.eq.s32.totalorder %s12, 1
    %p93 = scmp.ne.s32.totalorder %s88, %s90
    %p94 = scmp.eq.s32.totalorder %s12, 0
    %p95 = por %p93, %p94
    %p96 = scmp.ne.s32.totalorder %s88, %s90
    %p97 = scmp.eq.s32.totalorder %s17, 1
    %p98 = por %p96, %p97
    %p99 = scmp.ne.s32.totalorder %s90, %s91
    %p100 = scmp.eq.s32.totalorder %s17, 0
    %p101 = por %p99, %p100
    %p102 = scmp.ne.s32.totalorder %s90, %s91
    %p103 = scmp.eq.s32.totalorder %s18, 1
    %p104 = por %p102, %p103
    %p106 = scmp.ne.s32.totalorder %s91, %s105
    %p107 = scmp.eq.s32.totalorder %s18, 0
    %p108 = por %p106, %p107
    %s110 = sadd.s32 %s109, 1
    %p113 = scmp.eq.s32.totalorder %s12, 1
    %p114 = scmp.ne.s32.totalorder %s109, %s111
    %p115 = scmp.eq.s32.totalorder %s12, 0
    %p116 = por %p114, %p115
    %p117 = scmp.ne.s32.totalorder %s109, %s111
    %p118 = scmp.eq.s32.totalorder %s17, 1
    %p119 = por %p117, %p118
    %p120 = scmp.ne.s32.totalorder %s111, %s112
    %p121 = scmp.eq.s32.totalorder %s17, 0
    %p122 = por %p120, %p121
    %p123 = scmp.ne.s32.totalorder %s111, %s112
    %p124 = scmp.eq.s32.totalorder %s18, 1
    %p125 = por %p123, %p124
    %p127 = scmp.ne.s32.totalorder %s112, %s126
    %p128 = scmp.eq.s32.totalorder %s18, 0
    %p129 = por %p127, %p128
    %s131 = sadd.s32 %s130, 1
    %p134 = scmp.eq.s32.totalorder %s12, 1
    %p135 = scmp.ne.s32.totalorder %s130, %s132
    %p136 = scmp.eq.s32.totalorder %s12, 0
    %p137 = por %p135, %p136
    %p138 = scmp.ne.s32.totalorder %s130, %s132
    %p139 = scmp.eq.s32.totalorder %s17, 1
    %p140 = por %p138, %p139
    %p141 = scmp.ne.s32.totalorder %s132, %s133
    %p142 = scmp.eq.s32.totalorder %s17, 0
    %p143 = por %p141, %p142
    %p144 = scmp.ne.s32.totalorder %s132, %s133
    %p145 = scmp.eq.s32.totalorder %s18, 1
    %p146 = por %p144, %p145
    %p148 = scmp.ne.s32.totalorder %s133, %s147
    %p149 = scmp.eq.s32.totalorder %s18, 0
    %p150 = por %p148, %p149
    %s151 = ssub.s32 %s12, %s19
    %p152 = scmp.eq.s32.totalorder %s151, 0
    %s154 = sadd.s32 %s153, 1
    %s155 = scalar_select %p152, %s153, %s154
    %p158 = pneg %p152
    %p159 = scmp.eq.s32.totalorder %s12, 1
    %p160 = por %p158, %p159
    %p161 = scmp.ne.s32.totalorder %s153, %s156
    %p162 = scmp.eq.s32.totalorder %s12, 0
    %p163 = por %p161, %p162
    %p164 = scmp.ne.s32.totalorder %s153, %s156
    %p165 = scmp.eq.s32.totalorder %s17, 1
    %p166 = por %p164, %p165
    %p167 = scmp.ne.s32.totalorder %s156, %s157
    %p168 = scmp.eq.s32.totalorder %s17, 0
    %p169 = por %p167, %p168
    %p170 = scmp.ne.s32.totalorder %s156, %s157
    %p171 = scmp.eq.s32.totalorder %s18, 1
    %p172 = por %p170, %p171
    %p174 = scmp.ne.s32.totalorder %s157, %s173
    %p175 = scmp.eq.s32.totalorder %s18, 0
    %p176 = por %p174, %p175
    %p177 = scmp.le.s32.totalorder 1, %s12
    %p178 = scmp.lt.s32.totalorder %s12, 3
    %p179 = pnand %p177, %p178
    %p180 = pneg %p179
    // Predicated region
    $region9: #{_lambda_.8} parent=5 // pred_check
      _
    $region10: #{_lambda_.8} parent=5 // pred_check_branch
      %182 = sbr.rel (%p179) target = $region12
    $region11: #{_lambda_.8} parent=5 // pred_region
      %s183 = ssub.s32 %s12, 1
      // Predicated region
      $region13: #{_lambda_.8} parent=11 // pred_check
        %p184 = pneg %p59
      $region14: #{_lambda_.8} parent=11 // pred_check_branch
        %186 = sbr.rel (%p184) target = $region16
      $region15: #{_lambda_.8} parent=11 // pred_region
        _
      $region16: #{_lambda_.8} parent=11 // pred_fallthru
        _
      // Predicated region
      $region17: #{_lambda_.8} parent=11 // pred_check
        %p187 = pneg %p80
      $region18: #{_lambda_.8} parent=11 // pred_check_branch
        %189 = sbr.rel (%p187) target = $region20
      $region19: #{_lambda_.8} parent=11 // pred_region
        _
      $region20: #{_lambda_.8} parent=11 // pred_fallthru
        _
      // Predicated region
      $region21: #{_lambda_.8} parent=11 // pred_check
        %p190 = pneg %p101
      $region22: #{_lambda_.8} parent=11 // pred_check_branch
        %192 = sbr.rel (%p190) target = $region24
      $region23: #{_lambda_.8} parent=11 // pred_region
        _
      $region24: #{_lambda_.8} parent=11 // pred_fallthru
        _
      // Predicated region
      $region25: #{_lambda_.8} parent=11 // pred_check
        %p193 = pneg %p122
      $region26: #{_lambda_.8} parent=11 // pred_check_branch
        %195 = sbr.rel (%p193) target = $region28
      $region27: #{_lambda_.8} parent=11 // pred_region
        _
      $region28: #{_lambda_.8} parent=11 // pred_fallthru
        _
      // Predicated region
      $region29: #{_lambda_.8} parent=11 // pred_check
        %p196 = pneg %p143
      $region30: #{_lambda_.8} parent=11 // pred_check_branch
        %198 = sbr.rel (%p196) target = $region32
      $region31: #{_lambda_.8} parent=11 // pred_region
        _
      $region32: #{_lambda_.8} parent=11 // pred_fallthru
        _
    $region12: #{_lambda_.8} parent=5 // pred_fallthru
      _
    %p199 = scmp.lt.s32.totalorder %s12, 2
    // Predicated region
    $region33: #{_lambda_.8} parent=5 // pred_check
      %p200 = pneg %p199
    $region34: #{_lambda_.8} parent=5 // pred_check_branch
      %202 = sbr.rel (%p200) target = $region36
    $region35: #{_lambda_.8} parent=5 // pred_region
      // Predicated region
      $region37: #{_lambda_.8} parent=35 // pred_check
        %p203 = pneg %p32
      $region38: #{_lambda_.8} parent=35 // pred_check_branch
        %205 = sbr.rel (%p203) target = $region40
      $region39: #{_lambda_.8} parent=35 // pred_region
        %p206 = scmp.lt.s32.totalorder %s12, 1
        %s207 = scalar_select %p206, %s12, 1
        %s208 = smul.addr %s207, 32
        %s209 = smul.addr %s208, 4
        %s210 = scalar_lea.vmem %s0, %s209
      $region40: #{_lambda_.8} parent=35 // pred_fallthru
        _
    $region36: #{_lambda_.8} parent=5 // pred_fallthru
      _
    %p211 = scmp.le.s32.totalorder 1, %s12
    %p212 = scmp.lt.s32.totalorder %s12, 3
    %p213 = pnand %p211, %p212
    %p214 = pneg %p213
    // Predicated region
    $region41: #{_lambda_.8} parent=5 // pred_check
      _
    $region42: #{_lambda_.8} parent=5 // pred_check_branch
      %216 = sbr.rel (%p213) target = $region44
    $region43: #{_lambda_.8} parent=5 // pred_region
      %s217 = ssub.s32 %s12, 1
      %p218 = scmp.lt.s32.totalorder %s17, 1
      %s219 = scalar_select %p218, %s17, 1
      %s220 = smul.addr %s219, 32
      %s221 = smul.addr %s220, 4
      %s222 = scalar_lea.vmem %s0, %s221
      %p223 = pneg %p38
      %p224 = pneg %p35
      %p225 = pneg %p59
      %p226 = pneg %p56
      %p227 = pneg %p80
      %p228 = pneg %p77
      %p229 = pneg %p101
      %p230 = pneg %p98
      %p231 = pneg %p122
      %p232 = pneg %p119
      %p233 = pneg %p143
      %p234 = pneg %p140
      %p235 = pneg %p169
      %p236 = pneg %p166
      %p237 = scmp.lt.s32.totalorder %s17, 1
      %s238 = scalar_select %p237, %s17, 1
      %s239 = smul.addr %s238, 32
      %s240 = smul.addr %s239, 4
      %s241 = scalar_lea.vmem %s6, %s240
      %p242 = scmp.lt.s32.totalorder %s17, 1
      %s243 = scalar_select %p242, %s17, 1
      %s244 = smul.addr %s243, 32
      %s245 = smul.addr %s244, 4
      %s246 = scalar_lea.vmem %s0, %s245
      %p247 = scmp.lt.s32.totalorder %s17, 1
      %s248 = scalar_select %p247, %s17, 1
      %s249 = smul.addr %s248, 32
      %s250 = smul.addr %s249, 4
      %s251 = scalar_lea.vmem %s6, %s250
      %v253 = vld [vmem:[%s246] sm:$0xf]
      %v254 = vld [vmem:[%s246 + $0x4] sm:$0xf]
      %v255 = vld [vmem:[%s246 + $0x8] sm:$0xf]
      %v256 = vld [vmem:[%s246 + $0xc] sm:$0xf]
      %v257 = vld [vmem:[%s246 + $0x10] sm:$0xf]
      %v258 = vld [vmem:[%s246 + $0x14] sm:$0xf]
      %v259 = vld [vmem:[%s246 + $0x18] sm:$0xf]
      %v260 = vld [vmem:[%s246 + $0x1c] sm:$0xf]
      %v261 = vld [vmem:[%s246 + $0x20] sm:$0xf]
      %v262 = vld [vmem:[%s246 + $0x24] sm:$0xf]
      %v263 = vld [vmem:[%s246 + $0x28] sm:$0xf]
      %v264 = vld [vmem:[%s246 + $0x2c] sm:$0xf]
      %v265 = vld [vmem:[%s246 + $0x30] sm:$0xf]
      %v266 = vld [vmem:[%s246 + $0x34] sm:$0xf]
      %v267 = vld [vmem:[%s246 + $0x38] sm:$0xf]
      %v268 = vld [vmem:[%s246 + $0x3c] sm:$0xf]
      %v269 = vld [vmem:[%s246 + $0x40] sm:$0xf]
      %v270 = vld [vmem:[%s246 + $0x44] sm:$0xf]
      %v271 = vld [vmem:[%s246 + $0x48] sm:$0xf]
      %v272 = vld [vmem:[%s246 + $0x4c] sm:$0xf]
      %v273 = vld [vmem:[%s246 + $0x50] sm:$0xf]
      %v274 = vld [vmem:[%s246 + $0x54] sm:$0xf]
      %v275 = vld [vmem:[%s246 + $0x58] sm:$0xf]
      %v276 = vld [vmem:[%s246 + $0x5c] sm:$0xf]
      %v277 = vld [vmem:[%s246 + $0x60] sm:$0xf]
      %v278 = vld [vmem:[%s246 + $0x64] sm:$0xf]
      %v279 = vld [vmem:[%s246 + $0x68] sm:$0xf]
      %v280 = vld [vmem:[%s246 + $0x6c] sm:$0xf]
      %v281 = vld [vmem:[%s246 + $0x70] sm:$0xf]
      %v282 = vld [vmem:[%s246 + $0x74] sm:$0xf]
      %v283 = vld [vmem:[%s246 + $0x78] sm:$0xf]
      %v284 = vld [vmem:[%s246 + $0x7c] sm:$0xf]
      %v285 = vld [vmem:[%s1] sm:$0xf]
      %v286 = vld [vmem:[%s1 + $0x4] sm:$0xf]
      %v287 = vld [vmem:[%s1 + $0x8] sm:$0xf]
      %v288 = vld [vmem:[%s1 + $0xc] sm:$0xf]
      %v289 = vld [vmem:[%s1 + $0x10] sm:$0xf]
      %v290 = vld [vmem:[%s1 + $0x14] sm:$0xf]
      %v291 = vld [vmem:[%s1 + $0x18] sm:$0xf]
      %v292 = vld [vmem:[%s1 + $0x1c] sm:$0xf]
      %v293 = vld [vmem:[%s1 + $0x20] sm:$0xf]
      %v294 = vld [vmem:[%s1 + $0x24] sm:$0xf]
      %v295 = vld [vmem:[%s1 + $0x28] sm:$0xf]
      %v296 = vld [vmem:[%s1 + $0x2c] sm:$0xf]
      %v297 = vld [vmem:[%s1 + $0x30] sm:$0xf]
      %v298 = vld [vmem:[%s1 + $0x34] sm:$0xf]
      %v299 = vld [vmem:[%s1 + $0x38] sm:$0xf]
      %v300 = vld [vmem:[%s1 + $0x3c] sm:$0xf]
      %v333 = vunpack.c.l.b16 %v253
      %v334 = vunpack.c.l.b16 %v254
      %v335 = vunpack.c.l.b16 %v255
      %v336 = vunpack.c.l.b16 %v256
      %v337 = vunpack.c.l.b16 %v257
      %v338 = vunpack.c.l.b16 %v258
      %v339 = vunpack.c.l.b16 %v259
      %v340 = vunpack.c.l.b16 %v260
      %v341 = vunpack.c.l.b16 %v261
      %v342 = vunpack.c.l.b16 %v262
      %v343 = vunpack.c.l.b16 %v263
      %v344 = vunpack.c.l.b16 %v264
      %v345 = vunpack.c.l.b16 %v265
      %v346 = vunpack.c.l.b16 %v266
      %v347 = vunpack.c.l.b16 %v267
      %v348 = vunpack.c.l.b16 %v268
      %v349 = vunpack.c.l.b16 %v269
      %v350 = vunpack.c.l.b16 %v270
      %v351 = vunpack.c.l.b16 %v271
      %v352 = vunpack.c.l.b16 %v272
      %v353 = vunpack.c.l.b16 %v273
      %v354 = vunpack.c.l.b16 %v274
      %v355 = vunpack.c.l.b16 %v275
      %v356 = vunpack.c.l.b16 %v276
      %v357 = vunpack.c.l.b16 %v277
      %v358 = vunpack.c.l.b16 %v278
      %v359 = vunpack.c.l.b16 %v279
      %v360 = vunpack.c.l.b16 %v280
      %v361 = vunpack.c.l.b16 %v281
      %v362 = vunpack.c.l.b16 %v282
      %v363 = vunpack.c.l.b16 %v283
      %v364 = vunpack.c.l.b16 %v284
      %v365 = vpack.c.b16 %v334, %v333
      %v366 = vpack.c.b16 %v336, %v335
      %v367 = vpack.c.b16 %v338, %v337
      %v368 = vpack.c.b16 %v340, %v339
      %v369 = vpack.c.b16 %v342, %v341
      %v370 = vpack.c.b16 %v344, %v343
      %v371 = vpack.c.b16 %v346, %v345
      %v372 = vpack.c.b16 %v348, %v347
      %v373 = vpack.c.b16 %v350, %v349
      %v374 = vpack.c.b16 %v352, %v351
      %v375 = vpack.c.b16 %v354, %v353
      %v376 = vpack.c.b16 %v356, %v355
      %v377 = vpack.c.b16 %v358, %v357
      %v378 = vpack.c.b16 %v360, %v359
      %v379 = vpack.c.b16 %v362, %v361
      %v380 = vpack.c.b16 %v364, %v363
      %v413 = vunpack.c.l.b16 %v285
      %v414 = vunpack.c.l.b16 %v286
      %v415 = vunpack.c.l.b16 %v287
      %v416 = vunpack.c.l.b16 %v288
      %v417 = vunpack.c.l.b16 %v289
      %v418 = vunpack.c.l.b16 %v290
      %v419 = vunpack.c.l.b16 %v291
      %v420 = vunpack.c.l.b16 %v292
      %v421 = vunpack.c.l.b16 %v293
      %v422 = vunpack.c.l.b16 %v294
      %v423 = vunpack.c.l.b16 %v295
      %v424 = vunpack.c.l.b16 %v296
      %v425 = vunpack.c.l.b16 %v297
      %v426 = vunpack.c.l.b16 %v298
      %v427 = vunpack.c.l.b16 %v299
      %v428 = vunpack.c.l.b16 %v300
      %v429 = vpack.c.b16 %v414, %v413
      %v430 = vpack.c.b16 %v416, %v415
      %v431 = vpack.c.b16 %v418, %v417
      %v432 = vpack.c.b16 %v420, %v419
      %v433 = vpack.c.b16 %v422, %v421
      %v434 = vpack.c.b16 %v424, %v423
      %v435 = vpack.c.b16 %v426, %v425
      %v436 = vpack.c.b16 %v428, %v427
      %445 = vmatprep.subr.bf16.mxu0 0
      %446 = vmatpush1.bf16.msra.mxu0 %v436
      %447 = vmatprep.subr.bf16.mxu0 0
      %448 = vmatpush1.bf16.msra.mxu0 %v435
      %449 = vmatprep.subr.bf16.mxu0 0
      %450 = vmatpush1.bf16.msra.mxu0 %v434
      %451 = vmatprep.subr.bf16.mxu0 0
      %452 = vmatpush1.bf16.msra.mxu0 %v433
      %453 = vmatprep.subr.bf16.mxu0 0
      %454 = vmatpush1.bf16.msra.mxu0 %v432
      %455 = vmatprep.subr.bf16.mxu0 0
      %456 = vmatpush1.bf16.msra.mxu0 %v431
      %457 = vmatprep.subr.bf16.mxu0 0
      %458 = vmatpush1.bf16.msra.mxu0 %v430
      %459 = vmatprep.subr.bf16.mxu0 0
      %460 = vmatpush1.bf16.msra.mxu0 %v429
      %461 = vmatprep.subr.bf16.mxu0 0
      %462 = vmatpush2.bf16.msra.mxu0 0
      %463 = vmatprep.subr.bf16.mxu0 0
      %464 = vmatpush2.bf16.msra.mxu0 0
      %465 = vmatprep.subr.bf16.mxu0 0
      %466 = vmatpush2.bf16.msra.mxu0 0
      %467 = vmatprep.subr.bf16.mxu0 0
      %468 = vmatpush2.bf16.msra.mxu0 0
      %469 = vmatprep.subr.bf16.mxu0 0
      %470 = vmatpush2.bf16.msra.mxu0 0
      %471 = vmatprep.subr.bf16.mxu0 0
      %472 = vmatpush2.bf16.msra.mxu0 0
      %473 = vmatprep.subr.bf16.mxu0 0
      %474 = vmatpush2.bf16.msra.mxu0 0
      %475 = vmatprep.subr.bf16.mxu0 0
      %476 = vmatpush2.bf16.msra.mxu0 0
      %477 = vmatprep.mubr.bf16.mxu0 0
      %478 = vmatmul.mubr.bf16.gmra.mxu0 %v365
      %v479 = vpop.f32.mrf.mxu0
      %v480 = vadd.f32 0.0, %v479
      %v481 = vpop.f32.mrf.mxu0
      %v482 = vpop.f32.mrf.mxu0
      %v483 = vadd.f32 0.0, %v482
      %v484 = vpop.f32.mrf.mxu0
      %485 = vmatprep.mubr.bf16.mxu0 0
      %486 = vmatmul.mubr.bf16.gmra.mxu0 %v366
      %v487 = vpop.f32.mrf.mxu0
      %v488 = vadd.f32 0.0, %v487
      %v489 = vpop.f32.mrf.mxu0
      %v490 = vpop.f32.mrf.mxu0
      %v491 = vadd.f32 0.0, %v490
      %v492 = vpop.f32.mrf.mxu0
      %493 = vmatprep.mubr.bf16.mxu0 0
      %494 = vmatmul.mubr.bf16.gmra.mxu0 %v367
      %v495 = vpop.f32.mrf.mxu0
      %v496 = vadd.f32 0.0, %v495
      %v497 = vpop.f32.mrf.mxu0
      %v498 = vpop.f32.mrf.mxu0
      %v499 = vadd.f32 0.0, %v498
      %v500 = vpop.f32.mrf.mxu0
      %501 = vmatprep.mubr.bf16.mxu0 0
      %502 = vmatmul.mubr.bf16.gmra.mxu0 %v368
      %v503 = vpop.f32.mrf.mxu0
      %v504 = vadd.f32 0.0, %v503
      %v505 = vpop.f32.mrf.mxu0
      %v506 = vpop.f32.mrf.mxu0
      %v507 = vadd.f32 0.0, %v506
      %v508 = vpop.f32.mrf.mxu0
      %509 = vmatprep.mubr.bf16.mxu0 0
      %510 = vmatmul.mubr.bf16.gmra.mxu0 %v369
      %v511 = vpop.f32.mrf.mxu0
      %v512 = vadd.f32 0.0, %v511
      %v513 = vpop.f32.mrf.mxu0
      %v514 = vpop.f32.mrf.mxu0
      %v515 = vadd.f32 0.0, %v514
      %v516 = vpop.f32.mrf.mxu0
      %517 = vmatprep.mubr.bf16.mxu0 0
      %518 = vmatmul.mubr.bf16.gmra.mxu0 %v370
      %v519 = vpop.f32.mrf.mxu0
      %v520 = vadd.f32 0.0, %v519
      %v521 = vpop.f32.mrf.mxu0
      %v522 = vpop.f32.mrf.mxu0
      %v523 = vadd.f32 0.0, %v522
      %v524 = vpop.f32.mrf.mxu0
      %525 = vmatprep.mubr.bf16.mxu0 0
      %526 = vmatmul.mubr.bf16.gmra.mxu0 %v371
      %v527 = vpop.f32.mrf.mxu0
      %v528 = vadd.f32 0.0, %v527
      %v529 = vpop.f32.mrf.mxu0
      %v530 = vpop.f32.mrf.mxu0
      %v531 = vadd.f32 0.0, %v530
      %v532 = vpop.f32.mrf.mxu0
      %533 = vmatprep.mubr.bf16.mxu0 0
      %534 = vmatmul.mubr.bf16.gmra.mxu0 %v372
      %v535 = vpop.f32.mrf.mxu0
      %v536 = vadd.f32 0.0, %v535
      %v537 = vpop.f32.mrf.mxu0
      %v538 = vpop.f32.mrf.mxu0
      %v539 = vadd.f32 0.0, %v538
      %v540 = vpop.f32.mrf.mxu0
      %541 = vmatprep.mubr.bf16.mxu0 0
      %542 = vmatmul.mubr.bf16.gmra.mxu0 %v373
      %v543 = vpop.f32.mrf.mxu0
      %v544 = vadd.f32 0.0, %v543
      %v545 = vpop.f32.mrf.mxu0
      %v546 = vpop.f32.mrf.mxu0
      %v547 = vadd.f32 0.0, %v546
      %v548 = vpop.f32.mrf.mxu0
      %549 = vmatprep.mubr.bf16.mxu0 0
      %550 = vmatmul.mubr.bf16.gmra.mxu0 %v374
      %v551 = vpop.f32.mrf.mxu0
      %v552 = vadd.f32 0.0, %v551
      %v553 = vpop.f32.mrf.mxu0
      %v554 = vpop.f32.mrf.mxu0
      %v555 = vadd.f32 0.0, %v554
      %v556 = vpop.f32.mrf.mxu0
      %557 = vmatprep.mubr.bf16.mxu0 0
      %558 = vmatmul.mubr.bf16.gmra.mxu0 %v375
      %v559 = vpop.f32.mrf.mxu0
      %v560 = vadd.f32 0.0, %v559
      %v561 = vpop.f32.mrf.mxu0
      %v562 = vpop.f32.mrf.mxu0
      %v563 = vadd.f32 0.0, %v562
      %v564 = vpop.f32.mrf.mxu0
      %565 = vmatprep.mubr.bf16.mxu0 0
      %566 = vmatmul.mubr.bf16.gmra.mxu0 %v376
      %v567 = vpop.f32.mrf.mxu0
      %v568 = vadd.f32 0.0, %v567
      %v569 = vpop.f32.mrf.mxu0
      %v570 = vpop.f32.mrf.mxu0
      %v571 = vadd.f32 0.0, %v570
      %v572 = vpop.f32.mrf.mxu0
      %573 = vmatprep.mubr.bf16.mxu0 0
      %574 = vmatmul.mubr.bf16.gmra.mxu0 %v377
      %v575 = vpop.f32.mrf.mxu0
      %v576 = vadd.f32 0.0, %v575
      %v577 = vpop.f32.mrf.mxu0
      %v578 = vpop.f32.mrf.mxu0
      %v579 = vadd.f32 0.0, %v578
      %v580 = vpop.f32.mrf.mxu0
      %581 = vmatprep.mubr.bf16.mxu0 0
      %582 = vmatmul.mubr.bf16.gmra.mxu0 %v378
      %v583 = vpop.f32.mrf.mxu0
      %v584 = vadd.f32 0.0, %v583
      %v585 = vpop.f32.mrf.mxu0
      %v586 = vpop.f32.mrf.mxu0
      %v587 = vadd.f32 0.0, %v586
      %v588 = vpop.f32.mrf.mxu0
      %589 = vmatprep.mubr.bf16.mxu0 0
      %590 = vmatmul.mubr.bf16.gmra.mxu0 %v379
      %v591 = vpop.f32.mrf.mxu0
      %v592 = vadd.f32 0.0, %v591
      %v593 = vpop.f32.mrf.mxu0
      %v594 = vpop.f32.mrf.mxu0
      %v595 = vadd.f32 0.0, %v594
      %v596 = vpop.f32.mrf.mxu0
      %597 = vmatprep.mubr.bf16.mxu0 0
      %598 = vmatmul.mubr.bf16.gmra.mxu0 %v380
      %v599 = vpop.f32.mrf.mxu0
      %v600 = vadd.f32 0.0, %v599
      %v601 = vpop.f32.mrf.mxu0
      %v602 = vpop.f32.mrf.mxu0
      %v603 = vadd.f32 0.0, %v602
      %v604 = vpop.f32.mrf.mxu0
      %605 = vdwg.mxu0
      %v606 = vld [vmem:[%s2] sm:$0x1]
      %v607 = vld [vmem:[%s3] sm:$0x1]
      %v608 = vld [vmem:[%s4] sm:$0xff]
      %v609 = vld [vmem:[%s4 + $0x8] sm:$0xff]
      %v610 = vld [vmem:[%s4 + $0x10] sm:$0xff]
      %v611 = vld [vmem:[%s4 + $0x18] sm:$0xff]
      %v612 = vld [vmem:[%s4 + $0x20] sm:$0xff]
      %v613 = vld [vmem:[%s4 + $0x28] sm:$0xff]
      %v614 = vld [vmem:[%s4 + $0x30] sm:$0xff]
      %v615 = vld [vmem:[%s4 + $0x38] sm:$0xff]
      %v616 = vld [vmem:[%s4 + $0x40] sm:$0xff]
      %v617 = vld [vmem:[%s4 + $0x48] sm:$0xff]
      %v618 = vld [vmem:[%s4 + $0x50] sm:$0xff]
      %v619 = vld [vmem:[%s4 + $0x58] sm:$0xff]
      %v620 = vld [vmem:[%s4 + $0x60] sm:$0xff]
      %v621 = vld [vmem:[%s4 + $0x68] sm:$0xff]
      %v622 = vld [vmem:[%s4 + $0x70] sm:$0xff]
      %v623 = vld [vmem:[%s4 + $0x78] sm:$0xff]
      %v624 = vld [vmem:[%s5] sm:$0xff]
      %v625 = vld [vmem:[%s5 + $0x8] sm:$0xff]
      %v626 = vld [vmem:[%s5 + $0x10] sm:$0xff]
      %v627 = vld [vmem:[%s5 + $0x18] sm:$0xff]
      %v628 = vld [vmem:[%s5 + $0x20] sm:$0xff]
      %v629 = vld [vmem:[%s5 + $0x28] sm:$0xff]
      %v630 = vld [vmem:[%s5 + $0x30] sm:$0xff]
      %v631 = vld [vmem:[%s5 + $0x38] sm:$0xff]
      %v632 = vld [vmem:[%s5 + $0x40] sm:$0xff]
      %v633 = vld [vmem:[%s5 + $0x48] sm:$0xff]
      %v634 = vld [vmem:[%s5 + $0x50] sm:$0xff]
      %v635 = vld [vmem:[%s5 + $0x58] sm:$0xff]
      %v636 = vld [vmem:[%s5 + $0x60] sm:$0xff]
      %v637 = vld [vmem:[%s5 + $0x68] sm:$0xff]
      %v638 = vld [vmem:[%s5 + $0x70] sm:$0xff]
      %v639 = vld [vmem:[%s5 + $0x78] sm:$0xff]
      %v640 = vadd.f32 %v480, %v483
      %v641 = vadd.f32 %v640, %v488
      %v642 = vadd.f32 %v641, %v491
      %v643 = vadd.f32 %v642, %v496
      %v644 = vadd.f32 %v643, %v499
      %v645 = vadd.f32 %v644, %v504
      %v646 = vadd.f32 %v645, %v507
      %v647 = vadd.f32 %v646, %v512
      %v648 = vadd.f32 %v647, %v515
      %v649 = vadd.f32 %v648, %v520
      %v650 = vadd.f32 %v649, %v523
      %v651 = vadd.f32 %v650, %v528
      %v652 = vadd.f32 %v651, %v531
      %v653 = vadd.f32 %v652, %v536
      %v654 = vadd.f32 %v653, %v539
      %v655 = vadd.f32 %v654, %v544
      %v656 = vadd.f32 %v655, %v547
      %v657 = vadd.f32 %v656, %v552
      %v658 = vadd.f32 %v657, %v555
      %v659 = vadd.f32 %v658, %v560
      %v660 = vadd.f32 %v659, %v563
      %v661 = vadd.f32 %v660, %v568
      %v662 = vadd.f32 %v661, %v571
      %v663 = vadd.f32 %v662, %v576
      %v664 = vadd.f32 %v663, %v579
      %v665 = vadd.f32 %v664, %v584
      %v666 = vadd.f32 %v665, %v587
      %v667 = vadd.f32 %v666, %v592
      %v668 = vadd.f32 %v667, %v595
      %v669 = vadd.f32 %v668, %v600
      %v670 = vadd.f32 %v669, %v603
      %v671 = vrot.slane %v670, 4
      %v672 = vadd.f32 %v670, %v671
      %v673 = vrot.slane %v672, 2
      %v674 = vadd.f32 %v672, %v673
      %v675 = vrot.slane %v674, 1
      %v676 = vadd.f32 %v674, %v675
      %v677 = vmul.f32 %v480, %v480
      %v678 = vmul.f32 %v483, %v483
      %v679 = vmul.f32 %v488, %v488
      %v680 = vmul.f32 %v491, %v491
      %v681 = vmul.f32 %v496, %v496
      %v682 = vmul.f32 %v499, %v499
      %v683 = vmul.f32 %v504, %v504
      %v684 = vmul.f32 %v507, %v507
      %v685 = vmul.f32 %v512, %v512
      %v686 = vmul.f32 %v515, %v515
      %v687 = vmul.f32 %v520, %v520
      %v688 = vmul.f32 %v523, %v523
      %v689 = vmul.f32 %v528, %v528
      %v690 = vmul.f32 %v531, %v531
      %v691 = vmul.f32 %v536, %v536
      %v692 = vmul.f32 %v539, %v539
      %v693 = vmul.f32 %v544, %v544
      %v694 = vmul.f32 %v547, %v547
      %v695 = vmul.f32 %v552, %v552
      %v696 = vmul.f32 %v555, %v555
      %v697 = vmul.f32 %v560, %v560
      %v698 = vmul.f32 %v563, %v563
      %v699 = vmul.f32 %v568, %v568
      %v700 = vmul.f32 %v571, %v571
      %v701 = vmul.f32 %v576, %v576
      %v702 = vmul.f32 %v579, %v579
      %v703 = vmul.f32 %v584, %v584
      %v704 = vmul.f32 %v587, %v587
      %v705 = vmul.f32 %v592, %v592
      %v706 = vmul.f32 %v595, %v595
      %v707 = vmul.f32 %v600, %v600
      %v708 = vmul.f32 %v603, %v603
      %v709 = vadd.f32 %v677, %v678
      %v710 = vadd.f32 %v709, %v679
      %v711 = vadd.f32 %v710, %v680
      %v712 = vadd.f32 %v711, %v681
      %v713 = vadd.f32 %v712, %v682
      %v714 = vadd.f32 %v713, %v683
      %v715 = vadd.f32 %v714, %v684
      %v716 = vadd.f32 %v715, %v685
      %v717 = vadd.f32 %v716, %v686
      %v718 = vadd.f32 %v717, %v687
      %v719 = vadd.f32 %v718, %v688
      %v720 = vadd.f32 %v719, %v689
      %v721 = vadd.f32 %v720, %v690
      %v722 = vadd.f32 %v721, %v691
      %v723 = vadd.f32 %v722, %v692
      %v724 = vadd.f32 %v723, %v693
      %v725 = vadd.f32 %v724, %v694
      %v726 = vadd.f32 %v725, %v695
      %v727 = vadd.f32 %v726, %v696
      %v728 = vadd.f32 %v727, %v697
      %v729 = vadd.f32 %v728, %v698
      %v730 = vadd.f32 %v729, %v699
      %v731 = vadd.f32 %v730, %v700
      %v732 = vadd.f32 %v731, %v701
      %v733 = vadd.f32 %v732, %v702
      %v734 = vadd.f32 %v733, %v703
      %v735 = vadd.f32 %v734, %v704
      %v736 = vadd.f32 %v735, %v705
      %v737 = vadd.f32 %v736, %v706
      %v738 = vadd.f32 %v737, %v707
      %v739 = vadd.f32 %v738, %v708
      %v740 = vrot.slane %v739, 4
      %v741 = vadd.f32 %v739, %v740
      %v742 = vrot.slane %v741, 2
      %v743 = vadd.f32 %v741, %v742
      %v744 = vrot.slane %v743, 1
      %v745 = vadd.f32 %v743, %v744
      %746 = vmatprep.subr.mxu0 0.0
      %747 = vmatpush1.msra.mxu0 %v623
      %748 = vmatprep.subr.mxu0 0.0
      %749 = vmatpush1.msra.mxu0 %v622
      %750 = vmatprep.subr.mxu0 0.0
      %751 = vmatpush1.msra.mxu0 %v621
      %752 = vmatprep.subr.mxu0 0.0
      %753 = vmatpush1.msra.mxu0 %v620
      %754 = vmatprep.subr.mxu0 0.0
      %755 = vmatpush1.msra.mxu0 %v619
      %756 = vmatprep.subr.mxu0 0.0
      %757 = vmatpush1.msra.mxu0 %v618
      %758 = vmatprep.subr.mxu0 0.0
      %759 = vmatpush1.msra.mxu0 %v617
      %760 = vmatprep.subr.mxu0 0.0
      %761 = vmatpush1.msra.mxu0 %v616
      %762 = vmatprep.subr.mxu0 0.0
      %763 = vmatpush1.msra.mxu0 %v615
      %764 = vmatprep.subr.mxu0 0.0
      %765 = vmatpush1.msra.mxu0 %v614
      %766 = vmatprep.subr.mxu0 0.0
      %767 = vmatpush1.msra.mxu0 %v613
      %768 = vmatprep.subr.mxu0 0.0
      %769 = vmatpush1.msra.mxu0 %v612
      %770 = vmatprep.subr.mxu0 0.0
      %771 = vmatpush1.msra.mxu0 %v611
      %772 = vmatprep.subr.mxu0 0.0
      %773 = vmatpush1.msra.mxu0 %v610
      %774 = vmatprep.subr.mxu0 0.0
      %775 = vmatpush1.msra.mxu0 %v609
      %776 = vmatprep.subr.mxu0 0.0
      %777 = vmatpush1.msra.mxu0 %v608
      %778 = vmatprep.subr.mxu0 0.0
      %779 = vmatpush2.msra.mxu0 0.0
      %780 = vmatprep.subr.mxu0 0.0
      %781 = vmatpush2.msra.mxu0 0.0
      %782 = vmatprep.subr.mxu0 0.0
      %783 = vmatpush2.msra.mxu0 0.0
      %784 = vmatprep.subr.mxu0 0.0
      %785 = vmatpush2.msra.mxu0 0.0
      %786 = vmatprep.subr.mxu0 0.0
      %787 = vmatpush2.msra.mxu0 0.0
      %788 = vmatprep.subr.mxu0 0.0
      %789 = vmatpush2.msra.mxu0 0.0
      %790 = vmatprep.subr.mxu0 0.0
      %791 = vmatpush2.msra.mxu0 0.0
      %792 = vmatprep.subr.mxu0 0.0
      %793 = vmatpush2.msra.mxu0 0.0
      %794 = vmatprep.subr.mxu0 0.0
      %795 = vmatpush2.msra.mxu0 0.0
      %796 = vmatprep.subr.mxu0 0.0
      %797 = vmatpush2.msra.mxu0 0.0
      %798 = vmatprep.subr.mxu0 0.0
      %799 = vmatpush2.msra.mxu0 0.0
      %800 = vmatprep.subr.mxu0 0.0
      %801 = vmatpush2.msra.mxu0 0.0
      %802 = vmatprep.subr.mxu0 0.0
      %803 = vmatpush2.msra.mxu0 0.0
      %804 = vmatprep.subr.mxu0 0.0
      %805 = vmatpush2.msra.mxu0 0.0
      %806 = vmatprep.subr.mxu0 0.0
      %807 = vmatpush2.msra.mxu0 0.0
      %808 = vmatprep.subr.mxu0 0.0
      %809 = vmatpush2.msra.mxu0 0.0
      %810 = vmatprep.mubr.f32.mxu0 0.0
      %811 = vmatmul.mubr.f32.gmra.mxu0 %v676
      %v812 = vpop.f32.mrf.mxu0
      %v813 = vadd.f32 0.0, %v812
      %v814 = vpop.f32.mrf.mxu0
      %815 = vdwg.mxu0
      %v816 = vmul.f32 %v813, 0.00390625
      %817 = vmatprep.subr.mxu0 0.0
      %818 = vmatpush1.msra.mxu0 %v623
      %819 = vmatprep.subr.mxu0 0.0
      %820 = vmatpush1.msra.mxu0 %v622
      %821 = vmatprep.subr.mxu0 0.0
      %822 = vmatpush1.msra.mxu0 %v621
      %823 = vmatprep.subr.mxu0 0.0
      %824 = vmatpush1.msra.mxu0 %v620
      %825 = vmatprep.subr.mxu0 0.0
      %826 = vmatpush1.msra.mxu0 %v619
      %827 = vmatprep.subr.mxu0 0.0
      %828 = vmatpush1.msra.mxu0 %v618
      %829 = vmatprep.subr.mxu0 0.0
      %830 = vmatpush1.msra.mxu0 %v617
      %831 = vmatprep.subr.mxu0 0.0
      %832 = vmatpush1.msra.mxu0 %v616
      %833 = vmatprep.subr.mxu0 0.0
      %834 = vmatpush1.msra.mxu0 %v615
      %835 = vmatprep.subr.mxu0 0.0
      %836 = vmatpush1.msra.mxu0 %v614
      %837 = vmatprep.subr.mxu0 0.0
      %838 = vmatpush1.msra.mxu0 %v613
      %839 = vmatprep.subr.mxu0 0.0
      %840 = vmatpush1.msra.mxu0 %v612
      %841 = vmatprep.subr.mxu0 0.0
      %842 = vmatpush1.msra.mxu0 %v611
      %843 = vmatprep.subr.mxu0 0.0
      %844 = vmatpush1.msra.mxu0 %v610
      %845 = vmatprep.subr.mxu0 0.0
      %846 = vmatpush1.msra.mxu0 %v609
      %847 = vmatprep.subr.mxu0 0.0
      %848 = vmatpush1.msra.mxu0 %v608
      %849 = vmatprep.subr.mxu0 0.0
      %850 = vmatpush2.msra.mxu0 0.0
      %851 = vmatprep.subr.mxu0 0.0
      %852 = vmatpush2.msra.mxu0 0.0
      %853 = vmatprep.subr.mxu0 0.0
      %854 = vmatpush2.msra.mxu0 0.0
      %855 = vmatprep.subr.mxu0 0.0
      %856 = vmatpush2.msra.mxu0 0.0
      %857 = vmatprep.subr.mxu0 0.0
      %858 = vmatpush2.msra.mxu0 0.0
      %859 = vmatprep.subr.mxu0 0.0
      %860 = vmatpush2.msra.mxu0 0.0
      %861 = vmatprep.subr.mxu0 0.0
      %862 = vmatpush2.msra.mxu0 0.0
      %863 = vmatprep.subr.mxu0 0.0
      %864 = vmatpush2.msra.mxu0 0.0
      %865 = vmatprep.subr.mxu0 0.0
      %866 = vmatpush2.msra.mxu0 0.0
      %867 = vmatprep.subr.mxu0 0.0
      %868 = vmatpush2.msra.mxu0 0.0
      %869 = vmatprep.subr.mxu0 0.0
      %870 = vmatpush2.msra.mxu0 0.0
      %871 = vmatprep.subr.mxu0 0.0
      %872 = vmatpush2.msra.mxu0 0.0
      %873 = vmatprep.subr.mxu0 0.0
      %874 = vmatpush2.msra.mxu0 0.0
      %875 = vmatprep.subr.mxu0 0.0
      %876 = vmatpush2.msra.mxu0 0.0
      %877 = vmatprep.subr.mxu0 0.0
      %878 = vmatpush2.msra.mxu0 0.0
      %879 = vmatprep.subr.mxu0 0.0
      %880 = vmatpush2.msra.mxu0 0.0
      %881 = vmatprep.mubr.f32.mxu0 0.0
      %882 = vmatmul.mubr.f32.gmra.mxu0 %v745
      %v883 = vpop.f32.mrf.mxu0
      %v884 = vadd.f32 0.0, %v883
      %v885 = vpop.f32.mrf.mxu0
      %886 = vdwg.mxu0
      %v887 = vmul.f32 %v884, 0.00390625
      %v888 = vmul.f32 %v816, %v816
      %v889 = vsub.f32 %v887, %v888
      %v890 = vmax.f32 %v889, 0.0
      %v891 = vadd.f32 %v890, 1e-05
      %v892 = vrsqrt.pop %v891
      %893 = vmatprep.subr.mxu0 0.0
      %894 = vmatpush1.msra.mxu0 %v639
      %895 = vmatprep.subr.mxu0 0.0
      %896 = vmatpush1.msra.mxu0 %v638
      %897 = vmatprep.subr.mxu0 0.0
      %898 = vmatpush1.msra.mxu0 %v637
      %899 = vmatprep.subr.mxu0 0.0
      %900 = vmatpush1.msra.mxu0 %v636
      %901 = vmatprep.subr.mxu0 0.0
      %902 = vmatpush1.msra.mxu0 %v635
      %903 = vmatprep.subr.mxu0 0.0
      %904 = vmatpush1.msra.mxu0 %v634
      %905 = vmatprep.subr.mxu0 0.0
      %906 = vmatpush1.msra.mxu0 %v633
      %907 = vmatprep.subr.mxu0 0.0
      %908 = vmatpush1.msra.mxu0 %v632
      %909 = vmatprep.subr.mxu0 0.0
      %910 = vmatpush1.msra.mxu0 %v631
      %911 = vmatprep.subr.mxu0 0.0
      %912 = vmatpush1.msra.mxu0 %v630
      %913 = vmatprep.subr.mxu0 0.0
      %914 = vmatpush1.msra.mxu0 %v629
      %915 = vmatprep.subr.mxu0 0.0
      %916 = vmatpush1.msra.mxu0 %v628
      %917 = vmatprep.subr.mxu0 0.0
      %918 = vmatpush1.msra.mxu0 %v627
      %919 = vmatprep.subr.mxu0 0.0
      %920 = vmatpush1.msra.mxu0 %v626
      %921 = vmatprep.subr.mxu0 0.0
      %922 = vmatpush1.msra.mxu0 %v625
      %923 = vmatprep.subr.mxu0 0.0
      %924 = vmatpush1.msra.mxu0 %v624
      %925 = vmatprep.subr.mxu0 0.0
      %926 = vmatpush2.msra.mxu0 0.0
      %927 = vmatprep.subr.mxu0 0.0
      %928 = vmatpush2.msra.mxu0 0.0
      %929 = vmatprep.subr.mxu0 0.0
      %930 = vmatpush2.msra.mxu0 0.0
      %931 = vmatprep.subr.mxu0 0.0
      %932 = vmatpush2.msra.mxu0 0.0
      %933 = vmatprep.subr.mxu0 0.0
      %934 = vmatpush2.msra.mxu0 0.0
      %935 = vmatprep.subr.mxu0 0.0
      %936 = vmatpush2.msra.mxu0 0.0
      %937 = vmatprep.subr.mxu0 0.0
      %938 = vmatpush2.msra.mxu0 0.0
      %939 = vmatprep.subr.mxu0 0.0
      %940 = vmatpush2.msra.mxu0 0.0
      %941 = vmatprep.subr.mxu0 0.0
      %942 = vmatpush2.msra.mxu0 0.0
      %943 = vmatprep.subr.mxu0 0.0
      %944 = vmatpush2.msra.mxu0 0.0
      %945 = vmatprep.subr.mxu0 0.0
      %946 = vmatpush2.msra.mxu0 0.0
      %947 = vmatprep.subr.mxu0 0.0
      %948 = vmatpush2.msra.mxu0 0.0
      %949 = vmatprep.subr.mxu0 0.0
      %950 = vmatpush2.msra.mxu0 0.0
      %951 = vmatprep.subr.mxu0 0.0
      %952 = vmatpush2.msra.mxu0 0.0
      %953 = vmatprep.subr.mxu0 0.0
      %954 = vmatpush2.msra.mxu0 0.0
      %955 = vmatprep.subr.mxu0 0.0
      %956 = vmatpush2.msra.mxu0 0.0
      %957 = vmatprep.mubr.f32.mxu0 0.0
      %958 = vmatmul.mubr.f32.gmra.mxu0 %v816
      %v959 = vpop.f32.mrf.mxu0
      %v960 = vadd.f32 0.0, %v959
      %v961 = vpop.f32.mrf.mxu0
      %962 = vdwg.mxu0
      %963 = vmatprep.subr.mxu0 0.0
      %964 = vmatpush1.msra.mxu0 %v639
      %965 = vmatprep.subr.mxu0 0.0
      %966 = vmatpush1.msra.mxu0 %v638
      %967 = vmatprep.subr.mxu0 0.0
      %968 = vmatpush1.msra.mxu0 %v637
      %969 = vmatprep.subr.mxu0 0.0
      %970 = vmatpush1.msra.mxu0 %v636
      %971 = vmatprep.subr.mxu0 0.0
      %972 = vmatpush1.msra.mxu0 %v635
      %973 = vmatprep.subr.mxu0 0.0
      %974 = vmatpush1.msra.mxu0 %v634
      %975 = vmatprep.subr.mxu0 0.0
      %976 = vmatpush1.msra.mxu0 %v633
      %977 = vmatprep.subr.mxu0 0.0
      %978 = vmatpush1.msra.mxu0 %v632
      %979 = vmatprep.subr.mxu0 0.0
      %980 = vmatpush1.msra.mxu0 %v631
      %981 = vmatprep.subr.mxu0 0.0
      %982 = vmatpush1.msra.mxu0 %v630
      %983 = vmatprep.subr.mxu0 0.0
      %984 = vmatpush1.msra.mxu0 %v629
      %985 = vmatprep.subr.mxu0 0.0
      %986 = vmatpush1.msra.mxu0 %v628
      %987 = vmatprep.subr.mxu0 0.0
      %988 = vmatpush1.msra.mxu0 %v627
      %989 = vmatprep.subr.mxu0 0.0
      %990 = vmatpush1.msra.mxu0 %v626
      %991 = vmatprep.subr.mxu0 0.0
      %992 = vmatpush1.msra.mxu0 %v625
      %993 = vmatprep.subr.mxu0 0.0
      %994 = vmatpush1.msra.mxu0 %v624
      %995 = vmatprep.subr.mxu0 0.0
      %996 = vmatpush2.msra.mxu0 0.0
      %997 = vmatprep.subr.mxu0 0.0
      %998 = vmatpush2.msra.mxu0 0.0
      %999 = vmatprep.subr.mxu0 0.0
      %1000 = vmatpush2.msra.mxu0 0.0
      %1001 = vmatprep.subr.mxu0 0.0
      %1002 = vmatpush2.msra.mxu0 0.0
      %1003 = vmatprep.subr.mxu0 0.0
      %1004 = vmatpush2.msra.mxu0 0.0
      %1005 = vmatprep.subr.mxu0 0.0
      %1006 = vmatpush2.msra.mxu0 0.0
      %1007 = vmatprep.subr.mxu0 0.0
      %1008 = vmatpush2.msra.mxu0 0.0
      %1009 = vmatprep.subr.mxu0 0.0
      %1010 = vmatpush2.msra.mxu0 0.0
      %1011 = vmatprep.subr.mxu0 0.0
      %1012 = vmatpush2.msra.mxu0 0.0
      %1013 = vmatprep.subr.mxu0 0.0
      %1014 = vmatpush2.msra.mxu0 0.0
      %1015 = vmatprep.subr.mxu0 0.0
      %1016 = vmatpush2.msra.mxu0 0.0
      %1017 = vmatprep.subr.mxu0 0.0
      %1018 = vmatpush2.msra.mxu0 0.0
      %1019 = vmatprep.subr.mxu0 0.0
      %1020 = vmatpush2.msra.mxu0 0.0
      %1021 = vmatprep.subr.mxu0 0.0
      %1022 = vmatpush2.msra.mxu0 0.0
      %1023 = vmatprep.subr.mxu0 0.0
      %1024 = vmatpush2.msra.mxu0 0.0
      %1025 = vmatprep.subr.mxu0 0.0
      %1026 = vmatpush2.msra.mxu0 0.0
      %1027 = vmatprep.mubr.f32.mxu0 0.0
      %1028 = vmatmul.mubr.f32.gmra.mxu0 %v892
      %v1029 = vpop.f32.mrf.mxu0
      %v1030 = vadd.f32 0.0, %v1029
      %v1031 = vpop.f32.mrf.mxu0
      %1032 = vdwg.mxu0
      %v1033 = vlaneseq
      %v1034 = vshrl.u32 %v1033, 7
      %v1035 = vsub.s32 0, %v1034
      %v1036 = vrot.slane %v960, %v1035
      %v1037 = vsub.f32 %v480, %v1036
      %v1038 = vsub.f32 %v483, %v1036
      %v1039 = vsub.f32 %v488, %v1036
      %v1040 = vsub.f32 %v491, %v1036
      %v1041 = vsub.f32 %v496, %v1036
      %v1042 = vsub.f32 %v499, %v1036
      %v1043 = vsub.f32 %v504, %v1036
      %v1044 = vsub.f32 %v507, %v1036
      %v1045 = vsub.f32 %v512, %v1036
      %v1046 = vsub.f32 %v515, %v1036
      %v1047 = vsub.f32 %v520, %v1036
      %v1048 = vsub.f32 %v523, %v1036
      %v1049 = vsub.f32 %v528, %v1036
      %v1050 = vsub.f32 %v531, %v1036
      %v1051 = vsub.f32 %v536, %v1036
      %v1052 = vsub.f32 %v539, %v1036
      %v1053 = vsub.f32 %v544, %v1036
      %v1054 = vsub.f32 %v547, %v1036
      %v1055 = vsub.f32 %v552, %v1036
      %v1056 = vsub.f32 %v555, %v1036
      %v1057 = vsub.f32 %v560, %v1036
      %v1058 = vsub.f32 %v563, %v1036
      %v1059 = vsub.f32 %v568, %v1036
      %v1060 = vsub.f32 %v571, %v1036
      %v1061 = vsub.f32 %v576, %v1036
      %v1062 = vsub.f32 %v579, %v1036
      %v1063 = vsub.f32 %v584, %v1036
      %v1064 = vsub.f32 %v587, %v1036
      %v1065 = vsub.f32 %v592, %v1036
      %v1066 = vsub.f32 %v595, %v1036
      %v1067 = vsub.f32 %v600, %v1036
      %v1068 = vsub.f32 %v603, %v1036
      %v1069 = vmul.f32 %v1030, %v606
      %v1070 = vlaneseq
      %v1071 = vshrl.u32 %v1070, 7
      %v1072 = vsub.s32 0, %v1071
      %v1073 = vrot.slane %v1069, %v1072
      %v1074 = vmul.f32 %v1037, %v1073
      %v1075 = vmul.f32 %v1038, %v1073
      %v1076 = vmul.f32 %v1039, %v1073
      %v1077 = vmul.f32 %v1040, %v1073
      %v1078 = vmul.f32 %v1041, %v1073
      %v1079 = vmul.f32 %v1042, %v1073
      %v1080 = vmul.f32 %v1043, %v1073
      %v1081 = vmul.f32 %v1044, %v1073
      %v1082 = vmul.f32 %v1045, %v1073
      %v1083 = vmul.f32 %v1046, %v1073
      %v1084 = vmul.f32 %v1047, %v1073
      %v1085 = vmul.f32 %v1048, %v1073
      %v1086 = vmul.f32 %v1049, %v1073
      %v1087 = vmul.f32 %v1050, %v1073
      %v1088 = vmul.f32 %v1051, %v1073
      %v1089 = vmul.f32 %v1052, %v1073
      %v1090 = vmul.f32 %v1053, %v1073
      %v1091 = vmul.f32 %v1054, %v1073
      %v1092 = vmul.f32 %v1055, %v1073
      %v1093 = vmul.f32 %v1056, %v1073
      %v1094 = vmul.f32 %v1057, %v1073
      %v1095 = vmul.f32 %v1058, %v1073
      %v1096 = vmul.f32 %v1059, %v1073
      %v1097 = vmul.f32 %v1060, %v1073
      %v1098 = vmul.f32 %v1061, %v1073
      %v1099 = vmul.f32 %v1062, %v1073
      %v1100 = vmul.f32 %v1063, %v1073
      %v1101 = vmul.f32 %v1064, %v1073
      %v1102 = vmul.f32 %v1065, %v1073
      %v1103 = vmul.f32 %v1066, %v1073
      %v1104 = vmul.f32 %v1067, %v1073
      %v1105 = vmul.f32 %v1068, %v1073
      %v1107 = vlaneseq
      %v1108 = vshrl.u32 %v1107, 7
      %v1109 = vsub.s32 0, %v1108
      %v1110 = vrot.slane %v607, %v1109
      %v1112 = vadd.f32 %v1074, %v1110
      %v1113 = vadd.f32 %v1075, %v1110
      %v1114 = vadd.f32 %v1076, %v1110
      %v1115 = vadd.f32 %v1077, %v1110
      %v1116 = vadd.f32 %v1078, %v1110
      %v1117 = vadd.f32 %v1079, %v1110
      %v1118 = vadd.f32 %v1080, %v1110
      %v1119 = vadd.f32 %v1081, %v1110
      %v1120 = vadd.f32 %v1082, %v1110
      %v1121 = vadd.f32 %v1083, %v1110
      %v1122 = vadd.f32 %v1084, %v1110
      %v1123 = vadd.f32 %v1085, %v1110
      %v1124 = vadd.f32 %v1086, %v1110
      %v1125 = vadd.f32 %v1087, %v1110
      %v1126 = vadd.f32 %v1088, %v1110
      %v1127 = vadd.f32 %v1089, %v1110
      %v1128 = vadd.f32 %v1090, %v1110
      %v1129 = vadd.f32 %v1091, %v1110
      %v1130 = vadd.f32 %v1092, %v1110
      %v1131 = vadd.f32 %v1093, %v1110
      %v1132 = vadd.f32 %v1094, %v1110
      %v1133 = vadd.f32 %v1095, %v1110
      %v1134 = vadd.f32 %v1096, %v1110
      %v1135 = vadd.f32 %v1097, %v1110
      %v1136 = vadd.f32 %v1098, %v1110
      %v1137 = vadd.f32 %v1099, %v1110
      %v1138 = vadd.f32 %v1100, %v1110
      %v1139 = vadd.f32 %v1101, %v1110
      %v1140 = vadd.f32 %v1102, %v1110
      %v1141 = vadd.f32 %v1103, %v1110
      %v1142 = vadd.f32 %v1104, %v1110
      %v1143 = vadd.f32 %v1105, %v1110
      %v1144 = vmax.f32 %v1112, 0.0
      %v1145 = vmax.f32 %v1113, 0.0
      %v1146 = vmax.f32 %v1114, 0.0
      %v1147 = vmax.f32 %v1115, 0.0
      %v1148 = vmax.f32 %v1116, 0.0
      %v1149 = vmax.f32 %v1117, 0.0
      %v1150 = vmax.f32 %v1118, 0.0
      %v1151 = vmax.f32 %v1119, 0.0
      %v1152 = vmax.f32 %v1120, 0.0
      %v1153 = vmax.f32 %v1121, 0.0
      %v1154 = vmax.f32 %v1122, 0.0
      %v1155 = vmax.f32 %v1123, 0.0
      %v1156 = vmax.f32 %v1124, 0.0
      %v1157 = vmax.f32 %v1125, 0.0
      %v1158 = vmax.f32 %v1126, 0.0
      %v1159 = vmax.f32 %v1127, 0.0
      %v1160 = vmax.f32 %v1128, 0.0
      %v1161 = vmax.f32 %v1129, 0.0
      %v1162 = vmax.f32 %v1130, 0.0
      %v1163 = vmax.f32 %v1131, 0.0
      %v1164 = vmax.f32 %v1132, 0.0
      %v1165 = vmax.f32 %v1133, 0.0
      %v1166 = vmax.f32 %v1134, 0.0
      %v1167 = vmax.f32 %v1135, 0.0
      %v1168 = vmax.f32 %v1136, 0.0
      %v1169 = vmax.f32 %v1137, 0.0
      %v1170 = vmax.f32 %v1138, 0.0
      %v1171 = vmax.f32 %v1139, 0.0
      %v1172 = vmax.f32 %v1140, 0.0
      %v1173 = vmax.f32 %v1141, 0.0
      %v1174 = vmax.f32 %v1142, 0.0
      %v1175 = vmax.f32 %v1143, 0.0
      %v1176 = vpack.c.bf16 %v1145, %v1144
      %v1177 = vpack.c.bf16 %v1147, %v1146
      %v1178 = vpack.c.bf16 %v1149, %v1148
      %v1179 = vpack.c.bf16 %v1151, %v1150
      %v1180 = vpack.c.bf16 %v1153, %v1152
      %v1181 = vpack.c.bf16 %v1155, %v1154
      %v1182 = vpack.c.bf16 %v1157, %v1156
      %v1183 = vpack.c.bf16 %v1159, %v1158
      %v1184 = vpack.c.bf16 %v1161, %v1160
      %v1185 = vpack.c.bf16 %v1163, %v1162
      %v1186 = vpack.c.bf16 %v1165, %v1164
      %v1187 = vpack.c.bf16 %v1167, %v1166
      %v1188 = vpack.c.bf16 %v1169, %v1168
      %v1189 = vpack.c.bf16 %v1171, %v1170
      %v1190 = vpack.c.bf16 %v1173, %v1172
      %v1191 = vpack.c.bf16 %v1175, %v1174
      %v1208 = vunpack.c.l.b16 %v1176
      %v1209 = vunpack.c.h.b16 %v1176
      %v1210 = vunpack.c.l.b16 %v1177
      %v1211 = vunpack.c.h.b16 %v1177
      %v1212 = vunpack.c.l.b16 %v1178
      %v1213 = vunpack.c.h.b16 %v1178
      %v1214 = vunpack.c.l.b16 %v1179
      %v1215 = vunpack.c.h.b16 %v1179
      %v1216 = vunpack.c.l.b16 %v1180
      %v1217 = vunpack.c.h.b16 %v1180
      %v1218 = vunpack.c.l.b16 %v1181
      %v1219 = vunpack.c.h.b16 %v1181
      %v1220 = vunpack.c.l.b16 %v1182
      %v1221 = vunpack.c.h.b16 %v1182
      %v1222 = vunpack.c.l.b16 %v1183
      %v1223 = vunpack.c.h.b16 %v1183
      %v1224 = vunpack.c.l.b16 %v1184
      %v1225 = vunpack.c.h.b16 %v1184
      %v1226 = vunpack.c.l.b16 %v1185
      %v1227 = vunpack.c.h.b16 %v1185
      %v1228 = vunpack.c.l.b16 %v1186
      %v1229 = vunpack.c.h.b16 %v1186
      %v1230 = vunpack.c.l.b16 %v1187
      %v1231 = vunpack.c.h.b16 %v1187
      %v1232 = vunpack.c.l.b16 %v1188
      %v1233 = vunpack.c.h.b16 %v1188
      %v1234 = vunpack.c.l.b16 %v1189
      %v1235 = vunpack.c.h.b16 %v1189
      %v1236 = vunpack.c.l.b16 %v1190
      %v1237 = vunpack.c.h.b16 %v1190
      %v1238 = vunpack.c.l.b16 %v1191
      %v1239 = vunpack.c.h.b16 %v1191
      %v1240 = vpack.c.b16 %v1208, %v1208
      %v1241 = vpack.c.b16 %v1209, %v1209
      %v1242 = vpack.c.b16 %v1210, %v1210
      %v1243 = vpack.c.b16 %v1211, %v1211
      %v1244 = vpack.c.b16 %v1212, %v1212
      %v1245 = vpack.c.b16 %v1213, %v1213
      %v1246 = vpack.c.b16 %v1214, %v1214
      %v1247 = vpack.c.b16 %v1215, %v1215
      %v1248 = vpack.c.b16 %v1216, %v1216
      %v1249 = vpack.c.b16 %v1217, %v1217
      %v1250 = vpack.c.b16 %v1218, %v1218
      %v1251 = vpack.c.b16 %v1219, %v1219
      %v1252 = vpack.c.b16 %v1220, %v1220
      %v1253 = vpack.c.b16 %v1221, %v1221
      %v1254 = vpack.c.b16 %v1222, %v1222
      %v1255 = vpack.c.b16 %v1223, %v1223
      %v1256 = vpack.c.b16 %v1224, %v1224
      %v1257 = vpack.c.b16 %v1225, %v1225
      %v1258 = vpack.c.b16 %v1226, %v1226
      %v1259 = vpack.c.b16 %v1227, %v1227
      %v1260 = vpack.c.b16 %v1228, %v1228
      %v1261 = vpack.c.b16 %v1229, %v1229
      %v1262 = vpack.c.b16 %v1230, %v1230
      %v1263 = vpack.c.b16 %v1231, %v1231
      %v1264 = vpack.c.b16 %v1232, %v1232
      %v1265 = vpack.c.b16 %v1233, %v1233
      %v1266 = vpack.c.b16 %v1234, %v1234
      %v1267 = vpack.c.b16 %v1235, %v1235
      %v1268 = vpack.c.b16 %v1236, %v1236
      %v1269 = vpack.c.b16 %v1237, %v1237
      %v1270 = vpack.c.b16 %v1238, %v1238
      %v1271 = vpack.c.b16 %v1239, %v1239
      %1304 = vst [vmem:[%s251] sm:$0xf] %v1240
      %1305 = vst [vmem:[%s251 + $0x4] sm:$0xf] %v1241
      %1306 = vst [vmem:[%s251 + $0x8] sm:$0xf] %v1242
      %1307 = vst [vmem:[%s251 + $0xc] sm:$0xf] %v1243
      %1308 = vst [vmem:[%s251 + $0x10] sm:$0xf] %v1244
      %1309 = vst [vmem:[%s251 + $0x14] sm:$0xf] %v1245
      %1310 = vst [vmem:[%s251 + $0x18] sm:$0xf] %v1246
      %1311 = vst [vmem:[%s251 + $0x1c] sm:$0xf] %v1247
      %1312 = vst [vmem:[%s251 + $0x20] sm:$0xf] %v1248
      %1313 = vst [vmem:[%s251 + $0x24] sm:$0xf] %v1249
      %1314 = vst [vmem:[%s251 + $0x28] sm:$0xf] %v1250
      %1315 = vst [vmem:[%s251 + $0x2c] sm:$0xf] %v1251
      %1316 = vst [vmem:[%s251 + $0x30] sm:$0xf] %v1252
      %1317 = vst [vmem:[%s251 + $0x34] sm:$0xf] %v1253
      %1318 = vst [vmem:[%s251 + $0x38] sm:$0xf] %v1254
      %1319 = vst [vmem:[%s251 + $0x3c] sm:$0xf] %v1255
      %1320 = vst [vmem:[%s251 + $0x40] sm:$0xf] %v1256
      %1321 = vst [vmem:[%s251 + $0x44] sm:$0xf] %v1257
      %1322 = vst [vmem:[%s251 + $0x48] sm:$0xf] %v1258
      %1323 = vst [vmem:[%s251 + $0x4c] sm:$0xf] %v1259
      %1324 = vst [vmem:[%s251 + $0x50] sm:$0xf] %v1260
      %1325 = vst [vmem:[%s251 + $0x54] sm:$0xf] %v1261
      %1326 = vst [vmem:[%s251 + $0x58] sm:$0xf] %v1262
      %1327 = vst [vmem:[%s251 + $0x5c] sm:$0xf] %v1263
      %1328 = vst [vmem:[%s251 + $0x60] sm:$0xf] %v1264
      %1329 = vst [vmem:[%s251 + $0x64] sm:$0xf] %v1265
      %1330 = vst [vmem:[%s251 + $0x68] sm:$0xf] %v1266
      %1331 = vst [vmem:[%s251 + $0x6c] sm:$0xf] %v1267
      %1332 = vst [vmem:[%s251 + $0x70] sm:$0xf] %v1268
      %1333 = vst [vmem:[%s251 + $0x74] sm:$0xf] %v1269
      %1334 = vst [vmem:[%s251 + $0x78] sm:$0xf] %v1270
      %1335 = vst [vmem:[%s251 + $0x7c] sm:$0xf] %v1271
      %p1336 = scmp.lt.s32.totalorder %s17, 1
      %s1337 = scalar_select %p1336, %s17, 1
      %s1338 = smul.addr %s1337, 32
      %s1339 = smul.addr %s1338, 4
      %s1340 = scalar_lea.vmem %s6, %s1339
      // Predicated region
      $region45: #{_lambda_.8} parent=43 // pred_check
        %p1341 = pneg %p166
      $region46: #{_lambda_.8} parent=43 // pred_check_branch
        %1343 = sbr.rel (%p1341) target = $region48
      $region47: #{_lambda_.8} parent=43 // pred_region
        _
      $region48: #{_lambda_.8} parent=43 // pred_fallthru
        _
    $region44: #{_lambda_.8} parent=5 // pred_fallthru
      _
    %p1344 = scmp.le.s32.totalorder 2, %s12
    // Predicated region
    $region49: #{_lambda_.8} parent=5 // pred_check
      %p1345 = pneg %p1344
    $region50: #{_lambda_.8} parent=5 // pred_check_branch
      %1347 = sbr.rel (%p1345) target = $region52
    $region51: #{_lambda_.8} parent=5 // pred_region
      %s1348 = ssub.s32 %s12, 2
      // Predicated region
      $region53: #{_lambda_.8} parent=51 // pred_check
        %p1349 = pneg %p172
      $region54: #{_lambda_.8} parent=51 // pred_check_branch
        %1351 = sbr.rel (%p1349) target = $region56
      $region55: #{_lambda_.8} parent=51 // pred_region
        %p1352 = scmp.lt.s32.totalorder %s18, 1
        %s1353 = scalar_select %p1352, %s18, 1
        %s1354 = smul.addr %s1353, 32
        %s1355 = smul.addr %s1354, 4
        %s1356 = scalar_lea.vmem %s6, %s1355
      $region56: #{_lambda_.8} parent=51 // pred_fallthru
        _
    $region52: #{_lambda_.8} parent=5 // pred_fallthru
      _
  $region6: #{_lambda_.8} parent=0 // loop_footer
    %s16 = sadd.s32 1, %s12
  $region7: #{_lambda_.8} parent=0 // loop_footer_branch
    %11 = sbr.rel target = $region3
  $region8: #{_lambda_.8} parent=0 // loop_exit
    _

// kernel: _lambda_.10
$region0: #{_lambda_.10}
  #allocation0 [shape = 'u32[]', space=smem, size = 0x4, offset = 0x4, fixed_abs, tag = 'smem constant byte address 0x4 - core index']
  #allocation1 [shape = 'u32[144,128]{1,0:T(1,128)}', space=vmem, size = 0x12000, scoped, tag = 'internal scratch']
  %s0 = inlined_call_operand.vmem [shape: bf16[2,64,128], index: 0, kind: input, shape index: {}]
  %s1 = inlined_call_operand.vmem [shape: bf16[2,64,128], index: 1, kind: input, shape index: {}]
  %s2 = inlined_call_operand.vmem [shape: bf16[128,128], index: 2, kind: input, shape index: {}]
  %s3 = inlined_call_operand.vmem [shape: f32[1,128], index: 3, kind: input, shape index: {}]
  %s4 = inlined_call_operand.vmem [shape: f32[1,128], index: 4, kind: input, shape index: {}]
  %s5 = inlined_call_operand.vmem [shape: f32[128,128], index: 5, kind: input, shape index: {}]
  %s6 = inlined_call_operand.vmem [shape: f32[128,128], index: 6, kind: input, shape index: {}]
  %s7 = inlined_call_operand.vmem [shape: bf16[2,64,128], index: 7, kind: output, shape index: {}]
  %s8 = sld [smem:[#allocation0]]
  $region61: #{_lambda_.10} parent=0
    _
  %s10 = ssub.s32 1, %s8
  %s11 = scalar_select 0, %s10, %s8
  loop: start=0, step=1, limit=4
  $region2: #{_lambda_.10} parent=0 // loop_pre_header
    _
  $region3: #{_lambda_.10} parent=0 // loop_header
    %s13 = sphi 0, %s17
    %p14 = scmp.ge.s32.totalorder %s13, 4
    %s23 = sphi 0, %s25
    %s26 = sphi 0, %s23
    %s27 = sphi 0, %s26
    %s43 = sphi 0, %s27
    %s49 = sphi 0, %s51
    %s52 = sphi 0, %s49
    %s53 = sphi 0, %s52
    %s69 = sphi 0, %s53
    %s73 = sphi 0, %s73
    %s75 = sphi 0, %s73
    %s76 = sphi 0, %s75
    %s90 = sphi 0, %s76
    %s94 = sphi 0, %s94
    %s96 = sphi 0, %s94
    %s97 = sphi 0, %s96
    %s111 = sphi 0, %s97
    %s115 = sphi 0, %s115
    %s117 = sphi 0, %s115
    %s118 = sphi 0, %s117
    %s132 = sphi 0, %s118
    %s136 = sphi 0, %s136
    %s138 = sphi 0, %s136
    %s139 = sphi 0, %s138
    %s153 = sphi 0, %s139
    %s157 = sphi 0, %s157
    %s159 = sphi 0, %s157
    %s160 = sphi 0, %s159
    %s174 = sphi 0, %s160
    %s180 = sphi 0, %s182
    %s183 = sphi 0, %s180
    %s184 = sphi 0, %s183
    %s200 = sphi 0, %s184
  $region4: #{_lambda_.10} parent=0 // loop_header_branch
    %16 = sbr.rel (%p14) target = $region8
  $region5: #{_lambda_.10} parent=0 // loop_body
    %s18 = ssub.s32 %s13, 1
    %s19 = ssub.s32 %s13, 2
    %s20 = sadd.s32 %s13, 1
    %s21 = ssub.s32 %s13, %s20
    %p22 = scmp.eq.s32.totalorder %s21, 0
    %s24 = sadd.s32 %s23, 1
    %s25 = scalar_select %p22, %s23, %s24
    %p28 = pneg %p22
    %p29 = scmp.eq.s32.totalorder %s13, 1
    %p30 = por %p28, %p29
    %p31 = scmp.ne.s32.totalorder %s23, %s26
    %p32 = scmp.eq.s32.totalorder %s13, 0
    %p33 = por %p31, %p32
    %p34 = scmp.ne.s32.totalorder %s23, %s26
    %p35 = scmp.eq.s32.totalorder %s18, 1
    %p36 = por %p34, %p35
    %p37 = scmp.ne.s32.totalorder %s26, %s27
    %p38 = scmp.eq.s32.totalorder %s18, 0
    %p39 = por %p37, %p38
    %p40 = scmp.ne.s32.totalorder %s26, %s27
    %p41 = scmp.eq.s32.totalorder %s19, 1
    %p42 = por %p40, %p41
    %p44 = scmp.ne.s32.totalorder %s27, %s43
    %p45 = scmp.eq.s32.totalorder %s19, 0
    %p46 = por %p44, %p45
    %s47 = ssub.s32 %s13, %s20
    %p48 = scmp.eq.s32.totalorder %s47, 0
    %s50 = sadd.s32 %s49, 1
    %s51 = scalar_select %p48, %s49, %s50
    %p54 = pneg %p48
    %p55 = scmp.eq.s32.totalorder %s13, 1
    %p56 = por %p54, %p55
    %p57 = scmp.ne.s32.totalorder %s49, %s52
    %p58 = scmp.eq.s32.totalorder %s13, 0
    %p59 = por %p57, %p58
    %p60 = scmp.ne.s32.totalorder %s49, %s52
    %p61 = scmp.eq.s32.totalorder %s18, 1
    %p62 = por %p60, %p61
    %p63 = scmp.ne.s32.totalorder %s52, %s53
    %p64 = scmp.eq.s32.totalorder %s18, 0
    %p65 = por %p63, %p64
    %p66 = scmp.ne.s32.totalorder %s52, %s53
    %p67 = scmp.eq.s32.totalorder %s19, 1
    %p68 = por %p66, %p67
    %p70 = scmp.ne.s32.totalorder %s53, %s69
    %p71 = scmp.eq.s32.totalorder %s19, 0
    %p72 = por %p70, %p71
    %s74 = sadd.s32 %s73, 1
    %p77 = scmp.eq.s32.totalorder %s13, 1
    %p78 = scmp.ne.s32.totalorder %s73, %s75
    %p79 = scmp.eq.s32.totalorder %s13, 0
    %p80 = por %p78, %p79
    %p81 = scmp.ne.s32.totalorder %s73, %s75
    %p82 = scmp.eq.s32.totalorder %s18, 1
    %p83 = por %p81, %p82
    %p84 = scmp.ne.s32.totalorder %s75, %s76
    %p85 = scmp.eq.s32.totalorder %s18, 0
    %p86 = por %p84, %p85
    %p87 = scmp.ne.s32.totalorder %s75, %s76
    %p88 = scmp.eq.s32.totalorder %s19, 1
    %p89 = por %p87, %p88
    %p91 = scmp.ne.s32.totalorder %s76, %s90
    %p92 = scmp.eq.s32.totalorder %s19, 0
    %p93 = por %p91, %p92
    %s95 = sadd.s32 %s94, 1
    %p98 = scmp.eq.s32.totalorder %s13, 1
    %p99 = scmp.ne.s32.totalorder %s94, %s96
    %p100 = scmp.eq.s32.totalorder %s13, 0
    %p101 = por %p99, %p100
    %p102 = scmp.ne.s32.totalorder %s94, %s96
    %p103 = scmp.eq.s32.totalorder %s18, 1
    %p104 = por %p102, %p103
    %p105 = scmp.ne.s32.totalorder %s96, %s97
    %p106 = scmp.eq.s32.totalorder %s18, 0
    %p107 = por %p105, %p106
    %p108 = scmp.ne.s32.totalorder %s96, %s97
    %p109 = scmp.eq.s32.totalorder %s19, 1
    %p110 = por %p108, %p109
    %p112 = scmp.ne.s32.totalorder %s97, %s111
    %p113 = scmp.eq.s32.totalorder %s19, 0
    %p114 = por %p112, %p113
    %s116 = sadd.s32 %s115, 1
    %p119 = scmp.eq.s32.totalorder %s13, 1
    %p120 = scmp.ne.s32.totalorder %s115, %s117
    %p121 = scmp.eq.s32.totalorder %s13, 0
    %p122 = por %p120, %p121
    %p123 = scmp.ne.s32.totalorder %s115, %s117
    %p124 = scmp.eq.s32.totalorder %s18, 1
    %p125 = por %p123, %p124
    %p126 = scmp.ne.s32.totalorder %s117, %s118
    %p127 = scmp.eq.s32.totalorder %s18, 0
    %p128 = por %p126, %p127
    %p129 = scmp.ne.s32.totalorder %s117, %s118
    %p130 = scmp.eq.s32.totalorder %s19, 1
    %p131 = por %p129, %p130
    %p133 = scmp.ne.s32.totalorder %s118, %s132
    %p134 = scmp.eq.s32.totalorder %s19, 0
    %p135 = por %p133, %p134
    %s137 = sadd.s32 %s136, 1
    %p140 = scmp.eq.s32.totalorder %s13, 1
    %p141 = scmp.ne.s32.totalorder %s136, %s138
    %p142 = scmp.eq.s32.totalorder %s13, 0
    %p143 = por %p141, %p142
    %p144 = scmp.ne.s32.totalorder %s136, %s138
    %p145 = scmp.eq.s32.totalorder %s18, 1
    %p146 = por %p144, %p145
    %p147 = scmp.ne.s32.totalorder %s138, %s139
    %p148 = scmp.eq.s32.totalorder %s18, 0
    %p149 = por %p147, %p148
    %p150 = scmp.ne.s32.totalorder %s138, %s139
    %p151 = scmp.eq.s32.totalorder %s19, 1
    %p152 = por %p150, %p151
    %p154 = scmp.ne.s32.totalorder %s139, %s153
    %p155 = scmp.eq.s32.totalorder %s19, 0
    %p156 = por %p154, %p155
    %s158 = sadd.s32 %s157, 1
    %p161 = scmp.eq.s32.totalorder %s13, 1
    %p162 = scmp.ne.s32.totalorder %s157, %s159
    %p163 = scmp.eq.s32.totalorder %s13, 0
    %p164 = por %p162, %p163
    %p165 = scmp.ne.s32.totalorder %s157, %s159
    %p166 = scmp.eq.s32.totalorder %s18, 1
    %p167 = por %p165, %p166
    %p168 = scmp.ne.s32.totalorder %s159, %s160
    %p169 = scmp.eq.s32.totalorder %s18, 0
    %p170 = por %p168, %p169
    %p171 = scmp.ne.s32.totalorder %s159, %s160
    %p172 = scmp.eq.s32.totalorder %s19, 1
    %p173 = por %p171, %p172
    %p175 = scmp.ne.s32.totalorder %s160, %s174
    %p176 = scmp.eq.s32.totalorder %s19, 0
    %p177 = por %p175, %p176
    %s178 = ssub.s32 %s13, %s20
    %p179 = scmp.eq.s32.totalorder %s178, 0
    %s181 = sadd.s32 %s180, 1
    %s182 = scalar_select %p179, %s180, %s181
    %p185 = pneg %p179
    %p186 = scmp.eq.s32.totalorder %s13, 1
    %p187 = por %p185, %p186
    %p188 = scmp.ne.s32.totalorder %s180, %s183
    %p189 = scmp.eq.s32.totalorder %s13, 0
    %p190 = por %p188, %p189
    %p191 = scmp.ne.s32.totalorder %s180, %s183
    %p192 = scmp.eq.s32.totalorder %s18, 1
    %p193 = por %p191, %p192
    %p194 = scmp.ne.s32.totalorder %s183, %s184
    %p195 = scmp.eq.s32.totalorder %s18, 0
    %p196 = por %p194, %p195
    %p197 = scmp.ne.s32.totalorder %s183, %s184
    %p198 = scmp.eq.s32.totalorder %s19, 1
    %p199 = por %p197, %p198
    %p201 = scmp.ne.s32.totalorder %s184, %s200
    %p202 = scmp.eq.s32.totalorder %s19, 0
    %p203 = por %p201, %p202
    %p204 = scmp.le.s32.totalorder 1, %s13
    %p205 = scmp.lt.s32.totalorder %s13, 3
    %p206 = pnand %p204, %p205
    %p207 = pneg %p206
    // Predicated region
    $region9: #{_lambda_.10} parent=5 // pred_check
      _
    $region10: #{_lambda_.10} parent=5 // pred_check_branch
      %209 = sbr.rel (%p206) target = $region12
    $region11: #{_lambda_.10} parent=5 // pred_region
      %s210 = ssub.s32 %s13, 1
      // Predicated region
      $region13: #{_lambda_.10} parent=11 // pred_check
        %p211 = pneg %p86
      $region14: #{_lambda_.10} parent=11 // pred_check_branch
        %213 = sbr.rel (%p211) target = $region16
      $region15: #{_lambda_.10} parent=11 // pred_region
        _
      $region16: #{_lambda_.10} parent=11 // pred_fallthru
        _
      // Predicated region
      $region17: #{_lambda_.10} parent=11 // pred_check
        %p214 = pneg %p107
      $region18: #{_lambda_.10} parent=11 // pred_check_branch
        %216 = sbr.rel (%p214) target = $region20
      $region19: #{_lambda_.10} parent=11 // pred_region
        _
      $region20: #{_lambda_.10} parent=11 // pred_fallthru
        _
      // Predicated region
      $region21: #{_lambda_.10} parent=11 // pred_check
        %p217 = pneg %p128
      $region22: #{_lambda_.10} parent=11 // pred_check_branch
        %219 = sbr.rel (%p217) target = $region24
      $region23: #{_lambda_.10} parent=11 // pred_region
        _
      $region24: #{_lambda_.10} parent=11 // pred_fallthru
        _
      // Predicated region
      $region25: #{_lambda_.10} parent=11 // pred_check
        %p220 = pneg %p149
      $region26: #{_lambda_.10} parent=11 // pred_check_branch
        %222 = sbr.rel (%p220) target = $region28
      $region27: #{_lambda_.10} parent=11 // pred_region
        _
      $region28: #{_lambda_.10} parent=11 // pred_fallthru
        _
      // Predicated region
      $region29: #{_lambda_.10} parent=11 // pred_check
        %p223 = pneg %p170
      $region30: #{_lambda_.10} parent=11 // pred_check_branch
        %225 = sbr.rel (%p223) target = $region32
      $region31: #{_lambda_.10} parent=11 // pred_region
        _
      $region32: #{_lambda_.10} parent=11 // pred_fallthru
        _
    $region12: #{_lambda_.10} parent=5 // pred_fallthru
      _
    %p226 = scmp.lt.s32.totalorder %s13, 2
    // Predicated region
    $region33: #{_lambda_.10} parent=5 // pred_check
      %p227 = pneg %p226
    $region34: #{_lambda_.10} parent=5 // pred_check_branch
      %229 = sbr.rel (%p227) target = $region36
    $region35: #{_lambda_.10} parent=5 // pred_region
      // Predicated region
      $region37: #{_lambda_.10} parent=35 // pred_check
        %p230 = pneg %p33
      $region38: #{_lambda_.10} parent=35 // pred_check_branch
        %232 = sbr.rel (%p230) target = $region40
      $region39: #{_lambda_.10} parent=35 // pred_region
        %p233 = scmp.lt.s32.totalorder %s13, 1
        %s234 = scalar_select %p233, %s13, 1
        %s235 = smul.addr %s234, 8
        %s236 = smul.addr %s235, 4
        %s237 = scalar_lea.vmem %s0, %s236
      $region40: #{_lambda_.10} parent=35 // pred_fallthru
        _
      // Predicated region
      $region41: #{_lambda_.10} parent=35 // pred_check
        %p238 = pneg %p59
      $region42: #{_lambda_.10} parent=35 // pred_check_branch
        %240 = sbr.rel (%p238) target = $region44
      $region43: #{_lambda_.10} parent=35 // pred_region
        %p241 = scmp.lt.s32.totalorder %s13, 1
        %s242 = scalar_select %p241, %s13, 1
        %s243 = smul.addr %s242, 8
        %s244 = smul.addr %s243, 4
        %s245 = scalar_lea.vmem %s1, %s244
      $region44: #{_lambda_.10} parent=35 // pred_fallthru
        _
    $region36: #{_lambda_.10} parent=5 // pred_fallthru
      _
    %p246 = scmp.le.s32.totalorder 1, %s13
    %p247 = scmp.lt.s32.totalorder %s13, 3
    %p248 = pnand %p246, %p247
    %p249 = pneg %p248
    // Predicated region
    $region45: #{_lambda_.10} parent=5 // pred_check
      _
    $region46: #{_lambda_.10} parent=5 // pred_check_branch
      %251 = sbr.rel (%p248) target = $region48
    $region47: #{_lambda_.10} parent=5 // pred_region
      %s252 = ssub.s32 %s13, 1
      %p253 = scmp.lt.s32.totalorder %s18, 1
      %s254 = scalar_select %p253, %s18, 1
      %s255 = smul.addr %s254, 8
      %s256 = smul.addr %s255, 4
      %s257 = scalar_lea.vmem %s0, %s256
      %p258 = pneg %p39
      %p259 = pneg %p36
      %p260 = scmp.lt.s32.totalorder %s18, 1
      %s261 = scalar_select %p260, %s18, 1
      %s262 = smul.addr %s261, 8
      %s263 = smul.addr %s262, 4
      %s264 = scalar_lea.vmem %s1, %s263
      %p265 = pneg %p65
      %p266 = pneg %p62
      %p267 = pneg %p86
      %p268 = pneg %p83
      %p269 = pneg %p107
      %p270 = pneg %p104
      %p271 = pneg %p128
      %p272 = pneg %p125
      %p273 = pneg %p149
      %p274 = pneg %p146
      %p275 = pneg %p170
      %p276 = pneg %p167
      %p277 = pneg %p196
      %p278 = pneg %p193
      %p279 = scmp.lt.s32.totalorder %s18, 1
      %s280 = scalar_select %p279, %s18, 1
      %s281 = smul.addr %s280, 8
      %s282 = smul.addr %s281, 4
      %s283 = scalar_lea.vmem %s7, %s282
      %p284 = scmp.lt.s32.totalorder %s18, 1
      %s285 = scalar_select %p284, %s18, 1
      %s286 = smul.addr %s285, 8
      %s287 = smul.addr %s286, 4
      %s288 = scalar_lea.vmem %s0, %s287
      %p289 = scmp.lt.s32.totalorder %s18, 1
      %s290 = scalar_select %p289, %s18, 1
      %s291 = smul.addr %s290, 8
      %s292 = smul.addr %s291, 4
      %s293 = scalar_lea.vmem %s1, %s292
      %p294 = scmp.lt.s32.totalorder %s18, 1
      %s295 = scalar_select %p294, %s18, 1
      %s296 = smul.addr %s295, 8
      %s297 = smul.addr %s296, 4
      %s298 = scalar_lea.vmem %s7, %s297
      %v300 = vld [vmem:[%s288] sm:$0xf]
      %v301 = vld [vmem:[%s288 + $0x4] sm:$0xf]
      %v302 = vld [vmem:[%s288 + $0x8] sm:$0xf]
      %v303 = vld [vmem:[%s288 + $0xc] sm:$0xf]
      %v304 = vld [vmem:[%s288 + $0x10] sm:$0xf]
      %v305 = vld [vmem:[%s288 + $0x14] sm:$0xf]
      %v306 = vld [vmem:[%s288 + $0x18] sm:$0xf]
      %v307 = vld [vmem:[%s288 + $0x1c] sm:$0xf]
      %v308 = vld [vmem:[%s2] sm:$0xf]
      %v309 = vld [vmem:[%s2 + $0x4] sm:$0xf]
      %v310 = vld [vmem:[%s2 + $0x8] sm:$0xf]
      %v311 = vld [vmem:[%s2 + $0xc] sm:$0xf]
      %v312 = vld [vmem:[%s2 + $0x10] sm:$0xf]
      %v313 = vld [vmem:[%s2 + $0x14] sm:$0xf]
      %v314 = vld [vmem:[%s2 + $0x18] sm:$0xf]
      %v315 = vld [vmem:[%s2 + $0x1c] sm:$0xf]
      %v316 = vld [vmem:[%s2 + $0x20] sm:$0xf]
      %v317 = vld [vmem:[%s2 + $0x24] sm:$0xf]
      %v318 = vld [vmem:[%s2 + $0x28] sm:$0xf]
      %v319 = vld [vmem:[%s2 + $0x2c] sm:$0xf]
      %v320 = vld [vmem:[%s2 + $0x30] sm:$0xf]
      %v321 = vld [vmem:[%s2 + $0x34] sm:$0xf]
      %v322 = vld [vmem:[%s2 + $0x38] sm:$0xf]
      %v323 = vld [vmem:[%s2 + $0x3c] sm:$0xf]
      %v332 = vunpack.c.l.b16 %v300
      %v333 = vunpack.c.l.b16 %v301
      %v334 = vunpack.c.l.b16 %v302
      %v335 = vunpack.c.l.b16 %v303
      %v336 = vunpack.c.l.b16 %v304
      %v337 = vunpack.c.l.b16 %v305
      %v338 = vunpack.c.l.b16 %v306
      %v339 = vunpack.c.l.b16 %v307
      %v340 = vpack.c.b16 %v333, %v332
      %v341 = vpack.c.b16 %v335, %v334
      %v342 = vpack.c.b16 %v337, %v336
      %v343 = vpack.c.b16 %v339, %v338
      %v364 = vunpack.c.l.b16 %v308
      %v365 = vunpack.c.l.b16 %v309
      %v366 = vunpack.c.l.b16 %v310
      %v367 = vunpack.c.l.b16 %v311
      %v368 = vunpack.c.l.b16 %v312
      %v369 = vunpack.c.l.b16 %v313
      %v370 = vunpack.c.l.b16 %v314
      %v371 = vunpack.c.l.b16 %v315
      %v372 = vunpack.c.l.b16 %v316
      %v373 = vunpack.c.l.b16 %v317
      %v374 = vunpack.c.l.b16 %v318
      %v375 = vunpack.c.l.b16 %v319
      %v376 = vunpack.c.l.b16 %v320
      %v377 = vunpack.c.l.b16 %v321
      %v378 = vunpack.c.l.b16 %v322
      %v379 = vunpack.c.l.b16 %v323
      %v380 = vpack.c.b16 %v365, %v364
      %v381 = vpack.c.b16 %v367, %v366
      %v382 = vpack.c.b16 %v369, %v368
      %v383 = vpack.c.b16 %v371, %v370
      %v384 = vpack.c.b16 %v373, %v372
      %v385 = vpack.c.b16 %v375, %v374
      %v386 = vpack.c.b16 %v377, %v376
      %v387 = vpack.c.b16 %v379, %v378
      %396 = vmatprep.subr.bf16.mxu0 0
      %397 = vmatpush1.bf16.msra.mxu0 %v387
      %398 = vmatprep.subr.bf16.mxu0 0
      %399 = vmatpush1.bf16.msra.mxu0 %v386
      %400 = vmatprep.subr.bf16.mxu0 0
      %401 = vmatpush1.bf16.msra.mxu0 %v385
      %402 = vmatprep.subr.bf16.mxu0 0
      %403 = vmatpush1.bf16.msra.mxu0 %v384
      %404 = vmatprep.subr.bf16.mxu0 0
      %405 = vmatpush1.bf16.msra.mxu0 %v383
      %406 = vmatprep.subr.bf16.mxu0 0
      %407 = vmatpush1.bf16.msra.mxu0 %v382
      %408 = vmatprep.subr.bf16.mxu0 0
      %409 = vmatpush1.bf16.msra.mxu0 %v381
      %410 = vmatprep.subr.bf16.mxu0 0
      %411 = vmatpush1.bf16.msra.mxu0 %v380
      %412 = vmatprep.subr.bf16.mxu0 0
      %413 = vmatpush2.bf16.msra.mxu0 0
      %414 = vmatprep.subr.bf16.mxu0 0
      %415 = vmatpush2.bf16.msra.mxu0 0
      %416 = vmatprep.subr.bf16.mxu0 0
      %417 = vmatpush2.bf16.msra.mxu0 0
      %418 = vmatprep.subr.bf16.mxu0 0
      %419 = vmatpush2.bf16.msra.mxu0 0
      %420 = vmatprep.subr.bf16.mxu0 0
      %421 = vmatpush2.bf16.msra.mxu0 0
      %422 = vmatprep.subr.bf16.mxu0 0
      %423 = vmatpush2.bf16.msra.mxu0 0
      %424 = vmatprep.subr.bf16.mxu0 0
      %425 = vmatpush2.bf16.msra.mxu0 0
      %426 = vmatprep.subr.bf16.mxu0 0
      %427 = vmatpush2.bf16.msra.mxu0 0
      %428 = vmatprep.mubr.bf16.mxu0 0
      %429 = vmatmul.mubr.bf16.gmra.mxu0 %v340
      %v430 = vpop.f32.mrf.mxu0
      %v431 = vadd.f32 0.0, %v430
      %v432 = vpop.f32.mrf.mxu0
      %v433 = vpop.f32.mrf.mxu0
      %v434 = vadd.f32 0.0, %v433
      %v435 = vpop.f32.mrf.mxu0
      %436 = vmatprep.mubr.bf16.mxu0 0
      %437 = vmatmul.mubr.bf16.gmra.mxu0 %v341
      %v438 = vpop.f32.mrf.mxu0
      %v439 = vadd.f32 0.0, %v438
      %v440 = vpop.f32.mrf.mxu0
      %v441 = vpop.f32.mrf.mxu0
      %v442 = vadd.f32 0.0, %v441
      %v443 = vpop.f32.mrf.mxu0
      %444 = vmatprep.mubr.bf16.mxu0 0
      %445 = vmatmul.mubr.bf16.gmra.mxu0 %v342
      %v446 = vpop.f32.mrf.mxu0
      %v447 = vadd.f32 0.0, %v446
      %v448 = vpop.f32.mrf.mxu0
      %v449 = vpop.f32.mrf.mxu0
      %v450 = vadd.f32 0.0, %v449
      %v451 = vpop.f32.mrf.mxu0
      %452 = vmatprep.mubr.bf16.mxu0 0
      %453 = vmatmul.mubr.bf16.gmra.mxu0 %v343
      %v454 = vpop.f32.mrf.mxu0
      %v455 = vadd.f32 0.0, %v454
      %v456 = vpop.f32.mrf.mxu0
      %v457 = vpop.f32.mrf.mxu0
      %v458 = vadd.f32 0.0, %v457
      %v459 = vpop.f32.mrf.mxu0
      %460 = vdwg.mxu0
      %v461 = vld [vmem:[%s3] sm:$0x1]
      %v462 = vld [vmem:[%s4] sm:$0x1]
      %v463 = vld [vmem:[%s5] sm:$0xff]
      %v464 = vld [vmem:[%s5 + $0x8] sm:$0xff]
      %v465 = vld [vmem:[%s5 + $0x10] sm:$0xff]
      %v466 = vld [vmem:[%s5 + $0x18] sm:$0xff]
      %v467 = vld [vmem:[%s5 + $0x20] sm:$0xff]
      %v468 = vld [vmem:[%s5 + $0x28] sm:$0xff]
      %v469 = vld [vmem:[%s5 + $0x30] sm:$0xff]
      %v470 = vld [vmem:[%s5 + $0x38] sm:$0xff]
      %v471 = vld [vmem:[%s5 + $0x40] sm:$0xff]
      %v472 = vld [vmem:[%s5 + $0x48] sm:$0xff]
      %v473 = vld [vmem:[%s5 + $0x50] sm:$0xff]
      %v474 = vld [vmem:[%s5 + $0x58] sm:$0xff]
      %v475 = vld [vmem:[%s5 + $0x60] sm:$0xff]
      %v476 = vld [vmem:[%s5 + $0x68] sm:$0xff]
      %v477 = vld [vmem:[%s5 + $0x70] sm:$0xff]
      %v478 = vld [vmem:[%s5 + $0x78] sm:$0xff]
      %v479 = vld [vmem:[%s6] sm:$0xff]
      %v480 = vld [vmem:[%s6 + $0x8] sm:$0xff]
      %v481 = vld [vmem:[%s6 + $0x10] sm:$0xff]
      %v482 = vld [vmem:[%s6 + $0x18] sm:$0xff]
      %v483 = vld [vmem:[%s6 + $0x20] sm:$0xff]
      %v484 = vld [vmem:[%s6 + $0x28] sm:$0xff]
      %v485 = vld [vmem:[%s6 + $0x30] sm:$0xff]
      %v486 = vld [vmem:[%s6 + $0x38] sm:$0xff]
      %v487 = vld [vmem:[%s6 + $0x40] sm:$0xff]
      %v488 = vld [vmem:[%s6 + $0x48] sm:$0xff]
      %v489 = vld [vmem:[%s6 + $0x50] sm:$0xff]
      %v490 = vld [vmem:[%s6 + $0x58] sm:$0xff]
      %v491 = vld [vmem:[%s6 + $0x60] sm:$0xff]
      %v492 = vld [vmem:[%s6 + $0x68] sm:$0xff]
      %v493 = vld [vmem:[%s6 + $0x70] sm:$0xff]
      %v494 = vld [vmem:[%s6 + $0x78] sm:$0xff]
      %v495 = vadd.f32 %v431, %v434
      %v496 = vadd.f32 %v495, %v439
      %v497 = vadd.f32 %v496, %v442
      %v498 = vadd.f32 %v497, %v447
      %v499 = vadd.f32 %v498, %v450
      %v500 = vadd.f32 %v499, %v455
      %v501 = vadd.f32 %v500, %v458
      %v502 = vrot.slane %v501, 4
      %v503 = vadd.f32 %v501, %v502
      %v504 = vrot.slane %v503, 2
      %v505 = vadd.f32 %v503, %v504
      %v506 = vrot.slane %v505, 1
      %v507 = vadd.f32 %v505, %v506
      %v508 = vmul.f32 %v431, %v431
      %v509 = vmul.f32 %v434, %v434
      %v510 = vmul.f32 %v439, %v439
      %v511 = vmul.f32 %v442, %v442
      %v512 = vmul.f32 %v447, %v447
      %v513 = vmul.f32 %v450, %v450
      %v514 = vmul.f32 %v455, %v455
      %v515 = vmul.f32 %v458, %v458
      %v516 = vadd.f32 %v508, %v509
      %v517 = vadd.f32 %v516, %v510
      %v518 = vadd.f32 %v517, %v511
      %v519 = vadd.f32 %v518, %v512
      %v520 = vadd.f32 %v519, %v513
      %v521 = vadd.f32 %v520, %v514
      %v522 = vadd.f32 %v521, %v515
      %v523 = vrot.slane %v522, 4
      %v524 = vadd.f32 %v522, %v523
      %v525 = vrot.slane %v524, 2
      %v526 = vadd.f32 %v524, %v525
      %v527 = vrot.slane %v526, 1
      %v528 = vadd.f32 %v526, %v527
      %529 = vmatprep.subr.mxu0 0.0
      %530 = vmatpush1.msra.mxu0 %v478
      %531 = vmatprep.subr.mxu0 0.0
      %532 = vmatpush1.msra.mxu0 %v477
      %533 = vmatprep.subr.mxu0 0.0
      %534 = vmatpush1.msra.mxu0 %v476
      %535 = vmatprep.subr.mxu0 0.0
      %536 = vmatpush1.msra.mxu0 %v475
      %537 = vmatprep.subr.mxu0 0.0
      %538 = vmatpush1.msra.mxu0 %v474
      %539 = vmatprep.subr.mxu0 0.0
      %540 = vmatpush1.msra.mxu0 %v473
      %541 = vmatprep.subr.mxu0 0.0
      %542 = vmatpush1.msra.mxu0 %v472
      %543 = vmatprep.subr.mxu0 0.0
      %544 = vmatpush1.msra.mxu0 %v471
      %545 = vmatprep.subr.mxu0 0.0
      %546 = vmatpush1.msra.mxu0 %v470
      %547 = vmatprep.subr.mxu0 0.0
      %548 = vmatpush1.msra.mxu0 %v469
      %549 = vmatprep.subr.mxu0 0.0
      %550 = vmatpush1.msra.mxu0 %v468
      %551 = vmatprep.subr.mxu0 0.0
      %552 = vmatpush1.msra.mxu0 %v467
      %553 = vmatprep.subr.mxu0 0.0
      %554 = vmatpush1.msra.mxu0 %v466
      %555 = vmatprep.subr.mxu0 0.0
      %556 = vmatpush1.msra.mxu0 %v465
      %557 = vmatprep.subr.mxu0 0.0
      %558 = vmatpush1.msra.mxu0 %v464
      %559 = vmatprep.subr.mxu0 0.0
      %560 = vmatpush1.msra.mxu0 %v463
      %561 = vmatprep.subr.mxu0 0.0
      %562 = vmatpush2.msra.mxu0 0.0
      %563 = vmatprep.subr.mxu0 0.0
      %564 = vmatpush2.msra.mxu0 0.0
      %565 = vmatprep.subr.mxu0 0.0
      %566 = vmatpush2.msra.mxu0 0.0
      %567 = vmatprep.subr.mxu0 0.0
      %568 = vmatpush2.msra.mxu0 0.0
      %569 = vmatprep.subr.mxu0 0.0
      %570 = vmatpush2.msra.mxu0 0.0
      %571 = vmatprep.subr.mxu0 0.0
      %572 = vmatpush2.msra.mxu0 0.0
      %573 = vmatprep.subr.mxu0 0.0
      %574 = vmatpush2.msra.mxu0 0.0
      %575 = vmatprep.subr.mxu0 0.0
      %576 = vmatpush2.msra.mxu0 0.0
      %577 = vmatprep.subr.mxu0 0.0
      %578 = vmatpush2.msra.mxu0 0.0
      %579 = vmatprep.subr.mxu0 0.0
      %580 = vmatpush2.msra.mxu0 0.0
      %581 = vmatprep.subr.mxu0 0.0
      %582 = vmatpush2.msra.mxu0 0.0
      %583 = vmatprep.subr.mxu0 0.0
      %584 = vmatpush2.msra.mxu0 0.0
      %585 = vmatprep.subr.mxu0 0.0
      %586 = vmatpush2.msra.mxu0 0.0
      %587 = vmatprep.subr.mxu0 0.0
      %588 = vmatpush2.msra.mxu0 0.0
      %589 = vmatprep.subr.mxu0 0.0
      %590 = vmatpush2.msra.mxu0 0.0
      %591 = vmatprep.subr.mxu0 0.0
      %592 = vmatpush2.msra.mxu0 0.0
      %593 = vmatprep.mubr.f32.mxu0 0.0
      %594 = vmatmul.mubr.f32.gmra.mxu0 %v507
      %v595 = vpop.f32.mrf.mxu0
      %v596 = vadd.f32 0.0, %v595
      %v597 = vpop.f32.mrf.mxu0
      %598 = vdwg.mxu0
      %v599 = vmul.f32 %v596, 0.00390625
      %600 = vmatprep.subr.mxu0 0.0
      %601 = vmatpush1.msra.mxu0 %v478
      %602 = vmatprep.subr.mxu0 0.0
      %603 = vmatpush1.msra.mxu0 %v477
      %604 = vmatprep.subr.mxu0 0.0
      %605 = vmatpush1.msra.mxu0 %v476
      %606 = vmatprep.subr.mxu0 0.0
      %607 = vmatpush1.msra.mxu0 %v475
      %608 = vmatprep.subr.mxu0 0.0
      %609 = vmatpush1.msra.mxu0 %v474
      %610 = vmatprep.subr.mxu0 0.0
      %611 = vmatpush1.msra.mxu0 %v473
      %612 = vmatprep.subr.mxu0 0.0
      %613 = vmatpush1.msra.mxu0 %v472
      %614 = vmatprep.subr.mxu0 0.0
      %615 = vmatpush1.msra.mxu0 %v471
      %616 = vmatprep.subr.mxu0 0.0
      %617 = vmatpush1.msra.mxu0 %v470
      %618 = vmatprep.subr.mxu0 0.0
      %619 = vmatpush1.msra.mxu0 %v469
      %620 = vmatprep.subr.mxu0 0.0
      %621 = vmatpush1.msra.mxu0 %v468
      %622 = vmatprep.subr.mxu0 0.0
      %623 = vmatpush1.msra.mxu0 %v467
      %624 = vmatprep.subr.mxu0 0.0
      %625 = vmatpush1.msra.mxu0 %v466
      %626 = vmatprep.subr.mxu0 0.0
      %627 = vmatpush1.msra.mxu0 %v465
      %628 = vmatprep.subr.mxu0 0.0
      %629 = vmatpush1.msra.mxu0 %v464
      %630 = vmatprep.subr.mxu0 0.0
      %631 = vmatpush1.msra.mxu0 %v463
      %632 = vmatprep.subr.mxu0 0.0
      %633 = vmatpush2.msra.mxu0 0.0
      %634 = vmatprep.subr.mxu0 0.0
      %635 = vmatpush2.msra.mxu0 0.0
      %636 = vmatprep.subr.mxu0 0.0
      %637 = vmatpush2.msra.mxu0 0.0
      %638 = vmatprep.subr.mxu0 0.0
      %639 = vmatpush2.msra.mxu0 0.0
      %640 = vmatprep.subr.mxu0 0.0
      %641 = vmatpush2.msra.mxu0 0.0
      %642 = vmatprep.subr.mxu0 0.0
      %643 = vmatpush2.msra.mxu0 0.0
      %644 = vmatprep.subr.mxu0 0.0
      %645 = vmatpush2.msra.mxu0 0.0
      %646 = vmatprep.subr.mxu0 0.0
      %647 = vmatpush2.msra.mxu0 0.0
      %648 = vmatprep.subr.mxu0 0.0
      %649 = vmatpush2.msra.mxu0 0.0
      %650 = vmatprep.subr.mxu0 0.0
      %651 = vmatpush2.msra.mxu0 0.0
      %652 = vmatprep.subr.mxu0 0.0
      %653 = vmatpush2.msra.mxu0 0.0
      %654 = vmatprep.subr.mxu0 0.0
      %655 = vmatpush2.msra.mxu0 0.0
      %656 = vmatprep.subr.mxu0 0.0
      %657 = vmatpush2.msra.mxu0 0.0
      %658 = vmatprep.subr.mxu0 0.0
      %659 = vmatpush2.msra.mxu0 0.0
      %660 = vmatprep.subr.mxu0 0.0
      %661 = vmatpush2.msra.mxu0 0.0
      %662 = vmatprep.subr.mxu0 0.0
      %663 = vmatpush2.msra.mxu0 0.0
      %664 = vmatprep.mubr.f32.mxu0 0.0
      %665 = vmatmul.mubr.f32.gmra.mxu0 %v528
      %v666 = vpop.f32.mrf.mxu0
      %v667 = vadd.f32 0.0, %v666
      %v668 = vpop.f32.mrf.mxu0
      %669 = vdwg.mxu0
      %v670 = vmul.f32 %v667, 0.00390625
      %v671 = vmul.f32 %v599, %v599
      %v672 = vsub.f32 %v670, %v671
      %v673 = vmax.f32 %v672, 0.0
      %v674 = vadd.f32 %v673, 1e-05
      %v675 = vrsqrt.pop %v674
      %676 = vmatprep.subr.mxu0 0.0
      %677 = vmatpush1.msra.mxu0 %v494
      %678 = vmatprep.subr.mxu0 0.0
      %679 = vmatpush1.msra.mxu0 %v493
      %680 = vmatprep.subr.mxu0 0.0
      %681 = vmatpush1.msra.mxu0 %v492
      %682 = vmatprep.subr.mxu0 0.0
      %683 = vmatpush1.msra.mxu0 %v491
      %684 = vmatprep.subr.mxu0 0.0
      %685 = vmatpush1.msra.mxu0 %v490
      %686 = vmatprep.subr.mxu0 0.0
      %687 = vmatpush1.msra.mxu0 %v489
      %688 = vmatprep.subr.mxu0 0.0
      %689 = vmatpush1.msra.mxu0 %v488
      %690 = vmatprep.subr.mxu0 0.0
      %691 = vmatpush1.msra.mxu0 %v487
      %692 = vmatprep.subr.mxu0 0.0
      %693 = vmatpush1.msra.mxu0 %v486
      %694 = vmatprep.subr.mxu0 0.0
      %695 = vmatpush1.msra.mxu0 %v485
      %696 = vmatprep.subr.mxu0 0.0
      %697 = vmatpush1.msra.mxu0 %v484
      %698 = vmatprep.subr.mxu0 0.0
      %699 = vmatpush1.msra.mxu0 %v483
      %700 = vmatprep.subr.mxu0 0.0
      %701 = vmatpush1.msra.mxu0 %v482
      %702 = vmatprep.subr.mxu0 0.0
      %703 = vmatpush1.msra.mxu0 %v481
      %704 = vmatprep.subr.mxu0 0.0
      %705 = vmatpush1.msra.mxu0 %v480
      %706 = vmatprep.subr.mxu0 0.0
      %707 = vmatpush1.msra.mxu0 %v479
      %708 = vmatprep.subr.mxu0 0.0
      %709 = vmatpush2.msra.mxu0 0.0
      %710 = vmatprep.subr.mxu0 0.0
      %711 = vmatpush2.msra.mxu0 0.0
      %712 = vmatprep.subr.mxu0 0.0
      %713 = vmatpush2.msra.mxu0 0.0
      %714 = vmatprep.subr.mxu0 0.0
      %715 = vmatpush2.msra.mxu0 0.0
      %716 = vmatprep.subr.mxu0 0.0
      %717 = vmatpush2.msra.mxu0 0.0
      %718 = vmatprep.subr.mxu0 0.0
      %719 = vmatpush2.msra.mxu0 0.0
      %720 = vmatprep.subr.mxu0 0.0
      %721 = vmatpush2.msra.mxu0 0.0
      %722 = vmatprep.subr.mxu0 0.0
      %723 = vmatpush2.msra.mxu0 0.0
      %724 = vmatprep.subr.mxu0 0.0
      %725 = vmatpush2.msra.mxu0 0.0
      %726 = vmatprep.subr.mxu0 0.0
      %727 = vmatpush2.msra.mxu0 0.0
      %728 = vmatprep.subr.mxu0 0.0
      %729 = vmatpush2.msra.mxu0 0.0
      %730 = vmatprep.subr.mxu0 0.0
      %731 = vmatpush2.msra.mxu0 0.0
      %732 = vmatprep.subr.mxu0 0.0
      %733 = vmatpush2.msra.mxu0 0.0
      %734 = vmatprep.subr.mxu0 0.0
      %735 = vmatpush2.msra.mxu0 0.0
      %736 = vmatprep.subr.mxu0 0.0
      %737 = vmatpush2.msra.mxu0 0.0
      %738 = vmatprep.subr.mxu0 0.0
      %739 = vmatpush2.msra.mxu0 0.0
      %740 = vmatprep.mubr.f32.mxu0 0.0
      %741 = vmatmul.mubr.f32.gmra.mxu0 %v599
      %v742 = vpop.f32.mrf.mxu0
      %v743 = vadd.f32 0.0, %v742
      %v744 = vpop.f32.mrf.mxu0
      %745 = vdwg.mxu0
      %746 = vmatprep.subr.mxu0 0.0
      %747 = vmatpush1.msra.mxu0 %v494
      %748 = vmatprep.subr.mxu0 0.0
      %749 = vmatpush1.msra.mxu0 %v493
      %750 = vmatprep.subr.mxu0 0.0
      %751 = vmatpush1.msra.mxu0 %v492
      %752 = vmatprep.subr.mxu0 0.0
      %753 = vmatpush1.msra.mxu0 %v491
      %754 = vmatprep.subr.mxu0 0.0
      %755 = vmatpush1.msra.mxu0 %v490
      %756 = vmatprep.subr.mxu0 0.0
      %757 = vmatpush1.msra.mxu0 %v489
      %758 = vmatprep.subr.mxu0 0.0
      %759 = vmatpush1.msra.mxu0 %v488
      %760 = vmatprep.subr.mxu0 0.0
      %761 = vmatpush1.msra.mxu0 %v487
      %762 = vmatprep.subr.mxu0 0.0
      %763 = vmatpush1.msra.mxu0 %v486
      %764 = vmatprep.subr.mxu0 0.0
      %765 = vmatpush1.msra.mxu0 %v485
      %766 = vmatprep.subr.mxu0 0.0
      %767 = vmatpush1.msra.mxu0 %v484
      %768 = vmatprep.subr.mxu0 0.0
      %769 = vmatpush1.msra.mxu0 %v483
      %770 = vmatprep.subr.mxu0 0.0
      %771 = vmatpush1.msra.mxu0 %v482
      %772 = vmatprep.subr.mxu0 0.0
      %773 = vmatpush1.msra.mxu0 %v481
      %774 = vmatprep.subr.mxu0 0.0
      %775 = vmatpush1.msra.mxu0 %v480
      %776 = vmatprep.subr.mxu0 0.0
      %777 = vmatpush1.msra.mxu0 %v479
      %778 = vmatprep.subr.mxu0 0.0
      %779 = vmatpush2.msra.mxu0 0.0
      %780 = vmatprep.subr.mxu0 0.0
      %781 = vmatpush2.msra.mxu0 0.0
      %782 = vmatprep.subr.mxu0 0.0
      %783 = vmatpush2.msra.mxu0 0.0
      %784 = vmatprep.subr.mxu0 0.0
      %785 = vmatpush2.msra.mxu0 0.0
      %786 = vmatprep.subr.mxu0 0.0
      %787 = vmatpush2.msra.mxu0 0.0
      %788 = vmatprep.subr.mxu0 0.0
      %789 = vmatpush2.msra.mxu0 0.0
      %790 = vmatprep.subr.mxu0 0.0
      %791 = vmatpush2.msra.mxu0 0.0
      %792 = vmatprep.subr.mxu0 0.0
      %793 = vmatpush2.msra.mxu0 0.0
      %794 = vmatprep.subr.mxu0 0.0
      %795 = vmatpush2.msra.mxu0 0.0
      %796 = vmatprep.subr.mxu0 0.0
      %797 = vmatpush2.msra.mxu0 0.0
      %798 = vmatprep.subr.mxu0 0.0
      %799 = vmatpush2.msra.mxu0 0.0
      %800 = vmatprep.subr.mxu0 0.0
      %801 = vmatpush2.msra.mxu0 0.0
      %802 = vmatprep.subr.mxu0 0.0
      %803 = vmatpush2.msra.mxu0 0.0
      %804 = vmatprep.subr.mxu0 0.0
      %805 = vmatpush2.msra.mxu0 0.0
      %806 = vmatprep.subr.mxu0 0.0
      %807 = vmatpush2.msra.mxu0 0.0
      %808 = vmatprep.subr.mxu0 0.0
      %809 = vmatpush2.msra.mxu0 0.0
      %810 = vmatprep.mubr.f32.mxu0 0.0
      %811 = vmatmul.mubr.f32.gmra.mxu0 %v675
      %v812 = vpop.f32.mrf.mxu0
      %v813 = vadd.f32 0.0, %v812
      %v814 = vpop.f32.mrf.mxu0
      %815 = vdwg.mxu0
      %v816 = vlaneseq
      %v817 = vshrl.u32 %v816, 7
      %v818 = vsub.s32 0, %v817
      %v819 = vrot.slane %v743, %v818
      %v820 = vsub.f32 %v431, %v819
      %v821 = vsub.f32 %v434, %v819
      %v822 = vsub.f32 %v439, %v819
      %v823 = vsub.f32 %v442, %v819
      %v824 = vsub.f32 %v447, %v819
      %v825 = vsub.f32 %v450, %v819
      %v826 = vsub.f32 %v455, %v819
      %v827 = vsub.f32 %v458, %v819
      %v828 = vmul.f32 %v813, %v461
      %v829 = vlaneseq
      %v830 = vshrl.u32 %v829, 7
      %v831 = vsub.s32 0, %v830
      %v832 = vrot.slane %v828, %v831
      %v833 = vmul.f32 %v820, %v832
      %v834 = vmul.f32 %v821, %v832
      %v835 = vmul.f32 %v822, %v832
      %v836 = vmul.f32 %v823, %v832
      %v837 = vmul.f32 %v824, %v832
      %v838 = vmul.f32 %v825, %v832
      %v839 = vmul.f32 %v826, %v832
      %v840 = vmul.f32 %v827, %v832
      %v842 = vlaneseq
      %v843 = vshrl.u32 %v842, 7
      %v844 = vsub.s32 0, %v843
      %v845 = vrot.slane %v462, %v844
      %v847 = vadd.f32 %v833, %v845
      %v848 = vadd.f32 %v834, %v845
      %v849 = vadd.f32 %v835, %v845
      %v850 = vadd.f32 %v836, %v845
      %v851 = vadd.f32 %v837, %v845
      %v852 = vadd.f32 %v838, %v845
      %v853 = vadd.f32 %v839, %v845
      %v854 = vadd.f32 %v840, %v845
      %v855 = vld [vmem:[%s293] sm:$0xf]
      %v856 = vld [vmem:[%s293 + $0x4] sm:$0xf]
      %v857 = vld [vmem:[%s293 + $0x8] sm:$0xf]
      %v858 = vld [vmem:[%s293 + $0xc] sm:$0xf]
      %v859 = vld [vmem:[%s293 + $0x10] sm:$0xf]
      %v860 = vld [vmem:[%s293 + $0x14] sm:$0xf]
      %v861 = vld [vmem:[%s293 + $0x18] sm:$0xf]
      %v862 = vld [vmem:[%s293 + $0x1c] sm:$0xf]
      %v863 = vunpack.c.l.bf16 %v855
      %v864 = vunpack.c.l.bf16 %v856
      %v865 = vunpack.c.l.bf16 %v857
      %v866 = vunpack.c.l.bf16 %v858
      %v867 = vunpack.c.l.bf16 %v859
      %v868 = vunpack.c.l.bf16 %v860
      %v869 = vunpack.c.l.bf16 %v861
      %v870 = vunpack.c.l.bf16 %v862
      %v871 = vadd.f32 %v847, %v863
      %v872 = vadd.f32 %v848, %v864
      %v873 = vadd.f32 %v849, %v865
      %v874 = vadd.f32 %v850, %v866
      %v875 = vadd.f32 %v851, %v867
      %v876 = vadd.f32 %v852, %v868
      %v877 = vadd.f32 %v853, %v869
      %v878 = vadd.f32 %v854, %v870
      %v879 = vmax.f32 %v871, 0.0
      %v880 = vmax.f32 %v872, 0.0
      %v881 = vmax.f32 %v873, 0.0
      %v882 = vmax.f32 %v874, 0.0
      %v883 = vmax.f32 %v875, 0.0
      %v884 = vmax.f32 %v876, 0.0
      %v885 = vmax.f32 %v877, 0.0
      %v886 = vmax.f32 %v878, 0.0
      %v887 = vpack.c.bf16 %v880, %v879
      %v888 = vpack.c.bf16 %v882, %v881
      %v889 = vpack.c.bf16 %v884, %v883
      %v890 = vpack.c.bf16 %v886, %v885
      %v895 = vunpack.c.l.b16 %v887
      %v896 = vunpack.c.h.b16 %v887
      %v897 = vunpack.c.l.b16 %v888
      %v898 = vunpack.c.h.b16 %v888
      %v899 = vunpack.c.l.b16 %v889
      %v900 = vunpack.c.h.b16 %v889
      %v901 = vunpack.c.l.b16 %v890
      %v902 = vunpack.c.h.b16 %v890
      %v903 = vpack.c.b16 %v895, %v895
      %v904 = vpack.c.b16 %v896, %v896
      %v905 = vpack.c.b16 %v897, %v897
      %v906 = vpack.c.b16 %v898, %v898
      %v907 = vpack.c.b16 %v899, %v899
      %v908 = vpack.c.b16 %v900, %v900
      %v909 = vpack.c.b16 %v901, %v901
      %v910 = vpack.c.b16 %v902, %v902
      %919 = vst [vmem:[%s298] sm:$0xf] %v903
      %920 = vst [vmem:[%s298 + $0x4] sm:$0xf] %v904
      %921 = vst [vmem:[%s298 + $0x8] sm:$0xf] %v905
      %922 = vst [vmem:[%s298 + $0xc] sm:$0xf] %v906
      %923 = vst [vmem:[%s298 + $0x10] sm:$0xf] %v907
      %924 = vst [vmem:[%s298 + $0x14] sm:$0xf] %v908
      %925 = vst [vmem:[%s298 + $0x18] sm:$0xf] %v909
      %926 = vst [vmem:[%s298 + $0x1c] sm:$0xf] %v910
      %p927 = scmp.lt.s32.totalorder %s18, 1
      %s928 = scalar_select %p927, %s18, 1
      %s929 = smul.addr %s928, 8
      %s930 = smul.addr %s929, 4
      %s931 = scalar_lea.vmem %s7, %s930
      // Predicated region
      $region49: #{_lambda_.10} parent=47 // pred_check
        %p932 = pneg %p193
      $region50: #{_lambda_.10} parent=47 // pred_check_branch
        %934 = sbr.rel (%p932) target = $region52
      $region51: #{_lambda_.10} parent=47 // pred_region
        _
      $region52: #{_lambda_.10} parent=47 // pred_fallthru
        _
    $region48: #{_lambda_.10} parent=5 // pred_fallthru
      _
    %p935 = scmp.le.s32.totalorder 2, %s13
    // Predicated region
    $region53: #{_lambda_.10} parent=5 // pred_check
      %p936 = pneg %p935
    $region54: #{_lambda_.10} parent=5 // pred_check_branch
      %938 = sbr.rel (%p936) target = $region56
    $region55: #{_lambda_.10} parent=5 // pred_region
      %s939 = ssub.s32 %s13, 2
      // Predicated region
      $region57: #{_lambda_.10} parent=55 // pred_check
        %p940 = pneg %p199
      $region58: #{_lambda_.10} parent=55 // pred_check_branch
        %942 = sbr.rel (%p940) target = $region60
      $region59: #{_lambda_.10} parent=55 // pred_region
        %p943 = scmp.lt.s32.totalorder %s19, 1
        %s944 = scalar_select %p943, %s19, 1
        %s945 = smul.addr %s944, 8
        %s946 = smul.addr %s945, 4
        %s947 = scalar_lea.vmem %s7, %s946
      $region60: #{_lambda_.10} parent=55 // pred_fallthru
        _
    $region56: #{_lambda_.10} parent=5 // pred_fallthru
      _
  $region6: #{_lambda_.10} parent=0 // loop_footer
    %s17 = sadd.s32 1, %s13
  $region7: #{_lambda_.10} parent=0 // loop_footer_branch
    %12 = sbr.rel target = $region3
  $region8: #{_lambda_.10} parent=0 // loop_exit
    _

// kernel: _lambda_.11
$region0: #{_lambda_.11}
  #allocation0 [shape = 'u32[]', space=smem, size = 0x4, offset = 0x4, fixed_abs, tag = 'smem constant byte address 0x4 - core index']
  #allocation1 [shape = 'u32[144,128]{1,0:T(1,128)}', space=vmem, size = 0x12000, scoped, tag = 'internal scratch']
  %s0 = inlined_call_operand.vmem [shape: bf16[2,64,128], index: 0, kind: input, shape index: {}]
  %s1 = inlined_call_operand.vmem [shape: bf16[128,128], index: 1, kind: input, shape index: {}]
  %s2 = inlined_call_operand.vmem [shape: f32[1,128], index: 2, kind: input, shape index: {}]
  %s3 = inlined_call_operand.vmem [shape: f32[1,128], index: 3, kind: input, shape index: {}]
  %s4 = inlined_call_operand.vmem [shape: f32[128,128], index: 4, kind: input, shape index: {}, may-alias: {4,5}]
  %s5 = inlined_call_operand.vmem [shape: f32[128,128], index: 5, kind: input, shape index: {}, may-alias: {4,5}]
  %s6 = inlined_call_operand.vmem [shape: bf16[2,64,128], index: 6, kind: output, shape index: {}]
  %s7 = sld [smem:[#allocation0]]
  $region57: #{_lambda_.11} parent=0
    _
  %s9 = ssub.s32 1, %s7
  %s10 = scalar_select 0, %s9, %s7
  loop: start=0, step=1, limit=4
  $region2: #{_lambda_.11} parent=0 // loop_pre_header
    _
  $region3: #{_lambda_.11} parent=0 // loop_header
    %s12 = sphi 0, %s16
    %p13 = scmp.ge.s32.totalorder %s12, 4
    %s22 = sphi 0, %s24
    %s25 = sphi 0, %s22
    %s26 = sphi 0, %s25
    %s42 = sphi 0, %s26
    %s46 = sphi 0, %s46
    %s48 = sphi 0, %s46
    %s49 = sphi 0, %s48
    %s63 = sphi 0, %s49
    %s67 = sphi 0, %s67
    %s69 = sphi 0, %s67
    %s70 = sphi 0, %s69
    %s84 = sphi 0, %s70
    %s88 = sphi 0, %s88
    %s90 = sphi 0, %s88
    %s91 = sphi 0, %s90
    %s105 = sphi 0, %s91
    %s109 = sphi 0, %s109
    %s111 = sphi 0, %s109
    %s112 = sphi 0, %s111
    %s126 = sphi 0, %s112
    %s130 = sphi 0, %s130
    %s132 = sphi 0, %s130
    %s133 = sphi 0, %s132
    %s147 = sphi 0, %s133
    %s153 = sphi 0, %s155
    %s156 = sphi 0, %s153
    %s157 = sphi 0, %s156
    %s173 = sphi 0, %s157
  $region4: #{_lambda_.11} parent=0 // loop_header_branch
    %15 = sbr.rel (%p13) target = $region8
  $region5: #{_lambda_.11} parent=0 // loop_body
    %s17 = ssub.s32 %s12, 1
    %s18 = ssub.s32 %s12, 2
    %s19 = sadd.s32 %s12, 1
    %s20 = ssub.s32 %s12, %s19
    %p21 = scmp.eq.s32.totalorder %s20, 0
    %s23 = sadd.s32 %s22, 1
    %s24 = scalar_select %p21, %s22, %s23
    %p27 = pneg %p21
    %p28 = scmp.eq.s32.totalorder %s12, 1
    %p29 = por %p27, %p28
    %p30 = scmp.ne.s32.totalorder %s22, %s25
    %p31 = scmp.eq.s32.totalorder %s12, 0
    %p32 = por %p30, %p31
    %p33 = scmp.ne.s32.totalorder %s22, %s25
    %p34 = scmp.eq.s32.totalorder %s17, 1
    %p35 = por %p33, %p34
    %p36 = scmp.ne.s32.totalorder %s25, %s26
    %p37 = scmp.eq.s32.totalorder %s17, 0
    %p38 = por %p36, %p37
    %p39 = scmp.ne.s32.totalorder %s25, %s26
    %p40 = scmp.eq.s32.totalorder %s18, 1
    %p41 = por %p39, %p40
    %p43 = scmp.ne.s32.totalorder %s26, %s42
    %p44 = scmp.eq.s32.totalorder %s18, 0
    %p45 = por %p43, %p44
    %s47 = sadd.s32 %s46, 1
    %p50 = scmp.eq.s32.totalorder %s12, 1
    %p51 = scmp.ne.s32.totalorder %s46, %s48
    %p52 = scmp.eq.s32.totalorder %s12, 0
    %p53 = por %p51, %p52
    %p54 = scmp.ne.s32.totalorder %s46, %s48
    %p55 = scmp.eq.s32.totalorder %s17, 1
    %p56 = por %p54, %p55
    %p57 = scmp.ne.s32.totalorder %s48, %s49
    %p58 = scmp.eq.s32.totalorder %s17, 0
    %p59 = por %p57, %p58
    %p60 = scmp.ne.s32.totalorder %s48, %s49
    %p61 = scmp.eq.s32.totalorder %s18, 1
    %p62 = por %p60, %p61
    %p64 = scmp.ne.s32.totalorder %s49, %s63
    %p65 = scmp.eq.s32.totalorder %s18, 0
    %p66 = por %p64, %p65
    %s68 = sadd.s32 %s67, 1
    %p71 = scmp.eq.s32.totalorder %s12, 1
    %p72 = scmp.ne.s32.totalorder %s67, %s69
    %p73 = scmp.eq.s32.totalorder %s12, 0
    %p74 = por %p72, %p73
    %p75 = scmp.ne.s32.totalorder %s67, %s69
    %p76 = scmp.eq.s32.totalorder %s17, 1
    %p77 = por %p75, %p76
    %p78 = scmp.ne.s32.totalorder %s69, %s70
    %p79 = scmp.eq.s32.totalorder %s17, 0
    %p80 = por %p78, %p79
    %p81 = scmp.ne.s32.totalorder %s69, %s70
    %p82 = scmp.eq.s32.totalorder %s18, 1
    %p83 = por %p81, %p82
    %p85 = scmp.ne.s32.totalorder %s70, %s84
    %p86 = scmp.eq.s32.totalorder %s18, 0
    %p87 = por %p85, %p86
    %s89 = sadd.s32 %s88, 1
    %p92 = scmp.eq.s32.totalorder %s12, 1
    %p93 = scmp.ne.s32.totalorder %s88, %s90
    %p94 = scmp.eq.s32.totalorder %s12, 0
    %p95 = por %p93, %p94
    %p96 = scmp.ne.s32.totalorder %s88, %s90
    %p97 = scmp.eq.s32.totalorder %s17, 1
    %p98 = por %p96, %p97
    %p99 = scmp.ne.s32.totalorder %s90, %s91
    %p100 = scmp.eq.s32.totalorder %s17, 0
    %p101 = por %p99, %p100
    %p102 = scmp.ne.s32.totalorder %s90, %s91
    %p103 = scmp.eq.s32.totalorder %s18, 1
    %p104 = por %p102, %p103
    %p106 = scmp.ne.s32.totalorder %s91, %s105
    %p107 = scmp.eq.s32.totalorder %s18, 0
    %p108 = por %p106, %p107
    %s110 = sadd.s32 %s109, 1
    %p113 = scmp.eq.s32.totalorder %s12, 1
    %p114 = scmp.ne.s32.totalorder %s109, %s111
    %p115 = scmp.eq.s32.totalorder %s12, 0
    %p116 = por %p114, %p115
    %p117 = scmp.ne.s32.totalorder %s109, %s111
    %p118 = scmp.eq.s32.totalorder %s17, 1
    %p119 = por %p117, %p118
    %p120 = scmp.ne.s32.totalorder %s111, %s112
    %p121 = scmp.eq.s32.totalorder %s17, 0
    %p122 = por %p120, %p121
    %p123 = scmp.ne.s32.totalorder %s111, %s112
    %p124 = scmp.eq.s32.totalorder %s18, 1
    %p125 = por %p123, %p124
    %p127 = scmp.ne.s32.totalorder %s112, %s126
    %p128 = scmp.eq.s32.totalorder %s18, 0
    %p129 = por %p127, %p128
    %s131 = sadd.s32 %s130, 1
    %p134 = scmp.eq.s32.totalorder %s12, 1
    %p135 = scmp.ne.s32.totalorder %s130, %s132
    %p136 = scmp.eq.s32.totalorder %s12, 0
    %p137 = por %p135, %p136
    %p138 = scmp.ne.s32.totalorder %s130, %s132
    %p139 = scmp.eq.s32.totalorder %s17, 1
    %p140 = por %p138, %p139
    %p141 = scmp.ne.s32.totalorder %s132, %s133
    %p142 = scmp.eq.s32.totalorder %s17, 0
    %p143 = por %p141, %p142
    %p144 = scmp.ne.s32.totalorder %s132, %s133
    %p145 = scmp.eq.s32.totalorder %s18, 1
    %p146 = por %p144, %p145
    %p148 = scmp.ne.s32.totalorder %s133, %s147
    %p149 = scmp.eq.s32.totalorder %s18, 0
    %p150 = por %p148, %p149
    %s151 = ssub.s32 %s12, %s19
    %p152 = scmp.eq.s32.totalorder %s151, 0
    %s154 = sadd.s32 %s153, 1
    %s155 = scalar_select %p152, %s153, %s154
    %p158 = pneg %p152
    %p159 = scmp.eq.s32.totalorder %s12, 1
    %p160 = por %p158, %p159
    %p161 = scmp.ne.s32.totalorder %s153, %s156
    %p162 = scmp.eq.s32.totalorder %s12, 0
    %p163 = por %p161, %p162
    %p164 = scmp.ne.s32.totalorder %s153, %s156
    %p165 = scmp.eq.s32.totalorder %s17, 1
    %p166 = por %p164, %p165
    %p167 = scmp.ne.s32.totalorder %s156, %s157
    %p168 = scmp.eq.s32.totalorder %s17, 0
    %p169 = por %p167, %p168
    %p170 = scmp.ne.s32.totalorder %s156, %s157
    %p171 = scmp.eq.s32.totalorder %s18, 1
    %p172 = por %p170, %p171
    %p174 = scmp.ne.s32.totalorder %s157, %s173
    %p175 = scmp.eq.s32.totalorder %s18, 0
    %p176 = por %p174, %p175
    %p177 = scmp.le.s32.totalorder 1, %s12
    %p178 = scmp.lt.s32.totalorder %s12, 3
    %p179 = pnand %p177, %p178
    %p180 = pneg %p179
    // Predicated region
    $region9: #{_lambda_.11} parent=5 // pred_check
      _
    $region10: #{_lambda_.11} parent=5 // pred_check_branch
      %182 = sbr.rel (%p179) target = $region12
    $region11: #{_lambda_.11} parent=5 // pred_region
      %s183 = ssub.s32 %s12, 1
      // Predicated region
      $region13: #{_lambda_.11} parent=11 // pred_check
        %p184 = pneg %p59
      $region14: #{_lambda_.11} parent=11 // pred_check_branch
        %186 = sbr.rel (%p184) target = $region16
      $region15: #{_lambda_.11} parent=11 // pred_region
        _
      $region16: #{_lambda_.11} parent=11 // pred_fallthru
        _
      // Predicated region
      $region17: #{_lambda_.11} parent=11 // pred_check
        %p187 = pneg %p80
      $region18: #{_lambda_.11} parent=11 // pred_check_branch
        %189 = sbr.rel (%p187) target = $region20
      $region19: #{_lambda_.11} parent=11 // pred_region
        _
      $region20: #{_lambda_.11} parent=11 // pred_fallthru
        _
      // Predicated region
      $region21: #{_lambda_.11} parent=11 // pred_check
        %p190 = pneg %p101
      $region22: #{_lambda_.11} parent=11 // pred_check_branch
        %192 = sbr.rel (%p190) target = $region24
      $region23: #{_lambda_.11} parent=11 // pred_region
        _
      $region24: #{_lambda_.11} parent=11 // pred_fallthru
        _
      // Predicated region
      $region25: #{_lambda_.11} parent=11 // pred_check
        %p193 = pneg %p122
      $region26: #{_lambda_.11} parent=11 // pred_check_branch
        %195 = sbr.rel (%p193) target = $region28
      $region27: #{_lambda_.11} parent=11 // pred_region
        _
      $region28: #{_lambda_.11} parent=11 // pred_fallthru
        _
      // Predicated region
      $region29: #{_lambda_.11} parent=11 // pred_check
        %p196 = pneg %p143
      $region30: #{_lambda_.11} parent=11 // pred_check_branch
        %198 = sbr.rel (%p196) target = $region32
      $region31: #{_lambda_.11} parent=11 // pred_region
        _
      $region32: #{_lambda_.11} parent=11 // pred_fallthru
        _
    $region12: #{_lambda_.11} parent=5 // pred_fallthru
      _
    %p199 = scmp.lt.s32.totalorder %s12, 2
    // Predicated region
    $region33: #{_lambda_.11} parent=5 // pred_check
      %p200 = pneg %p199
    $region34: #{_lambda_.11} parent=5 // pred_check_branch
      %202 = sbr.rel (%p200) target = $region36
    $region35: #{_lambda_.11} parent=5 // pred_region
      // Predicated region
      $region37: #{_lambda_.11} parent=35 // pred_check
        %p203 = pneg %p32
      $region38: #{_lambda_.11} parent=35 // pred_check_branch
        %205 = sbr.rel (%p203) target = $region40
      $region39: #{_lambda_.11} parent=35 // pred_region
        %p206 = scmp.lt.s32.totalorder %s12, 1
        %s207 = scalar_select %p206, %s12, 1
        %s208 = smul.addr %s207, 8
        %s209 = smul.addr %s208, 4
        %s210 = scalar_lea.vmem %s0, %s209
      $region40: #{_lambda_.11} parent=35 // pred_fallthru
        _
    $region36: #{_lambda_.11} parent=5 // pred_fallthru
      _
    %p211 = scmp.le.s32.totalorder 1, %s12
    %p212 = scmp.lt.s32.totalorder %s12, 3
    %p213 = pnand %p211, %p212
    %p214 = pneg %p213
    // Predicated region
    $region41: #{_lambda_.11} parent=5 // pred_check
      _
    $region42: #{_lambda_.11} parent=5 // pred_check_branch
      %216 = sbr.rel (%p213) target = $region44
    $region43: #{_lambda_.11} parent=5 // pred_region
      %s217 = ssub.s32 %s12, 1
      %p218 = scmp.lt.s32.totalorder %s17, 1
      %s219 = scalar_select %p218, %s17, 1
      %s220 = smul.addr %s219, 8
      %s221 = smul.addr %s220, 4
      %s222 = scalar_lea.vmem %s0, %s221
      %p223 = pneg %p38
      %p224 = pneg %p35
      %p225 = pneg %p59
      %p226 = pneg %p56
      %p227 = pneg %p80
      %p228 = pneg %p77
      %p229 = pneg %p101
      %p230 = pneg %p98
      %p231 = pneg %p122
      %p232 = pneg %p119
      %p233 = pneg %p143
      %p234 = pneg %p140
      %p235 = pneg %p169
      %p236 = pneg %p166
      %p237 = scmp.lt.s32.totalorder %s17, 1
      %s238 = scalar_select %p237, %s17, 1
      %s239 = smul.addr %s238, 8
      %s240 = smul.addr %s239, 4
      %s241 = scalar_lea.vmem %s6, %s240
      %p242 = scmp.lt.s32.totalorder %s17, 1
      %s243 = scalar_select %p242, %s17, 1
      %s244 = smul.addr %s243, 8
      %s245 = smul.addr %s244, 4
      %s246 = scalar_lea.vmem %s0, %s245
      %p247 = scmp.lt.s32.totalorder %s17, 1
      %s248 = scalar_select %p247, %s17, 1
      %s249 = smul.addr %s248, 8
      %s250 = smul.addr %s249, 4
      %s251 = scalar_lea.vmem %s6, %s250
      %v253 = vld [vmem:[%s246] sm:$0xf]
      %v254 = vld [vmem:[%s246 + $0x4] sm:$0xf]
      %v255 = vld [vmem:[%s246 + $0x8] sm:$0xf]
      %v256 = vld [vmem:[%s246 + $0xc] sm:$0xf]
      %v257 = vld [vmem:[%s246 + $0x10] sm:$0xf]
      %v258 = vld [vmem:[%s246 + $0x14] sm:$0xf]
      %v259 = vld [vmem:[%s246 + $0x18] sm:$0xf]
      %v260 = vld [vmem:[%s246 + $0x1c] sm:$0xf]
      %v261 = vld [vmem:[%s1] sm:$0xf]
      %v262 = vld [vmem:[%s1 + $0x4] sm:$0xf]
      %v263 = vld [vmem:[%s1 + $0x8] sm:$0xf]
      %v264 = vld [vmem:[%s1 + $0xc] sm:$0xf]
      %v265 = vld [vmem:[%s1 + $0x10] sm:$0xf]
      %v266 = vld [vmem:[%s1 + $0x14] sm:$0xf]
      %v267 = vld [vmem:[%s1 + $0x18] sm:$0xf]
      %v268 = vld [vmem:[%s1 + $0x1c] sm:$0xf]
      %v269 = vld [vmem:[%s1 + $0x20] sm:$0xf]
      %v270 = vld [vmem:[%s1 + $0x24] sm:$0xf]
      %v271 = vld [vmem:[%s1 + $0x28] sm:$0xf]
      %v272 = vld [vmem:[%s1 + $0x2c] sm:$0xf]
      %v273 = vld [vmem:[%s1 + $0x30] sm:$0xf]
      %v274 = vld [vmem:[%s1 + $0x34] sm:$0xf]
      %v275 = vld [vmem:[%s1 + $0x38] sm:$0xf]
      %v276 = vld [vmem:[%s1 + $0x3c] sm:$0xf]
      %v285 = vunpack.c.l.b16 %v253
      %v286 = vunpack.c.l.b16 %v254
      %v287 = vunpack.c.l.b16 %v255
      %v288 = vunpack.c.l.b16 %v256
      %v289 = vunpack.c.l.b16 %v257
      %v290 = vunpack.c.l.b16 %v258
      %v291 = vunpack.c.l.b16 %v259
      %v292 = vunpack.c.l.b16 %v260
      %v293 = vpack.c.b16 %v286, %v285
      %v294 = vpack.c.b16 %v288, %v287
      %v295 = vpack.c.b16 %v290, %v289
      %v296 = vpack.c.b16 %v292, %v291
      %v317 = vunpack.c.l.b16 %v261
      %v318 = vunpack.c.l.b16 %v262
      %v319 = vunpack.c.l.b16 %v263
      %v320 = vunpack.c.l.b16 %v264
      %v321 = vunpack.c.l.b16 %v265
      %v322 = vunpack.c.l.b16 %v266
      %v323 = vunpack.c.l.b16 %v267
      %v324 = vunpack.c.l.b16 %v268
      %v325 = vunpack.c.l.b16 %v269
      %v326 = vunpack.c.l.b16 %v270
      %v327 = vunpack.c.l.b16 %v271
      %v328 = vunpack.c.l.b16 %v272
      %v329 = vunpack.c.l.b16 %v273
      %v330 = vunpack.c.l.b16 %v274
      %v331 = vunpack.c.l.b16 %v275
      %v332 = vunpack.c.l.b16 %v276
      %v333 = vpack.c.b16 %v318, %v317
      %v334 = vpack.c.b16 %v320, %v319
      %v335 = vpack.c.b16 %v322, %v321
      %v336 = vpack.c.b16 %v324, %v323
      %v337 = vpack.c.b16 %v326, %v325
      %v338 = vpack.c.b16 %v328, %v327
      %v339 = vpack.c.b16 %v330, %v329
      %v340 = vpack.c.b16 %v332, %v331
      %349 = vmatprep.subr.bf16.mxu0 0
      %350 = vmatpush1.bf16.msra.mxu0 %v340
      %351 = vmatprep.subr.bf16.mxu0 0
      %352 = vmatpush1.bf16.msra.mxu0 %v339
      %353 = vmatprep.subr.bf16.mxu0 0
      %354 = vmatpush1.bf16.msra.mxu0 %v338
      %355 = vmatprep.subr.bf16.mxu0 0
      %356 = vmatpush1.bf16.msra.mxu0 %v337
      %357 = vmatprep.subr.bf16.mxu0 0
      %358 = vmatpush1.bf16.msra.mxu0 %v336
      %359 = vmatprep.subr.bf16.mxu0 0
      %360 = vmatpush1.bf16.msra.mxu0 %v335
      %361 = vmatprep.subr.bf16.mxu0 0
      %362 = vmatpush1.bf16.msra.mxu0 %v334
      %363 = vmatprep.subr.bf16.mxu0 0
      %364 = vmatpush1.bf16.msra.mxu0 %v333
      %365 = vmatprep.subr.bf16.mxu0 0
      %366 = vmatpush2.bf16.msra.mxu0 0
      %367 = vmatprep.subr.bf16.mxu0 0
      %368 = vmatpush2.bf16.msra.mxu0 0
      %369 = vmatprep.subr.bf16.mxu0 0
      %370 = vmatpush2.bf16.msra.mxu0 0
      %371 = vmatprep.subr.bf16.mxu0 0
      %372 = vmatpush2.bf16.msra.mxu0 0
      %373 = vmatprep.subr.bf16.mxu0 0
      %374 = vmatpush2.bf16.msra.mxu0 0
      %375 = vmatprep.subr.bf16.mxu0 0
      %376 = vmatpush2.bf16.msra.mxu0 0
      %377 = vmatprep.subr.bf16.mxu0 0
      %378 = vmatpush2.bf16.msra.mxu0 0
      %379 = vmatprep.subr.bf16.mxu0 0
      %380 = vmatpush2.bf16.msra.mxu0 0
      %381 = vmatprep.mubr.bf16.mxu0 0
      %382 = vmatmul.mubr.bf16.gmra.mxu0 %v293
      %v383 = vpop.f32.mrf.mxu0
      %v384 = vadd.f32 0.0, %v383
      %v385 = vpop.f32.mrf.mxu0
      %v386 = vpop.f32.mrf.mxu0
      %v387 = vadd.f32 0.0, %v386
      %v388 = vpop.f32.mrf.mxu0
      %389 = vmatprep.mubr.bf16.mxu0 0
      %390 = vmatmul.mubr.bf16.gmra.mxu0 %v294
      %v391 = vpop.f32.mrf.mxu0
      %v392 = vadd.f32 0.0, %v391
      %v393 = vpop.f32.mrf.mxu0
      %v394 = vpop.f32.mrf.mxu0
      %v395 = vadd.f32 0.0, %v394
      %v396 = vpop.f32.mrf.mxu0
      %397 = vmatprep.mubr.bf16.mxu0 0
      %398 = vmatmul.mubr.bf16.gmra.mxu0 %v295
      %v399 = vpop.f32.mrf.mxu0
      %v400 = vadd.f32 0.0, %v399
      %v401 = vpop.f32.mrf.mxu0
      %v402 = vpop.f32.mrf.mxu0
      %v403 = vadd.f32 0.0, %v402
      %v404 = vpop.f32.mrf.mxu0
      %405 = vmatprep.mubr.bf16.mxu0 0
      %406 = vmatmul.mubr.bf16.gmra.mxu0 %v296
      %v407 = vpop.f32.mrf.mxu0
      %v408 = vadd.f32 0.0, %v407
      %v409 = vpop.f32.mrf.mxu0
      %v410 = vpop.f32.mrf.mxu0
      %v411 = vadd.f32 0.0, %v410
      %v412 = vpop.f32.mrf.mxu0
      %413 = vdwg.mxu0
      %v414 = vld [vmem:[%s2] sm:$0x1]
      %v415 = vld [vmem:[%s3] sm:$0x1]
      %v416 = vld [vmem:[%s4] sm:$0xff]
      %v417 = vld [vmem:[%s4 + $0x8] sm:$0xff]
      %v418 = vld [vmem:[%s4 + $0x10] sm:$0xff]
      %v419 = vld [vmem:[%s4 + $0x18] sm:$0xff]
      %v420 = vld [vmem:[%s4 + $0x20] sm:$0xff]
      %v421 = vld [vmem:[%s4 + $0x28] sm:$0xff]
      %v422 = vld [vmem:[%s4 + $0x30] sm:$0xff]
      %v423 = vld [vmem:[%s4 + $0x38] sm:$0xff]
      %v424 = vld [vmem:[%s4 + $0x40] sm:$0xff]
      %v425 = vld [vmem:[%s4 + $0x48] sm:$0xff]
      %v426 = vld [vmem:[%s4 + $0x50] sm:$0xff]
      %v427 = vld [vmem:[%s4 + $0x58] sm:$0xff]
      %v428 = vld [vmem:[%s4 + $0x60] sm:$0xff]
      %v429 = vld [vmem:[%s4 + $0x68] sm:$0xff]
      %v430 = vld [vmem:[%s4 + $0x70] sm:$0xff]
      %v431 = vld [vmem:[%s4 + $0x78] sm:$0xff]
      %v432 = vld [vmem:[%s5] sm:$0xff]
      %v433 = vld [vmem:[%s5 + $0x8] sm:$0xff]
      %v434 = vld [vmem:[%s5 + $0x10] sm:$0xff]
      %v435 = vld [vmem:[%s5 + $0x18] sm:$0xff]
      %v436 = vld [vmem:[%s5 + $0x20] sm:$0xff]
      %v437 = vld [vmem:[%s5 + $0x28] sm:$0xff]
      %v438 = vld [vmem:[%s5 + $0x30] sm:$0xff]
      %v439 = vld [vmem:[%s5 + $0x38] sm:$0xff]
      %v440 = vld [vmem:[%s5 + $0x40] sm:$0xff]
      %v441 = vld [vmem:[%s5 + $0x48] sm:$0xff]
      %v442 = vld [vmem:[%s5 + $0x50] sm:$0xff]
      %v443 = vld [vmem:[%s5 + $0x58] sm:$0xff]
      %v444 = vld [vmem:[%s5 + $0x60] sm:$0xff]
      %v445 = vld [vmem:[%s5 + $0x68] sm:$0xff]
      %v446 = vld [vmem:[%s5 + $0x70] sm:$0xff]
      %v447 = vld [vmem:[%s5 + $0x78] sm:$0xff]
      %v448 = vadd.f32 %v384, %v387
      %v449 = vadd.f32 %v448, %v392
      %v450 = vadd.f32 %v449, %v395
      %v451 = vadd.f32 %v450, %v400
      %v452 = vadd.f32 %v451, %v403
      %v453 = vadd.f32 %v452, %v408
      %v454 = vadd.f32 %v453, %v411
      %v455 = vrot.slane %v454, 4
      %v456 = vadd.f32 %v454, %v455
      %v457 = vrot.slane %v456, 2
      %v458 = vadd.f32 %v456, %v457
      %v459 = vrot.slane %v458, 1
      %v460 = vadd.f32 %v458, %v459
      %v461 = vmul.f32 %v384, %v384
      %v462 = vmul.f32 %v387, %v387
      %v463 = vmul.f32 %v392, %v392
      %v464 = vmul.f32 %v395, %v395
      %v465 = vmul.f32 %v400, %v400
      %v466 = vmul.f32 %v403, %v403
      %v467 = vmul.f32 %v408, %v408
      %v468 = vmul.f32 %v411, %v411
      %v469 = vadd.f32 %v461, %v462
      %v470 = vadd.f32 %v469, %v463
      %v471 = vadd.f32 %v470, %v464
      %v472 = vadd.f32 %v471, %v465
      %v473 = vadd.f32 %v472, %v466
      %v474 = vadd.f32 %v473, %v467
      %v475 = vadd.f32 %v474, %v468
      %v476 = vrot.slane %v475, 4
      %v477 = vadd.f32 %v475, %v476
      %v478 = vrot.slane %v477, 2
      %v479 = vadd.f32 %v477, %v478
      %v480 = vrot.slane %v479, 1
      %v481 = vadd.f32 %v479, %v480
      %482 = vmatprep.subr.mxu0 0.0
      %483 = vmatpush1.msra.mxu0 %v431
      %484 = vmatprep.subr.mxu0 0.0
      %485 = vmatpush1.msra.mxu0 %v430
      %486 = vmatprep.subr.mxu0 0.0
      %487 = vmatpush1.msra.mxu0 %v429
      %488 = vmatprep.subr.mxu0 0.0
      %489 = vmatpush1.msra.mxu0 %v428
      %490 = vmatprep.subr.mxu0 0.0
      %491 = vmatpush1.msra.mxu0 %v427
      %492 = vmatprep.subr.mxu0 0.0
      %493 = vmatpush1.msra.mxu0 %v426
      %494 = vmatprep.subr.mxu0 0.0
      %495 = vmatpush1.msra.mxu0 %v425
      %496 = vmatprep.subr.mxu0 0.0
      %497 = vmatpush1.msra.mxu0 %v424
      %498 = vmatprep.subr.mxu0 0.0
      %499 = vmatpush1.msra.mxu0 %v423
      %500 = vmatprep.subr.mxu0 0.0
      %501 = vmatpush1.msra.mxu0 %v422
      %502 = vmatprep.subr.mxu0 0.0
      %503 = vmatpush1.msra.mxu0 %v421
      %504 = vmatprep.subr.mxu0 0.0
      %505 = vmatpush1.msra.mxu0 %v420
      %506 = vmatprep.subr.mxu0 0.0
      %507 = vmatpush1.msra.mxu0 %v419
      %508 = vmatprep.subr.mxu0 0.0
      %509 = vmatpush1.msra.mxu0 %v418
      %510 = vmatprep.subr.mxu0 0.0
      %511 = vmatpush1.msra.mxu0 %v417
      %512 = vmatprep.subr.mxu0 0.0
      %513 = vmatpush1.msra.mxu0 %v416
      %514 = vmatprep.subr.mxu0 0.0
      %515 = vmatpush2.msra.mxu0 0.0
      %516 = vmatprep.subr.mxu0 0.0
      %517 = vmatpush2.msra.mxu0 0.0
      %518 = vmatprep.subr.mxu0 0.0
      %519 = vmatpush2.msra.mxu0 0.0
      %520 = vmatprep.subr.mxu0 0.0
      %521 = vmatpush2.msra.mxu0 0.0
      %522 = vmatprep.subr.mxu0 0.0
      %523 = vmatpush2.msra.mxu0 0.0
      %524 = vmatprep.subr.mxu0 0.0
      %525 = vmatpush2.msra.mxu0 0.0
      %526 = vmatprep.subr.mxu0 0.0
      %527 = vmatpush2.msra.mxu0 0.0
      %528 = vmatprep.subr.mxu0 0.0
      %529 = vmatpush2.msra.mxu0 0.0
      %530 = vmatprep.subr.mxu0 0.0
      %531 = vmatpush2.msra.mxu0 0.0
      %532 = vmatprep.subr.mxu0 0.0
      %533 = vmatpush2.msra.mxu0 0.0
      %534 = vmatprep.subr.mxu0 0.0
      %535 = vmatpush2.msra.mxu0 0.0
      %536 = vmatprep.subr.mxu0 0.0
      %537 = vmatpush2.msra.mxu0 0.0
      %538 = vmatprep.subr.mxu0 0.0
      %539 = vmatpush2.msra.mxu0 0.0
      %540 = vmatprep.subr.mxu0 0.0
      %541 = vmatpush2.msra.mxu0 0.0
      %542 = vmatprep.subr.mxu0 0.0
      %543 = vmatpush2.msra.mxu0 0.0
      %544 = vmatprep.subr.mxu0 0.0
      %545 = vmatpush2.msra.mxu0 0.0
      %546 = vmatprep.mubr.f32.mxu0 0.0
      %547 = vmatmul.mubr.f32.gmra.mxu0 %v460
      %v548 = vpop.f32.mrf.mxu0
      %v549 = vadd.f32 0.0, %v548
      %v550 = vpop.f32.mrf.mxu0
      %551 = vdwg.mxu0
      %v552 = vmul.f32 %v549, 0.015625
      %553 = vmatprep.subr.mxu0 0.0
      %554 = vmatpush1.msra.mxu0 %v431
      %555 = vmatprep.subr.mxu0 0.0
      %556 = vmatpush1.msra.mxu0 %v430
      %557 = vmatprep.subr.mxu0 0.0
      %558 = vmatpush1.msra.mxu0 %v429
      %559 = vmatprep.subr.mxu0 0.0
      %560 = vmatpush1.msra.mxu0 %v428
      %561 = vmatprep.subr.mxu0 0.0
      %562 = vmatpush1.msra.mxu0 %v427
      %563 = vmatprep.subr.mxu0 0.0
      %564 = vmatpush1.msra.mxu0 %v426
      %565 = vmatprep.subr.mxu0 0.0
      %566 = vmatpush1.msra.mxu0 %v425
      %567 = vmatprep.subr.mxu0 0.0
      %568 = vmatpush1.msra.mxu0 %v424
      %569 = vmatprep.subr.mxu0 0.0
      %570 = vmatpush1.msra.mxu0 %v423
      %571 = vmatprep.subr.mxu0 0.0
      %572 = vmatpush1.msra.mxu0 %v422
      %573 = vmatprep.subr.mxu0 0.0
      %574 = vmatpush1.msra.mxu0 %v421
      %575 = vmatprep.subr.mxu0 0.0
      %576 = vmatpush1.msra.mxu0 %v420
      %577 = vmatprep.subr.mxu0 0.0
      %578 = vmatpush1.msra.mxu0 %v419
      %579 = vmatprep.subr.mxu0 0.0
      %580 = vmatpush1.msra.mxu0 %v418
      %581 = vmatprep.subr.mxu0 0.0
      %582 = vmatpush1.msra.mxu0 %v417
      %583 = vmatprep.subr.mxu0 0.0
      %584 = vmatpush1.msra.mxu0 %v416
      %585 = vmatprep.subr.mxu0 0.0
      %586 = vmatpush2.msra.mxu0 0.0
      %587 = vmatprep.subr.mxu0 0.0
      %588 = vmatpush2.msra.mxu0 0.0
      %589 = vmatprep.subr.mxu0 0.0
      %590 = vmatpush2.msra.mxu0 0.0
      %591 = vmatprep.subr.mxu0 0.0
      %592 = vmatpush2.msra.mxu0 0.0
      %593 = vmatprep.subr.mxu0 0.0
      %594 = vmatpush2.msra.mxu0 0.0
      %595 = vmatprep.subr.mxu0 0.0
      %596 = vmatpush2.msra.mxu0 0.0
      %597 = vmatprep.subr.mxu0 0.0
      %598 = vmatpush2.msra.mxu0 0.0
      %599 = vmatprep.subr.mxu0 0.0
      %600 = vmatpush2.msra.mxu0 0.0
      %601 = vmatprep.subr.mxu0 0.0
      %602 = vmatpush2.msra.mxu0 0.0
      %603 = vmatprep.subr.mxu0 0.0
      %604 = vmatpush2.msra.mxu0 0.0
      %605 = vmatprep.subr.mxu0 0.0
      %606 = vmatpush2.msra.mxu0 0.0
      %607 = vmatprep.subr.mxu0 0.0
      %608 = vmatpush2.msra.mxu0 0.0
      %609 = vmatprep.subr.mxu0 0.0
      %610 = vmatpush2.msra.mxu0 0.0
      %611 = vmatprep.subr.mxu0 0.0
      %612 = vmatpush2.msra.mxu0 0.0
      %613 = vmatprep.subr.mxu0 0.0
      %614 = vmatpush2.msra.mxu0 0.0
      %615 = vmatprep.subr.mxu0 0.0
      %616 = vmatpush2.msra.mxu0 0.0
      %617 = vmatprep.mubr.f32.mxu0 0.0
      %618 = vmatmul.mubr.f32.gmra.mxu0 %v481
      %v619 = vpop.f32.mrf.mxu0
      %v620 = vadd.f32 0.0, %v619
      %v621 = vpop.f32.mrf.mxu0
      %622 = vdwg.mxu0
      %v623 = vmul.f32 %v620, 0.015625
      %v624 = vmul.f32 %v552, %v552
      %v625 = vsub.f32 %v623, %v624
      %v626 = vmax.f32 %v625, 0.0
      %v627 = vadd.f32 %v626, 1e-05
      %v628 = vrsqrt.pop %v627
      %629 = vmatprep.subr.mxu0 0.0
      %630 = vmatpush1.msra.mxu0 %v447
      %631 = vmatprep.subr.mxu0 0.0
      %632 = vmatpush1.msra.mxu0 %v446
      %633 = vmatprep.subr.mxu0 0.0
      %634 = vmatpush1.msra.mxu0 %v445
      %635 = vmatprep.subr.mxu0 0.0
      %636 = vmatpush1.msra.mxu0 %v444
      %637 = vmatprep.subr.mxu0 0.0
      %638 = vmatpush1.msra.mxu0 %v443
      %639 = vmatprep.subr.mxu0 0.0
      %640 = vmatpush1.msra.mxu0 %v442
      %641 = vmatprep.subr.mxu0 0.0
      %642 = vmatpush1.msra.mxu0 %v441
      %643 = vmatprep.subr.mxu0 0.0
      %644 = vmatpush1.msra.mxu0 %v440
      %645 = vmatprep.subr.mxu0 0.0
      %646 = vmatpush1.msra.mxu0 %v439
      %647 = vmatprep.subr.mxu0 0.0
      %648 = vmatpush1.msra.mxu0 %v438
      %649 = vmatprep.subr.mxu0 0.0
      %650 = vmatpush1.msra.mxu0 %v437
      %651 = vmatprep.subr.mxu0 0.0
      %652 = vmatpush1.msra.mxu0 %v436
      %653 = vmatprep.subr.mxu0 0.0
      %654 = vmatpush1.msra.mxu0 %v435
      %655 = vmatprep.subr.mxu0 0.0
      %656 = vmatpush1.msra.mxu0 %v434
      %657 = vmatprep.subr.mxu0 0.0
      %658 = vmatpush1.msra.mxu0 %v433
      %659 = vmatprep.subr.mxu0 0.0
      %660 = vmatpush1.msra.mxu0 %v432
      %661 = vmatprep.subr.mxu0 0.0
      %662 = vmatpush2.msra.mxu0 0.0
      %663 = vmatprep.subr.mxu0 0.0
      %664 = vmatpush2.msra.mxu0 0.0
      %665 = vmatprep.subr.mxu0 0.0
      %666 = vmatpush2.msra.mxu0 0.0
      %667 = vmatprep.subr.mxu0 0.0
      %668 = vmatpush2.msra.mxu0 0.0
      %669 = vmatprep.subr.mxu0 0.0
      %670 = vmatpush2.msra.mxu0 0.0
      %671 = vmatprep.subr.mxu0 0.0
      %672 = vmatpush2.msra.mxu0 0.0
      %673 = vmatprep.subr.mxu0 0.0
      %674 = vmatpush2.msra.mxu0 0.0
      %675 = vmatprep.subr.mxu0 0.0
      %676 = vmatpush2.msra.mxu0 0.0
      %677 = vmatprep.subr.mxu0 0.0
      %678 = vmatpush2.msra.mxu0 0.0
      %679 = vmatprep.subr.mxu0 0.0
      %680 = vmatpush2.msra.mxu0 0.0
      %681 = vmatprep.subr.mxu0 0.0
      %682 = vmatpush2.msra.mxu0 0.0
      %683 = vmatprep.subr.mxu0 0.0
      %684 = vmatpush2.msra.mxu0 0.0
      %685 = vmatprep.subr.mxu0 0.0
      %686 = vmatpush2.msra.mxu0 0.0
      %687 = vmatprep.subr.mxu0 0.0
      %688 = vmatpush2.msra.mxu0 0.0
      %689 = vmatprep.subr.mxu0 0.0
      %690 = vmatpush2.msra.mxu0 0.0
      %691 = vmatprep.subr.mxu0 0.0
      %692 = vmatpush2.msra.mxu0 0.0
      %693 = vmatprep.mubr.f32.mxu0 0.0
      %694 = vmatmul.mubr.f32.gmra.mxu0 %v552
      %v695 = vpop.f32.mrf.mxu0
      %v696 = vadd.f32 0.0, %v695
      %v697 = vpop.f32.mrf.mxu0
      %698 = vdwg.mxu0
      %699 = vmatprep.subr.mxu0 0.0
      %700 = vmatpush1.msra.mxu0 %v447
      %701 = vmatprep.subr.mxu0 0.0
      %702 = vmatpush1.msra.mxu0 %v446
      %703 = vmatprep.subr.mxu0 0.0
      %704 = vmatpush1.msra.mxu0 %v445
      %705 = vmatprep.subr.mxu0 0.0
      %706 = vmatpush1.msra.mxu0 %v444
      %707 = vmatprep.subr.mxu0 0.0
      %708 = vmatpush1.msra.mxu0 %v443
      %709 = vmatprep.subr.mxu0 0.0
      %710 = vmatpush1.msra.mxu0 %v442
      %711 = vmatprep.subr.mxu0 0.0
      %712 = vmatpush1.msra.mxu0 %v441
      %713 = vmatprep.subr.mxu0 0.0
      %714 = vmatpush1.msra.mxu0 %v440
      %715 = vmatprep.subr.mxu0 0.0
      %716 = vmatpush1.msra.mxu0 %v439
      %717 = vmatprep.subr.mxu0 0.0
      %718 = vmatpush1.msra.mxu0 %v438
      %719 = vmatprep.subr.mxu0 0.0
      %720 = vmatpush1.msra.mxu0 %v437
      %721 = vmatprep.subr.mxu0 0.0
      %722 = vmatpush1.msra.mxu0 %v436
      %723 = vmatprep.subr.mxu0 0.0
      %724 = vmatpush1.msra.mxu0 %v435
      %725 = vmatprep.subr.mxu0 0.0
      %726 = vmatpush1.msra.mxu0 %v434
      %727 = vmatprep.subr.mxu0 0.0
      %728 = vmatpush1.msra.mxu0 %v433
      %729 = vmatprep.subr.mxu0 0.0
      %730 = vmatpush1.msra.mxu0 %v432
      %731 = vmatprep.subr.mxu0 0.0
      %732 = vmatpush2.msra.mxu0 0.0
      %733 = vmatprep.subr.mxu0 0.0
      %734 = vmatpush2.msra.mxu0 0.0
      %735 = vmatprep.subr.mxu0 0.0
      %736 = vmatpush2.msra.mxu0 0.0
      %737 = vmatprep.subr.mxu0 0.0
      %738 = vmatpush2.msra.mxu0 0.0
      %739 = vmatprep.subr.mxu0 0.0
      %740 = vmatpush2.msra.mxu0 0.0
      %741 = vmatprep.subr.mxu0 0.0
      %742 = vmatpush2.msra.mxu0 0.0
      %743 = vmatprep.subr.mxu0 0.0
      %744 = vmatpush2.msra.mxu0 0.0
      %745 = vmatprep.subr.mxu0 0.0
      %746 = vmatpush2.msra.mxu0 0.0
      %747 = vmatprep.subr.mxu0 0.0
      %748 = vmatpush2.msra.mxu0 0.0
      %749 = vmatprep.subr.mxu0 0.0
      %750 = vmatpush2.msra.mxu0 0.0
      %751 = vmatprep.subr.mxu0 0.0
      %752 = vmatpush2.msra.mxu0 0.0
      %753 = vmatprep.subr.mxu0 0.0
      %754 = vmatpush2.msra.mxu0 0.0
      %755 = vmatprep.subr.mxu0 0.0
      %756 = vmatpush2.msra.mxu0 0.0
      %757 = vmatprep.subr.mxu0 0.0
      %758 = vmatpush2.msra.mxu0 0.0
      %759 = vmatprep.subr.mxu0 0.0
      %760 = vmatpush2.msra.mxu0 0.0
      %761 = vmatprep.subr.mxu0 0.0
      %762 = vmatpush2.msra.mxu0 0.0
      %763 = vmatprep.mubr.f32.mxu0 0.0
      %764 = vmatmul.mubr.f32.gmra.mxu0 %v628
      %v765 = vpop.f32.mrf.mxu0
      %v766 = vadd.f32 0.0, %v765
      %v767 = vpop.f32.mrf.mxu0
      %768 = vdwg.mxu0
      %v769 = vlaneseq
      %v770 = vshrl.u32 %v769, 7
      %v771 = vsub.s32 0, %v770
      %v772 = vrot.slane %v696, %v771
      %v773 = vsub.f32 %v384, %v772
      %v774 = vsub.f32 %v387, %v772
      %v775 = vsub.f32 %v392, %v772
      %v776 = vsub.f32 %v395, %v772
      %v777 = vsub.f32 %v400, %v772
      %v778 = vsub.f32 %v403, %v772
      %v779 = vsub.f32 %v408, %v772
      %v780 = vsub.f32 %v411, %v772
      %v781 = vmul.f32 %v766, %v414
      %v782 = vlaneseq
      %v783 = vshrl.u32 %v782, 7
      %v784 = vsub.s32 0, %v783
      %v785 = vrot.slane %v781, %v784
      %v786 = vmul.f32 %v773, %v785
      %v787 = vmul.f32 %v774, %v785
      %v788 = vmul.f32 %v775, %v785
      %v789 = vmul.f32 %v776, %v785
      %v790 = vmul.f32 %v777, %v785
      %v791 = vmul.f32 %v778, %v785
      %v792 = vmul.f32 %v779, %v785
      %v793 = vmul.f32 %v780, %v785
      %v795 = vlaneseq
      %v796 = vshrl.u32 %v795, 7
      %v797 = vsub.s32 0, %v796
      %v798 = vrot.slane %v415, %v797
      %v800 = vadd.f32 %v786, %v798
      %v801 = vadd.f32 %v787, %v798
      %v802 = vadd.f32 %v788, %v798
      %v803 = vadd.f32 %v789, %v798
      %v804 = vadd.f32 %v790, %v798
      %v805 = vadd.f32 %v791, %v798
      %v806 = vadd.f32 %v792, %v798
      %v807 = vadd.f32 %v793, %v798
      %v808 = vmax.f32 %v800, 0.0
      %v809 = vmax.f32 %v801, 0.0
      %v810 = vmax.f32 %v802, 0.0
      %v811 = vmax.f32 %v803, 0.0
      %v812 = vmax.f32 %v804, 0.0
      %v813 = vmax.f32 %v805, 0.0
      %v814 = vmax.f32 %v806, 0.0
      %v815 = vmax.f32 %v807, 0.0
      %v816 = vpack.c.bf16 %v809, %v808
      %v817 = vpack.c.bf16 %v811, %v810
      %v818 = vpack.c.bf16 %v813, %v812
      %v819 = vpack.c.bf16 %v815, %v814
      %v824 = vunpack.c.l.b16 %v816
      %v825 = vunpack.c.h.b16 %v816
      %v826 = vunpack.c.l.b16 %v817
      %v827 = vunpack.c.h.b16 %v817
      %v828 = vunpack.c.l.b16 %v818
      %v829 = vunpack.c.h.b16 %v818
      %v830 = vunpack.c.l.b16 %v819
      %v831 = vunpack.c.h.b16 %v819
      %v832 = vpack.c.b16 %v824, %v824
      %v833 = vpack.c.b16 %v825, %v825
      %v834 = vpack.c.b16 %v826, %v826
      %v835 = vpack.c.b16 %v827, %v827
      %v836 = vpack.c.b16 %v828, %v828
      %v837 = vpack.c.b16 %v829, %v829
      %v838 = vpack.c.b16 %v830, %v830
      %v839 = vpack.c.b16 %v831, %v831
      %848 = vst [vmem:[%s251] sm:$0xf] %v832
      %849 = vst [vmem:[%s251 + $0x4] sm:$0xf] %v833
      %850 = vst [vmem:[%s251 + $0x8] sm:$0xf] %v834
      %851 = vst [vmem:[%s251 + $0xc] sm:$0xf] %v835
      %852 = vst [vmem:[%s251 + $0x10] sm:$0xf] %v836
      %853 = vst [vmem:[%s251 + $0x14] sm:$0xf] %v837
      %854 = vst [vmem:[%s251 + $0x18] sm:$0xf] %v838
      %855 = vst [vmem:[%s251 + $0x1c] sm:$0xf] %v839
      %p856 = scmp.lt.s32.totalorder %s17, 1
      %s857 = scalar_select %p856, %s17, 1
      %s858 = smul.addr %s857, 8
      %s859 = smul.addr %s858, 4
      %s860 = scalar_lea.vmem %s6, %s859
      // Predicated region
      $region45: #{_lambda_.11} parent=43 // pred_check
        %p861 = pneg %p166
      $region46: #{_lambda_.11} parent=43 // pred_check_branch
        %863 = sbr.rel (%p861) target = $region48
      $region47: #{_lambda_.11} parent=43 // pred_region
        _
      $region48: #{_lambda_.11} parent=43 // pred_fallthru
        _
    $region44: #{_lambda_.11} parent=5 // pred_fallthru
      _
    %p864 = scmp.le.s32.totalorder 2, %s12
    // Predicated region
    $region49: #{_lambda_.11} parent=5 // pred_check
      %p865 = pneg %p864
    $region50: #{_lambda_.11} parent=5 // pred_check_branch
      %867 = sbr.rel (%p865) target = $region52
    $region51: #{_lambda_.11} parent=5 // pred_region
      %s868 = ssub.s32 %s12, 2
      // Predicated region
      $region53: #{_lambda_.11} parent=51 // pred_check
        %p869 = pneg %p172
      $region54: #{_lambda_.11} parent=51 // pred_check_branch
        %871 = sbr.rel (%p869) target = $region56
      $region55: #{_lambda_.11} parent=51 // pred_region
        %p872 = scmp.lt.s32.totalorder %s18, 1
        %s873 = scalar_select %p872, %s18, 1
        %s874 = smul.addr %s873, 8
        %s875 = smul.addr %s874, 4
        %s876 = scalar_lea.vmem %s6, %s875
      $region56: #{_lambda_.11} parent=51 // pred_fallthru
        _
    $region52: #{_lambda_.11} parent=5 // pred_fallthru
      _
  $region6: #{_lambda_.11} parent=0 // loop_footer
    %s16 = sadd.s32 1, %s12
  $region7: #{_lambda_.11} parent=0 // loop_footer_branch
    %11 = sbr.rel target = $region3
  $region8: #{_lambda_.11} parent=0 // loop_exit
    _

// kernel: _lambda_.9
$region0: #{_lambda_.9}
  #allocation0 [shape = 'u32[]', space=smem, size = 0x4, offset = 0x4, fixed_abs, tag = 'smem constant byte address 0x4 - core index']
  #allocation1 [shape = 'u32[144,128]{1,0:T(1,128)}', space=vmem, size = 0x12000, scoped, tag = 'internal scratch']
  %s0 = inlined_call_operand.vmem [shape: bf16[2,36,9,128], index: 0, kind: input, shape index: {}]
  %s1 = inlined_call_operand.vmem [shape: bf16[9,128,128], index: 1, kind: input, shape index: {}]
  %s2 = inlined_call_operand.vmem [shape: f32[1,128], index: 2, kind: input, shape index: {}]
  %s3 = inlined_call_operand.vmem [shape: f32[1,128], index: 3, kind: input, shape index: {}]
  %s4 = inlined_call_operand.vmem [shape: f32[128,128], index: 4, kind: input, shape index: {}, may-alias: {4,5}]
  %s5 = inlined_call_operand.vmem [shape: f32[128,128], index: 5, kind: input, shape index: {}, may-alias: {4,5}]
  %s6 = inlined_call_operand.vmem [shape: bf16[2,64,128], index: 6, kind: output, shape index: {}]
  %s7 = sld [smem:[#allocation0]]
  $region57: #{_lambda_.9} parent=0
    _
  %s9 = ssub.s32 1, %s7
  %s10 = scalar_select 0, %s9, %s7
  loop: start=0, step=1, limit=4
  $region2: #{_lambda_.9} parent=0 // loop_pre_header
    _
  $region3: #{_lambda_.9} parent=0 // loop_header
    %s12 = sphi 0, %s16
    %p13 = scmp.ge.s32.totalorder %s12, 4
    %s22 = sphi 0, %s24
    %s25 = sphi 0, %s22
    %s26 = sphi 0, %s25
    %s42 = sphi 0, %s26
    %s46 = sphi 0, %s46
    %s48 = sphi 0, %s46
    %s49 = sphi 0, %s48
    %s63 = sphi 0, %s49
    %s67 = sphi 0, %s67
    %s69 = sphi 0, %s67
    %s70 = sphi 0, %s69
    %s84 = sphi 0, %s70
    %s88 = sphi 0, %s88
    %s90 = sphi 0, %s88
    %s91 = sphi 0, %s90
    %s105 = sphi 0, %s91
    %s109 = sphi 0, %s109
    %s111 = sphi 0, %s109
    %s112 = sphi 0, %s111
    %s126 = sphi 0, %s112
    %s130 = sphi 0, %s130
    %s132 = sphi 0, %s130
    %s133 = sphi 0, %s132
    %s147 = sphi 0, %s133
    %s153 = sphi 0, %s155
    %s156 = sphi 0, %s153
    %s157 = sphi 0, %s156
    %s173 = sphi 0, %s157
  $region4: #{_lambda_.9} parent=0 // loop_header_branch
    %15 = sbr.rel (%p13) target = $region8
  $region5: #{_lambda_.9} parent=0 // loop_body
    %s17 = ssub.s32 %s12, 1
    %s18 = ssub.s32 %s12, 2
    %s19 = sadd.s32 %s12, 1
    %s20 = ssub.s32 %s12, %s19
    %p21 = scmp.eq.s32.totalorder %s20, 0
    %s23 = sadd.s32 %s22, 1
    %s24 = scalar_select %p21, %s22, %s23
    %p27 = pneg %p21
    %p28 = scmp.eq.s32.totalorder %s12, 1
    %p29 = por %p27, %p28
    %p30 = scmp.ne.s32.totalorder %s22, %s25
    %p31 = scmp.eq.s32.totalorder %s12, 0
    %p32 = por %p30, %p31
    %p33 = scmp.ne.s32.totalorder %s22, %s25
    %p34 = scmp.eq.s32.totalorder %s17, 1
    %p35 = por %p33, %p34
    %p36 = scmp.ne.s32.totalorder %s25, %s26
    %p37 = scmp.eq.s32.totalorder %s17, 0
    %p38 = por %p36, %p37
    %p39 = scmp.ne.s32.totalorder %s25, %s26
    %p40 = scmp.eq.s32.totalorder %s18, 1
    %p41 = por %p39, %p40
    %p43 = scmp.ne.s32.totalorder %s26, %s42
    %p44 = scmp.eq.s32.totalorder %s18, 0
    %p45 = por %p43, %p44
    %s47 = sadd.s32 %s46, 1
    %p50 = scmp.eq.s32.totalorder %s12, 1
    %p51 = scmp.ne.s32.totalorder %s46, %s48
    %p52 = scmp.eq.s32.totalorder %s12, 0
    %p53 = por %p51, %p52
    %p54 = scmp.ne.s32.totalorder %s46, %s48
    %p55 = scmp.eq.s32.totalorder %s17, 1
    %p56 = por %p54, %p55
    %p57 = scmp.ne.s32.totalorder %s48, %s49
    %p58 = scmp.eq.s32.totalorder %s17, 0
    %p59 = por %p57, %p58
    %p60 = scmp.ne.s32.totalorder %s48, %s49
    %p61 = scmp.eq.s32.totalorder %s18, 1
    %p62 = por %p60, %p61
    %p64 = scmp.ne.s32.totalorder %s49, %s63
    %p65 = scmp.eq.s32.totalorder %s18, 0
    %p66 = por %p64, %p65
    %s68 = sadd.s32 %s67, 1
    %p71 = scmp.eq.s32.totalorder %s12, 1
    %p72 = scmp.ne.s32.totalorder %s67, %s69
    %p73 = scmp.eq.s32.totalorder %s12, 0
    %p74 = por %p72, %p73
    %p75 = scmp.ne.s32.totalorder %s67, %s69
    %p76 = scmp.eq.s32.totalorder %s17, 1
    %p77 = por %p75, %p76
    %p78 = scmp.ne.s32.totalorder %s69, %s70
    %p79 = scmp.eq.s32.totalorder %s17, 0
    %p80 = por %p78, %p79
    %p81 = scmp.ne.s32.totalorder %s69, %s70
    %p82 = scmp.eq.s32.totalorder %s18, 1
    %p83 = por %p81, %p82
    %p85 = scmp.ne.s32.totalorder %s70, %s84
    %p86 = scmp.eq.s32.totalorder %s18, 0
    %p87 = por %p85, %p86
    %s89 = sadd.s32 %s88, 1
    %p92 = scmp.eq.s32.totalorder %s12, 1
    %p93 = scmp.ne.s32.totalorder %s88, %s90
    %p94 = scmp.eq.s32.totalorder %s12, 0
    %p95 = por %p93, %p94
    %p96 = scmp.ne.s32.totalorder %s88, %s90
    %p97 = scmp.eq.s32.totalorder %s17, 1
    %p98 = por %p96, %p97
    %p99 = scmp.ne.s32.totalorder %s90, %s91
    %p100 = scmp.eq.s32.totalorder %s17, 0
    %p101 = por %p99, %p100
    %p102 = scmp.ne.s32.totalorder %s90, %s91
    %p103 = scmp.eq.s32.totalorder %s18, 1
    %p104 = por %p102, %p103
    %p106 = scmp.ne.s32.totalorder %s91, %s105
    %p107 = scmp.eq.s32.totalorder %s18, 0
    %p108 = por %p106, %p107
    %s110 = sadd.s32 %s109, 1
    %p113 = scmp.eq.s32.totalorder %s12, 1
    %p114 = scmp.ne.s32.totalorder %s109, %s111
    %p115 = scmp.eq.s32.totalorder %s12, 0
    %p116 = por %p114, %p115
    %p117 = scmp.ne.s32.totalorder %s109, %s111
    %p118 = scmp.eq.s32.totalorder %s17, 1
    %p119 = por %p117, %p118
    %p120 = scmp.ne.s32.totalorder %s111, %s112
    %p121 = scmp.eq.s32.totalorder %s17, 0
    %p122 = por %p120, %p121
    %p123 = scmp.ne.s32.totalorder %s111, %s112
    %p124 = scmp.eq.s32.totalorder %s18, 1
    %p125 = por %p123, %p124
    %p127 = scmp.ne.s32.totalorder %s112, %s126
    %p128 = scmp.eq.s32.totalorder %s18, 0
    %p129 = por %p127, %p128
    %s131 = sadd.s32 %s130, 1
    %p134 = scmp.eq.s32.totalorder %s12, 1
    %p135 = scmp.ne.s32.totalorder %s130, %s132
    %p136 = scmp.eq.s32.totalorder %s12, 0
    %p137 = por %p135, %p136
    %p138 = scmp.ne.s32.totalorder %s130, %s132
    %p139 = scmp.eq.s32.totalorder %s17, 1
    %p140 = por %p138, %p139
    %p141 = scmp.ne.s32.totalorder %s132, %s133
    %p142 = scmp.eq.s32.totalorder %s17, 0
    %p143 = por %p141, %p142
    %p144 = scmp.ne.s32.totalorder %s132, %s133
    %p145 = scmp.eq.s32.totalorder %s18, 1
    %p146 = por %p144, %p145
    %p148 = scmp.ne.s32.totalorder %s133, %s147
    %p149 = scmp.eq.s32.totalorder %s18, 0
    %p150 = por %p148, %p149
    %s151 = ssub.s32 %s12, %s19
    %p152 = scmp.eq.s32.totalorder %s151, 0
    %s154 = sadd.s32 %s153, 1
    %s155 = scalar_select %p152, %s153, %s154
    %p158 = pneg %p152
    %p159 = scmp.eq.s32.totalorder %s12, 1
    %p160 = por %p158, %p159
    %p161 = scmp.ne.s32.totalorder %s153, %s156
    %p162 = scmp.eq.s32.totalorder %s12, 0
    %p163 = por %p161, %p162
    %p164 = scmp.ne.s32.totalorder %s153, %s156
    %p165 = scmp.eq.s32.totalorder %s17, 1
    %p166 = por %p164, %p165
    %p167 = scmp.ne.s32.totalorder %s156, %s157
    %p168 = scmp.eq.s32.totalorder %s17, 0
    %p169 = por %p167, %p168
    %p170 = scmp.ne.s32.totalorder %s156, %s157
    %p171 = scmp.eq.s32.totalorder %s18, 1
    %p172 = por %p170, %p171
    %p174 = scmp.ne.s32.totalorder %s157, %s173
    %p175 = scmp.eq.s32.totalorder %s18, 0
    %p176 = por %p174, %p175
    %p177 = scmp.le.s32.totalorder 1, %s12
    %p178 = scmp.lt.s32.totalorder %s12, 3
    %p179 = pnand %p177, %p178
    %p180 = pneg %p179
    // Predicated region
    $region9: #{_lambda_.9} parent=5 // pred_check
      _
    $region10: #{_lambda_.9} parent=5 // pred_check_branch
      %182 = sbr.rel (%p179) target = $region12
    $region11: #{_lambda_.9} parent=5 // pred_region
      %s183 = ssub.s32 %s12, 1
      // Predicated region
      $region13: #{_lambda_.9} parent=11 // pred_check
        %p184 = pneg %p59
      $region14: #{_lambda_.9} parent=11 // pred_check_branch
        %186 = sbr.rel (%p184) target = $region16
      $region15: #{_lambda_.9} parent=11 // pred_region
        _
      $region16: #{_lambda_.9} parent=11 // pred_fallthru
        _
      // Predicated region
      $region17: #{_lambda_.9} parent=11 // pred_check
        %p187 = pneg %p80
      $region18: #{_lambda_.9} parent=11 // pred_check_branch
        %189 = sbr.rel (%p187) target = $region20
      $region19: #{_lambda_.9} parent=11 // pred_region
        _
      $region20: #{_lambda_.9} parent=11 // pred_fallthru
        _
      // Predicated region
      $region21: #{_lambda_.9} parent=11 // pred_check
        %p190 = pneg %p101
      $region22: #{_lambda_.9} parent=11 // pred_check_branch
        %192 = sbr.rel (%p190) target = $region24
      $region23: #{_lambda_.9} parent=11 // pred_region
        _
      $region24: #{_lambda_.9} parent=11 // pred_fallthru
        _
      // Predicated region
      $region25: #{_lambda_.9} parent=11 // pred_check
        %p193 = pneg %p122
      $region26: #{_lambda_.9} parent=11 // pred_check_branch
        %195 = sbr.rel (%p193) target = $region28
      $region27: #{_lambda_.9} parent=11 // pred_region
        _
      $region28: #{_lambda_.9} parent=11 // pred_fallthru
        _
      // Predicated region
      $region29: #{_lambda_.9} parent=11 // pred_check
        %p196 = pneg %p143
      $region30: #{_lambda_.9} parent=11 // pred_check_branch
        %198 = sbr.rel (%p196) target = $region32
      $region31: #{_lambda_.9} parent=11 // pred_region
        _
      $region32: #{_lambda_.9} parent=11 // pred_fallthru
        _
    $region12: #{_lambda_.9} parent=5 // pred_fallthru
      _
    %p199 = scmp.lt.s32.totalorder %s12, 2
    // Predicated region
    $region33: #{_lambda_.9} parent=5 // pred_check
      %p200 = pneg %p199
    $region34: #{_lambda_.9} parent=5 // pred_check_branch
      %202 = sbr.rel (%p200) target = $region36
    $region35: #{_lambda_.9} parent=5 // pred_region
      // Predicated region
      $region37: #{_lambda_.9} parent=35 // pred_check
        %p203 = pneg %p32
      $region38: #{_lambda_.9} parent=35 // pred_check_branch
        %205 = sbr.rel (%p203) target = $region40
      $region39: #{_lambda_.9} parent=35 // pred_region
        %p206 = scmp.lt.s32.totalorder %s12, 1
        %s207 = scalar_select %p206, %s12, 1
        %s208 = smul.addr %s207, 72
        %s209 = smul.addr %s208, 4
        %s210 = scalar_lea.vmem %s0, %s209
      $region40: #{_lambda_.9} parent=35 // pred_fallthru
        _
    $region36: #{_lambda_.9} parent=5 // pred_fallthru
      _
    %p211 = scmp.le.s32.totalorder 1, %s12
    %p212 = scmp.lt.s32.totalorder %s12, 3
    %p213 = pnand %p211, %p212
    %p214 = pneg %p213
    // Predicated region
    $region41: #{_lambda_.9} parent=5 // pred_check
      _
    $region42: #{_lambda_.9} parent=5 // pred_check_branch
      %216 = sbr.rel (%p213) target = $region44
    $region43: #{_lambda_.9} parent=5 // pred_region
      %s217 = ssub.s32 %s12, 1
      %p218 = scmp.lt.s32.totalorder %s17, 1
      %s219 = scalar_select %p218, %s17, 1
      %s220 = smul.addr %s219, 72
      %s221 = smul.addr %s220, 4
      %s222 = scalar_lea.vmem %s0, %s221
      %p223 = pneg %p38
      %p224 = pneg %p35
      %p225 = pneg %p59
      %p226 = pneg %p56
      %p227 = pneg %p80
      %p228 = pneg %p77
      %p229 = pneg %p101
      %p230 = pneg %p98
      %p231 = pneg %p122
      %p232 = pneg %p119
      %p233 = pneg %p143
      %p234 = pneg %p140
      %p235 = pneg %p169
      %p236 = pneg %p166
      %p237 = scmp.lt.s32.totalorder %s17, 1
      %s238 = scalar_select %p237, %s17, 1
      %s239 = smul.addr %s238, 8
      %s240 = smul.addr %s239, 4
      %s241 = scalar_lea.vmem %s6, %s240
      %p242 = scmp.lt.s32.totalorder %s17, 1
      %s243 = scalar_select %p242, %s17, 1
      %s244 = smul.addr %s243, 72
      %s245 = smul.addr %s244, 4
      %s246 = scalar_lea.vmem %s0, %s245
      %p247 = scmp.lt.s32.totalorder %s17, 1
      %s248 = scalar_select %p247, %s17, 1
      %s249 = smul.addr %s248, 8
      %s250 = smul.addr %s249, 4
      %s251 = scalar_lea.vmem %s6, %s250
      %v253 = vld [vmem:[%s246] sm:$0xf]
      %v254 = vld [vmem:[%s246 + $0x8] sm:$0xf]
      %v255 = vld [vmem:[%s246 + $0x10] sm:$0xf]
      %v256 = vld [vmem:[%s246 + $0x18] sm:$0xf]
      %v257 = vld [vmem:[%s246 + $0x20] sm:$0xf]
      %v258 = vld [vmem:[%s246 + $0x28] sm:$0xf]
      %v259 = vld [vmem:[%s246 + $0x30] sm:$0xf]
      %v260 = vld [vmem:[%s246 + $0x38] sm:$0xf]
      %v261 = vld [vmem:[%s1] sm:$0xf]
      %v262 = vld [vmem:[%s1 + $0x4] sm:$0xf]
      %v263 = vld [vmem:[%s1 + $0x8] sm:$0xf]
      %v264 = vld [vmem:[%s1 + $0xc] sm:$0xf]
      %v265 = vld [vmem:[%s1 + $0x10] sm:$0xf]
      %v266 = vld [vmem:[%s1 + $0x14] sm:$0xf]
      %v267 = vld [vmem:[%s1 + $0x18] sm:$0xf]
      %v268 = vld [vmem:[%s1 + $0x1c] sm:$0xf]
      %v269 = vld [vmem:[%s1 + $0x20] sm:$0xf]
      %v270 = vld [vmem:[%s1 + $0x24] sm:$0xf]
      %v271 = vld [vmem:[%s1 + $0x28] sm:$0xf]
      %v272 = vld [vmem:[%s1 + $0x2c] sm:$0xf]
      %v273 = vld [vmem:[%s1 + $0x30] sm:$0xf]
      %v274 = vld [vmem:[%s1 + $0x34] sm:$0xf]
      %v275 = vld [vmem:[%s1 + $0x38] sm:$0xf]
      %v276 = vld [vmem:[%s1 + $0x3c] sm:$0xf]
      %s277 = scalar_lea.vmem %s246, 72
      %v278 = vld [vmem:[%s277] sm:$0xf]
      %v279 = vld [vmem:[%s277 + $0x8] sm:$0xf]
      %v280 = vld [vmem:[%s277 + $0x10] sm:$0xf]
      %v281 = vld [vmem:[%s277 + $0x18] sm:$0xf]
      %v282 = vld [vmem:[%s277 + $0x20] sm:$0xf]
      %v283 = vld [vmem:[%s277 + $0x28] sm:$0xf]
      %v284 = vld [vmem:[%s277 + $0x30] sm:$0xf]
      %v285 = vld [vmem:[%s277 + $0x38] sm:$0xf]
      %s286 = scalar_lea.vmem %s1, 64
      %v287 = vld [vmem:[%s286] sm:$0xf]
      %v288 = vld [vmem:[%s286 + $0x4] sm:$0xf]
      %v289 = vld [vmem:[%s286 + $0x8] sm:$0xf]
      %v290 = vld [vmem:[%s286 + $0xc] sm:$0xf]
      %v291 = vld [vmem:[%s286 + $0x10] sm:$0xf]
      %v292 = vld [vmem:[%s286 + $0x14] sm:$0xf]
      %v293 = vld [vmem:[%s286 + $0x18] sm:$0xf]
      %v294 = vld [vmem:[%s286 + $0x1c] sm:$0xf]
      %v295 = vld [vmem:[%s286 + $0x20] sm:$0xf]
      %v296 = vld [vmem:[%s286 + $0x24] sm:$0xf]
      %v297 = vld [vmem:[%s286 + $0x28] sm:$0xf]
      %v298 = vld [vmem:[%s286 + $0x2c] sm:$0xf]
      %v299 = vld [vmem:[%s286 + $0x30] sm:$0xf]
      %v300 = vld [vmem:[%s286 + $0x34] sm:$0xf]
      %v301 = vld [vmem:[%s286 + $0x38] sm:$0xf]
      %v302 = vld [vmem:[%s286 + $0x3c] sm:$0xf]
      %v311 = vunpack.c.l.b16 %v278
      %v312 = vunpack.c.l.b16 %v279
      %v313 = vunpack.c.l.b16 %v280
      %v314 = vunpack.c.l.b16 %v281
      %v315 = vunpack.c.l.b16 %v282
      %v316 = vunpack.c.l.b16 %v283
      %v317 = vunpack.c.l.b16 %v284
      %v318 = vunpack.c.l.b16 %v285
      %v319 = vpack.c.b16 %v312, %v311
      %v320 = vpack.c.b16 %v314, %v313
      %v321 = vpack.c.b16 %v316, %v315
      %v322 = vpack.c.b16 %v318, %v317
      %v343 = vunpack.c.l.b16 %v287
      %v344 = vunpack.c.l.b16 %v288
      %v345 = vunpack.c.l.b16 %v289
      %v346 = vunpack.c.l.b16 %v290
      %v347 = vunpack.c.l.b16 %v291
      %v348 = vunpack.c.l.b16 %v292
      %v349 = vunpack.c.l.b16 %v293
      %v350 = vunpack.c.l.b16 %v294
      %v351 = vunpack.c.l.b16 %v295
      %v352 = vunpack.c.l.b16 %v296
      %v353 = vunpack.c.l.b16 %v297
      %v354 = vunpack.c.l.b16 %v298
      %v355 = vunpack.c.l.b16 %v299
      %v356 = vunpack.c.l.b16 %v300
      %v357 = vunpack.c.l.b16 %v301
      %v358 = vunpack.c.l.b16 %v302
      %v359 = vpack.c.b16 %v344, %v343
      %v360 = vpack.c.b16 %v346, %v345
      %v361 = vpack.c.b16 %v348, %v347
      %v362 = vpack.c.b16 %v350, %v349
      %v363 = vpack.c.b16 %v352, %v351
      %v364 = vpack.c.b16 %v354, %v353
      %v365 = vpack.c.b16 %v356, %v355
      %v366 = vpack.c.b16 %v358, %v357
      %375 = vmatprep.subr.bf16.mxu0 0
      %376 = vmatpush1.bf16.msra.mxu0 %v366
      %377 = vmatprep.subr.bf16.mxu0 0
      %378 = vmatpush1.bf16.msra.mxu0 %v365
      %379 = vmatprep.subr.bf16.mxu0 0
      %380 = vmatpush1.bf16.msra.mxu0 %v364
      %381 = vmatprep.subr.bf16.mxu0 0
      %382 = vmatpush1.bf16.msra.mxu0 %v363
      %383 = vmatprep.subr.bf16.mxu0 0
      %384 = vmatpush1.bf16.msra.mxu0 %v362
      %385 = vmatprep.subr.bf16.mxu0 0
      %386 = vmatpush1.bf16.msra.mxu0 %v361
      %387 = vmatprep.subr.bf16.mxu0 0
      %388 = vmatpush1.bf16.msra.mxu0 %v360
      %389 = vmatprep.subr.bf16.mxu0 0
      %390 = vmatpush1.bf16.msra.mxu0 %v359
      %391 = vmatprep.subr.bf16.mxu0 0
      %392 = vmatpush2.bf16.msra.mxu0 0
      %393 = vmatprep.subr.bf16.mxu0 0
      %394 = vmatpush2.bf16.msra.mxu0 0
      %395 = vmatprep.subr.bf16.mxu0 0
      %396 = vmatpush2.bf16.msra.mxu0 0
      %397 = vmatprep.subr.bf16.mxu0 0
      %398 = vmatpush2.bf16.msra.mxu0 0
      %399 = vmatprep.subr.bf16.mxu0 0
      %400 = vmatpush2.bf16.msra.mxu0 0
      %401 = vmatprep.subr.bf16.mxu0 0
      %402 = vmatpush2.bf16.msra.mxu0 0
      %403 = vmatprep.subr.bf16.mxu0 0
      %404 = vmatpush2.bf16.msra.mxu0 0
      %405 = vmatprep.subr.bf16.mxu0 0
      %406 = vmatpush2.bf16.msra.mxu0 0
      %407 = vmatprep.mubr.bf16.mxu0 0
      %408 = vmatmul.mubr.bf16.gmra.mxu0 %v319
      %v409 = vpop.f32.mrf.mxu0
      %v410 = vadd.f32 0.0, %v409
      %v411 = vpop.f32.mrf.mxu0
      %v412 = vpop.f32.mrf.mxu0
      %v413 = vadd.f32 0.0, %v412
      %v414 = vpop.f32.mrf.mxu0
      %415 = vmatprep.mubr.bf16.mxu0 0
      %416 = vmatmul.mubr.bf16.gmra.mxu0 %v320
      %v417 = vpop.f32.mrf.mxu0
      %v418 = vadd.f32 0.0, %v417
      %v419 = vpop.f32.mrf.mxu0
      %v420 = vpop.f32.mrf.mxu0
      %v421 = vadd.f32 0.0, %v420
      %v422 = vpop.f32.mrf.mxu0
      %423 = vmatprep.mubr.bf16.mxu0 0
      %424 = vmatmul.mubr.bf16.gmra.mxu0 %v321
      %v425 = vpop.f32.mrf.mxu0
      %v426 = vadd.f32 0.0, %v425
      %v427 = vpop.f32.mrf.mxu0
      %v428 = vpop.f32.mrf.mxu0
      %v429 = vadd.f32 0.0, %v428
      %v430 = vpop.f32.mrf.mxu0
      %431 = vmatprep.mubr.bf16.mxu0 0
      %432 = vmatmul.mubr.bf16.gmra.mxu0 %v322
      %v433 = vpop.f32.mrf.mxu0
      %v434 = vadd.f32 0.0, %v433
      %v435 = vpop.f32.mrf.mxu0
      %v436 = vpop.f32.mrf.mxu0
      %v437 = vadd.f32 0.0, %v436
      %v438 = vpop.f32.mrf.mxu0
      %439 = vdwg.mxu0
      %v448 = vunpack.c.l.b16 %v253
      %v449 = vunpack.c.l.b16 %v254
      %v450 = vunpack.c.l.b16 %v255
      %v451 = vunpack.c.l.b16 %v256
      %v452 = vunpack.c.l.b16 %v257
      %v453 = vunpack.c.l.b16 %v258
      %v454 = vunpack.c.l.b16 %v259
      %v455 = vunpack.c.l.b16 %v260
      %v456 = vpack.c.b16 %v449, %v448
      %v457 = vpack.c.b16 %v451, %v450
      %v458 = vpack.c.b16 %v453, %v452
      %v459 = vpack.c.b16 %v455, %v454
      %v480 = vunpack.c.l.b16 %v261
      %v481 = vunpack.c.l.b16 %v262
      %v482 = vunpack.c.l.b16 %v263
      %v483 = vunpack.c.l.b16 %v264
      %v484 = vunpack.c.l.b16 %v265
      %v485 = vunpack.c.l.b16 %v266
      %v486 = vunpack.c.l.b16 %v267
      %v487 = vunpack.c.l.b16 %v268
      %v488 = vunpack.c.l.b16 %v269
      %v489 = vunpack.c.l.b16 %v270
      %v490 = vunpack.c.l.b16 %v271
      %v491 = vunpack.c.l.b16 %v272
      %v492 = vunpack.c.l.b16 %v273
      %v493 = vunpack.c.l.b16 %v274
      %v494 = vunpack.c.l.b16 %v275
      %v495 = vunpack.c.l.b16 %v276
      %v496 = vpack.c.b16 %v481, %v480
      %v497 = vpack.c.b16 %v483, %v482
      %v498 = vpack.c.b16 %v485, %v484
      %v499 = vpack.c.b16 %v487, %v486
      %v500 = vpack.c.b16 %v489, %v488
      %v501 = vpack.c.b16 %v491, %v490
      %v502 = vpack.c.b16 %v493, %v492
      %v503 = vpack.c.b16 %v495, %v494
      %512 = vmatprep.subr.bf16.mxu0 0
      %513 = vmatpush1.bf16.msra.mxu0 %v503
      %514 = vmatprep.subr.bf16.mxu0 0
      %515 = vmatpush1.bf16.msra.mxu0 %v502
      %516 = vmatprep.subr.bf16.mxu0 0
      %517 = vmatpush1.bf16.msra.mxu0 %v501
      %518 = vmatprep.subr.bf16.mxu0 0
      %519 = vmatpush1.bf16.msra.mxu0 %v500
      %520 = vmatprep.subr.bf16.mxu0 0
      %521 = vmatpush1.bf16.msra.mxu0 %v499
      %522 = vmatprep.subr.bf16.mxu0 0
      %523 = vmatpush1.bf16.msra.mxu0 %v498
      %524 = vmatprep.subr.bf16.mxu0 0
      %525 = vmatpush1.bf16.msra.mxu0 %v497
      %526 = vmatprep.subr.bf16.mxu0 0
      %527 = vmatpush1.bf16.msra.mxu0 %v496
      %528 = vmatprep.subr.bf16.mxu0 0
      %529 = vmatpush2.bf16.msra.mxu0 0
      %530 = vmatprep.subr.bf16.mxu0 0
      %531 = vmatpush2.bf16.msra.mxu0 0
      %532 = vmatprep.subr.bf16.mxu0 0
      %533 = vmatpush2.bf16.msra.mxu0 0
      %534 = vmatprep.subr.bf16.mxu0 0
      %535 = vmatpush2.bf16.msra.mxu0 0
      %536 = vmatprep.subr.bf16.mxu0 0
      %537 = vmatpush2.bf16.msra.mxu0 0
      %538 = vmatprep.subr.bf16.mxu0 0
      %539 = vmatpush2.bf16.msra.mxu0 0
      %540 = vmatprep.subr.bf16.mxu0 0
      %541 = vmatpush2.bf16.msra.mxu0 0
      %542 = vmatprep.subr.bf16.mxu0 0
      %543 = vmatpush2.bf16.msra.mxu0 0
      %544 = vmatprep.mubr.bf16.mxu0 0
      %545 = vmatmul.mubr.bf16.gmra.mxu0 %v456
      %v546 = vpop.f32.mrf.mxu0
      %v547 = vadd.f32 %v410, %v546
      %v548 = vpop.f32.mrf.mxu0
      %v549 = vpop.f32.mrf.mxu0
      %v550 = vadd.f32 %v413, %v549
      %v551 = vpop.f32.mrf.mxu0
      %552 = vmatprep.mubr.bf16.mxu0 0
      %553 = vmatmul.mubr.bf16.gmra.mxu0 %v457
      %v554 = vpop.f32.mrf.mxu0
      %v555 = vadd.f32 %v418, %v554
      %v556 = vpop.f32.mrf.mxu0
      %v557 = vpop.f32.mrf.mxu0
      %v558 = vadd.f32 %v421, %v557
      %v559 = vpop.f32.mrf.mxu0
      %560 = vmatprep.mubr.bf16.mxu0 0
      %561 = vmatmul.mubr.bf16.gmra.mxu0 %v458
      %v562 = vpop.f32.mrf.mxu0
      %v563 = vadd.f32 %v426, %v562
      %v564 = vpop.f32.mrf.mxu0
      %v565 = vpop.f32.mrf.mxu0
      %v566 = vadd.f32 %v429, %v565
      %v567 = vpop.f32.mrf.mxu0
      %568 = vmatprep.mubr.bf16.mxu0 0
      %569 = vmatmul.mubr.bf16.gmra.mxu0 %v459
      %v570 = vpop.f32.mrf.mxu0
      %v571 = vadd.f32 %v434, %v570
      %v572 = vpop.f32.mrf.mxu0
      %v573 = vpop.f32.mrf.mxu0
      %v574 = vadd.f32 %v437, %v573
      %v575 = vpop.f32.mrf.mxu0
      %576 = vdwg.mxu0
      %v577 = vld [vmem:[%s246] sm:$0xf]
      %v578 = vld [vmem:[%s246 + $0x4] sm:$0x1]
      %v579 = vld [vmem:[%s246 + $0x8] sm:$0xf]
      %v580 = vld [vmem:[%s246 + $0xc] sm:$0x1]
      %v581 = vld [vmem:[%s246 + $0x10] sm:$0xf]
      %v582 = vld [vmem:[%s246 + $0x14] sm:$0x1]
      %v583 = vld [vmem:[%s246 + $0x18] sm:$0xf]
      %v584 = vld [vmem:[%s246 + $0x1c] sm:$0x1]
      %v585 = vld [vmem:[%s246 + $0x20] sm:$0xf]
      %v586 = vld [vmem:[%s246 + $0x24] sm:$0x1]
      %v587 = vld [vmem:[%s246 + $0x28] sm:$0xf]
      %v588 = vld [vmem:[%s246 + $0x2c] sm:$0x1]
      %v589 = vld [vmem:[%s246 + $0x30] sm:$0xf]
      %v590 = vld [vmem:[%s246 + $0x34] sm:$0x1]
      %v591 = vld [vmem:[%s246 + $0x38] sm:$0xf]
      %v592 = vld [vmem:[%s246 + $0x3c] sm:$0x1]
      %vm593 = vsmask.f32 3328
      %vm594 = vsmask.f32 7440
      %vm595 = vmor %vm593, %vm594
      %v597 = vshrl.u32 %v577, 16
      %v599 = vrot.slane %v597, 4
      %v600 = vshll.u32 %v577, 16
      %v602 = vrot.slane %v600, 5
      %v603 = vor.u32 %v599, %v602
      %v604 = vrot.slane %v603, 4
      %v606 = vshll.u32 %v578, 16
      %v608 = vrot.slane %v606, 5
      %v609 = vsel %vm595, %v604, %v608
      %v611 = vshrl.u32 %v579, 16
      %v613 = vrot.slane %v611, 4
      %v614 = vshll.u32 %v579, 16
      %v616 = vrot.slane %v614, 5
      %v617 = vor.u32 %v613, %v616
      %v618 = vrot.slane %v617, 4
      %v620 = vshll.u32 %v580, 16
      %v622 = vrot.slane %v620, 5
      %v623 = vsel %vm595, %v618, %v622
      %v625 = vshrl.u32 %v581, 16
      %v627 = vrot.slane %v625, 4
      %v628 = vshll.u32 %v581, 16
      %v630 = vrot.slane %v628, 5
      %v631 = vor.u32 %v627, %v630
      %v632 = vrot.slane %v631, 4
      %v634 = vshll.u32 %v582, 16
      %v636 = vrot.slane %v634, 5
      %v637 = vsel %vm595, %v632, %v636
      %v639 = vshrl.u32 %v583, 16
      %v641 = vrot.slane %v639, 4
      %v642 = vshll.u32 %v583, 16
      %v644 = vrot.slane %v642, 5
      %v645 = vor.u32 %v641, %v644
      %v646 = vrot.slane %v645, 4
      %v648 = vshll.u32 %v584, 16
      %v650 = vrot.slane %v648, 5
      %v651 = vsel %vm595, %v646, %v650
      %v653 = vshrl.u32 %v585, 16
      %v655 = vrot.slane %v653, 4
      %v656 = vshll.u32 %v585, 16
      %v658 = vrot.slane %v656, 5
      %v659 = vor.u32 %v655, %v658
      %v660 = vrot.slane %v659, 4
      %v662 = vshll.u32 %v586, 16
      %v664 = vrot.slane %v662, 5
      %v665 = vsel %vm595, %v660, %v664
      %v667 = vshrl.u32 %v587, 16
      %v669 = vrot.slane %v667, 4
      %v670 = vshll.u32 %v587, 16
      %v672 = vrot.slane %v670, 5
      %v673 = vor.u32 %v669, %v672
      %v674 = vrot.slane %v673, 4
      %v676 = vshll.u32 %v588, 16
      %v678 = vrot.slane %v676, 5
      %v679 = vsel %vm595, %v674, %v678
      %v681 = vshrl.u32 %v589, 16
      %v683 = vrot.slane %v681, 4
      %v684 = vshll.u32 %v589, 16
      %v686 = vrot.slane %v684, 5
      %v687 = vor.u32 %v683, %v686
      %v688 = vrot.slane %v687, 4
      %v690 = vshll.u32 %v590, 16
      %v692 = vrot.slane %v690, 5
      %v693 = vsel %vm595, %v688, %v692
      %v695 = vshrl.u32 %v591, 16
      %v697 = vrot.slane %v695, 4
      %v698 = vshll.u32 %v591, 16
      %v700 = vrot.slane %v698, 5
      %v701 = vor.u32 %v697, %v700
      %v702 = vrot.slane %v701, 4
      %v704 = vshll.u32 %v592, 16
      %v706 = vrot.slane %v704, 5
      %v707 = vsel %vm595, %v702, %v706
      %s708 = scalar_lea.vmem %s1, 128
      %v709 = vld [vmem:[%s708] sm:$0xf]
      %v710 = vld [vmem:[%s708 + $0x4] sm:$0xf]
      %v711 = vld [vmem:[%s708 + $0x8] sm:$0xf]
      %v712 = vld [vmem:[%s708 + $0xc] sm:$0xf]
      %v713 = vld [vmem:[%s708 + $0x10] sm:$0xf]
      %v714 = vld [vmem:[%s708 + $0x14] sm:$0xf]
      %v715 = vld [vmem:[%s708 + $0x18] sm:$0xf]
      %v716 = vld [vmem:[%s708 + $0x1c] sm:$0xf]
      %v717 = vld [vmem:[%s708 + $0x20] sm:$0xf]
      %v718 = vld [vmem:[%s708 + $0x24] sm:$0xf]
      %v719 = vld [vmem:[%s708 + $0x28] sm:$0xf]
      %v720 = vld [vmem:[%s708 + $0x2c] sm:$0xf]
      %v721 = vld [vmem:[%s708 + $0x30] sm:$0xf]
      %v722 = vld [vmem:[%s708 + $0x34] sm:$0xf]
      %v723 = vld [vmem:[%s708 + $0x38] sm:$0xf]
      %v724 = vld [vmem:[%s708 + $0x3c] sm:$0xf]
      %v725 = vunpack.c.l.b16 %v609
      %v726 = vunpack.c.l.b16 %v623
      %v727 = vunpack.c.l.b16 %v637
      %v728 = vunpack.c.l.b16 %v651
      %v729 = vunpack.c.l.b16 %v665
      %v730 = vunpack.c.l.b16 %v679
      %v731 = vunpack.c.l.b16 %v693
      %v732 = vunpack.c.l.b16 %v707
      %v733 = vpack.c.b16 %v726, %v725
      %v734 = vpack.c.b16 %v728, %v727
      %v735 = vpack.c.b16 %v730, %v729
      %v736 = vpack.c.b16 %v732, %v731
      %v757 = vunpack.c.l.b16 %v709
      %v758 = vunpack.c.l.b16 %v710
      %v759 = vunpack.c.l.b16 %v711
      %v760 = vunpack.c.l.b16 %v712
      %v761 = vunpack.c.l.b16 %v713
      %v762 = vunpack.c.l.b16 %v714
      %v763 = vunpack.c.l.b16 %v715
      %v764 = vunpack.c.l.b16 %v716
      %v765 = vunpack.c.l.b16 %v717
      %v766 = vunpack.c.l.b16 %v718
      %v767 = vunpack.c.l.b16 %v719
      %v768 = vunpack.c.l.b16 %v720
      %v769 = vunpack.c.l.b16 %v721
      %v770 = vunpack.c.l.b16 %v722
      %v771 = vunpack.c.l.b16 %v723
      %v772 = vunpack.c.l.b16 %v724
      %v773 = vpack.c.b16 %v758, %v757
      %v774 = vpack.c.b16 %v760, %v759
      %v775 = vpack.c.b16 %v762, %v761
      %v776 = vpack.c.b16 %v764, %v763
      %v777 = vpack.c.b16 %v766, %v765
      %v778 = vpack.c.b16 %v768, %v767
      %v779 = vpack.c.b16 %v770, %v769
      %v780 = vpack.c.b16 %v772, %v771
      %789 = vmatprep.subr.bf16.mxu0 0
      %790 = vmatpush1.bf16.msra.mxu0 %v780
      %791 = vmatprep.subr.bf16.mxu0 0
      %792 = vmatpush1.bf16.msra.mxu0 %v779
      %793 = vmatprep.subr.bf16.mxu0 0
      %794 = vmatpush1.bf16.msra.mxu0 %v778
      %795 = vmatprep.subr.bf16.mxu0 0
      %796 = vmatpush1.bf16.msra.mxu0 %v777
      %797 = vmatprep.subr.bf16.mxu0 0
      %798 = vmatpush1.bf16.msra.mxu0 %v776
      %799 = vmatprep.subr.bf16.mxu0 0
      %800 = vmatpush1.bf16.msra.mxu0 %v775
      %801 = vmatprep.subr.bf16.mxu0 0
      %802 = vmatpush1.bf16.msra.mxu0 %v774
      %803 = vmatprep.subr.bf16.mxu0 0
      %804 = vmatpush1.bf16.msra.mxu0 %v773
      %805 = vmatprep.subr.bf16.mxu0 0
      %806 = vmatpush2.bf16.msra.mxu0 0
      %807 = vmatprep.subr.bf16.mxu0 0
      %808 = vmatpush2.bf16.msra.mxu0 0
      %809 = vmatprep.subr.bf16.mxu0 0
      %810 = vmatpush2.bf16.msra.mxu0 0
      %811 = vmatprep.subr.bf16.mxu0 0
      %812 = vmatpush2.bf16.msra.mxu0 0
      %813 = vmatprep.subr.bf16.mxu0 0
      %814 = vmatpush2.bf16.msra.mxu0 0
      %815 = vmatprep.subr.bf16.mxu0 0
      %816 = vmatpush2.bf16.msra.mxu0 0
      %817 = vmatprep.subr.bf16.mxu0 0
      %818 = vmatpush2.bf16.msra.mxu0 0
      %819 = vmatprep.subr.bf16.mxu0 0
      %820 = vmatpush2.bf16.msra.mxu0 0
      %821 = vmatprep.mubr.bf16.mxu0 0
      %822 = vmatmul.mubr.bf16.gmra.mxu0 %v733
      %v823 = vpop.f32.mrf.mxu0
      %v824 = vadd.f32 0.0, %v823
      %v825 = vpop.f32.mrf.mxu0
      %v826 = vpop.f32.mrf.mxu0
      %v827 = vadd.f32 0.0, %v826
      %v828 = vpop.f32.mrf.mxu0
      %829 = vmatprep.mubr.bf16.mxu0 0
      %830 = vmatmul.mubr.bf16.gmra.mxu0 %v734
      %v831 = vpop.f32.mrf.mxu0
      %v832 = vadd.f32 0.0, %v831
      %v833 = vpop.f32.mrf.mxu0
      %v834 = vpop.f32.mrf.mxu0
      %v835 = vadd.f32 0.0, %v834
      %v836 = vpop.f32.mrf.mxu0
      %837 = vmatprep.mubr.bf16.mxu0 0
      %838 = vmatmul.mubr.bf16.gmra.mxu0 %v735
      %v839 = vpop.f32.mrf.mxu0
      %v840 = vadd.f32 0.0, %v839
      %v841 = vpop.f32.mrf.mxu0
      %v842 = vpop.f32.mrf.mxu0
      %v843 = vadd.f32 0.0, %v842
      %v844 = vpop.f32.mrf.mxu0
      %845 = vmatprep.mubr.bf16.mxu0 0
      %846 = vmatmul.mubr.bf16.gmra.mxu0 %v736
      %v847 = vpop.f32.mrf.mxu0
      %v848 = vadd.f32 0.0, %v847
      %v849 = vpop.f32.mrf.mxu0
      %v850 = vpop.f32.mrf.mxu0
      %v851 = vadd.f32 0.0, %v850
      %v852 = vpop.f32.mrf.mxu0
      %853 = vdwg.mxu0
      %v854 = vadd.f32 %v547, %v824
      %v855 = vadd.f32 %v550, %v827
      %v856 = vadd.f32 %v555, %v832
      %v857 = vadd.f32 %v558, %v835
      %v858 = vadd.f32 %v563, %v840
      %v859 = vadd.f32 %v566, %v843
      %v860 = vadd.f32 %v571, %v848
      %v861 = vadd.f32 %v574, %v851
      %s862 = scalar_lea.vmem %s246, 144
      %v863 = vld [vmem:[%s862] sm:$0xf]
      %v864 = vld [vmem:[%s862 + $0x8] sm:$0xf]
      %v865 = vld [vmem:[%s862 + $0x10] sm:$0xf]
      %v866 = vld [vmem:[%s862 + $0x18] sm:$0xf]
      %v867 = vld [vmem:[%s862 + $0x20] sm:$0xf]
      %v868 = vld [vmem:[%s862 + $0x28] sm:$0xf]
      %v869 = vld [vmem:[%s862 + $0x30] sm:$0xf]
      %v870 = vld [vmem:[%s862 + $0x38] sm:$0xf]
      %s871 = scalar_lea.vmem %s1, 192
      %v872 = vld [vmem:[%s871] sm:$0xf]
      %v873 = vld [vmem:[%s871 + $0x4] sm:$0xf]
      %v874 = vld [vmem:[%s871 + $0x8] sm:$0xf]
      %v875 = vld [vmem:[%s871 + $0xc] sm:$0xf]
      %v876 = vld [vmem:[%s871 + $0x10] sm:$0xf]
      %v877 = vld [vmem:[%s871 + $0x14] sm:$0xf]
      %v878 = vld [vmem:[%s871 + $0x18] sm:$0xf]
      %v879 = vld [vmem:[%s871 + $0x1c] sm:$0xf]
      %v880 = vld [vmem:[%s871 + $0x20] sm:$0xf]
      %v881 = vld [vmem:[%s871 + $0x24] sm:$0xf]
      %v882 = vld [vmem:[%s871 + $0x28] sm:$0xf]
      %v883 = vld [vmem:[%s871 + $0x2c] sm:$0xf]
      %v884 = vld [vmem:[%s871 + $0x30] sm:$0xf]
      %v885 = vld [vmem:[%s871 + $0x34] sm:$0xf]
      %v886 = vld [vmem:[%s871 + $0x38] sm:$0xf]
      %v887 = vld [vmem:[%s871 + $0x3c] sm:$0xf]
      %v896 = vunpack.c.l.b16 %v863
      %v897 = vunpack.c.l.b16 %v864
      %v898 = vunpack.c.l.b16 %v865
      %v899 = vunpack.c.l.b16 %v866
      %v900 = vunpack.c.l.b16 %v867
      %v901 = vunpack.c.l.b16 %v868
      %v902 = vunpack.c.l.b16 %v869
      %v903 = vunpack.c.l.b16 %v870
      %v904 = vpack.c.b16 %v897, %v896
      %v905 = vpack.c.b16 %v899, %v898
      %v906 = vpack.c.b16 %v901, %v900
      %v907 = vpack.c.b16 %v903, %v902
      %v928 = vunpack.c.l.b16 %v872
      %v929 = vunpack.c.l.b16 %v873
      %v930 = vunpack.c.l.b16 %v874
      %v931 = vunpack.c.l.b16 %v875
      %v932 = vunpack.c.l.b16 %v876
      %v933 = vunpack.c.l.b16 %v877
      %v934 = vunpack.c.l.b16 %v878
      %v935 = vunpack.c.l.b16 %v879
      %v936 = vunpack.c.l.b16 %v880
      %v937 = vunpack.c.l.b16 %v881
      %v938 = vunpack.c.l.b16 %v882
      %v939 = vunpack.c.l.b16 %v883
      %v940 = vunpack.c.l.b16 %v884
      %v941 = vunpack.c.l.b16 %v885
      %v942 = vunpack.c.l.b16 %v886
      %v943 = vunpack.c.l.b16 %v887
      %v944 = vpack.c.b16 %v929, %v928
      %v945 = vpack.c.b16 %v931, %v930
      %v946 = vpack.c.b16 %v933, %v932
      %v947 = vpack.c.b16 %v935, %v934
      %v948 = vpack.c.b16 %v937, %v936
      %v949 = vpack.c.b16 %v939, %v938
      %v950 = vpack.c.b16 %v941, %v940
      %v951 = vpack.c.b16 %v943, %v942
      %960 = vmatprep.subr.bf16.mxu0 0
      %961 = vmatpush1.bf16.msra.mxu0 %v951
      %962 = vmatprep.subr.bf16.mxu0 0
      %963 = vmatpush1.bf16.msra.mxu0 %v950
      %964 = vmatprep.subr.bf16.mxu0 0
      %965 = vmatpush1.bf16.msra.mxu0 %v949
      %966 = vmatprep.subr.bf16.mxu0 0
      %967 = vmatpush1.bf16.msra.mxu0 %v948
      %968 = vmatprep.subr.bf16.mxu0 0
      %969 = vmatpush1.bf16.msra.mxu0 %v947
      %970 = vmatprep.subr.bf16.mxu0 0
      %971 = vmatpush1.bf16.msra.mxu0 %v946
      %972 = vmatprep.subr.bf16.mxu0 0
      %973 = vmatpush1.bf16.msra.mxu0 %v945
      %974 = vmatprep.subr.bf16.mxu0 0
      %975 = vmatpush1.bf16.msra.mxu0 %v944
      %976 = vmatprep.subr.bf16.mxu0 0
      %977 = vmatpush2.bf16.msra.mxu0 0
      %978 = vmatprep.subr.bf16.mxu0 0
      %979 = vmatpush2.bf16.msra.mxu0 0
      %980 = vmatprep.subr.bf16.mxu0 0
      %981 = vmatpush2.bf16.msra.mxu0 0
      %982 = vmatprep.subr.bf16.mxu0 0
      %983 = vmatpush2.bf16.msra.mxu0 0
      %984 = vmatprep.subr.bf16.mxu0 0
      %985 = vmatpush2.bf16.msra.mxu0 0
      %986 = vmatprep.subr.bf16.mxu0 0
      %987 = vmatpush2.bf16.msra.mxu0 0
      %988 = vmatprep.subr.bf16.mxu0 0
      %989 = vmatpush2.bf16.msra.mxu0 0
      %990 = vmatprep.subr.bf16.mxu0 0
      %991 = vmatpush2.bf16.msra.mxu0 0
      %992 = vmatprep.mubr.bf16.mxu0 0
      %993 = vmatmul.mubr.bf16.gmra.mxu0 %v904
      %v994 = vpop.f32.mrf.mxu0
      %v995 = vadd.f32 0.0, %v994
      %v996 = vpop.f32.mrf.mxu0
      %v997 = vpop.f32.mrf.mxu0
      %v998 = vadd.f32 0.0, %v997
      %v999 = vpop.f32.mrf.mxu0
      %1000 = vmatprep.mubr.bf16.mxu0 0
      %1001 = vmatmul.mubr.bf16.gmra.mxu0 %v905
      %v1002 = vpop.f32.mrf.mxu0
      %v1003 = vadd.f32 0.0, %v1002
      %v1004 = vpop.f32.mrf.mxu0
      %v1005 = vpop.f32.mrf.mxu0
      %v1006 = vadd.f32 0.0, %v1005
      %v1007 = vpop.f32.mrf.mxu0
      %1008 = vmatprep.mubr.bf16.mxu0 0
      %1009 = vmatmul.mubr.bf16.gmra.mxu0 %v906
      %v1010 = vpop.f32.mrf.mxu0
      %v1011 = vadd.f32 0.0, %v1010
      %v1012 = vpop.f32.mrf.mxu0
      %v1013 = vpop.f32.mrf.mxu0
      %v1014 = vadd.f32 0.0, %v1013
      %v1015 = vpop.f32.mrf.mxu0
      %1016 = vmatprep.mubr.bf16.mxu0 0
      %1017 = vmatmul.mubr.bf16.gmra.mxu0 %v907
      %v1018 = vpop.f32.mrf.mxu0
      %v1019 = vadd.f32 0.0, %v1018
      %v1020 = vpop.f32.mrf.mxu0
      %v1021 = vpop.f32.mrf.mxu0
      %v1022 = vadd.f32 0.0, %v1021
      %v1023 = vpop.f32.mrf.mxu0
      %1024 = vdwg.mxu0
      %v1025 = vadd.f32 %v854, %v995
      %v1026 = vadd.f32 %v855, %v998
      %v1027 = vadd.f32 %v856, %v1003
      %v1028 = vadd.f32 %v857, %v1006
      %v1029 = vadd.f32 %v858, %v1011
      %v1030 = vadd.f32 %v859, %v1014
      %v1031 = vadd.f32 %v860, %v1019
      %v1032 = vadd.f32 %v861, %v1022
      %s1033 = scalar_lea.vmem %s246, 216
      %v1034 = vld [vmem:[%s1033] sm:$0xf]
      %v1035 = vld [vmem:[%s1033 + $0x8] sm:$0xf]
      %v1036 = vld [vmem:[%s1033 + $0x10] sm:$0xf]
      %v1037 = vld [vmem:[%s1033 + $0x18] sm:$0xf]
      %v1038 = vld [vmem:[%s1033 + $0x20] sm:$0xf]
      %v1039 = vld [vmem:[%s1033 + $0x28] sm:$0xf]
      %v1040 = vld [vmem:[%s1033 + $0x30] sm:$0xf]
      %v1041 = vld [vmem:[%s1033 + $0x38] sm:$0xf]
      %s1042 = scalar_lea.vmem %s1, 256
      %v1043 = vld [vmem:[%s1042] sm:$0xf]
      %v1044 = vld [vmem:[%s1042 + $0x4] sm:$0xf]
      %v1045 = vld [vmem:[%s1042 + $0x8] sm:$0xf]
      %v1046 = vld [vmem:[%s1042 + $0xc] sm:$0xf]
      %v1047 = vld [vmem:[%s1042 + $0x10] sm:$0xf]
      %v1048 = vld [vmem:[%s1042 + $0x14] sm:$0xf]
      %v1049 = vld [vmem:[%s1042 + $0x18] sm:$0xf]
      %v1050 = vld [vmem:[%s1042 + $0x1c] sm:$0xf]
      %v1051 = vld [vmem:[%s1042 + $0x20] sm:$0xf]
      %v1052 = vld [vmem:[%s1042 + $0x24] sm:$0xf]
      %v1053 = vld [vmem:[%s1042 + $0x28] sm:$0xf]
      %v1054 = vld [vmem:[%s1042 + $0x2c] sm:$0xf]
      %v1055 = vld [vmem:[%s1042 + $0x30] sm:$0xf]
      %v1056 = vld [vmem:[%s1042 + $0x34] sm:$0xf]
      %v1057 = vld [vmem:[%s1042 + $0x38] sm:$0xf]
      %v1058 = vld [vmem:[%s1042 + $0x3c] sm:$0xf]
      %v1067 = vunpack.c.l.b16 %v1034
      %v1068 = vunpack.c.l.b16 %v1035
      %v1069 = vunpack.c.l.b16 %v1036
      %v1070 = vunpack.c.l.b16 %v1037
      %v1071 = vunpack.c.l.b16 %v1038
      %v1072 = vunpack.c.l.b16 %v1039
      %v1073 = vunpack.c.l.b16 %v1040
      %v1074 = vunpack.c.l.b16 %v1041
      %v1075 = vpack.c.b16 %v1068, %v1067
      %v1076 = vpack.c.b16 %v1070, %v1069
      %v1077 = vpack.c.b16 %v1072, %v1071
      %v1078 = vpack.c.b16 %v1074, %v1073
      %v1099 = vunpack.c.l.b16 %v1043
      %v1100 = vunpack.c.l.b16 %v1044
      %v1101 = vunpack.c.l.b16 %v1045
      %v1102 = vunpack.c.l.b16 %v1046
      %v1103 = vunpack.c.l.b16 %v1047
      %v1104 = vunpack.c.l.b16 %v1048
      %v1105 = vunpack.c.l.b16 %v1049
      %v1106 = vunpack.c.l.b16 %v1050
      %v1107 = vunpack.c.l.b16 %v1051
      %v1108 = vunpack.c.l.b16 %v1052
      %v1109 = vunpack.c.l.b16 %v1053
      %v1110 = vunpack.c.l.b16 %v1054
      %v1111 = vunpack.c.l.b16 %v1055
      %v1112 = vunpack.c.l.b16 %v1056
      %v1113 = vunpack.c.l.b16 %v1057
      %v1114 = vunpack.c.l.b16 %v1058
      %v1115 = vpack.c.b16 %v1100, %v1099
      %v1116 = vpack.c.b16 %v1102, %v1101
      %v1117 = vpack.c.b16 %v1104, %v1103
      %v1118 = vpack.c.b16 %v1106, %v1105
      %v1119 = vpack.c.b16 %v1108, %v1107
      %v1120 = vpack.c.b16 %v1110, %v1109
      %v1121 = vpack.c.b16 %v1112, %v1111
      %v1122 = vpack.c.b16 %v1114, %v1113
      %1131 = vmatprep.subr.bf16.mxu0 0
      %1132 = vmatpush1.bf16.msra.mxu0 %v1122
      %1133 = vmatprep.subr.bf16.mxu0 0
      %1134 = vmatpush1.bf16.msra.mxu0 %v1121
      %1135 = vmatprep.subr.bf16.mxu0 0
      %1136 = vmatpush1.bf16.msra.mxu0 %v1120
      %1137 = vmatprep.subr.bf16.mxu0 0
      %1138 = vmatpush1.bf16.msra.mxu0 %v1119
      %1139 = vmatprep.subr.bf16.mxu0 0
      %1140 = vmatpush1.bf16.msra.mxu0 %v1118
      %1141 = vmatprep.subr.bf16.mxu0 0
      %1142 = vmatpush1.bf16.msra.mxu0 %v1117
      %1143 = vmatprep.subr.bf16.mxu0 0
      %1144 = vmatpush1.bf16.msra.mxu0 %v1116
      %1145 = vmatprep.subr.bf16.mxu0 0
      %1146 = vmatpush1.bf16.msra.mxu0 %v1115
      %1147 = vmatprep.subr.bf16.mxu0 0
      %1148 = vmatpush2.bf16.msra.mxu0 0
      %1149 = vmatprep.subr.bf16.mxu0 0
      %1150 = vmatpush2.bf16.msra.mxu0 0
      %1151 = vmatprep.subr.bf16.mxu0 0
      %1152 = vmatpush2.bf16.msra.mxu0 0
      %1153 = vmatprep.subr.bf16.mxu0 0
      %1154 = vmatpush2.bf16.msra.mxu0 0
      %1155 = vmatprep.subr.bf16.mxu0 0
      %1156 = vmatpush2.bf16.msra.mxu0 0
      %1157 = vmatprep.subr.bf16.mxu0 0
      %1158 = vmatpush2.bf16.msra.mxu0 0
      %1159 = vmatprep.subr.bf16.mxu0 0
      %1160 = vmatpush2.bf16.msra.mxu0 0
      %1161 = vmatprep.subr.bf16.mxu0 0
      %1162 = vmatpush2.bf16.msra.mxu0 0
      %1163 = vmatprep.mubr.bf16.mxu0 0
      %1164 = vmatmul.mubr.bf16.gmra.mxu0 %v1075
      %v1165 = vpop.f32.mrf.mxu0
      %v1166 = vadd.f32 0.0, %v1165
      %v1167 = vpop.f32.mrf.mxu0
      %v1168 = vpop.f32.mrf.mxu0
      %v1169 = vadd.f32 0.0, %v1168
      %v1170 = vpop.f32.mrf.mxu0
      %1171 = vmatprep.mubr.bf16.mxu0 0
      %1172 = vmatmul.mubr.bf16.gmra.mxu0 %v1076
      %v1173 = vpop.f32.mrf.mxu0
      %v1174 = vadd.f32 0.0, %v1173
      %v1175 = vpop.f32.mrf.mxu0
      %v1176 = vpop.f32.mrf.mxu0
      %v1177 = vadd.f32 0.0, %v1176
      %v1178 = vpop.f32.mrf.mxu0
      %1179 = vmatprep.mubr.bf16.mxu0 0
      %1180 = vmatmul.mubr.bf16.gmra.mxu0 %v1077
      %v1181 = vpop.f32.mrf.mxu0
      %v1182 = vadd.f32 0.0, %v1181
      %v1183 = vpop.f32.mrf.mxu0
      %v1184 = vpop.f32.mrf.mxu0
      %v1185 = vadd.f32 0.0, %v1184
      %v1186 = vpop.f32.mrf.mxu0
      %1187 = vmatprep.mubr.bf16.mxu0 0
      %1188 = vmatmul.mubr.bf16.gmra.mxu0 %v1078
      %v1189 = vpop.f32.mrf.mxu0
      %v1190 = vadd.f32 0.0, %v1189
      %v1191 = vpop.f32.mrf.mxu0
      %v1192 = vpop.f32.mrf.mxu0
      %v1193 = vadd.f32 0.0, %v1192
      %v1194 = vpop.f32.mrf.mxu0
      %1195 = vdwg.mxu0
      %v1196 = vadd.f32 %v1025, %v1166
      %v1197 = vadd.f32 %v1026, %v1169
      %v1198 = vadd.f32 %v1027, %v1174
      %v1199 = vadd.f32 %v1028, %v1177
      %v1200 = vadd.f32 %v1029, %v1182
      %v1201 = vadd.f32 %v1030, %v1185
      %v1202 = vadd.f32 %v1031, %v1190
      %v1203 = vadd.f32 %v1032, %v1193
      %v1204 = vld [vmem:[%s862] sm:$0xf]
      %v1205 = vld [vmem:[%s862 + $0x4] sm:$0x1]
      %v1206 = vld [vmem:[%s862 + $0x8] sm:$0xf]
      %v1207 = vld [vmem:[%s862 + $0xc] sm:$0x1]
      %v1208 = vld [vmem:[%s862 + $0x10] sm:$0xf]
      %v1209 = vld [vmem:[%s862 + $0x14] sm:$0x1]
      %v1210 = vld [vmem:[%s862 + $0x18] sm:$0xf]
      %v1211 = vld [vmem:[%s862 + $0x1c] sm:$0x1]
      %v1212 = vld [vmem:[%s862 + $0x20] sm:$0xf]
      %v1213 = vld [vmem:[%s862 + $0x24] sm:$0x1]
      %v1214 = vld [vmem:[%s862 + $0x28] sm:$0xf]
      %v1215 = vld [vmem:[%s862 + $0x2c] sm:$0x1]
      %v1216 = vld [vmem:[%s862 + $0x30] sm:$0xf]
      %v1217 = vld [vmem:[%s862 + $0x34] sm:$0x1]
      %v1218 = vld [vmem:[%s862 + $0x38] sm:$0xf]
      %v1219 = vld [vmem:[%s862 + $0x3c] sm:$0x1]
      %v1221 = vshrl.u32 %v1204, 16
      %v1223 = vrot.slane %v1221, 4
      %v1224 = vshll.u32 %v1204, 16
      %v1226 = vrot.slane %v1224, 5
      %v1227 = vor.u32 %v1223, %v1226
      %v1228 = vrot.slane %v1227, 4
      %v1230 = vshll.u32 %v1205, 16
      %v1232 = vrot.slane %v1230, 5
      %v1233 = vsel %vm595, %v1228, %v1232
      %v1235 = vshrl.u32 %v1206, 16
      %v1237 = vrot.slane %v1235, 4
      %v1238 = vshll.u32 %v1206, 16
      %v1240 = vrot.slane %v1238, 5
      %v1241 = vor.u32 %v1237, %v1240
      %v1242 = vrot.slane %v1241, 4
      %v1244 = vshll.u32 %v1207, 16
      %v1246 = vrot.slane %v1244, 5
      %v1247 = vsel %vm595, %v1242, %v1246
      %v1249 = vshrl.u32 %v1208, 16
      %v1251 = vrot.slane %v1249, 4
      %v1252 = vshll.u32 %v1208, 16
      %v1254 = vrot.slane %v1252, 5
      %v1255 = vor.u32 %v1251, %v1254
      %v1256 = vrot.slane %v1255, 4
      %v1258 = vshll.u32 %v1209, 16
      %v1260 = vrot.slane %v1258, 5
      %v1261 = vsel %vm595, %v1256, %v1260
      %v1263 = vshrl.u32 %v1210, 16
      %v1265 = vrot.slane %v1263, 4
      %v1266 = vshll.u32 %v1210, 16
      %v1268 = vrot.slane %v1266, 5
      %v1269 = vor.u32 %v1265, %v1268
      %v1270 = vrot.slane %v1269, 4
      %v1272 = vshll.u32 %v1211, 16
      %v1274 = vrot.slane %v1272, 5
      %v1275 = vsel %vm595, %v1270, %v1274
      %v1277 = vshrl.u32 %v1212, 16
      %v1279 = vrot.slane %v1277, 4
      %v1280 = vshll.u32 %v1212, 16
      %v1282 = vrot.slane %v1280, 5
      %v1283 = vor.u32 %v1279, %v1282
      %v1284 = vrot.slane %v1283, 4
      %v1286 = vshll.u32 %v1213, 16
      %v1288 = vrot.slane %v1286, 5
      %v1289 = vsel %vm595, %v1284, %v1288
      %v1291 = vshrl.u32 %v1214, 16
      %v1293 = vrot.slane %v1291, 4
      %v1294 = vshll.u32 %v1214, 16
      %v1296 = vrot.slane %v1294, 5
      %v1297 = vor.u32 %v1293, %v1296
      %v1298 = vrot.slane %v1297, 4
      %v1300 = vshll.u32 %v1215, 16
      %v1302 = vrot.slane %v1300, 5
      %v1303 = vsel %vm595, %v1298, %v1302
      %v1305 = vshrl.u32 %v1216, 16
      %v1307 = vrot.slane %v1305, 4
      %v1308 = vshll.u32 %v1216, 16
      %v1310 = vrot.slane %v1308, 5
      %v1311 = vor.u32 %v1307, %v1310
      %v1312 = vrot.slane %v1311, 4
      %v1314 = vshll.u32 %v1217, 16
      %v1316 = vrot.slane %v1314, 5
      %v1317 = vsel %vm595, %v1312, %v1316
      %v1319 = vshrl.u32 %v1218, 16
      %v1321 = vrot.slane %v1319, 4
      %v1322 = vshll.u32 %v1218, 16
      %v1324 = vrot.slane %v1322, 5
      %v1325 = vor.u32 %v1321, %v1324
      %v1326 = vrot.slane %v1325, 4
      %v1328 = vshll.u32 %v1219, 16
      %v1330 = vrot.slane %v1328, 5
      %v1331 = vsel %vm595, %v1326, %v1330
      %s1332 = scalar_lea.vmem %s1, 320
      %v1333 = vld [vmem:[%s1332] sm:$0xf]
      %v1334 = vld [vmem:[%s1332 + $0x4] sm:$0xf]
      %v1335 = vld [vmem:[%s1332 + $0x8] sm:$0xf]
      %v1336 = vld [vmem:[%s1332 + $0xc] sm:$0xf]
      %v1337 = vld [vmem:[%s1332 + $0x10] sm:$0xf]
      %v1338 = vld [vmem:[%s1332 + $0x14] sm:$0xf]
      %v1339 = vld [vmem:[%s1332 + $0x18] sm:$0xf]
      %v1340 = vld [vmem:[%s1332 + $0x1c] sm:$0xf]
      %v1341 = vld [vmem:[%s1332 + $0x20] sm:$0xf]
      %v1342 = vld [vmem:[%s1332 + $0x24] sm:$0xf]
      %v1343 = vld [vmem:[%s1332 + $0x28] sm:$0xf]
      %v1344 = vld [vmem:[%s1332 + $0x2c] sm:$0xf]
      %v1345 = vld [vmem:[%s1332 + $0x30] sm:$0xf]
      %v1346 = vld [vmem:[%s1332 + $0x34] sm:$0xf]
      %v1347 = vld [vmem:[%s1332 + $0x38] sm:$0xf]
      %v1348 = vld [vmem:[%s1332 + $0x3c] sm:$0xf]
      %v1349 = vunpack.c.l.b16 %v1233
      %v1350 = vunpack.c.l.b16 %v1247
      %v1351 = vunpack.c.l.b16 %v1261
      %v1352 = vunpack.c.l.b16 %v1275
      %v1353 = vunpack.c.l.b16 %v1289
      %v1354 = vunpack.c.l.b16 %v1303
      %v1355 = vunpack.c.l.b16 %v1317
      %v1356 = vunpack.c.l.b16 %v1331
      %v1357 = vpack.c.b16 %v1350, %v1349
      %v1358 = vpack.c.b16 %v1352, %v1351
      %v1359 = vpack.c.b16 %v1354, %v1353
      %v1360 = vpack.c.b16 %v1356, %v1355
      %v1381 = vunpack.c.l.b16 %v1333
      %v1382 = vunpack.c.l.b16 %v1334
      %v1383 = vunpack.c.l.b16 %v1335
      %v1384 = vunpack.c.l.b16 %v1336
      %v1385 = vunpack.c.l.b16 %v1337
      %v1386 = vunpack.c.l.b16 %v1338
      %v1387 = vunpack.c.l.b16 %v1339
      %v1388 = vunpack.c.l.b16 %v1340
      %v1389 = vunpack.c.l.b16 %v1341
      %v1390 = vunpack.c.l.b16 %v1342
      %v1391 = vunpack.c.l.b16 %v1343
      %v1392 = vunpack.c.l.b16 %v1344
      %v1393 = vunpack.c.l.b16 %v1345
      %v1394 = vunpack.c.l.b16 %v1346
      %v1395 = vunpack.c.l.b16 %v1347
      %v1396 = vunpack.c.l.b16 %v1348
      %v1397 = vpack.c.b16 %v1382, %v1381
      %v1398 = vpack.c.b16 %v1384, %v1383
      %v1399 = vpack.c.b16 %v1386, %v1385
      %v1400 = vpack.c.b16 %v1388, %v1387
      %v1401 = vpack.c.b16 %v1390, %v1389
      %v1402 = vpack.c.b16 %v1392, %v1391
      %v1403 = vpack.c.b16 %v1394, %v1393
      %v1404 = vpack.c.b16 %v1396, %v1395
      %1413 = vmatprep.subr.bf16.mxu0 0
      %1414 = vmatpush1.bf16.msra.mxu0 %v1404
      %1415 = vmatprep.subr.bf16.mxu0 0
      %1416 = vmatpush1.bf16.msra.mxu0 %v1403
      %1417 = vmatprep.subr.bf16.mxu0 0
      %1418 = vmatpush1.bf16.msra.mxu0 %v1402
      %1419 = vmatprep.subr.bf16.mxu0 0
      %1420 = vmatpush1.bf16.msra.mxu0 %v1401
      %1421 = vmatprep.subr.bf16.mxu0 0
      %1422 = vmatpush1.bf16.msra.mxu0 %v1400
      %1423 = vmatprep.subr.bf16.mxu0 0
      %1424 = vmatpush1.bf16.msra.mxu0 %v1399
      %1425 = vmatprep.subr.bf16.mxu0 0
      %1426 = vmatpush1.bf16.msra.mxu0 %v1398
      %1427 = vmatprep.subr.bf16.mxu0 0
      %1428 = vmatpush1.bf16.msra.mxu0 %v1397
      %1429 = vmatprep.subr.bf16.mxu0 0
      %1430 = vmatpush2.bf16.msra.mxu0 0
      %1431 = vmatprep.subr.bf16.mxu0 0
      %1432 = vmatpush2.bf16.msra.mxu0 0
      %1433 = vmatprep.subr.bf16.mxu0 0
      %1434 = vmatpush2.bf16.msra.mxu0 0
      %1435 = vmatprep.subr.bf16.mxu0 0
      %1436 = vmatpush2.bf16.msra.mxu0 0
      %1437 = vmatprep.subr.bf16.mxu0 0
      %1438 = vmatpush2.bf16.msra.mxu0 0
      %1439 = vmatprep.subr.bf16.mxu0 0
      %1440 = vmatpush2.bf16.msra.mxu0 0
      %1441 = vmatprep.subr.bf16.mxu0 0
      %1442 = vmatpush2.bf16.msra.mxu0 0
      %1443 = vmatprep.subr.bf16.mxu0 0
      %1444 = vmatpush2.bf16.msra.mxu0 0
      %1445 = vmatprep.mubr.bf16.mxu0 0
      %1446 = vmatmul.mubr.bf16.gmra.mxu0 %v1357
      %v1447 = vpop.f32.mrf.mxu0
      %v1448 = vadd.f32 0.0, %v1447
      %v1449 = vpop.f32.mrf.mxu0
      %v1450 = vpop.f32.mrf.mxu0
      %v1451 = vadd.f32 0.0, %v1450
      %v1452 = vpop.f32.mrf.mxu0
      %1453 = vmatprep.mubr.bf16.mxu0 0
      %1454 = vmatmul.mubr.bf16.gmra.mxu0 %v1358
      %v1455 = vpop.f32.mrf.mxu0
      %v1456 = vadd.f32 0.0, %v1455
      %v1457 = vpop.f32.mrf.mxu0
      %v1458 = vpop.f32.mrf.mxu0
      %v1459 = vadd.f32 0.0, %v1458
      %v1460 = vpop.f32.mrf.mxu0
      %1461 = vmatprep.mubr.bf16.mxu0 0
      %1462 = vmatmul.mubr.bf16.gmra.mxu0 %v1359
      %v1463 = vpop.f32.mrf.mxu0
      %v1464 = vadd.f32 0.0, %v1463
      %v1465 = vpop.f32.mrf.mxu0
      %v1466 = vpop.f32.mrf.mxu0
      %v1467 = vadd.f32 0.0, %v1466
      %v1468 = vpop.f32.mrf.mxu0
      %1469 = vmatprep.mubr.bf16.mxu0 0
      %1470 = vmatmul.mubr.bf16.gmra.mxu0 %v1360
      %v1471 = vpop.f32.mrf.mxu0
      %v1472 = vadd.f32 0.0, %v1471
      %v1473 = vpop.f32.mrf.mxu0
      %v1474 = vpop.f32.mrf.mxu0
      %v1475 = vadd.f32 0.0, %v1474
      %v1476 = vpop.f32.mrf.mxu0
      %1477 = vdwg.mxu0
      %v1478 = vadd.f32 %v1196, %v1448
      %v1479 = vadd.f32 %v1197, %v1451
      %v1480 = vadd.f32 %v1198, %v1456
      %v1481 = vadd.f32 %v1199, %v1459
      %v1482 = vadd.f32 %v1200, %v1464
      %v1483 = vadd.f32 %v1201, %v1467
      %v1484 = vadd.f32 %v1202, %v1472
      %v1485 = vadd.f32 %v1203, %v1475
      %s1486 = scalar_lea.vmem %s246, 8
      %v1487 = vld [vmem:[%s1486] sm:$0xf]
      %v1488 = vld [vmem:[%s1486 + $0x8] sm:$0xf]
      %v1489 = vld [vmem:[%s1486 + $0x10] sm:$0xf]
      %v1490 = vld [vmem:[%s1486 + $0x18] sm:$0xf]
      %v1491 = vld [vmem:[%s1486 + $0x20] sm:$0xf]
      %v1492 = vld [vmem:[%s1486 + $0x28] sm:$0xf]
      %v1493 = vld [vmem:[%s1486 + $0x30] sm:$0xf]
      %v1494 = vld [vmem:[%s1486 + $0x38] sm:$0xf]
      %s1495 = scalar_lea.vmem %s1, 384
      %v1496 = vld [vmem:[%s1495] sm:$0xf]
      %v1497 = vld [vmem:[%s1495 + $0x4] sm:$0xf]
      %v1498 = vld [vmem:[%s1495 + $0x8] sm:$0xf]
      %v1499 = vld [vmem:[%s1495 + $0xc] sm:$0xf]
      %v1500 = vld [vmem:[%s1495 + $0x10] sm:$0xf]
      %v1501 = vld [vmem:[%s1495 + $0x14] sm:$0xf]
      %v1502 = vld [vmem:[%s1495 + $0x18] sm:$0xf]
      %v1503 = vld [vmem:[%s1495 + $0x1c] sm:$0xf]
      %v1504 = vld [vmem:[%s1495 + $0x20] sm:$0xf]
      %v1505 = vld [vmem:[%s1495 + $0x24] sm:$0xf]
      %v1506 = vld [vmem:[%s1495 + $0x28] sm:$0xf]
      %v1507 = vld [vmem:[%s1495 + $0x2c] sm:$0xf]
      %v1508 = vld [vmem:[%s1495 + $0x30] sm:$0xf]
      %v1509 = vld [vmem:[%s1495 + $0x34] sm:$0xf]
      %v1510 = vld [vmem:[%s1495 + $0x38] sm:$0xf]
      %v1511 = vld [vmem:[%s1495 + $0x3c] sm:$0xf]
      %v1520 = vunpack.c.l.b16 %v1487
      %v1521 = vunpack.c.l.b16 %v1488
      %v1522 = vunpack.c.l.b16 %v1489
      %v1523 = vunpack.c.l.b16 %v1490
      %v1524 = vunpack.c.l.b16 %v1491
      %v1525 = vunpack.c.l.b16 %v1492
      %v1526 = vunpack.c.l.b16 %v1493
      %v1527 = vunpack.c.l.b16 %v1494
      %v1528 = vpack.c.b16 %v1521, %v1520
      %v1529 = vpack.c.b16 %v1523, %v1522
      %v1530 = vpack.c.b16 %v1525, %v1524
      %v1531 = vpack.c.b16 %v1527, %v1526
      %v1552 = vunpack.c.l.b16 %v1496
      %v1553 = vunpack.c.l.b16 %v1497
      %v1554 = vunpack.c.l.b16 %v1498
      %v1555 = vunpack.c.l.b16 %v1499
      %v1556 = vunpack.c.l.b16 %v1500
      %v1557 = vunpack.c.l.b16 %v1501
      %v1558 = vunpack.c.l.b16 %v1502
      %v1559 = vunpack.c.l.b16 %v1503
      %v1560 = vunpack.c.l.b16 %v1504
      %v1561 = vunpack.c.l.b16 %v1505
      %v1562 = vunpack.c.l.b16 %v1506
      %v1563 = vunpack.c.l.b16 %v1507
      %v1564 = vunpack.c.l.b16 %v1508
      %v1565 = vunpack.c.l.b16 %v1509
      %v1566 = vunpack.c.l.b16 %v1510
      %v1567 = vunpack.c.l.b16 %v1511
      %v1568 = vpack.c.b16 %v1553, %v1552
      %v1569 = vpack.c.b16 %v1555, %v1554
      %v1570 = vpack.c.b16 %v1557, %v1556
      %v1571 = vpack.c.b16 %v1559, %v1558
      %v1572 = vpack.c.b16 %v1561, %v1560
      %v1573 = vpack.c.b16 %v1563, %v1562
      %v1574 = vpack.c.b16 %v1565, %v1564
      %v1575 = vpack.c.b16 %v1567, %v1566
      %1584 = vmatprep.subr.bf16.mxu0 0
      %1585 = vmatpush1.bf16.msra.mxu0 %v1575
      %1586 = vmatprep.subr.bf16.mxu0 0
      %1587 = vmatpush1.bf16.msra.mxu0 %v1574
      %1588 = vmatprep.subr.bf16.mxu0 0
      %1589 = vmatpush1.bf16.msra.mxu0 %v1573
      %1590 = vmatprep.subr.bf16.mxu0 0
      %1591 = vmatpush1.bf16.msra.mxu0 %v1572
      %1592 = vmatprep.subr.bf16.mxu0 0
      %1593 = vmatpush1.bf16.msra.mxu0 %v1571
      %1594 = vmatprep.subr.bf16.mxu0 0
      %1595 = vmatpush1.bf16.msra.mxu0 %v1570
      %1596 = vmatprep.subr.bf16.mxu0 0
      %1597 = vmatpush1.bf16.msra.mxu0 %v1569
      %1598 = vmatprep.subr.bf16.mxu0 0
      %1599 = vmatpush1.bf16.msra.mxu0 %v1568
      %1600 = vmatprep.subr.bf16.mxu0 0
      %1601 = vmatpush2.bf16.msra.mxu0 0
      %1602 = vmatprep.subr.bf16.mxu0 0
      %1603 = vmatpush2.bf16.msra.mxu0 0
      %1604 = vmatprep.subr.bf16.mxu0 0
      %1605 = vmatpush2.bf16.msra.mxu0 0
      %1606 = vmatprep.subr.bf16.mxu0 0
      %1607 = vmatpush2.bf16.msra.mxu0 0
      %1608 = vmatprep.subr.bf16.mxu0 0
      %1609 = vmatpush2.bf16.msra.mxu0 0
      %1610 = vmatprep.subr.bf16.mxu0 0
      %1611 = vmatpush2.bf16.msra.mxu0 0
      %1612 = vmatprep.subr.bf16.mxu0 0
      %1613 = vmatpush2.bf16.msra.mxu0 0
      %1614 = vmatprep.subr.bf16.mxu0 0
      %1615 = vmatpush2.bf16.msra.mxu0 0
      %1616 = vmatprep.mubr.bf16.mxu0 0
      %1617 = vmatmul.mubr.bf16.gmra.mxu0 %v1528
      %v1618 = vpop.f32.mrf.mxu0
      %v1619 = vadd.f32 0.0, %v1618
      %v1620 = vpop.f32.mrf.mxu0
      %v1621 = vpop.f32.mrf.mxu0
      %v1622 = vadd.f32 0.0, %v1621
      %v1623 = vpop.f32.mrf.mxu0
      %1624 = vmatprep.mubr.bf16.mxu0 0
      %1625 = vmatmul.mubr.bf16.gmra.mxu0 %v1529
      %v1626 = vpop.f32.mrf.mxu0
      %v1627 = vadd.f32 0.0, %v1626
      %v1628 = vpop.f32.mrf.mxu0
      %v1629 = vpop.f32.mrf.mxu0
      %v1630 = vadd.f32 0.0, %v1629
      %v1631 = vpop.f32.mrf.mxu0
      %1632 = vmatprep.mubr.bf16.mxu0 0
      %1633 = vmatmul.mubr.bf16.gmra.mxu0 %v1530
      %v1634 = vpop.f32.mrf.mxu0
      %v1635 = vadd.f32 0.0, %v1634
      %v1636 = vpop.f32.mrf.mxu0
      %v1637 = vpop.f32.mrf.mxu0
      %v1638 = vadd.f32 0.0, %v1637
      %v1639 = vpop.f32.mrf.mxu0
      %1640 = vmatprep.mubr.bf16.mxu0 0
      %1641 = vmatmul.mubr.bf16.gmra.mxu0 %v1531
      %v1642 = vpop.f32.mrf.mxu0
      %v1643 = vadd.f32 0.0, %v1642
      %v1644 = vpop.f32.mrf.mxu0
      %v1645 = vpop.f32.mrf.mxu0
      %v1646 = vadd.f32 0.0, %v1645
      %v1647 = vpop.f32.mrf.mxu0
      %1648 = vdwg.mxu0
      %v1649 = vadd.f32 %v1478, %v1619
      %v1650 = vadd.f32 %v1479, %v1622
      %v1651 = vadd.f32 %v1480, %v1627
      %v1652 = vadd.f32 %v1481, %v1630
      %v1653 = vadd.f32 %v1482, %v1635
      %v1654 = vadd.f32 %v1483, %v1638
      %v1655 = vadd.f32 %v1484, %v1643
      %v1656 = vadd.f32 %v1485, %v1646
      %s1657 = scalar_lea.vmem %s246, 80
      %v1658 = vld [vmem:[%s1657] sm:$0xf]
      %v1659 = vld [vmem:[%s1657 + $0x8] sm:$0xf]
      %v1660 = vld [vmem:[%s1657 + $0x10] sm:$0xf]
      %v1661 = vld [vmem:[%s1657 + $0x18] sm:$0xf]
      %v1662 = vld [vmem:[%s1657 + $0x20] sm:$0xf]
      %v1663 = vld [vmem:[%s1657 + $0x28] sm:$0xf]
      %v1664 = vld [vmem:[%s1657 + $0x30] sm:$0xf]
      %v1665 = vld [vmem:[%s1657 + $0x38] sm:$0xf]
      %s1666 = scalar_lea.vmem %s1, 448
      %v1667 = vld [vmem:[%s1666] sm:$0xf]
      %v1668 = vld [vmem:[%s1666 + $0x4] sm:$0xf]
      %v1669 = vld [vmem:[%s1666 + $0x8] sm:$0xf]
      %v1670 = vld [vmem:[%s1666 + $0xc] sm:$0xf]
      %v1671 = vld [vmem:[%s1666 + $0x10] sm:$0xf]
      %v1672 = vld [vmem:[%s1666 + $0x14] sm:$0xf]
      %v1673 = vld [vmem:[%s1666 + $0x18] sm:$0xf]
      %v1674 = vld [vmem:[%s1666 + $0x1c] sm:$0xf]
      %v1675 = vld [vmem:[%s1666 + $0x20] sm:$0xf]
      %v1676 = vld [vmem:[%s1666 + $0x24] sm:$0xf]
      %v1677 = vld [vmem:[%s1666 + $0x28] sm:$0xf]
      %v1678 = vld [vmem:[%s1666 + $0x2c] sm:$0xf]
      %v1679 = vld [vmem:[%s1666 + $0x30] sm:$0xf]
      %v1680 = vld [vmem:[%s1666 + $0x34] sm:$0xf]
      %v1681 = vld [vmem:[%s1666 + $0x38] sm:$0xf]
      %v1682 = vld [vmem:[%s1666 + $0x3c] sm:$0xf]
      %v1691 = vunpack.c.l.b16 %v1658
      %v1692 = vunpack.c.l.b16 %v1659
      %v1693 = vunpack.c.l.b16 %v1660
      %v1694 = vunpack.c.l.b16 %v1661
      %v1695 = vunpack.c.l.b16 %v1662
      %v1696 = vunpack.c.l.b16 %v1663
      %v1697 = vunpack.c.l.b16 %v1664
      %v1698 = vunpack.c.l.b16 %v1665
      %v1699 = vpack.c.b16 %v1692, %v1691
      %v1700 = vpack.c.b16 %v1694, %v1693
      %v1701 = vpack.c.b16 %v1696, %v1695
      %v1702 = vpack.c.b16 %v1698, %v1697
      %v1723 = vunpack.c.l.b16 %v1667
      %v1724 = vunpack.c.l.b16 %v1668
      %v1725 = vunpack.c.l.b16 %v1669
      %v1726 = vunpack.c.l.b16 %v1670
      %v1727 = vunpack.c.l.b16 %v1671
      %v1728 = vunpack.c.l.b16 %v1672
      %v1729 = vunpack.c.l.b16 %v1673
      %v1730 = vunpack.c.l.b16 %v1674
      %v1731 = vunpack.c.l.b16 %v1675
      %v1732 = vunpack.c.l.b16 %v1676
      %v1733 = vunpack.c.l.b16 %v1677
      %v1734 = vunpack.c.l.b16 %v1678
      %v1735 = vunpack.c.l.b16 %v1679
      %v1736 = vunpack.c.l.b16 %v1680
      %v1737 = vunpack.c.l.b16 %v1681
      %v1738 = vunpack.c.l.b16 %v1682
      %v1739 = vpack.c.b16 %v1724, %v1723
      %v1740 = vpack.c.b16 %v1726, %v1725
      %v1741 = vpack.c.b16 %v1728, %v1727
      %v1742 = vpack.c.b16 %v1730, %v1729
      %v1743 = vpack.c.b16 %v1732, %v1731
      %v1744 = vpack.c.b16 %v1734, %v1733
      %v1745 = vpack.c.b16 %v1736, %v1735
      %v1746 = vpack.c.b16 %v1738, %v1737
      %1755 = vmatprep.subr.bf16.mxu0 0
      %1756 = vmatpush1.bf16.msra.mxu0 %v1746
      %1757 = vmatprep.subr.bf16.mxu0 0
      %1758 = vmatpush1.bf16.msra.mxu0 %v1745
      %1759 = vmatprep.subr.bf16.mxu0 0
      %1760 = vmatpush1.bf16.msra.mxu0 %v1744
      %1761 = vmatprep.subr.bf16.mxu0 0
      %1762 = vmatpush1.bf16.msra.mxu0 %v1743
      %1763 = vmatprep.subr.bf16.mxu0 0
      %1764 = vmatpush1.bf16.msra.mxu0 %v1742
      %1765 = vmatprep.subr.bf16.mxu0 0
      %1766 = vmatpush1.bf16.msra.mxu0 %v1741
      %1767 = vmatprep.subr.bf16.mxu0 0
      %1768 = vmatpush1.bf16.msra.mxu0 %v1740
      %1769 = vmatprep.subr.bf16.mxu0 0
      %1770 = vmatpush1.bf16.msra.mxu0 %v1739
      %1771 = vmatprep.subr.bf16.mxu0 0
      %1772 = vmatpush2.bf16.msra.mxu0 0
      %1773 = vmatprep.subr.bf16.mxu0 0
      %1774 = vmatpush2.bf16.msra.mxu0 0
      %1775 = vmatprep.subr.bf16.mxu0 0
      %1776 = vmatpush2.bf16.msra.mxu0 0
      %1777 = vmatprep.subr.bf16.mxu0 0
      %1778 = vmatpush2.bf16.msra.mxu0 0
      %1779 = vmatprep.subr.bf16.mxu0 0
      %1780 = vmatpush2.bf16.msra.mxu0 0
      %1781 = vmatprep.subr.bf16.mxu0 0
      %1782 = vmatpush2.bf16.msra.mxu0 0
      %1783 = vmatprep.subr.bf16.mxu0 0
      %1784 = vmatpush2.bf16.msra.mxu0 0
      %1785 = vmatprep.subr.bf16.mxu0 0
      %1786 = vmatpush2.bf16.msra.mxu0 0
      %1787 = vmatprep.mubr.bf16.mxu0 0
      %1788 = vmatmul.mubr.bf16.gmra.mxu0 %v1699
      %v1789 = vpop.f32.mrf.mxu0
      %v1790 = vadd.f32 0.0, %v1789
      %v1791 = vpop.f32.mrf.mxu0
      %v1792 = vpop.f32.mrf.mxu0
      %v1793 = vadd.f32 0.0, %v1792
      %v1794 = vpop.f32.mrf.mxu0
      %1795 = vmatprep.mubr.bf16.mxu0 0
      %1796 = vmatmul.mubr.bf16.gmra.mxu0 %v1700
      %v1797 = vpop.f32.mrf.mxu0
      %v1798 = vadd.f32 0.0, %v1797
      %v1799 = vpop.f32.mrf.mxu0
      %v1800 = vpop.f32.mrf.mxu0
      %v1801 = vadd.f32 0.0, %v1800
      %v1802 = vpop.f32.mrf.mxu0
      %1803 = vmatprep.mubr.bf16.mxu0 0
      %1804 = vmatmul.mubr.bf16.gmra.mxu0 %v1701
      %v1805 = vpop.f32.mrf.mxu0
      %v1806 = vadd.f32 0.0, %v1805
      %v1807 = vpop.f32.mrf.mxu0
      %v1808 = vpop.f32.mrf.mxu0
      %v1809 = vadd.f32 0.0, %v1808
      %v1810 = vpop.f32.mrf.mxu0
      %1811 = vmatprep.mubr.bf16.mxu0 0
      %1812 = vmatmul.mubr.bf16.gmra.mxu0 %v1702
      %v1813 = vpop.f32.mrf.mxu0
      %v1814 = vadd.f32 0.0, %v1813
      %v1815 = vpop.f32.mrf.mxu0
      %v1816 = vpop.f32.mrf.mxu0
      %v1817 = vadd.f32 0.0, %v1816
      %v1818 = vpop.f32.mrf.mxu0
      %1819 = vdwg.mxu0
      %v1820 = vadd.f32 %v1649, %v1790
      %v1821 = vadd.f32 %v1650, %v1793
      %v1822 = vadd.f32 %v1651, %v1798
      %v1823 = vadd.f32 %v1652, %v1801
      %v1824 = vadd.f32 %v1653, %v1806
      %v1825 = vadd.f32 %v1654, %v1809
      %v1826 = vadd.f32 %v1655, %v1814
      %v1827 = vadd.f32 %v1656, %v1817
      %v1828 = vld [vmem:[%s1486] sm:$0xf]
      %v1829 = vld [vmem:[%s1486 + $0x4] sm:$0x1]
      %v1830 = vld [vmem:[%s1486 + $0x8] sm:$0xf]
      %v1831 = vld [vmem:[%s1486 + $0xc] sm:$0x1]
      %v1832 = vld [vmem:[%s1486 + $0x10] sm:$0xf]
      %v1833 = vld [vmem:[%s1486 + $0x14] sm:$0x1]
      %v1834 = vld [vmem:[%s1486 + $0x18] sm:$0xf]
      %v1835 = vld [vmem:[%s1486 + $0x1c] sm:$0x1]
      %v1836 = vld [vmem:[%s1486 + $0x20] sm:$0xf]
      %v1837 = vld [vmem:[%s1486 + $0x24] sm:$0x1]
      %v1838 = vld [vmem:[%s1486 + $0x28] sm:$0xf]
      %v1839 = vld [vmem:[%s1486 + $0x2c] sm:$0x1]
      %v1840 = vld [vmem:[%s1486 + $0x30] sm:$0xf]
      %v1841 = vld [vmem:[%s1486 + $0x34] sm:$0x1]
      %v1842 = vld [vmem:[%s1486 + $0x38] sm:$0xf]
      %v1843 = vld [vmem:[%s1486 + $0x3c] sm:$0x1]
      %v1845 = vshrl.u32 %v1828, 16
      %v1847 = vrot.slane %v1845, 4
      %v1848 = vshll.u32 %v1828, 16
      %v1850 = vrot.slane %v1848, 5
      %v1851 = vor.u32 %v1847, %v1850
      %v1852 = vrot.slane %v1851, 4
      %v1854 = vshll.u32 %v1829, 16
      %v1856 = vrot.slane %v1854, 5
      %v1857 = vsel %vm595, %v1852, %v1856
      %v1859 = vshrl.u32 %v1830, 16
      %v1861 = vrot.slane %v1859, 4
      %v1862 = vshll.u32 %v1830, 16
      %v1864 = vrot.slane %v1862, 5
      %v1865 = vor.u32 %v1861, %v1864
      %v1866 = vrot.slane %v1865, 4
      %v1868 = vshll.u32 %v1831, 16
      %v1870 = vrot.slane %v1868, 5
      %v1871 = vsel %vm595, %v1866, %v1870
      %v1873 = vshrl.u32 %v1832, 16
      %v1875 = vrot.slane %v1873, 4
      %v1876 = vshll.u32 %v1832, 16
      %v1878 = vrot.slane %v1876, 5
      %v1879 = vor.u32 %v1875, %v1878
      %v1880 = vrot.slane %v1879, 4
      %v1882 = vshll.u32 %v1833, 16
      %v1884 = vrot.slane %v1882, 5
      %v1885 = vsel %vm595, %v1880, %v1884
      %v1887 = vshrl.u32 %v1834, 16
      %v1889 = vrot.slane %v1887, 4
      %v1890 = vshll.u32 %v1834, 16
      %v1892 = vrot.slane %v1890, 5
      %v1893 = vor.u32 %v1889, %v1892
      %v1894 = vrot.slane %v1893, 4
      %v1896 = vshll.u32 %v1835, 16
      %v1898 = vrot.slane %v1896, 5
      %v1899 = vsel %vm595, %v1894, %v1898
      %v1901 = vshrl.u32 %v1836, 16
      %v1903 = vrot.slane %v1901, 4
      %v1904 = vshll.u32 %v1836, 16
      %v1906 = vrot.slane %v1904, 5
      %v1907 = vor.u32 %v1903, %v1906
      %v1908 = vrot.slane %v1907, 4
      %v1910 = vshll.u32 %v1837, 16
      %v1912 = vrot.slane %v1910, 5
      %v1913 = vsel %vm595, %v1908, %v1912
      %v1915 = vshrl.u32 %v1838, 16
      %v1917 = vrot.slane %v1915, 4
      %v1918 = vshll.u32 %v1838, 16
      %v1920 = vrot.slane %v1918, 5
      %v1921 = vor.u32 %v1917, %v1920
      %v1922 = vrot.slane %v1921, 4
      %v1924 = vshll.u32 %v1839, 16
      %v1926 = vrot.slane %v1924, 5
      %v1927 = vsel %vm595, %v1922, %v1926
      %v1929 = vshrl.u32 %v1840, 16
      %v1931 = vrot.slane %v1929, 4
      %v1932 = vshll.u32 %v1840, 16
      %v1934 = vrot.slane %v1932, 5
      %v1935 = vor.u32 %v1931, %v1934
      %v1936 = vrot.slane %v1935, 4
      %v1938 = vshll.u32 %v1841, 16
      %v1940 = vrot.slane %v1938, 5
      %v1941 = vsel %vm595, %v1936, %v1940
      %v1943 = vshrl.u32 %v1842, 16
      %v1945 = vrot.slane %v1943, 4
      %v1946 = vshll.u32 %v1842, 16
      %v1948 = vrot.slane %v1946, 5
      %v1949 = vor.u32 %v1945, %v1948
      %v1950 = vrot.slane %v1949, 4
      %v1952 = vshll.u32 %v1843, 16
      %v1954 = vrot.slane %v1952, 5
      %v1955 = vsel %vm595, %v1950, %v1954
      %s1956 = scalar_lea.vmem %s1, 512
      %v1957 = vld [vmem:[%s1956] sm:$0xf]
      %v1958 = vld [vmem:[%s1956 + $0x4] sm:$0xf]
      %v1959 = vld [vmem:[%s1956 + $0x8] sm:$0xf]
      %v1960 = vld [vmem:[%s1956 + $0xc] sm:$0xf]
      %v1961 = vld [vmem:[%s1956 + $0x10] sm:$0xf]
      %v1962 = vld [vmem:[%s1956 + $0x14] sm:$0xf]
      %v1963 = vld [vmem:[%s1956 + $0x18] sm:$0xf]
      %v1964 = vld [vmem:[%s1956 + $0x1c] sm:$0xf]
      %v1965 = vld [vmem:[%s1956 + $0x20] sm:$0xf]
      %v1966 = vld [vmem:[%s1956 + $0x24] sm:$0xf]
      %v1967 = vld [vmem:[%s1956 + $0x28] sm:$0xf]
      %v1968 = vld [vmem:[%s1956 + $0x2c] sm:$0xf]
      %v1969 = vld [vmem:[%s1956 + $0x30] sm:$0xf]
      %v1970 = vld [vmem:[%s1956 + $0x34] sm:$0xf]
      %v1971 = vld [vmem:[%s1956 + $0x38] sm:$0xf]
      %v1972 = vld [vmem:[%s1956 + $0x3c] sm:$0xf]
      %v1973 = vunpack.c.l.b16 %v1857
      %v1974 = vunpack.c.l.b16 %v1871
      %v1975 = vunpack.c.l.b16 %v1885
      %v1976 = vunpack.c.l.b16 %v1899
      %v1977 = vunpack.c.l.b16 %v1913
      %v1978 = vunpack.c.l.b16 %v1927
      %v1979 = vunpack.c.l.b16 %v1941
      %v1980 = vunpack.c.l.b16 %v1955
      %v1981 = vpack.c.b16 %v1974, %v1973
      %v1982 = vpack.c.b16 %v1976, %v1975
      %v1983 = vpack.c.b16 %v1978, %v1977
      %v1984 = vpack.c.b16 %v1980, %v1979
      %v2005 = vunpack.c.l.b16 %v1957
      %v2006 = vunpack.c.l.b16 %v1958
      %v2007 = vunpack.c.l.b16 %v1959
      %v2008 = vunpack.c.l.b16 %v1960
      %v2009 = vunpack.c.l.b16 %v1961
      %v2010 = vunpack.c.l.b16 %v1962
      %v2011 = vunpack.c.l.b16 %v1963
      %v2012 = vunpack.c.l.b16 %v1964
      %v2013 = vunpack.c.l.b16 %v1965
      %v2014 = vunpack.c.l.b16 %v1966
      %v2015 = vunpack.c.l.b16 %v1967
      %v2016 = vunpack.c.l.b16 %v1968
      %v2017 = vunpack.c.l.b16 %v1969
      %v2018 = vunpack.c.l.b16 %v1970
      %v2019 = vunpack.c.l.b16 %v1971
      %v2020 = vunpack.c.l.b16 %v1972
      %v2021 = vpack.c.b16 %v2006, %v2005
      %v2022 = vpack.c.b16 %v2008, %v2007
      %v2023 = vpack.c.b16 %v2010, %v2009
      %v2024 = vpack.c.b16 %v2012, %v2011
      %v2025 = vpack.c.b16 %v2014, %v2013
      %v2026 = vpack.c.b16 %v2016, %v2015
      %v2027 = vpack.c.b16 %v2018, %v2017
      %v2028 = vpack.c.b16 %v2020, %v2019
      %2037 = vmatprep.subr.bf16.mxu0 0
      %2038 = vmatpush1.bf16.msra.mxu0 %v2028
      %2039 = vmatprep.subr.bf16.mxu0 0
      %2040 = vmatpush1.bf16.msra.mxu0 %v2027
      %2041 = vmatprep.subr.bf16.mxu0 0
      %2042 = vmatpush1.bf16.msra.mxu0 %v2026
      %2043 = vmatprep.subr.bf16.mxu0 0
      %2044 = vmatpush1.bf16.msra.mxu0 %v2025
      %2045 = vmatprep.subr.bf16.mxu0 0
      %2046 = vmatpush1.bf16.msra.mxu0 %v2024
      %2047 = vmatprep.subr.bf16.mxu0 0
      %2048 = vmatpush1.bf16.msra.mxu0 %v2023
      %2049 = vmatprep.subr.bf16.mxu0 0
      %2050 = vmatpush1.bf16.msra.mxu0 %v2022
      %2051 = vmatprep.subr.bf16.mxu0 0
      %2052 = vmatpush1.bf16.msra.mxu0 %v2021
      %2053 = vmatprep.subr.bf16.mxu0 0
      %2054 = vmatpush2.bf16.msra.mxu0 0
      %2055 = vmatprep.subr.bf16.mxu0 0
      %2056 = vmatpush2.bf16.msra.mxu0 0
      %2057 = vmatprep.subr.bf16.mxu0 0
      %2058 = vmatpush2.bf16.msra.mxu0 0
      %2059 = vmatprep.subr.bf16.mxu0 0
      %2060 = vmatpush2.bf16.msra.mxu0 0
      %2061 = vmatprep.subr.bf16.mxu0 0
      %2062 = vmatpush2.bf16.msra.mxu0 0
      %2063 = vmatprep.subr.bf16.mxu0 0
      %2064 = vmatpush2.bf16.msra.mxu0 0
      %2065 = vmatprep.subr.bf16.mxu0 0
      %2066 = vmatpush2.bf16.msra.mxu0 0
      %2067 = vmatprep.subr.bf16.mxu0 0
      %2068 = vmatpush2.bf16.msra.mxu0 0
      %2069 = vmatprep.mubr.bf16.mxu0 0
      %2070 = vmatmul.mubr.bf16.gmra.mxu0 %v1981
      %v2071 = vpop.f32.mrf.mxu0
      %v2072 = vadd.f32 0.0, %v2071
      %v2073 = vpop.f32.mrf.mxu0
      %v2074 = vpop.f32.mrf.mxu0
      %v2075 = vadd.f32 0.0, %v2074
      %v2076 = vpop.f32.mrf.mxu0
      %2077 = vmatprep.mubr.bf16.mxu0 0
      %2078 = vmatmul.mubr.bf16.gmra.mxu0 %v1982
      %v2079 = vpop.f32.mrf.mxu0
      %v2080 = vadd.f32 0.0, %v2079
      %v2081 = vpop.f32.mrf.mxu0
      %v2082 = vpop.f32.mrf.mxu0
      %v2083 = vadd.f32 0.0, %v2082
      %v2084 = vpop.f32.mrf.mxu0
      %2085 = vmatprep.mubr.bf16.mxu0 0
      %2086 = vmatmul.mubr.bf16.gmra.mxu0 %v1983
      %v2087 = vpop.f32.mrf.mxu0
      %v2088 = vadd.f32 0.0, %v2087
      %v2089 = vpop.f32.mrf.mxu0
      %v2090 = vpop.f32.mrf.mxu0
      %v2091 = vadd.f32 0.0, %v2090
      %v2092 = vpop.f32.mrf.mxu0
      %2093 = vmatprep.mubr.bf16.mxu0 0
      %2094 = vmatmul.mubr.bf16.gmra.mxu0 %v1984
      %v2095 = vpop.f32.mrf.mxu0
      %v2096 = vadd.f32 0.0, %v2095
      %v2097 = vpop.f32.mrf.mxu0
      %v2098 = vpop.f32.mrf.mxu0
      %v2099 = vadd.f32 0.0, %v2098
      %v2100 = vpop.f32.mrf.mxu0
      %2101 = vdwg.mxu0
      %v2102 = vadd.f32 %v1820, %v2072
      %v2103 = vadd.f32 %v1821, %v2075
      %v2104 = vadd.f32 %v1822, %v2080
      %v2105 = vadd.f32 %v1823, %v2083
      %v2106 = vadd.f32 %v1824, %v2088
      %v2107 = vadd.f32 %v1825, %v2091
      %v2108 = vadd.f32 %v1826, %v2096
      %v2109 = vadd.f32 %v1827, %v2099
      %v2110 = vld [vmem:[%s2] sm:$0x1]
      %v2111 = vld [vmem:[%s3] sm:$0x1]
      %v2112 = vld [vmem:[%s4] sm:$0xff]
      %v2113 = vld [vmem:[%s4 + $0x8] sm:$0xff]
      %v2114 = vld [vmem:[%s4 + $0x10] sm:$0xff]
      %v2115 = vld [vmem:[%s4 + $0x18] sm:$0xff]
      %v2116 = vld [vmem:[%s4 + $0x20] sm:$0xff]
      %v2117 = vld [vmem:[%s4 + $0x28] sm:$0xff]
      %v2118 = vld [vmem:[%s4 + $0x30] sm:$0xff]
      %v2119 = vld [vmem:[%s4 + $0x38] sm:$0xff]
      %v2120 = vld [vmem:[%s4 + $0x40] sm:$0xff]
      %v2121 = vld [vmem:[%s4 + $0x48] sm:$0xff]
      %v2122 = vld [vmem:[%s4 + $0x50] sm:$0xff]
      %v2123 = vld [vmem:[%s4 + $0x58] sm:$0xff]
      %v2124 = vld [vmem:[%s4 + $0x60] sm:$0xff]
      %v2125 = vld [vmem:[%s4 + $0x68] sm:$0xff]
      %v2126 = vld [vmem:[%s4 + $0x70] sm:$0xff]
      %v2127 = vld [vmem:[%s4 + $0x78] sm:$0xff]
      %v2128 = vld [vmem:[%s5] sm:$0xff]
      %v2129 = vld [vmem:[%s5 + $0x8] sm:$0xff]
      %v2130 = vld [vmem:[%s5 + $0x10] sm:$0xff]
      %v2131 = vld [vmem:[%s5 + $0x18] sm:$0xff]
      %v2132 = vld [vmem:[%s5 + $0x20] sm:$0xff]
      %v2133 = vld [vmem:[%s5 + $0x28] sm:$0xff]
      %v2134 = vld [vmem:[%s5 + $0x30] sm:$0xff]
      %v2135 = vld [vmem:[%s5 + $0x38] sm:$0xff]
      %v2136 = vld [vmem:[%s5 + $0x40] sm:$0xff]
      %v2137 = vld [vmem:[%s5 + $0x48] sm:$0xff]
      %v2138 = vld [vmem:[%s5 + $0x50] sm:$0xff]
      %v2139 = vld [vmem:[%s5 + $0x58] sm:$0xff]
      %v2140 = vld [vmem:[%s5 + $0x60] sm:$0xff]
      %v2141 = vld [vmem:[%s5 + $0x68] sm:$0xff]
      %v2142 = vld [vmem:[%s5 + $0x70] sm:$0xff]
      %v2143 = vld [vmem:[%s5 + $0x78] sm:$0xff]
      %v2144 = vadd.f32 %v2102, %v2103
      %v2145 = vadd.f32 %v2144, %v2104
      %v2146 = vadd.f32 %v2145, %v2105
      %v2147 = vadd.f32 %v2146, %v2106
      %v2148 = vadd.f32 %v2147, %v2107
      %v2149 = vadd.f32 %v2148, %v2108
      %v2150 = vadd.f32 %v2149, %v2109
      %v2151 = vrot.slane %v2150, 4
      %v2152 = vadd.f32 %v2150, %v2151
      %v2153 = vrot.slane %v2152, 2
      %v2154 = vadd.f32 %v2152, %v2153
      %v2155 = vrot.slane %v2154, 1
      %v2156 = vadd.f32 %v2154, %v2155
      %v2157 = vmul.f32 %v2102, %v2102
      %v2158 = vmul.f32 %v2103, %v2103
      %v2159 = vmul.f32 %v2104, %v2104
      %v2160 = vmul.f32 %v2105, %v2105
      %v2161 = vmul.f32 %v2106, %v2106
      %v2162 = vmul.f32 %v2107, %v2107
      %v2163 = vmul.f32 %v2108, %v2108
      %v2164 = vmul.f32 %v2109, %v2109
      %v2165 = vadd.f32 %v2157, %v2158
      %v2166 = vadd.f32 %v2165, %v2159
      %v2167 = vadd.f32 %v2166, %v2160
      %v2168 = vadd.f32 %v2167, %v2161
      %v2169 = vadd.f32 %v2168, %v2162
      %v2170 = vadd.f32 %v2169, %v2163
      %v2171 = vadd.f32 %v2170, %v2164
      %v2172 = vrot.slane %v2171, 4
      %v2173 = vadd.f32 %v2171, %v2172
      %v2174 = vrot.slane %v2173, 2
      %v2175 = vadd.f32 %v2173, %v2174
      %v2176 = vrot.slane %v2175, 1
      %v2177 = vadd.f32 %v2175, %v2176
      %2178 = vmatprep.subr.mxu0 0.0
      %2179 = vmatpush1.msra.mxu0 %v2127
      %2180 = vmatprep.subr.mxu0 0.0
      %2181 = vmatpush1.msra.mxu0 %v2126
      %2182 = vmatprep.subr.mxu0 0.0
      %2183 = vmatpush1.msra.mxu0 %v2125
      %2184 = vmatprep.subr.mxu0 0.0
      %2185 = vmatpush1.msra.mxu0 %v2124
      %2186 = vmatprep.subr.mxu0 0.0
      %2187 = vmatpush1.msra.mxu0 %v2123
      %2188 = vmatprep.subr.mxu0 0.0
      %2189 = vmatpush1.msra.mxu0 %v2122
      %2190 = vmatprep.subr.mxu0 0.0
      %2191 = vmatpush1.msra.mxu0 %v2121
      %2192 = vmatprep.subr.mxu0 0.0
      %2193 = vmatpush1.msra.mxu0 %v2120
      %2194 = vmatprep.subr.mxu0 0.0
      %2195 = vmatpush1.msra.mxu0 %v2119
      %2196 = vmatprep.subr.mxu0 0.0
      %2197 = vmatpush1.msra.mxu0 %v2118
      %2198 = vmatprep.subr.mxu0 0.0
      %2199 = vmatpush1.msra.mxu0 %v2117
      %2200 = vmatprep.subr.mxu0 0.0
      %2201 = vmatpush1.msra.mxu0 %v2116
      %2202 = vmatprep.subr.mxu0 0.0
      %2203 = vmatpush1.msra.mxu0 %v2115
      %2204 = vmatprep.subr.mxu0 0.0
      %2205 = vmatpush1.msra.mxu0 %v2114
      %2206 = vmatprep.subr.mxu0 0.0
      %2207 = vmatpush1.msra.mxu0 %v2113
      %2208 = vmatprep.subr.mxu0 0.0
      %2209 = vmatpush1.msra.mxu0 %v2112
      %2210 = vmatprep.subr.mxu0 0.0
      %2211 = vmatpush2.msra.mxu0 0.0
      %2212 = vmatprep.subr.mxu0 0.0
      %2213 = vmatpush2.msra.mxu0 0.0
      %2214 = vmatprep.subr.mxu0 0.0
      %2215 = vmatpush2.msra.mxu0 0.0
      %2216 = vmatprep.subr.mxu0 0.0
      %2217 = vmatpush2.msra.mxu0 0.0
      %2218 = vmatprep.subr.mxu0 0.0
      %2219 = vmatpush2.msra.mxu0 0.0
      %2220 = vmatprep.subr.mxu0 0.0
      %2221 = vmatpush2.msra.mxu0 0.0
      %2222 = vmatprep.subr.mxu0 0.0
      %2223 = vmatpush2.msra.mxu0 0.0
      %2224 = vmatprep.subr.mxu0 0.0
      %2225 = vmatpush2.msra.mxu0 0.0
      %2226 = vmatprep.subr.mxu0 0.0
      %2227 = vmatpush2.msra.mxu0 0.0
      %2228 = vmatprep.subr.mxu0 0.0
      %2229 = vmatpush2.msra.mxu0 0.0
      %2230 = vmatprep.subr.mxu0 0.0
      %2231 = vmatpush2.msra.mxu0 0.0
      %2232 = vmatprep.subr.mxu0 0.0
      %2233 = vmatpush2.msra.mxu0 0.0
      %2234 = vmatprep.subr.mxu0 0.0
      %2235 = vmatpush2.msra.mxu0 0.0
      %2236 = vmatprep.subr.mxu0 0.0
      %2237 = vmatpush2.msra.mxu0 0.0
      %2238 = vmatprep.subr.mxu0 0.0
      %2239 = vmatpush2.msra.mxu0 0.0
      %2240 = vmatprep.subr.mxu0 0.0
      %2241 = vmatpush2.msra.mxu0 0.0
      %2242 = vmatprep.mubr.f32.mxu0 0.0
      %2243 = vmatmul.mubr.f32.gmra.mxu0 %v2156
      %v2244 = vpop.f32.mrf.mxu0
      %v2245 = vadd.f32 0.0, %v2244
      %v2246 = vpop.f32.mrf.mxu0
      %2247 = vdwg.mxu0
      %v2248 = vmul.f32 %v2245, 0.015625
      %2249 = vmatprep.subr.mxu0 0.0
      %2250 = vmatpush1.msra.mxu0 %v2127
      %2251 = vmatprep.subr.mxu0 0.0
      %2252 = vmatpush1.msra.mxu0 %v2126
      %2253 = vmatprep.subr.mxu0 0.0
      %2254 = vmatpush1.msra.mxu0 %v2125
      %2255 = vmatprep.subr.mxu0 0.0
      %2256 = vmatpush1.msra.mxu0 %v2124
      %2257 = vmatprep.subr.mxu0 0.0
      %2258 = vmatpush1.msra.mxu0 %v2123
      %2259 = vmatprep.subr.mxu0 0.0
      %2260 = vmatpush1.msra.mxu0 %v2122
      %2261 = vmatprep.subr.mxu0 0.0
      %2262 = vmatpush1.msra.mxu0 %v2121
      %2263 = vmatprep.subr.mxu0 0.0
      %2264 = vmatpush1.msra.mxu0 %v2120
      %2265 = vmatprep.subr.mxu0 0.0
      %2266 = vmatpush1.msra.mxu0 %v2119
      %2267 = vmatprep.subr.mxu0 0.0
      %2268 = vmatpush1.msra.mxu0 %v2118
      %2269 = vmatprep.subr.mxu0 0.0
      %2270 = vmatpush1.msra.mxu0 %v2117
      %2271 = vmatprep.subr.mxu0 0.0
      %2272 = vmatpush1.msra.mxu0 %v2116
      %2273 = vmatprep.subr.mxu0 0.0
      %2274 = vmatpush1.msra.mxu0 %v2115
      %2275 = vmatprep.subr.mxu0 0.0
      %2276 = vmatpush1.msra.mxu0 %v2114
      %2277 = vmatprep.subr.mxu0 0.0
      %2278 = vmatpush1.msra.mxu0 %v2113
      %2279 = vmatprep.subr.mxu0 0.0
      %2280 = vmatpush1.msra.mxu0 %v2112
      %2281 = vmatprep.subr.mxu0 0.0
      %2282 = vmatpush2.msra.mxu0 0.0
      %2283 = vmatprep.subr.mxu0 0.0
      %2284 = vmatpush2.msra.mxu0 0.0
      %2285 = vmatprep.subr.mxu0 0.0
      %2286 = vmatpush2.msra.mxu0 0.0
      %2287 = vmatprep.subr.mxu0 0.0
      %2288 = vmatpush2.msra.mxu0 0.0
      %2289 = vmatprep.subr.mxu0 0.0
      %2290 = vmatpush2.msra.mxu0 0.0
      %2291 = vmatprep.subr.mxu0 0.0
      %2292 = vmatpush2.msra.mxu0 0.0
      %2293 = vmatprep.subr.mxu0 0.0
      %2294 = vmatpush2.msra.mxu0 0.0
      %2295 = vmatprep.subr.mxu0 0.0
      %2296 = vmatpush2.msra.mxu0 0.0
      %2297 = vmatprep.subr.mxu0 0.0
      %2298 = vmatpush2.msra.mxu0 0.0
      %2299 = vmatprep.subr.mxu0 0.0
      %2300 = vmatpush2.msra.mxu0 0.0
      %2301 = vmatprep.subr.mxu0 0.0
      %2302 = vmatpush2.msra.mxu0 0.0
      %2303 = vmatprep.subr.mxu0 0.0
      %2304 = vmatpush2.msra.mxu0 0.0
      %2305 = vmatprep.subr.mxu0 0.0
      %2306 = vmatpush2.msra.mxu0 0.0
      %2307 = vmatprep.subr.mxu0 0.0
      %2308 = vmatpush2.msra.mxu0 0.0
      %2309 = vmatprep.subr.mxu0 0.0
      %2310 = vmatpush2.msra.mxu0 0.0
      %2311 = vmatprep.subr.mxu0 0.0
      %2312 = vmatpush2.msra.mxu0 0.0
      %2313 = vmatprep.mubr.f32.mxu0 0.0
      %2314 = vmatmul.mubr.f32.gmra.mxu0 %v2177
      %v2315 = vpop.f32.mrf.mxu0
      %v2316 = vadd.f32 0.0, %v2315
      %v2317 = vpop.f32.mrf.mxu0
      %2318 = vdwg.mxu0
      %v2319 = vmul.f32 %v2316, 0.015625
      %v2320 = vmul.f32 %v2248, %v2248
      %v2321 = vsub.f32 %v2319, %v2320
      %v2322 = vmax.f32 %v2321, 0.0
      %v2323 = vadd.f32 %v2322, 1e-05
      %v2324 = vrsqrt.pop %v2323
      %2325 = vmatprep.subr.mxu0 0.0
      %2326 = vmatpush1.msra.mxu0 %v2143
      %2327 = vmatprep.subr.mxu0 0.0
      %2328 = vmatpush1.msra.mxu0 %v2142
      %2329 = vmatprep.subr.mxu0 0.0
      %2330 = vmatpush1.msra.mxu0 %v2141
      %2331 = vmatprep.subr.mxu0 0.0
      %2332 = vmatpush1.msra.mxu0 %v2140
      %2333 = vmatprep.subr.mxu0 0.0
      %2334 = vmatpush1.msra.mxu0 %v2139
      %2335 = vmatprep.subr.mxu0 0.0
      %2336 = vmatpush1.msra.mxu0 %v2138
      %2337 = vmatprep.subr.mxu0 0.0
      %2338 = vmatpush1.msra.mxu0 %v2137
      %2339 = vmatprep.subr.mxu0 0.0
      %2340 = vmatpush1.msra.mxu0 %v2136
      %2341 = vmatprep.subr.mxu0 0.0
      %2342 = vmatpush1.msra.mxu0 %v2135
      %2343 = vmatprep.subr.mxu0 0.0
      %2344 = vmatpush1.msra.mxu0 %v2134
      %2345 = vmatprep.subr.mxu0 0.0
      %2346 = vmatpush1.msra.mxu0 %v2133
      %2347 = vmatprep.subr.mxu0 0.0
      %2348 = vmatpush1.msra.mxu0 %v2132
      %2349 = vmatprep.subr.mxu0 0.0
      %2350 = vmatpush1.msra.mxu0 %v2131
      %2351 = vmatprep.subr.mxu0 0.0
      %2352 = vmatpush1.msra.mxu0 %v2130
      %2353 = vmatprep.subr.mxu0 0.0
      %2354 = vmatpush1.msra.mxu0 %v2129
      %2355 = vmatprep.subr.mxu0 0.0
      %2356 = vmatpush1.msra.mxu0 %v2128
      %2357 = vmatprep.subr.mxu0 0.0
      %2358 = vmatpush2.msra.mxu0 0.0
      %2359 = vmatprep.subr.mxu0 0.0
      %2360 = vmatpush2.msra.mxu0 0.0
      %2361 = vmatprep.subr.mxu0 0.0
      %2362 = vmatpush2.msra.mxu0 0.0
      %2363 = vmatprep.subr.mxu0 0.0
      %2364 = vmatpush2.msra.mxu0 0.0
      %2365 = vmatprep.subr.mxu0 0.0
      %2366 = vmatpush2.msra.mxu0 0.0
      %2367 = vmatprep.subr.mxu0 0.0
      %2368 = vmatpush2.msra.mxu0 0.0
      %2369 = vmatprep.subr.mxu0 0.0
      %2370 = vmatpush2.msra.mxu0 0.0
      %2371 = vmatprep.subr.mxu0 0.0
      %2372 = vmatpush2.msra.mxu0 0.0
      %2373 = vmatprep.subr.mxu0 0.0
      %2374 = vmatpush2.msra.mxu0 0.0
      %2375 = vmatprep.subr.mxu0 0.0
      %2376 = vmatpush2.msra.mxu0 0.0
      %2377 = vmatprep.subr.mxu0 0.0
      %2378 = vmatpush2.msra.mxu0 0.0
      %2379 = vmatprep.subr.mxu0 0.0
      %2380 = vmatpush2.msra.mxu0 0.0
      %2381 = vmatprep.subr.mxu0 0.0
      %2382 = vmatpush2.msra.mxu0 0.0
      %2383 = vmatprep.subr.mxu0 0.0
      %2384 = vmatpush2.msra.mxu0 0.0
      %2385 = vmatprep.subr.mxu0 0.0
      %2386 = vmatpush2.msra.mxu0 0.0
      %2387 = vmatprep.subr.mxu0 0.0
      %2388 = vmatpush2.msra.mxu0 0.0
      %2389 = vmatprep.mubr.f32.mxu0 0.0
      %2390 = vmatmul.mubr.f32.gmra.mxu0 %v2248
      %v2391 = vpop.f32.mrf.mxu0
      %v2392 = vadd.f32 0.0, %v2391
      %v2393 = vpop.f32.mrf.mxu0
      %2394 = vdwg.mxu0
      %2395 = vmatprep.subr.mxu0 0.0
      %2396 = vmatpush1.msra.mxu0 %v2143
      %2397 = vmatprep.subr.mxu0 0.0
      %2398 = vmatpush1.msra.mxu0 %v2142
      %2399 = vmatprep.subr.mxu0 0.0
      %2400 = vmatpush1.msra.mxu0 %v2141
      %2401 = vmatprep.subr.mxu0 0.0
      %2402 = vmatpush1.msra.mxu0 %v2140
      %2403 = vmatprep.subr.mxu0 0.0
      %2404 = vmatpush1.msra.mxu0 %v2139
      %2405 = vmatprep.subr.mxu0 0.0
      %2406 = vmatpush1.msra.mxu0 %v2138
      %2407 = vmatprep.subr.mxu0 0.0
      %2408 = vmatpush1.msra.mxu0 %v2137
      %2409 = vmatprep.subr.mxu0 0.0
      %2410 = vmatpush1.msra.mxu0 %v2136
      %2411 = vmatprep.subr.mxu0 0.0
      %2412 = vmatpush1.msra.mxu0 %v2135
      %2413 = vmatprep.subr.mxu0 0.0
      %2414 = vmatpush1.msra.mxu0 %v2134
      %2415 = vmatprep.subr.mxu0 0.0
      %2416 = vmatpush1.msra.mxu0 %v2133
      %2417 = vmatprep.subr.mxu0 0.0
      %2418 = vmatpush1.msra.mxu0 %v2132
      %2419 = vmatprep.subr.mxu0 0.0
      %2420 = vmatpush1.msra.mxu0 %v2131
      %2421 = vmatprep.subr.mxu0 0.0
      %2422 = vmatpush1.msra.mxu0 %v2130
      %2423 = vmatprep.subr.mxu0 0.0
      %2424 = vmatpush1.msra.mxu0 %v2129
      %2425 = vmatprep.subr.mxu0 0.0
      %2426 = vmatpush1.msra.mxu0 %v2128
      %2427 = vmatprep.subr.mxu0 0.0
      %2428 = vmatpush2.msra.mxu0 0.0
      %2429 = vmatprep.subr.mxu0 0.0
      %2430 = vmatpush2.msra.mxu0 0.0
      %2431 = vmatprep.subr.mxu0 0.0
      %2432 = vmatpush2.msra.mxu0 0.0
      %2433 = vmatprep.subr.mxu0 0.0
      %2434 = vmatpush2.msra.mxu0 0.0
      %2435 = vmatprep.subr.mxu0 0.0
      %2436 = vmatpush2.msra.mxu0 0.0
      %2437 = vmatprep.subr.mxu0 0.0
      %2438 = vmatpush2.msra.mxu0 0.0
      %2439 = vmatprep.subr.mxu0 0.0
      %2440 = vmatpush2.msra.mxu0 0.0
      %2441 = vmatprep.subr.mxu0 0.0
      %2442 = vmatpush2.msra.mxu0 0.0
      %2443 = vmatprep.subr.mxu0 0.0
      %2444 = vmatpush2.msra.mxu0 0.0
      %2445 = vmatprep.subr.mxu0 0.0
      %2446 = vmatpush2.msra.mxu0 0.0
      %2447 = vmatprep.subr.mxu0 0.0
      %2448 = vmatpush2.msra.mxu0 0.0
      %2449 = vmatprep.subr.mxu0 0.0
      %2450 = vmatpush2.msra.mxu0 0.0
      %2451 = vmatprep.subr.mxu0 0.0
      %2452 = vmatpush2.msra.mxu0 0.0
      %2453 = vmatprep.subr.mxu0 0.0
      %2454 = vmatpush2.msra.mxu0 0.0
      %2455 = vmatprep.subr.mxu0 0.0
      %2456 = vmatpush2.msra.mxu0 0.0
      %2457 = vmatprep.subr.mxu0 0.0
      %2458 = vmatpush2.msra.mxu0 0.0
      %2459 = vmatprep.mubr.f32.mxu0 0.0
      %2460 = vmatmul.mubr.f32.gmra.mxu0 %v2324
      %v2461 = vpop.f32.mrf.mxu0
      %v2462 = vadd.f32 0.0, %v2461
      %v2463 = vpop.f32.mrf.mxu0
      %2464 = vdwg.mxu0
      %v2465 = vlaneseq
      %v2466 = vshrl.u32 %v2465, 7
      %v2467 = vsub.s32 0, %v2466
      %v2468 = vrot.slane %v2392, %v2467
      %v2469 = vsub.f32 %v2102, %v2468
      %v2470 = vsub.f32 %v2103, %v2468
      %v2471 = vsub.f32 %v2104, %v2468
      %v2472 = vsub.f32 %v2105, %v2468
      %v2473 = vsub.f32 %v2106, %v2468
      %v2474 = vsub.f32 %v2107, %v2468
      %v2475 = vsub.f32 %v2108, %v2468
      %v2476 = vsub.f32 %v2109, %v2468
      %v2477 = vmul.f32 %v2462, %v2110
      %v2478 = vlaneseq
      %v2479 = vshrl.u32 %v2478, 7
      %v2480 = vsub.s32 0, %v2479
      %v2481 = vrot.slane %v2477, %v2480
      %v2482 = vmul.f32 %v2469, %v2481
      %v2483 = vmul.f32 %v2470, %v2481
      %v2484 = vmul.f32 %v2471, %v2481
      %v2485 = vmul.f32 %v2472, %v2481
      %v2486 = vmul.f32 %v2473, %v2481
      %v2487 = vmul.f32 %v2474, %v2481
      %v2488 = vmul.f32 %v2475, %v2481
      %v2489 = vmul.f32 %v2476, %v2481
      %v2491 = vlaneseq
      %v2492 = vshrl.u32 %v2491, 7
      %v2493 = vsub.s32 0, %v2492
      %v2494 = vrot.slane %v2111, %v2493
      %v2496 = vadd.f32 %v2482, %v2494
      %v2497 = vadd.f32 %v2483, %v2494
      %v2498 = vadd.f32 %v2484, %v2494
      %v2499 = vadd.f32 %v2485, %v2494
      %v2500 = vadd.f32 %v2486, %v2494
      %v2501 = vadd.f32 %v2487, %v2494
      %v2502 = vadd.f32 %v2488, %v2494
      %v2503 = vadd.f32 %v2489, %v2494
      %v2504 = vmax.f32 %v2496, 0.0
      %v2505 = vmax.f32 %v2497, 0.0
      %v2506 = vmax.f32 %v2498, 0.0
      %v2507 = vmax.f32 %v2499, 0.0
      %v2508 = vmax.f32 %v2500, 0.0
      %v2509 = vmax.f32 %v2501, 0.0
      %v2510 = vmax.f32 %v2502, 0.0
      %v2511 = vmax.f32 %v2503, 0.0
      %v2512 = vpack.c.bf16 %v2505, %v2504
      %v2513 = vpack.c.bf16 %v2507, %v2506
      %v2514 = vpack.c.bf16 %v2509, %v2508
      %v2515 = vpack.c.bf16 %v2511, %v2510
      %v2520 = vunpack.c.l.b16 %v2512
      %v2521 = vunpack.c.h.b16 %v2512
      %v2522 = vunpack.c.l.b16 %v2513
      %v2523 = vunpack.c.h.b16 %v2513
      %v2524 = vunpack.c.l.b16 %v2514
      %v2525 = vunpack.c.h.b16 %v2514
      %v2526 = vunpack.c.l.b16 %v2515
      %v2527 = vunpack.c.h.b16 %v2515
      %v2528 = vpack.c.b16 %v2520, %v2520
      %v2529 = vpack.c.b16 %v2521, %v2521
      %v2530 = vpack.c.b16 %v2522, %v2522
      %v2531 = vpack.c.b16 %v2523, %v2523
      %v2532 = vpack.c.b16 %v2524, %v2524
      %v2533 = vpack.c.b16 %v2525, %v2525
      %v2534 = vpack.c.b16 %v2526, %v2526
      %v2535 = vpack.c.b16 %v2527, %v2527
      %2544 = vst [vmem:[%s251] sm:$0xf] %v2528
      %2545 = vst [vmem:[%s251 + $0x4] sm:$0xf] %v2529
      %2546 = vst [vmem:[%s251 + $0x8] sm:$0xf] %v2530
      %2547 = vst [vmem:[%s251 + $0xc] sm:$0xf] %v2531
      %2548 = vst [vmem:[%s251 + $0x10] sm:$0xf] %v2532
      %2549 = vst [vmem:[%s251 + $0x14] sm:$0xf] %v2533
      %2550 = vst [vmem:[%s251 + $0x18] sm:$0xf] %v2534
      %2551 = vst [vmem:[%s251 + $0x1c] sm:$0xf] %v2535
      %p2552 = scmp.lt.s32.totalorder %s17, 1
      %s2553 = scalar_select %p2552, %s17, 1
      %s2554 = smul.addr %s2553, 8
      %s2555 = smul.addr %s2554, 4
      %s2556 = scalar_lea.vmem %s6, %s2555
      // Predicated region
      $region45: #{_lambda_.9} parent=43 // pred_check
        %p2557 = pneg %p166
      $region46: #{_lambda_.9} parent=43 // pred_check_branch
        %2559 = sbr.rel (%p2557) target = $region48
      $region47: #{_lambda_.9} parent=43 // pred_region
        _
      $region48: #{_lambda_.9} parent=43 // pred_fallthru
        _
    $region44: #{_lambda_.9} parent=5 // pred_fallthru
      _
    %p2560 = scmp.le.s32.totalorder 2, %s12
    // Predicated region
    $region49: #{_lambda_.9} parent=5 // pred_check
      %p2561 = pneg %p2560
    $region50: #{_lambda_.9} parent=5 // pred_check_branch
      %2563 = sbr.rel (%p2561) target = $region52
    $region51: #{_lambda_.9} parent=5 // pred_region
      %s2564 = ssub.s32 %s12, 2
      // Predicated region
      $region53: #{_lambda_.9} parent=51 // pred_check
        %p2565 = pneg %p172
      $region54: #{_lambda_.9} parent=51 // pred_check_branch
        %2567 = sbr.rel (%p2565) target = $region56
      $region55: #{_lambda_.9} parent=51 // pred_region
        %p2568 = scmp.lt.s32.totalorder %s18, 1
        %s2569 = scalar_select %p2568, %s18, 1
        %s2570 = smul.addr %s2569, 8
        %s2571 = smul.addr %s2570, 4
        %s2572 = scalar_lea.vmem %s6, %s2571
      $region56: #{_lambda_.9} parent=51 // pred_fallthru
        _
    $region52: #{_lambda_.9} parent=5 // pred_fallthru
      _
  $region6: #{_lambda_.9} parent=0 // loop_footer
    %s16 = sadd.s32 1, %s12
  $region7: #{_lambda_.9} parent=0 // loop_footer_branch
    %11 = sbr.rel target = $region3
  $region8: #{_lambda_.9} parent=0 // loop_exit
    _

// kernel: _lambda_.12
$region0: #{_lambda_.12}
  #allocation0 [shape = 'u32[]', space=smem, size = 0x4, offset = 0x4, fixed_abs, tag = 'smem constant byte address 0x4 - core index']
  #allocation1 [shape = 'u32[144,128]{1,0:T(1,128)}', space=vmem, size = 0x12000, scoped, tag = 'internal scratch']
  %s0 = inlined_call_operand.vmem [shape: bf16[2,10,10,128], index: 0, kind: input, shape index: {}]
  %s1 = inlined_call_operand.vmem [shape: bf16[9,128,128], index: 1, kind: input, shape index: {}]
  %s2 = inlined_call_operand.vmem [shape: f32[1,128], index: 2, kind: input, shape index: {}]
  %s3 = inlined_call_operand.vmem [shape: f32[1,128], index: 3, kind: input, shape index: {}]
  %s4 = inlined_call_operand.vmem [shape: f32[128,128], index: 4, kind: input, shape index: {}, may-alias: {4,5}]
  %s5 = inlined_call_operand.vmem [shape: f32[128,128], index: 5, kind: input, shape index: {}, may-alias: {4,5}]
  %s6 = inlined_call_operand.vmem [shape: bf16[2,64,128], index: 6, kind: output, shape index: {}]
  %s7 = sld [smem:[#allocation0]]
  $region57: #{_lambda_.12} parent=0
    _
  %s9 = ssub.s32 1, %s7
  %s10 = scalar_select 0, %s9, %s7
  loop: start=0, step=1, limit=4
  $region2: #{_lambda_.12} parent=0 // loop_pre_header
    _
  $region3: #{_lambda_.12} parent=0 // loop_header
    %s12 = sphi 0, %s16
    %p13 = scmp.ge.s32.totalorder %s12, 4
    %s22 = sphi 0, %s24
    %s25 = sphi 0, %s22
    %s26 = sphi 0, %s25
    %s42 = sphi 0, %s26
    %s46 = sphi 0, %s46
    %s48 = sphi 0, %s46
    %s49 = sphi 0, %s48
    %s63 = sphi 0, %s49
    %s67 = sphi 0, %s67
    %s69 = sphi 0, %s67
    %s70 = sphi 0, %s69
    %s84 = sphi 0, %s70
    %s88 = sphi 0, %s88
    %s90 = sphi 0, %s88
    %s91 = sphi 0, %s90
    %s105 = sphi 0, %s91
    %s109 = sphi 0, %s109
    %s111 = sphi 0, %s109
    %s112 = sphi 0, %s111
    %s126 = sphi 0, %s112
    %s130 = sphi 0, %s130
    %s132 = sphi 0, %s130
    %s133 = sphi 0, %s132
    %s147 = sphi 0, %s133
    %s153 = sphi 0, %s155
    %s156 = sphi 0, %s153
    %s157 = sphi 0, %s156
    %s173 = sphi 0, %s157
  $region4: #{_lambda_.12} parent=0 // loop_header_branch
    %15 = sbr.rel (%p13) target = $region8
  $region5: #{_lambda_.12} parent=0 // loop_body
    %s17 = ssub.s32 %s12, 1
    %s18 = ssub.s32 %s12, 2
    %s19 = sadd.s32 %s12, 1
    %s20 = ssub.s32 %s12, %s19
    %p21 = scmp.eq.s32.totalorder %s20, 0
    %s23 = sadd.s32 %s22, 1
    %s24 = scalar_select %p21, %s22, %s23
    %p27 = pneg %p21
    %p28 = scmp.eq.s32.totalorder %s12, 1
    %p29 = por %p27, %p28
    %p30 = scmp.ne.s32.totalorder %s22, %s25
    %p31 = scmp.eq.s32.totalorder %s12, 0
    %p32 = por %p30, %p31
    %p33 = scmp.ne.s32.totalorder %s22, %s25
    %p34 = scmp.eq.s32.totalorder %s17, 1
    %p35 = por %p33, %p34
    %p36 = scmp.ne.s32.totalorder %s25, %s26
    %p37 = scmp.eq.s32.totalorder %s17, 0
    %p38 = por %p36, %p37
    %p39 = scmp.ne.s32.totalorder %s25, %s26
    %p40 = scmp.eq.s32.totalorder %s18, 1
    %p41 = por %p39, %p40
    %p43 = scmp.ne.s32.totalorder %s26, %s42
    %p44 = scmp.eq.s32.totalorder %s18, 0
    %p45 = por %p43, %p44
    %s47 = sadd.s32 %s46, 1
    %p50 = scmp.eq.s32.totalorder %s12, 1
    %p51 = scmp.ne.s32.totalorder %s46, %s48
    %p52 = scmp.eq.s32.totalorder %s12, 0
    %p53 = por %p51, %p52
    %p54 = scmp.ne.s32.totalorder %s46, %s48
    %p55 = scmp.eq.s32.totalorder %s17, 1
    %p56 = por %p54, %p55
    %p57 = scmp.ne.s32.totalorder %s48, %s49
    %p58 = scmp.eq.s32.totalorder %s17, 0
    %p59 = por %p57, %p58
    %p60 = scmp.ne.s32.totalorder %s48, %s49
    %p61 = scmp.eq.s32.totalorder %s18, 1
    %p62 = por %p60, %p61
    %p64 = scmp.ne.s32.totalorder %s49, %s63
    %p65 = scmp.eq.s32.totalorder %s18, 0
    %p66 = por %p64, %p65
    %s68 = sadd.s32 %s67, 1
    %p71 = scmp.eq.s32.totalorder %s12, 1
    %p72 = scmp.ne.s32.totalorder %s67, %s69
    %p73 = scmp.eq.s32.totalorder %s12, 0
    %p74 = por %p72, %p73
    %p75 = scmp.ne.s32.totalorder %s67, %s69
    %p76 = scmp.eq.s32.totalorder %s17, 1
    %p77 = por %p75, %p76
    %p78 = scmp.ne.s32.totalorder %s69, %s70
    %p79 = scmp.eq.s32.totalorder %s17, 0
    %p80 = por %p78, %p79
    %p81 = scmp.ne.s32.totalorder %s69, %s70
    %p82 = scmp.eq.s32.totalorder %s18, 1
    %p83 = por %p81, %p82
    %p85 = scmp.ne.s32.totalorder %s70, %s84
    %p86 = scmp.eq.s32.totalorder %s18, 0
    %p87 = por %p85, %p86
    %s89 = sadd.s32 %s88, 1
    %p92 = scmp.eq.s32.totalorder %s12, 1
    %p93 = scmp.ne.s32.totalorder %s88, %s90
    %p94 = scmp.eq.s32.totalorder %s12, 0
    %p95 = por %p93, %p94
    %p96 = scmp.ne.s32.totalorder %s88, %s90
    %p97 = scmp.eq.s32.totalorder %s17, 1
    %p98 = por %p96, %p97
    %p99 = scmp.ne.s32.totalorder %s90, %s91
    %p100 = scmp.eq.s32.totalorder %s17, 0
    %p101 = por %p99, %p100
    %p102 = scmp.ne.s32.totalorder %s90, %s91
    %p103 = scmp.eq.s32.totalorder %s18, 1
    %p104 = por %p102, %p103
    %p106 = scmp.ne.s32.totalorder %s91, %s105
    %p107 = scmp.eq.s32.totalorder %s18, 0
    %p108 = por %p106, %p107
    %s110 = sadd.s32 %s109, 1
    %p113 = scmp.eq.s32.totalorder %s12, 1
    %p114 = scmp.ne.s32.totalorder %s109, %s111
    %p115 = scmp.eq.s32.totalorder %s12, 0
    %p116 = por %p114, %p115
    %p117 = scmp.ne.s32.totalorder %s109, %s111
    %p118 = scmp.eq.s32.totalorder %s17, 1
    %p119 = por %p117, %p118
    %p120 = scmp.ne.s32.totalorder %s111, %s112
    %p121 = scmp.eq.s32.totalorder %s17, 0
    %p122 = por %p120, %p121
    %p123 = scmp.ne.s32.totalorder %s111, %s112
    %p124 = scmp.eq.s32.totalorder %s18, 1
    %p125 = por %p123, %p124
    %p127 = scmp.ne.s32.totalorder %s112, %s126
    %p128 = scmp.eq.s32.totalorder %s18, 0
    %p129 = por %p127, %p128
    %s131 = sadd.s32 %s130, 1
    %p134 = scmp.eq.s32.totalorder %s12, 1
    %p135 = scmp.ne.s32.totalorder %s130, %s132
    %p136 = scmp.eq.s32.totalorder %s12, 0
    %p137 = por %p135, %p136
    %p138 = scmp.ne.s32.totalorder %s130, %s132
    %p139 = scmp.eq.s32.totalorder %s17, 1
    %p140 = por %p138, %p139
    %p141 = scmp.ne.s32.totalorder %s132, %s133
    %p142 = scmp.eq.s32.totalorder %s17, 0
    %p143 = por %p141, %p142
    %p144 = scmp.ne.s32.totalorder %s132, %s133
    %p145 = scmp.eq.s32.totalorder %s18, 1
    %p146 = por %p144, %p145
    %p148 = scmp.ne.s32.totalorder %s133, %s147
    %p149 = scmp.eq.s32.totalorder %s18, 0
    %p150 = por %p148, %p149
    %s151 = ssub.s32 %s12, %s19
    %p152 = scmp.eq.s32.totalorder %s151, 0
    %s154 = sadd.s32 %s153, 1
    %s155 = scalar_select %p152, %s153, %s154
    %p158 = pneg %p152
    %p159 = scmp.eq.s32.totalorder %s12, 1
    %p160 = por %p158, %p159
    %p161 = scmp.ne.s32.totalorder %s153, %s156
    %p162 = scmp.eq.s32.totalorder %s12, 0
    %p163 = por %p161, %p162
    %p164 = scmp.ne.s32.totalorder %s153, %s156
    %p165 = scmp.eq.s32.totalorder %s17, 1
    %p166 = por %p164, %p165
    %p167 = scmp.ne.s32.totalorder %s156, %s157
    %p168 = scmp.eq.s32.totalorder %s17, 0
    %p169 = por %p167, %p168
    %p170 = scmp.ne.s32.totalorder %s156, %s157
    %p171 = scmp.eq.s32.totalorder %s18, 1
    %p172 = por %p170, %p171
    %p174 = scmp.ne.s32.totalorder %s157, %s173
    %p175 = scmp.eq.s32.totalorder %s18, 0
    %p176 = por %p174, %p175
    %p177 = scmp.le.s32.totalorder 1, %s12
    %p178 = scmp.lt.s32.totalorder %s12, 3
    %p179 = pnand %p177, %p178
    %p180 = pneg %p179
    // Predicated region
    $region9: #{_lambda_.12} parent=5 // pred_check
      _
    $region10: #{_lambda_.12} parent=5 // pred_check_branch
      %182 = sbr.rel (%p179) target = $region12
    $region11: #{_lambda_.12} parent=5 // pred_region
      %s183 = ssub.s32 %s12, 1
      // Predicated region
      $region13: #{_lambda_.12} parent=11 // pred_check
        %p184 = pneg %p59
      $region14: #{_lambda_.12} parent=11 // pred_check_branch
        %186 = sbr.rel (%p184) target = $region16
      $region15: #{_lambda_.12} parent=11 // pred_region
        _
      $region16: #{_lambda_.12} parent=11 // pred_fallthru
        _
      // Predicated region
      $region17: #{_lambda_.12} parent=11 // pred_check
        %p187 = pneg %p80
      $region18: #{_lambda_.12} parent=11 // pred_check_branch
        %189 = sbr.rel (%p187) target = $region20
      $region19: #{_lambda_.12} parent=11 // pred_region
        _
      $region20: #{_lambda_.12} parent=11 // pred_fallthru
        _
      // Predicated region
      $region21: #{_lambda_.12} parent=11 // pred_check
        %p190 = pneg %p101
      $region22: #{_lambda_.12} parent=11 // pred_check_branch
        %192 = sbr.rel (%p190) target = $region24
      $region23: #{_lambda_.12} parent=11 // pred_region
        _
      $region24: #{_lambda_.12} parent=11 // pred_fallthru
        _
      // Predicated region
      $region25: #{_lambda_.12} parent=11 // pred_check
        %p193 = pneg %p122
      $region26: #{_lambda_.12} parent=11 // pred_check_branch
        %195 = sbr.rel (%p193) target = $region28
      $region27: #{_lambda_.12} parent=11 // pred_region
        _
      $region28: #{_lambda_.12} parent=11 // pred_fallthru
        _
      // Predicated region
      $region29: #{_lambda_.12} parent=11 // pred_check
        %p196 = pneg %p143
      $region30: #{_lambda_.12} parent=11 // pred_check_branch
        %198 = sbr.rel (%p196) target = $region32
      $region31: #{_lambda_.12} parent=11 // pred_region
        _
      $region32: #{_lambda_.12} parent=11 // pred_fallthru
        _
    $region12: #{_lambda_.12} parent=5 // pred_fallthru
      _
    %p199 = scmp.lt.s32.totalorder %s12, 2
    // Predicated region
    $region33: #{_lambda_.12} parent=5 // pred_check
      %p200 = pneg %p199
    $region34: #{_lambda_.12} parent=5 // pred_check_branch
      %202 = sbr.rel (%p200) target = $region36
    $region35: #{_lambda_.12} parent=5 // pred_region
      // Predicated region
      $region37: #{_lambda_.12} parent=35 // pred_check
        %p203 = pneg %p32
      $region38: #{_lambda_.12} parent=35 // pred_check_branch
        %205 = sbr.rel (%p203) target = $region40
      $region39: #{_lambda_.12} parent=35 // pred_region
        %p206 = scmp.lt.s32.totalorder %s12, 1
        %s207 = scalar_select %p206, %s12, 1
        %s208 = smul.addr %s207, 20
        %s209 = smul.addr %s208, 4
        %s210 = scalar_lea.vmem %s0, %s209
      $region40: #{_lambda_.12} parent=35 // pred_fallthru
        _
    $region36: #{_lambda_.12} parent=5 // pred_fallthru
      _
    %p211 = scmp.le.s32.totalorder 1, %s12
    %p212 = scmp.lt.s32.totalorder %s12, 3
    %p213 = pnand %p211, %p212
    %p214 = pneg %p213
    // Predicated region
    $region41: #{_lambda_.12} parent=5 // pred_check
      _
    $region42: #{_lambda_.12} parent=5 // pred_check_branch
      %216 = sbr.rel (%p213) target = $region44
    $region43: #{_lambda_.12} parent=5 // pred_region
      %s217 = ssub.s32 %s12, 1
      %p218 = scmp.lt.s32.totalorder %s17, 1
      %s219 = scalar_select %p218, %s17, 1
      %s220 = smul.addr %s219, 20
      %s221 = smul.addr %s220, 4
      %s222 = scalar_lea.vmem %s0, %s221
      %p223 = pneg %p38
      %p224 = pneg %p35
      %p225 = pneg %p59
      %p226 = pneg %p56
      %p227 = pneg %p80
      %p228 = pneg %p77
      %p229 = pneg %p101
      %p230 = pneg %p98
      %p231 = pneg %p122
      %p232 = pneg %p119
      %p233 = pneg %p143
      %p234 = pneg %p140
      %p235 = pneg %p169
      %p236 = pneg %p166
      %p237 = scmp.lt.s32.totalorder %s17, 1
      %s238 = scalar_select %p237, %s17, 1
      %s239 = smul.addr %s238, 8
      %s240 = smul.addr %s239, 4
      %s241 = scalar_lea.vmem %s6, %s240
      %p242 = scmp.lt.s32.totalorder %s17, 1
      %s243 = scalar_select %p242, %s17, 1
      %s244 = smul.addr %s243, 20
      %s245 = smul.addr %s244, 4
      %s246 = scalar_lea.vmem %s0, %s245
      %p247 = scmp.lt.s32.totalorder %s17, 1
      %s248 = scalar_select %p247, %s17, 1
      %s249 = smul.addr %s248, 8
      %s250 = smul.addr %s249, 4
      %s251 = scalar_lea.vmem %s6, %s250
      %v253 = vld [vmem:[%s246] sm:$0xf]
      %v254 = vld [vmem:[%s246 + $0x8] sm:$0xf]
      %v255 = vld [vmem:[%s246 + $0x10] sm:$0xf]
      %v256 = vld [vmem:[%s246 + $0x18] sm:$0xf]
      %v257 = vld [vmem:[%s246 + $0x20] sm:$0xf]
      %v258 = vld [vmem:[%s246 + $0x28] sm:$0xf]
      %v259 = vld [vmem:[%s246 + $0x30] sm:$0xf]
      %v260 = vld [vmem:[%s246 + $0x38] sm:$0xf]
      %v261 = vld [vmem:[%s1] sm:$0xf]
      %v262 = vld [vmem:[%s1 + $0x4] sm:$0xf]
      %v263 = vld [vmem:[%s1 + $0x8] sm:$0xf]
      %v264 = vld [vmem:[%s1 + $0xc] sm:$0xf]
      %v265 = vld [vmem:[%s1 + $0x10] sm:$0xf]
      %v266 = vld [vmem:[%s1 + $0x14] sm:$0xf]
      %v267 = vld [vmem:[%s1 + $0x18] sm:$0xf]
      %v268 = vld [vmem:[%s1 + $0x1c] sm:$0xf]
      %v269 = vld [vmem:[%s1 + $0x20] sm:$0xf]
      %v270 = vld [vmem:[%s1 + $0x24] sm:$0xf]
      %v271 = vld [vmem:[%s1 + $0x28] sm:$0xf]
      %v272 = vld [vmem:[%s1 + $0x2c] sm:$0xf]
      %v273 = vld [vmem:[%s1 + $0x30] sm:$0xf]
      %v274 = vld [vmem:[%s1 + $0x34] sm:$0xf]
      %v275 = vld [vmem:[%s1 + $0x38] sm:$0xf]
      %v276 = vld [vmem:[%s1 + $0x3c] sm:$0xf]
      %v277 = vld [vmem:[%s246 + $0x4] sm:$0x1]
      %v278 = vld [vmem:[%s246 + $0xc] sm:$0x1]
      %v279 = vld [vmem:[%s246 + $0x14] sm:$0x1]
      %v280 = vld [vmem:[%s246 + $0x1c] sm:$0x1]
      %v281 = vld [vmem:[%s246 + $0x24] sm:$0x1]
      %v282 = vld [vmem:[%s246 + $0x2c] sm:$0x1]
      %v283 = vld [vmem:[%s246 + $0x34] sm:$0x1]
      %v284 = vld [vmem:[%s246 + $0x3c] sm:$0x1]
      %vm285 = vsmask.f32 3328
      %vm286 = vsmask.f32 7440
      %vm287 = vmor %vm285, %vm286
      %v289 = vshrl.u32 %v253, 16
      %v291 = vrot.slane %v289, 4
      %v292 = vshll.u32 %v253, 16
      %v294 = vrot.slane %v292, 5
      %v295 = vor.u32 %v291, %v294
      %v296 = vrot.slane %v295, 4
      %v298 = vshll.u32 %v277, 16
      %v300 = vrot.slane %v298, 5
      %v301 = vsel %vm287, %v296, %v300
      %v303 = vshrl.u32 %v254, 16
      %v305 = vrot.slane %v303, 4
      %v306 = vshll.u32 %v254, 16
      %v308 = vrot.slane %v306, 5
      %v309 = vor.u32 %v305, %v308
      %v310 = vrot.slane %v309, 4
      %v312 = vshll.u32 %v278, 16
      %v314 = vrot.slane %v312, 5
      %v315 = vsel %vm287, %v310, %v314
      %v317 = vshrl.u32 %v255, 16
      %v319 = vrot.slane %v317, 4
      %v320 = vshll.u32 %v255, 16
      %v322 = vrot.slane %v320, 5
      %v323 = vor.u32 %v319, %v322
      %v324 = vrot.slane %v323, 4
      %v326 = vshll.u32 %v279, 16
      %v328 = vrot.slane %v326, 5
      %v329 = vsel %vm287, %v324, %v328
      %v331 = vshrl.u32 %v256, 16
      %v333 = vrot.slane %v331, 4
      %v334 = vshll.u32 %v256, 16
      %v336 = vrot.slane %v334, 5
      %v337 = vor.u32 %v333, %v336
      %v338 = vrot.slane %v337, 4
      %v340 = vshll.u32 %v280, 16
      %v342 = vrot.slane %v340, 5
      %v343 = vsel %vm287, %v338, %v342
      %v345 = vshrl.u32 %v257, 16
      %v347 = vrot.slane %v345, 4
      %v348 = vshll.u32 %v257, 16
      %v350 = vrot.slane %v348, 5
      %v351 = vor.u32 %v347, %v350
      %v352 = vrot.slane %v351, 4
      %v354 = vshll.u32 %v281, 16
      %v356 = vrot.slane %v354, 5
      %v357 = vsel %vm287, %v352, %v356
      %v359 = vshrl.u32 %v258, 16
      %v361 = vrot.slane %v359, 4
      %v362 = vshll.u32 %v258, 16
      %v364 = vrot.slane %v362, 5
      %v365 = vor.u32 %v361, %v364
      %v366 = vrot.slane %v365, 4
      %v368 = vshll.u32 %v282, 16
      %v370 = vrot.slane %v368, 5
      %v371 = vsel %vm287, %v366, %v370
      %v373 = vshrl.u32 %v259, 16
      %v375 = vrot.slane %v373, 4
      %v376 = vshll.u32 %v259, 16
      %v378 = vrot.slane %v376, 5
      %v379 = vor.u32 %v375, %v378
      %v380 = vrot.slane %v379, 4
      %v382 = vshll.u32 %v283, 16
      %v384 = vrot.slane %v382, 5
      %v385 = vsel %vm287, %v380, %v384
      %v387 = vshrl.u32 %v260, 16
      %v389 = vrot.slane %v387, 4
      %v390 = vshll.u32 %v260, 16
      %v392 = vrot.slane %v390, 5
      %v393 = vor.u32 %v389, %v392
      %v394 = vrot.slane %v393, 4
      %v396 = vshll.u32 %v284, 16
      %v398 = vrot.slane %v396, 5
      %v399 = vsel %vm287, %v394, %v398
      %s400 = scalar_lea.vmem %s1, 64
      %v401 = vld [vmem:[%s400] sm:$0xf]
      %v402 = vld [vmem:[%s400 + $0x4] sm:$0xf]
      %v403 = vld [vmem:[%s400 + $0x8] sm:$0xf]
      %v404 = vld [vmem:[%s400 + $0xc] sm:$0xf]
      %v405 = vld [vmem:[%s400 + $0x10] sm:$0xf]
      %v406 = vld [vmem:[%s400 + $0x14] sm:$0xf]
      %v407 = vld [vmem:[%s400 + $0x18] sm:$0xf]
      %v408 = vld [vmem:[%s400 + $0x1c] sm:$0xf]
      %v409 = vld [vmem:[%s400 + $0x20] sm:$0xf]
      %v410 = vld [vmem:[%s400 + $0x24] sm:$0xf]
      %v411 = vld [vmem:[%s400 + $0x28] sm:$0xf]
      %v412 = vld [vmem:[%s400 + $0x2c] sm:$0xf]
      %v413 = vld [vmem:[%s400 + $0x30] sm:$0xf]
      %v414 = vld [vmem:[%s400 + $0x34] sm:$0xf]
      %v415 = vld [vmem:[%s400 + $0x38] sm:$0xf]
      %v416 = vld [vmem:[%s400 + $0x3c] sm:$0xf]
      %v417 = vunpack.c.l.b16 %v301
      %v418 = vunpack.c.l.b16 %v315
      %v419 = vunpack.c.l.b16 %v329
      %v420 = vunpack.c.l.b16 %v343
      %v421 = vunpack.c.l.b16 %v357
      %v422 = vunpack.c.l.b16 %v371
      %v423 = vunpack.c.l.b16 %v385
      %v424 = vunpack.c.l.b16 %v399
      %v425 = vpack.c.b16 %v418, %v417
      %v426 = vpack.c.b16 %v420, %v419
      %v427 = vpack.c.b16 %v422, %v421
      %v428 = vpack.c.b16 %v424, %v423
      %v449 = vunpack.c.l.b16 %v401
      %v450 = vunpack.c.l.b16 %v402
      %v451 = vunpack.c.l.b16 %v403
      %v452 = vunpack.c.l.b16 %v404
      %v453 = vunpack.c.l.b16 %v405
      %v454 = vunpack.c.l.b16 %v406
      %v455 = vunpack.c.l.b16 %v407
      %v456 = vunpack.c.l.b16 %v408
      %v457 = vunpack.c.l.b16 %v409
      %v458 = vunpack.c.l.b16 %v410
      %v459 = vunpack.c.l.b16 %v411
      %v460 = vunpack.c.l.b16 %v412
      %v461 = vunpack.c.l.b16 %v413
      %v462 = vunpack.c.l.b16 %v414
      %v463 = vunpack.c.l.b16 %v415
      %v464 = vunpack.c.l.b16 %v416
      %v465 = vpack.c.b16 %v450, %v449
      %v466 = vpack.c.b16 %v452, %v451
      %v467 = vpack.c.b16 %v454, %v453
      %v468 = vpack.c.b16 %v456, %v455
      %v469 = vpack.c.b16 %v458, %v457
      %v470 = vpack.c.b16 %v460, %v459
      %v471 = vpack.c.b16 %v462, %v461
      %v472 = vpack.c.b16 %v464, %v463
      %481 = vmatprep.subr.bf16.mxu0 0
      %482 = vmatpush1.bf16.msra.mxu0 %v472
      %483 = vmatprep.subr.bf16.mxu0 0
      %484 = vmatpush1.bf16.msra.mxu0 %v471
      %485 = vmatprep.subr.bf16.mxu0 0
      %486 = vmatpush1.bf16.msra.mxu0 %v470
      %487 = vmatprep.subr.bf16.mxu0 0
      %488 = vmatpush1.bf16.msra.mxu0 %v469
      %489 = vmatprep.subr.bf16.mxu0 0
      %490 = vmatpush1.bf16.msra.mxu0 %v468
      %491 = vmatprep.subr.bf16.mxu0 0
      %492 = vmatpush1.bf16.msra.mxu0 %v467
      %493 = vmatprep.subr.bf16.mxu0 0
      %494 = vmatpush1.bf16.msra.mxu0 %v466
      %495 = vmatprep.subr.bf16.mxu0 0
      %496 = vmatpush1.bf16.msra.mxu0 %v465
      %497 = vmatprep.subr.bf16.mxu0 0
      %498 = vmatpush2.bf16.msra.mxu0 0
      %499 = vmatprep.subr.bf16.mxu0 0
      %500 = vmatpush2.bf16.msra.mxu0 0
      %501 = vmatprep.subr.bf16.mxu0 0
      %502 = vmatpush2.bf16.msra.mxu0 0
      %503 = vmatprep.subr.bf16.mxu0 0
      %504 = vmatpush2.bf16.msra.mxu0 0
      %505 = vmatprep.subr.bf16.mxu0 0
      %506 = vmatpush2.bf16.msra.mxu0 0
      %507 = vmatprep.subr.bf16.mxu0 0
      %508 = vmatpush2.bf16.msra.mxu0 0
      %509 = vmatprep.subr.bf16.mxu0 0
      %510 = vmatpush2.bf16.msra.mxu0 0
      %511 = vmatprep.subr.bf16.mxu0 0
      %512 = vmatpush2.bf16.msra.mxu0 0
      %513 = vmatprep.mubr.bf16.mxu0 0
      %514 = vmatmul.mubr.bf16.gmra.mxu0 %v425
      %v515 = vpop.f32.mrf.mxu0
      %v516 = vadd.f32 0.0, %v515
      %v517 = vpop.f32.mrf.mxu0
      %v518 = vpop.f32.mrf.mxu0
      %v519 = vadd.f32 0.0, %v518
      %v520 = vpop.f32.mrf.mxu0
      %521 = vmatprep.mubr.bf16.mxu0 0
      %522 = vmatmul.mubr.bf16.gmra.mxu0 %v426
      %v523 = vpop.f32.mrf.mxu0
      %v524 = vadd.f32 0.0, %v523
      %v525 = vpop.f32.mrf.mxu0
      %v526 = vpop.f32.mrf.mxu0
      %v527 = vadd.f32 0.0, %v526
      %v528 = vpop.f32.mrf.mxu0
      %529 = vmatprep.mubr.bf16.mxu0 0
      %530 = vmatmul.mubr.bf16.gmra.mxu0 %v427
      %v531 = vpop.f32.mrf.mxu0
      %v532 = vadd.f32 0.0, %v531
      %v533 = vpop.f32.mrf.mxu0
      %v534 = vpop.f32.mrf.mxu0
      %v535 = vadd.f32 0.0, %v534
      %v536 = vpop.f32.mrf.mxu0
      %537 = vmatprep.mubr.bf16.mxu0 0
      %538 = vmatmul.mubr.bf16.gmra.mxu0 %v428
      %v539 = vpop.f32.mrf.mxu0
      %v540 = vadd.f32 0.0, %v539
      %v541 = vpop.f32.mrf.mxu0
      %v542 = vpop.f32.mrf.mxu0
      %v543 = vadd.f32 0.0, %v542
      %v544 = vpop.f32.mrf.mxu0
      %545 = vdwg.mxu0
      %v554 = vunpack.c.l.b16 %v253
      %v555 = vunpack.c.l.b16 %v254
      %v556 = vunpack.c.l.b16 %v255
      %v557 = vunpack.c.l.b16 %v256
      %v558 = vunpack.c.l.b16 %v257
      %v559 = vunpack.c.l.b16 %v258
      %v560 = vunpack.c.l.b16 %v259
      %v561 = vunpack.c.l.b16 %v260
      %v562 = vpack.c.b16 %v555, %v554
      %v563 = vpack.c.b16 %v557, %v556
      %v564 = vpack.c.b16 %v559, %v558
      %v565 = vpack.c.b16 %v561, %v560
      %v586 = vunpack.c.l.b16 %v261
      %v587 = vunpack.c.l.b16 %v262
      %v588 = vunpack.c.l.b16 %v263
      %v589 = vunpack.c.l.b16 %v264
      %v590 = vunpack.c.l.b16 %v265
      %v591 = vunpack.c.l.b16 %v266
      %v592 = vunpack.c.l.b16 %v267
      %v593 = vunpack.c.l.b16 %v268
      %v594 = vunpack.c.l.b16 %v269
      %v595 = vunpack.c.l.b16 %v270
      %v596 = vunpack.c.l.b16 %v271
      %v597 = vunpack.c.l.b16 %v272
      %v598 = vunpack.c.l.b16 %v273
      %v599 = vunpack.c.l.b16 %v274
      %v600 = vunpack.c.l.b16 %v275
      %v601 = vunpack.c.l.b16 %v276
      %v602 = vpack.c.b16 %v587, %v586
      %v603 = vpack.c.b16 %v589, %v588
      %v604 = vpack.c.b16 %v591, %v590
      %v605 = vpack.c.b16 %v593, %v592
      %v606 = vpack.c.b16 %v595, %v594
      %v607 = vpack.c.b16 %v597, %v596
      %v608 = vpack.c.b16 %v599, %v598
      %v609 = vpack.c.b16 %v601, %v600
      %618 = vmatprep.subr.bf16.mxu0 0
      %619 = vmatpush1.bf16.msra.mxu0 %v609
      %620 = vmatprep.subr.bf16.mxu0 0
      %621 = vmatpush1.bf16.msra.mxu0 %v608
      %622 = vmatprep.subr.bf16.mxu0 0
      %623 = vmatpush1.bf16.msra.mxu0 %v607
      %624 = vmatprep.subr.bf16.mxu0 0
      %625 = vmatpush1.bf16.msra.mxu0 %v606
      %626 = vmatprep.subr.bf16.mxu0 0
      %627 = vmatpush1.bf16.msra.mxu0 %v605
      %628 = vmatprep.subr.bf16.mxu0 0
      %629 = vmatpush1.bf16.msra.mxu0 %v604
      %630 = vmatprep.subr.bf16.mxu0 0
      %631 = vmatpush1.bf16.msra.mxu0 %v603
      %632 = vmatprep.subr.bf16.mxu0 0
      %633 = vmatpush1.bf16.msra.mxu0 %v602
      %634 = vmatprep.subr.bf16.mxu0 0
      %635 = vmatpush2.bf16.msra.mxu0 0
      %636 = vmatprep.subr.bf16.mxu0 0
      %637 = vmatpush2.bf16.msra.mxu0 0
      %638 = vmatprep.subr.bf16.mxu0 0
      %639 = vmatpush2.bf16.msra.mxu0 0
      %640 = vmatprep.subr.bf16.mxu0 0
      %641 = vmatpush2.bf16.msra.mxu0 0
      %642 = vmatprep.subr.bf16.mxu0 0
      %643 = vmatpush2.bf16.msra.mxu0 0
      %644 = vmatprep.subr.bf16.mxu0 0
      %645 = vmatpush2.bf16.msra.mxu0 0
      %646 = vmatprep.subr.bf16.mxu0 0
      %647 = vmatpush2.bf16.msra.mxu0 0
      %648 = vmatprep.subr.bf16.mxu0 0
      %649 = vmatpush2.bf16.msra.mxu0 0
      %650 = vmatprep.mubr.bf16.mxu0 0
      %651 = vmatmul.mubr.bf16.gmra.mxu0 %v562
      %v652 = vpop.f32.mrf.mxu0
      %v653 = vadd.f32 %v516, %v652
      %v654 = vpop.f32.mrf.mxu0
      %v655 = vpop.f32.mrf.mxu0
      %v656 = vadd.f32 %v519, %v655
      %v657 = vpop.f32.mrf.mxu0
      %658 = vmatprep.mubr.bf16.mxu0 0
      %659 = vmatmul.mubr.bf16.gmra.mxu0 %v563
      %v660 = vpop.f32.mrf.mxu0
      %v661 = vadd.f32 %v524, %v660
      %v662 = vpop.f32.mrf.mxu0
      %v663 = vpop.f32.mrf.mxu0
      %v664 = vadd.f32 %v527, %v663
      %v665 = vpop.f32.mrf.mxu0
      %666 = vmatprep.mubr.bf16.mxu0 0
      %667 = vmatmul.mubr.bf16.gmra.mxu0 %v564
      %v668 = vpop.f32.mrf.mxu0
      %v669 = vadd.f32 %v532, %v668
      %v670 = vpop.f32.mrf.mxu0
      %v671 = vpop.f32.mrf.mxu0
      %v672 = vadd.f32 %v535, %v671
      %v673 = vpop.f32.mrf.mxu0
      %674 = vmatprep.mubr.bf16.mxu0 0
      %675 = vmatmul.mubr.bf16.gmra.mxu0 %v565
      %v676 = vpop.f32.mrf.mxu0
      %v677 = vadd.f32 %v540, %v676
      %v678 = vpop.f32.mrf.mxu0
      %v679 = vpop.f32.mrf.mxu0
      %v680 = vadd.f32 %v543, %v679
      %v681 = vpop.f32.mrf.mxu0
      %682 = vdwg.mxu0
      %v683 = vld [vmem:[%s246] sm:$0xe]
      %v684 = vld [vmem:[%s246 + $0x8] sm:$0xe]
      %v685 = vld [vmem:[%s246 + $0x10] sm:$0xe]
      %v686 = vld [vmem:[%s246 + $0x18] sm:$0xe]
      %v687 = vld [vmem:[%s246 + $0x20] sm:$0xe]
      %v688 = vld [vmem:[%s246 + $0x28] sm:$0xe]
      %v689 = vld [vmem:[%s246 + $0x30] sm:$0xe]
      %v690 = vld [vmem:[%s246 + $0x38] sm:$0xe]
      %vm707 = vcmask 1042432
      %vm708 = vcmask 1046532
      %vm709 = vmor %vm707, %vm708
      %v710 = vrot.slane %v683, 5
      %v711 = vrot.slane %v710, 4
      %v712 = vrot.slane %v277, 5
      %v713 = vsel %vm709, %v711, %v712
      %v714 = vrot.slane %v684, 5
      %v715 = vrot.slane %v714, 4
      %v716 = vrot.slane %v278, 5
      %v717 = vsel %vm709, %v715, %v716
      %v718 = vrot.slane %v685, 5
      %v719 = vrot.slane %v718, 4
      %v720 = vrot.slane %v279, 5
      %v721 = vsel %vm709, %v719, %v720
      %v722 = vrot.slane %v686, 5
      %v723 = vrot.slane %v722, 4
      %v724 = vrot.slane %v280, 5
      %v725 = vsel %vm709, %v723, %v724
      %v726 = vrot.slane %v687, 5
      %v727 = vrot.slane %v726, 4
      %v728 = vrot.slane %v281, 5
      %v729 = vsel %vm709, %v727, %v728
      %v730 = vrot.slane %v688, 5
      %v731 = vrot.slane %v730, 4
      %v732 = vrot.slane %v282, 5
      %v733 = vsel %vm709, %v731, %v732
      %v734 = vrot.slane %v689, 5
      %v735 = vrot.slane %v734, 4
      %v736 = vrot.slane %v283, 5
      %v737 = vsel %vm709, %v735, %v736
      %v738 = vrot.slane %v690, 5
      %v739 = vrot.slane %v738, 4
      %v740 = vrot.slane %v284, 5
      %v741 = vsel %vm709, %v739, %v740
      %s742 = scalar_lea.vmem %s1, 128
      %v743 = vld [vmem:[%s742] sm:$0xf]
      %v744 = vld [vmem:[%s742 + $0x4] sm:$0xf]
      %v745 = vld [vmem:[%s742 + $0x8] sm:$0xf]
      %v746 = vld [vmem:[%s742 + $0xc] sm:$0xf]
      %v747 = vld [vmem:[%s742 + $0x10] sm:$0xf]
      %v748 = vld [vmem:[%s742 + $0x14] sm:$0xf]
      %v749 = vld [vmem:[%s742 + $0x18] sm:$0xf]
      %v750 = vld [vmem:[%s742 + $0x1c] sm:$0xf]
      %v751 = vld [vmem:[%s742 + $0x20] sm:$0xf]
      %v752 = vld [vmem:[%s742 + $0x24] sm:$0xf]
      %v753 = vld [vmem:[%s742 + $0x28] sm:$0xf]
      %v754 = vld [vmem:[%s742 + $0x2c] sm:$0xf]
      %v755 = vld [vmem:[%s742 + $0x30] sm:$0xf]
      %v756 = vld [vmem:[%s742 + $0x34] sm:$0xf]
      %v757 = vld [vmem:[%s742 + $0x38] sm:$0xf]
      %v758 = vld [vmem:[%s742 + $0x3c] sm:$0xf]
      %v759 = vunpack.c.l.b16 %v713
      %v760 = vunpack.c.l.b16 %v717
      %v761 = vunpack.c.l.b16 %v721
      %v762 = vunpack.c.l.b16 %v725
      %v763 = vunpack.c.l.b16 %v729
      %v764 = vunpack.c.l.b16 %v733
      %v765 = vunpack.c.l.b16 %v737
      %v766 = vunpack.c.l.b16 %v741
      %v767 = vpack.c.b16 %v760, %v759
      %v768 = vpack.c.b16 %v762, %v761
      %v769 = vpack.c.b16 %v764, %v763
      %v770 = vpack.c.b16 %v766, %v765
      %v791 = vunpack.c.l.b16 %v743
      %v792 = vunpack.c.l.b16 %v744
      %v793 = vunpack.c.l.b16 %v745
      %v794 = vunpack.c.l.b16 %v746
      %v795 = vunpack.c.l.b16 %v747
      %v796 = vunpack.c.l.b16 %v748
      %v797 = vunpack.c.l.b16 %v749
      %v798 = vunpack.c.l.b16 %v750
      %v799 = vunpack.c.l.b16 %v751
      %v800 = vunpack.c.l.b16 %v752
      %v801 = vunpack.c.l.b16 %v753
      %v802 = vunpack.c.l.b16 %v754
      %v803 = vunpack.c.l.b16 %v755
      %v804 = vunpack.c.l.b16 %v756
      %v805 = vunpack.c.l.b16 %v757
      %v806 = vunpack.c.l.b16 %v758
      %v807 = vpack.c.b16 %v792, %v791
      %v808 = vpack.c.b16 %v794, %v793
      %v809 = vpack.c.b16 %v796, %v795
      %v810 = vpack.c.b16 %v798, %v797
      %v811 = vpack.c.b16 %v800, %v799
      %v812 = vpack.c.b16 %v802, %v801
      %v813 = vpack.c.b16 %v804, %v803
      %v814 = vpack.c.b16 %v806, %v805
      %823 = vmatprep.subr.bf16.mxu0 0
      %824 = vmatpush1.bf16.msra.mxu0 %v814
      %825 = vmatprep.subr.bf16.mxu0 0
      %826 = vmatpush1.bf16.msra.mxu0 %v813
      %827 = vmatprep.subr.bf16.mxu0 0
      %828 = vmatpush1.bf16.msra.mxu0 %v812
      %829 = vmatprep.subr.bf16.mxu0 0
      %830 = vmatpush1.bf16.msra.mxu0 %v811
      %831 = vmatprep.subr.bf16.mxu0 0
      %832 = vmatpush1.bf16.msra.mxu0 %v810
      %833 = vmatprep.subr.bf16.mxu0 0
      %834 = vmatpush1.bf16.msra.mxu0 %v809
      %835 = vmatprep.subr.bf16.mxu0 0
      %836 = vmatpush1.bf16.msra.mxu0 %v808
      %837 = vmatprep.subr.bf16.mxu0 0
      %838 = vmatpush1.bf16.msra.mxu0 %v807
      %839 = vmatprep.subr.bf16.mxu0 0
      %840 = vmatpush2.bf16.msra.mxu0 0
      %841 = vmatprep.subr.bf16.mxu0 0
      %842 = vmatpush2.bf16.msra.mxu0 0
      %843 = vmatprep.subr.bf16.mxu0 0
      %844 = vmatpush2.bf16.msra.mxu0 0
      %845 = vmatprep.subr.bf16.mxu0 0
      %846 = vmatpush2.bf16.msra.mxu0 0
      %847 = vmatprep.subr.bf16.mxu0 0
      %848 = vmatpush2.bf16.msra.mxu0 0
      %849 = vmatprep.subr.bf16.mxu0 0
      %850 = vmatpush2.bf16.msra.mxu0 0
      %851 = vmatprep.subr.bf16.mxu0 0
      %852 = vmatpush2.bf16.msra.mxu0 0
      %853 = vmatprep.subr.bf16.mxu0 0
      %854 = vmatpush2.bf16.msra.mxu0 0
      %855 = vmatprep.mubr.bf16.mxu0 0
      %856 = vmatmul.mubr.bf16.gmra.mxu0 %v767
      %v857 = vpop.f32.mrf.mxu0
      %v858 = vadd.f32 0.0, %v857
      %v859 = vpop.f32.mrf.mxu0
      %v860 = vpop.f32.mrf.mxu0
      %v861 = vadd.f32 0.0, %v860
      %v862 = vpop.f32.mrf.mxu0
      %863 = vmatprep.mubr.bf16.mxu0 0
      %864 = vmatmul.mubr.bf16.gmra.mxu0 %v768
      %v865 = vpop.f32.mrf.mxu0
      %v866 = vadd.f32 0.0, %v865
      %v867 = vpop.f32.mrf.mxu0
      %v868 = vpop.f32.mrf.mxu0
      %v869 = vadd.f32 0.0, %v868
      %v870 = vpop.f32.mrf.mxu0
      %871 = vmatprep.mubr.bf16.mxu0 0
      %872 = vmatmul.mubr.bf16.gmra.mxu0 %v769
      %v873 = vpop.f32.mrf.mxu0
      %v874 = vadd.f32 0.0, %v873
      %v875 = vpop.f32.mrf.mxu0
      %v876 = vpop.f32.mrf.mxu0
      %v877 = vadd.f32 0.0, %v876
      %v878 = vpop.f32.mrf.mxu0
      %879 = vmatprep.mubr.bf16.mxu0 0
      %880 = vmatmul.mubr.bf16.gmra.mxu0 %v770
      %v881 = vpop.f32.mrf.mxu0
      %v882 = vadd.f32 0.0, %v881
      %v883 = vpop.f32.mrf.mxu0
      %v884 = vpop.f32.mrf.mxu0
      %v885 = vadd.f32 0.0, %v884
      %v886 = vpop.f32.mrf.mxu0
      %887 = vdwg.mxu0
      %v888 = vadd.f32 %v653, %v858
      %v889 = vadd.f32 %v656, %v861
      %v890 = vadd.f32 %v661, %v866
      %v891 = vadd.f32 %v664, %v869
      %v892 = vadd.f32 %v669, %v874
      %v893 = vadd.f32 %v672, %v877
      %v894 = vadd.f32 %v677, %v882
      %v895 = vadd.f32 %v680, %v885
      %s896 = scalar_lea.vmem %s246, 8
      %v897 = vld [vmem:[%s896] sm:$0xf]
      %v898 = vld [vmem:[%s896 + $0x8] sm:$0xf]
      %v899 = vld [vmem:[%s896 + $0x10] sm:$0xf]
      %v900 = vld [vmem:[%s896 + $0x18] sm:$0xf]
      %v901 = vld [vmem:[%s896 + $0x20] sm:$0xf]
      %v902 = vld [vmem:[%s896 + $0x28] sm:$0xf]
      %v903 = vld [vmem:[%s896 + $0x30] sm:$0xf]
      %v904 = vld [vmem:[%s896 + $0x38] sm:$0xf]
      %s905 = scalar_lea.vmem %s1, 192
      %v906 = vld [vmem:[%s905] sm:$0xf]
      %v907 = vld [vmem:[%s905 + $0x4] sm:$0xf]
      %v908 = vld [vmem:[%s905 + $0x8] sm:$0xf]
      %v909 = vld [vmem:[%s905 + $0xc] sm:$0xf]
      %v910 = vld [vmem:[%s905 + $0x10] sm:$0xf]
      %v911 = vld [vmem:[%s905 + $0x14] sm:$0xf]
      %v912 = vld [vmem:[%s905 + $0x18] sm:$0xf]
      %v913 = vld [vmem:[%s905 + $0x1c] sm:$0xf]
      %v914 = vld [vmem:[%s905 + $0x20] sm:$0xf]
      %v915 = vld [vmem:[%s905 + $0x24] sm:$0xf]
      %v916 = vld [vmem:[%s905 + $0x28] sm:$0xf]
      %v917 = vld [vmem:[%s905 + $0x2c] sm:$0xf]
      %v918 = vld [vmem:[%s905 + $0x30] sm:$0xf]
      %v919 = vld [vmem:[%s905 + $0x34] sm:$0xf]
      %v920 = vld [vmem:[%s905 + $0x38] sm:$0xf]
      %v921 = vld [vmem:[%s905 + $0x3c] sm:$0xf]
      %v930 = vunpack.c.l.b16 %v897
      %v931 = vunpack.c.l.b16 %v898
      %v932 = vunpack.c.l.b16 %v899
      %v933 = vunpack.c.l.b16 %v900
      %v934 = vunpack.c.l.b16 %v901
      %v935 = vunpack.c.l.b16 %v902
      %v936 = vunpack.c.l.b16 %v903
      %v937 = vunpack.c.l.b16 %v904
      %v938 = vpack.c.b16 %v931, %v930
      %v939 = vpack.c.b16 %v933, %v932
      %v940 = vpack.c.b16 %v935, %v934
      %v941 = vpack.c.b16 %v937, %v936
      %v962 = vunpack.c.l.b16 %v906
      %v963 = vunpack.c.l.b16 %v907
      %v964 = vunpack.c.l.b16 %v908
      %v965 = vunpack.c.l.b16 %v909
      %v966 = vunpack.c.l.b16 %v910
      %v967 = vunpack.c.l.b16 %v911
      %v968 = vunpack.c.l.b16 %v912
      %v969 = vunpack.c.l.b16 %v913
      %v970 = vunpack.c.l.b16 %v914
      %v971 = vunpack.c.l.b16 %v915
      %v972 = vunpack.c.l.b16 %v916
      %v973 = vunpack.c.l.b16 %v917
      %v974 = vunpack.c.l.b16 %v918
      %v975 = vunpack.c.l.b16 %v919
      %v976 = vunpack.c.l.b16 %v920
      %v977 = vunpack.c.l.b16 %v921
      %v978 = vpack.c.b16 %v963, %v962
      %v979 = vpack.c.b16 %v965, %v964
      %v980 = vpack.c.b16 %v967, %v966
      %v981 = vpack.c.b16 %v969, %v968
      %v982 = vpack.c.b16 %v971, %v970
      %v983 = vpack.c.b16 %v973, %v972
      %v984 = vpack.c.b16 %v975, %v974
      %v985 = vpack.c.b16 %v977, %v976
      %994 = vmatprep.subr.bf16.mxu0 0
      %995 = vmatpush1.bf16.msra.mxu0 %v985
      %996 = vmatprep.subr.bf16.mxu0 0
      %997 = vmatpush1.bf16.msra.mxu0 %v984
      %998 = vmatprep.subr.bf16.mxu0 0
      %999 = vmatpush1.bf16.msra.mxu0 %v983
      %1000 = vmatprep.subr.bf16.mxu0 0
      %1001 = vmatpush1.bf16.msra.mxu0 %v982
      %1002 = vmatprep.subr.bf16.mxu0 0
      %1003 = vmatpush1.bf16.msra.mxu0 %v981
      %1004 = vmatprep.subr.bf16.mxu0 0
      %1005 = vmatpush1.bf16.msra.mxu0 %v980
      %1006 = vmatprep.subr.bf16.mxu0 0
      %1007 = vmatpush1.bf16.msra.mxu0 %v979
      %1008 = vmatprep.subr.bf16.mxu0 0
      %1009 = vmatpush1.bf16.msra.mxu0 %v978
      %1010 = vmatprep.subr.bf16.mxu0 0
      %1011 = vmatpush2.bf16.msra.mxu0 0
      %1012 = vmatprep.subr.bf16.mxu0 0
      %1013 = vmatpush2.bf16.msra.mxu0 0
      %1014 = vmatprep.subr.bf16.mxu0 0
      %1015 = vmatpush2.bf16.msra.mxu0 0
      %1016 = vmatprep.subr.bf16.mxu0 0
      %1017 = vmatpush2.bf16.msra.mxu0 0
      %1018 = vmatprep.subr.bf16.mxu0 0
      %1019 = vmatpush2.bf16.msra.mxu0 0
      %1020 = vmatprep.subr.bf16.mxu0 0
      %1021 = vmatpush2.bf16.msra.mxu0 0
      %1022 = vmatprep.subr.bf16.mxu0 0
      %1023 = vmatpush2.bf16.msra.mxu0 0
      %1024 = vmatprep.subr.bf16.mxu0 0
      %1025 = vmatpush2.bf16.msra.mxu0 0
      %1026 = vmatprep.mubr.bf16.mxu0 0
      %1027 = vmatmul.mubr.bf16.gmra.mxu0 %v938
      %v1028 = vpop.f32.mrf.mxu0
      %v1029 = vadd.f32 0.0, %v1028
      %v1030 = vpop.f32.mrf.mxu0
      %v1031 = vpop.f32.mrf.mxu0
      %v1032 = vadd.f32 0.0, %v1031
      %v1033 = vpop.f32.mrf.mxu0
      %1034 = vmatprep.mubr.bf16.mxu0 0
      %1035 = vmatmul.mubr.bf16.gmra.mxu0 %v939
      %v1036 = vpop.f32.mrf.mxu0
      %v1037 = vadd.f32 0.0, %v1036
      %v1038 = vpop.f32.mrf.mxu0
      %v1039 = vpop.f32.mrf.mxu0
      %v1040 = vadd.f32 0.0, %v1039
      %v1041 = vpop.f32.mrf.mxu0
      %1042 = vmatprep.mubr.bf16.mxu0 0
      %1043 = vmatmul.mubr.bf16.gmra.mxu0 %v940
      %v1044 = vpop.f32.mrf.mxu0
      %v1045 = vadd.f32 0.0, %v1044
      %v1046 = vpop.f32.mrf.mxu0
      %v1047 = vpop.f32.mrf.mxu0
      %v1048 = vadd.f32 0.0, %v1047
      %v1049 = vpop.f32.mrf.mxu0
      %1050 = vmatprep.mubr.bf16.mxu0 0
      %1051 = vmatmul.mubr.bf16.gmra.mxu0 %v941
      %v1052 = vpop.f32.mrf.mxu0
      %v1053 = vadd.f32 0.0, %v1052
      %v1054 = vpop.f32.mrf.mxu0
      %v1055 = vpop.f32.mrf.mxu0
      %v1056 = vadd.f32 0.0, %v1055
      %v1057 = vpop.f32.mrf.mxu0
      %1058 = vdwg.mxu0
      %v1059 = vadd.f32 %v888, %v1029
      %v1060 = vadd.f32 %v889, %v1032
      %v1061 = vadd.f32 %v890, %v1037
      %v1062 = vadd.f32 %v891, %v1040
      %v1063 = vadd.f32 %v892, %v1045
      %v1064 = vadd.f32 %v893, %v1048
      %v1065 = vadd.f32 %v894, %v1053
      %v1066 = vadd.f32 %v895, %v1056
      %v1067 = vld [vmem:[%s896] sm:$0xf]
      %v1068 = vld [vmem:[%s896 + $0x4] sm:$0x1]
      %v1069 = vld [vmem:[%s896 + $0x8] sm:$0xf]
      %v1070 = vld [vmem:[%s896 + $0xc] sm:$0x1]
      %v1071 = vld [vmem:[%s896 + $0x10] sm:$0xf]
      %v1072 = vld [vmem:[%s896 + $0x14] sm:$0x1]
      %v1073 = vld [vmem:[%s896 + $0x18] sm:$0xf]
      %v1074 = vld [vmem:[%s896 + $0x1c] sm:$0x1]
      %v1075 = vld [vmem:[%s896 + $0x20] sm:$0xf]
      %v1076 = vld [vmem:[%s896 + $0x24] sm:$0x1]
      %v1077 = vld [vmem:[%s896 + $0x28] sm:$0xf]
      %v1078 = vld [vmem:[%s896 + $0x2c] sm:$0x1]
      %v1079 = vld [vmem:[%s896 + $0x30] sm:$0xf]
      %v1080 = vld [vmem:[%s896 + $0x34] sm:$0x1]
      %v1081 = vld [vmem:[%s896 + $0x38] sm:$0xf]
      %v1082 = vld [vmem:[%s896 + $0x3c] sm:$0x1]
      %v1084 = vshrl.u32 %v1067, 16
      %v1086 = vrot.slane %v1084, 4
      %v1087 = vshll.u32 %v1067, 16
      %v1089 = vrot.slane %v1087, 5
      %v1090 = vor.u32 %v1086, %v1089
      %v1091 = vrot.slane %v1090, 4
      %v1093 = vshll.u32 %v1068, 16
      %v1095 = vrot.slane %v1093, 5
      %v1096 = vsel %vm287, %v1091, %v1095
      %v1098 = vshrl.u32 %v1069, 16
      %v1100 = vrot.slane %v1098, 4
      %v1101 = vshll.u32 %v1069, 16
      %v1103 = vrot.slane %v1101, 5
      %v1104 = vor.u32 %v1100, %v1103
      %v1105 = vrot.slane %v1104, 4
      %v1107 = vshll.u32 %v1070, 16
      %v1109 = vrot.slane %v1107, 5
      %v1110 = vsel %vm287, %v1105, %v1109
      %v1112 = vshrl.u32 %v1071, 16
      %v1114 = vrot.slane %v1112, 4
      %v1115 = vshll.u32 %v1071, 16
      %v1117 = vrot.slane %v1115, 5
      %v1118 = vor.u32 %v1114, %v1117
      %v1119 = vrot.slane %v1118, 4
      %v1121 = vshll.u32 %v1072, 16
      %v1123 = vrot.slane %v1121, 5
      %v1124 = vsel %vm287, %v1119, %v1123
      %v1126 = vshrl.u32 %v1073, 16
      %v1128 = vrot.slane %v1126, 4
      %v1129 = vshll.u32 %v1073, 16
      %v1131 = vrot.slane %v1129, 5
      %v1132 = vor.u32 %v1128, %v1131
      %v1133 = vrot.slane %v1132, 4
      %v1135 = vshll.u32 %v1074, 16
      %v1137 = vrot.slane %v1135, 5
      %v1138 = vsel %vm287, %v1133, %v1137
      %v1140 = vshrl.u32 %v1075, 16
      %v1142 = vrot.slane %v1140, 4
      %v1143 = vshll.u32 %v1075, 16
      %v1145 = vrot.slane %v1143, 5
      %v1146 = vor.u32 %v1142, %v1145
      %v1147 = vrot.slane %v1146, 4
      %v1149 = vshll.u32 %v1076, 16
      %v1151 = vrot.slane %v1149, 5
      %v1152 = vsel %vm287, %v1147, %v1151
      %v1154 = vshrl.u32 %v1077, 16
      %v1156 = vrot.slane %v1154, 4
      %v1157 = vshll.u32 %v1077, 16
      %v1159 = vrot.slane %v1157, 5
      %v1160 = vor.u32 %v1156, %v1159
      %v1161 = vrot.slane %v1160, 4
      %v1163 = vshll.u32 %v1078, 16
      %v1165 = vrot.slane %v1163, 5
      %v1166 = vsel %vm287, %v1161, %v1165
      %v1168 = vshrl.u32 %v1079, 16
      %v1170 = vrot.slane %v1168, 4
      %v1171 = vshll.u32 %v1079, 16
      %v1173 = vrot.slane %v1171, 5
      %v1174 = vor.u32 %v1170, %v1173
      %v1175 = vrot.slane %v1174, 4
      %v1177 = vshll.u32 %v1080, 16
      %v1179 = vrot.slane %v1177, 5
      %v1180 = vsel %vm287, %v1175, %v1179
      %v1182 = vshrl.u32 %v1081, 16
      %v1184 = vrot.slane %v1182, 4
      %v1185 = vshll.u32 %v1081, 16
      %v1187 = vrot.slane %v1185, 5
      %v1188 = vor.u32 %v1184, %v1187
      %v1189 = vrot.slane %v1188, 4
      %v1191 = vshll.u32 %v1082, 16
      %v1193 = vrot.slane %v1191, 5
      %v1194 = vsel %vm287, %v1189, %v1193
      %s1195 = scalar_lea.vmem %s1, 256
      %v1196 = vld [vmem:[%s1195] sm:$0xf]
      %v1197 = vld [vmem:[%s1195 + $0x4] sm:$0xf]
      %v1198 = vld [vmem:[%s1195 + $0x8] sm:$0xf]
      %v1199 = vld [vmem:[%s1195 + $0xc] sm:$0xf]
      %v1200 = vld [vmem:[%s1195 + $0x10] sm:$0xf]
      %v1201 = vld [vmem:[%s1195 + $0x14] sm:$0xf]
      %v1202 = vld [vmem:[%s1195 + $0x18] sm:$0xf]
      %v1203 = vld [vmem:[%s1195 + $0x1c] sm:$0xf]
      %v1204 = vld [vmem:[%s1195 + $0x20] sm:$0xf]
      %v1205 = vld [vmem:[%s1195 + $0x24] sm:$0xf]
      %v1206 = vld [vmem:[%s1195 + $0x28] sm:$0xf]
      %v1207 = vld [vmem:[%s1195 + $0x2c] sm:$0xf]
      %v1208 = vld [vmem:[%s1195 + $0x30] sm:$0xf]
      %v1209 = vld [vmem:[%s1195 + $0x34] sm:$0xf]
      %v1210 = vld [vmem:[%s1195 + $0x38] sm:$0xf]
      %v1211 = vld [vmem:[%s1195 + $0x3c] sm:$0xf]
      %v1212 = vunpack.c.l.b16 %v1096
      %v1213 = vunpack.c.l.b16 %v1110
      %v1214 = vunpack.c.l.b16 %v1124
      %v1215 = vunpack.c.l.b16 %v1138
      %v1216 = vunpack.c.l.b16 %v1152
      %v1217 = vunpack.c.l.b16 %v1166
      %v1218 = vunpack.c.l.b16 %v1180
      %v1219 = vunpack.c.l.b16 %v1194
      %v1220 = vpack.c.b16 %v1213, %v1212
      %v1221 = vpack.c.b16 %v1215, %v1214
      %v1222 = vpack.c.b16 %v1217, %v1216
      %v1223 = vpack.c.b16 %v1219, %v1218
      %v1244 = vunpack.c.l.b16 %v1196
      %v1245 = vunpack.c.l.b16 %v1197
      %v1246 = vunpack.c.l.b16 %v1198
      %v1247 = vunpack.c.l.b16 %v1199
      %v1248 = vunpack.c.l.b16 %v1200
      %v1249 = vunpack.c.l.b16 %v1201
      %v1250 = vunpack.c.l.b16 %v1202
      %v1251 = vunpack.c.l.b16 %v1203
      %v1252 = vunpack.c.l.b16 %v1204
      %v1253 = vunpack.c.l.b16 %v1205
      %v1254 = vunpack.c.l.b16 %v1206
      %v1255 = vunpack.c.l.b16 %v1207
      %v1256 = vunpack.c.l.b16 %v1208
      %v1257 = vunpack.c.l.b16 %v1209
      %v1258 = vunpack.c.l.b16 %v1210
      %v1259 = vunpack.c.l.b16 %v1211
      %v1260 = vpack.c.b16 %v1245, %v1244
      %v1261 = vpack.c.b16 %v1247, %v1246
      %v1262 = vpack.c.b16 %v1249, %v1248
      %v1263 = vpack.c.b16 %v1251, %v1250
      %v1264 = vpack.c.b16 %v1253, %v1252
      %v1265 = vpack.c.b16 %v1255, %v1254
      %v1266 = vpack.c.b16 %v1257, %v1256
      %v1267 = vpack.c.b16 %v1259, %v1258
      %1276 = vmatprep.subr.bf16.mxu0 0
      %1277 = vmatpush1.bf16.msra.mxu0 %v1267
      %1278 = vmatprep.subr.bf16.mxu0 0
      %1279 = vmatpush1.bf16.msra.mxu0 %v1266
      %1280 = vmatprep.subr.bf16.mxu0 0
      %1281 = vmatpush1.bf16.msra.mxu0 %v1265
      %1282 = vmatprep.subr.bf16.mxu0 0
      %1283 = vmatpush1.bf16.msra.mxu0 %v1264
      %1284 = vmatprep.subr.bf16.mxu0 0
      %1285 = vmatpush1.bf16.msra.mxu0 %v1263
      %1286 = vmatprep.subr.bf16.mxu0 0
      %1287 = vmatpush1.bf16.msra.mxu0 %v1262
      %1288 = vmatprep.subr.bf16.mxu0 0
      %1289 = vmatpush1.bf16.msra.mxu0 %v1261
      %1290 = vmatprep.subr.bf16.mxu0 0
      %1291 = vmatpush1.bf16.msra.mxu0 %v1260
      %1292 = vmatprep.subr.bf16.mxu0 0
      %1293 = vmatpush2.bf16.msra.mxu0 0
      %1294 = vmatprep.subr.bf16.mxu0 0
      %1295 = vmatpush2.bf16.msra.mxu0 0
      %1296 = vmatprep.subr.bf16.mxu0 0
      %1297 = vmatpush2.bf16.msra.mxu0 0
      %1298 = vmatprep.subr.bf16.mxu0 0
      %1299 = vmatpush2.bf16.msra.mxu0 0
      %1300 = vmatprep.subr.bf16.mxu0 0
      %1301 = vmatpush2.bf16.msra.mxu0 0
      %1302 = vmatprep.subr.bf16.mxu0 0
      %1303 = vmatpush2.bf16.msra.mxu0 0
      %1304 = vmatprep.subr.bf16.mxu0 0
      %1305 = vmatpush2.bf16.msra.mxu0 0
      %1306 = vmatprep.subr.bf16.mxu0 0
      %1307 = vmatpush2.bf16.msra.mxu0 0
      %1308 = vmatprep.mubr.bf16.mxu0 0
      %1309 = vmatmul.mubr.bf16.gmra.mxu0 %v1220
      %v1310 = vpop.f32.mrf.mxu0
      %v1311 = vadd.f32 0.0, %v1310
      %v1312 = vpop.f32.mrf.mxu0
      %v1313 = vpop.f32.mrf.mxu0
      %v1314 = vadd.f32 0.0, %v1313
      %v1315 = vpop.f32.mrf.mxu0
      %1316 = vmatprep.mubr.bf16.mxu0 0
      %1317 = vmatmul.mubr.bf16.gmra.mxu0 %v1221
      %v1318 = vpop.f32.mrf.mxu0
      %v1319 = vadd.f32 0.0, %v1318
      %v1320 = vpop.f32.mrf.mxu0
      %v1321 = vpop.f32.mrf.mxu0
      %v1322 = vadd.f32 0.0, %v1321
      %v1323 = vpop.f32.mrf.mxu0
      %1324 = vmatprep.mubr.bf16.mxu0 0
      %1325 = vmatmul.mubr.bf16.gmra.mxu0 %v1222
      %v1326 = vpop.f32.mrf.mxu0
      %v1327 = vadd.f32 0.0, %v1326
      %v1328 = vpop.f32.mrf.mxu0
      %v1329 = vpop.f32.mrf.mxu0
      %v1330 = vadd.f32 0.0, %v1329
      %v1331 = vpop.f32.mrf.mxu0
      %1332 = vmatprep.mubr.bf16.mxu0 0
      %1333 = vmatmul.mubr.bf16.gmra.mxu0 %v1223
      %v1334 = vpop.f32.mrf.mxu0
      %v1335 = vadd.f32 0.0, %v1334
      %v1336 = vpop.f32.mrf.mxu0
      %v1337 = vpop.f32.mrf.mxu0
      %v1338 = vadd.f32 0.0, %v1337
      %v1339 = vpop.f32.mrf.mxu0
      %1340 = vdwg.mxu0
      %v1341 = vadd.f32 %v1059, %v1311
      %v1342 = vadd.f32 %v1060, %v1314
      %v1343 = vadd.f32 %v1061, %v1319
      %v1344 = vadd.f32 %v1062, %v1322
      %v1345 = vadd.f32 %v1063, %v1327
      %v1346 = vadd.f32 %v1064, %v1330
      %v1347 = vadd.f32 %v1065, %v1335
      %v1348 = vadd.f32 %v1066, %v1338
      %v1349 = vld [vmem:[%s896] sm:$0xe]
      %v1350 = vld [vmem:[%s896 + $0x8] sm:$0xe]
      %v1351 = vld [vmem:[%s896 + $0x10] sm:$0xe]
      %v1352 = vld [vmem:[%s896 + $0x18] sm:$0xe]
      %v1353 = vld [vmem:[%s896 + $0x20] sm:$0xe]
      %v1354 = vld [vmem:[%s896 + $0x28] sm:$0xe]
      %v1355 = vld [vmem:[%s896 + $0x30] sm:$0xe]
      %v1356 = vld [vmem:[%s896 + $0x38] sm:$0xe]
      %v1373 = vrot.slane %v1349, 5
      %v1374 = vrot.slane %v1373, 4
      %v1375 = vrot.slane %v1068, 5
      %v1376 = vsel %vm709, %v1374, %v1375
      %v1377 = vrot.slane %v1350, 5
      %v1378 = vrot.slane %v1377, 4
      %v1379 = vrot.slane %v1070, 5
      %v1380 = vsel %vm709, %v1378, %v1379
      %v1381 = vrot.slane %v1351, 5
      %v1382 = vrot.slane %v1381, 4
      %v1383 = vrot.slane %v1072, 5
      %v1384 = vsel %vm709, %v1382, %v1383
      %v1385 = vrot.slane %v1352, 5
      %v1386 = vrot.slane %v1385, 4
      %v1387 = vrot.slane %v1074, 5
      %v1388 = vsel %vm709, %v1386, %v1387
      %v1389 = vrot.slane %v1353, 5
      %v1390 = vrot.slane %v1389, 4
      %v1391 = vrot.slane %v1076, 5
      %v1392 = vsel %vm709, %v1390, %v1391
      %v1393 = vrot.slane %v1354, 5
      %v1394 = vrot.slane %v1393, 4
      %v1395 = vrot.slane %v1078, 5
      %v1396 = vsel %vm709, %v1394, %v1395
      %v1397 = vrot.slane %v1355, 5
      %v1398 = vrot.slane %v1397, 4
      %v1399 = vrot.slane %v1080, 5
      %v1400 = vsel %vm709, %v1398, %v1399
      %v1401 = vrot.slane %v1356, 5
      %v1402 = vrot.slane %v1401, 4
      %v1403 = vrot.slane %v1082, 5
      %v1404 = vsel %vm709, %v1402, %v1403
      %s1405 = scalar_lea.vmem %s1, 320
      %v1406 = vld [vmem:[%s1405] sm:$0xf]
      %v1407 = vld [vmem:[%s1405 + $0x4] sm:$0xf]
      %v1408 = vld [vmem:[%s1405 + $0x8] sm:$0xf]
      %v1409 = vld [vmem:[%s1405 + $0xc] sm:$0xf]
      %v1410 = vld [vmem:[%s1405 + $0x10] sm:$0xf]
      %v1411 = vld [vmem:[%s1405 + $0x14] sm:$0xf]
      %v1412 = vld [vmem:[%s1405 + $0x18] sm:$0xf]
      %v1413 = vld [vmem:[%s1405 + $0x1c] sm:$0xf]
      %v1414 = vld [vmem:[%s1405 + $0x20] sm:$0xf]
      %v1415 = vld [vmem:[%s1405 + $0x24] sm:$0xf]
      %v1416 = vld [vmem:[%s1405 + $0x28] sm:$0xf]
      %v1417 = vld [vmem:[%s1405 + $0x2c] sm:$0xf]
      %v1418 = vld [vmem:[%s1405 + $0x30] sm:$0xf]
      %v1419 = vld [vmem:[%s1405 + $0x34] sm:$0xf]
      %v1420 = vld [vmem:[%s1405 + $0x38] sm:$0xf]
      %v1421 = vld [vmem:[%s1405 + $0x3c] sm:$0xf]
      %v1422 = vunpack.c.l.b16 %v1376
      %v1423 = vunpack.c.l.b16 %v1380
      %v1424 = vunpack.c.l.b16 %v1384
      %v1425 = vunpack.c.l.b16 %v1388
      %v1426 = vunpack.c.l.b16 %v1392
      %v1427 = vunpack.c.l.b16 %v1396
      %v1428 = vunpack.c.l.b16 %v1400
      %v1429 = vunpack.c.l.b16 %v1404
      %v1430 = vpack.c.b16 %v1423, %v1422
      %v1431 = vpack.c.b16 %v1425, %v1424
      %v1432 = vpack.c.b16 %v1427, %v1426
      %v1433 = vpack.c.b16 %v1429, %v1428
      %v1454 = vunpack.c.l.b16 %v1406
      %v1455 = vunpack.c.l.b16 %v1407
      %v1456 = vunpack.c.l.b16 %v1408
      %v1457 = vunpack.c.l.b16 %v1409
      %v1458 = vunpack.c.l.b16 %v1410
      %v1459 = vunpack.c.l.b16 %v1411
      %v1460 = vunpack.c.l.b16 %v1412
      %v1461 = vunpack.c.l.b16 %v1413
      %v1462 = vunpack.c.l.b16 %v1414
      %v1463 = vunpack.c.l.b16 %v1415
      %v1464 = vunpack.c.l.b16 %v1416
      %v1465 = vunpack.c.l.b16 %v1417
      %v1466 = vunpack.c.l.b16 %v1418
      %v1467 = vunpack.c.l.b16 %v1419
      %v1468 = vunpack.c.l.b16 %v1420
      %v1469 = vunpack.c.l.b16 %v1421
      %v1470 = vpack.c.b16 %v1455, %v1454
      %v1471 = vpack.c.b16 %v1457, %v1456
      %v1472 = vpack.c.b16 %v1459, %v1458
      %v1473 = vpack.c.b16 %v1461, %v1460
      %v1474 = vpack.c.b16 %v1463, %v1462
      %v1475 = vpack.c.b16 %v1465, %v1464
      %v1476 = vpack.c.b16 %v1467, %v1466
      %v1477 = vpack.c.b16 %v1469, %v1468
      %1486 = vmatprep.subr.bf16.mxu0 0
      %1487 = vmatpush1.bf16.msra.mxu0 %v1477
      %1488 = vmatprep.subr.bf16.mxu0 0
      %1489 = vmatpush1.bf16.msra.mxu0 %v1476
      %1490 = vmatprep.subr.bf16.mxu0 0
      %1491 = vmatpush1.bf16.msra.mxu0 %v1475
      %1492 = vmatprep.subr.bf16.mxu0 0
      %1493 = vmatpush1.bf16.msra.mxu0 %v1474
      %1494 = vmatprep.subr.bf16.mxu0 0
      %1495 = vmatpush1.bf16.msra.mxu0 %v1473
      %1496 = vmatprep.subr.bf16.mxu0 0
      %1497 = vmatpush1.bf16.msra.mxu0 %v1472
      %1498 = vmatprep.subr.bf16.mxu0 0
      %1499 = vmatpush1.bf16.msra.mxu0 %v1471
      %1500 = vmatprep.subr.bf16.mxu0 0
      %1501 = vmatpush1.bf16.msra.mxu0 %v1470
      %1502 = vmatprep.subr.bf16.mxu0 0
      %1503 = vmatpush2.bf16.msra.mxu0 0
      %1504 = vmatprep.subr.bf16.mxu0 0
      %1505 = vmatpush2.bf16.msra.mxu0 0
      %1506 = vmatprep.subr.bf16.mxu0 0
      %1507 = vmatpush2.bf16.msra.mxu0 0
      %1508 = vmatprep.subr.bf16.mxu0 0
      %1509 = vmatpush2.bf16.msra.mxu0 0
      %1510 = vmatprep.subr.bf16.mxu0 0
      %1511 = vmatpush2.bf16.msra.mxu0 0
      %1512 = vmatprep.subr.bf16.mxu0 0
      %1513 = vmatpush2.bf16.msra.mxu0 0
      %1514 = vmatprep.subr.bf16.mxu0 0
      %1515 = vmatpush2.bf16.msra.mxu0 0
      %1516 = vmatprep.subr.bf16.mxu0 0
      %1517 = vmatpush2.bf16.msra.mxu0 0
      %1518 = vmatprep.mubr.bf16.mxu0 0
      %1519 = vmatmul.mubr.bf16.gmra.mxu0 %v1430
      %v1520 = vpop.f32.mrf.mxu0
      %v1521 = vadd.f32 0.0, %v1520
      %v1522 = vpop.f32.mrf.mxu0
      %v1523 = vpop.f32.mrf.mxu0
      %v1524 = vadd.f32 0.0, %v1523
      %v1525 = vpop.f32.mrf.mxu0
      %1526 = vmatprep.mubr.bf16.mxu0 0
      %1527 = vmatmul.mubr.bf16.gmra.mxu0 %v1431
      %v1528 = vpop.f32.mrf.mxu0
      %v1529 = vadd.f32 0.0, %v1528
      %v1530 = vpop.f32.mrf.mxu0
      %v1531 = vpop.f32.mrf.mxu0
      %v1532 = vadd.f32 0.0, %v1531
      %v1533 = vpop.f32.mrf.mxu0
      %1534 = vmatprep.mubr.bf16.mxu0 0
      %1535 = vmatmul.mubr.bf16.gmra.mxu0 %v1432
      %v1536 = vpop.f32.mrf.mxu0
      %v1537 = vadd.f32 0.0, %v1536
      %v1538 = vpop.f32.mrf.mxu0
      %v1539 = vpop.f32.mrf.mxu0
      %v1540 = vadd.f32 0.0, %v1539
      %v1541 = vpop.f32.mrf.mxu0
      %1542 = vmatprep.mubr.bf16.mxu0 0
      %1543 = vmatmul.mubr.bf16.gmra.mxu0 %v1433
      %v1544 = vpop.f32.mrf.mxu0
      %v1545 = vadd.f32 0.0, %v1544
      %v1546 = vpop.f32.mrf.mxu0
      %v1547 = vpop.f32.mrf.mxu0
      %v1548 = vadd.f32 0.0, %v1547
      %v1549 = vpop.f32.mrf.mxu0
      %1550 = vdwg.mxu0
      %v1551 = vadd.f32 %v1341, %v1521
      %v1552 = vadd.f32 %v1342, %v1524
      %v1553 = vadd.f32 %v1343, %v1529
      %v1554 = vadd.f32 %v1344, %v1532
      %v1555 = vadd.f32 %v1345, %v1537
      %v1556 = vadd.f32 %v1346, %v1540
      %v1557 = vadd.f32 %v1347, %v1545
      %v1558 = vadd.f32 %v1348, %v1548
      %s1559 = scalar_lea.vmem %s246, 16
      %v1560 = vld [vmem:[%s1559] sm:$0xf]
      %v1561 = vld [vmem:[%s1559 + $0x8] sm:$0xf]
      %v1562 = vld [vmem:[%s1559 + $0x10] sm:$0xf]
      %v1563 = vld [vmem:[%s1559 + $0x18] sm:$0xf]
      %v1564 = vld [vmem:[%s1559 + $0x20] sm:$0xf]
      %v1565 = vld [vmem:[%s1559 + $0x28] sm:$0xf]
      %v1566 = vld [vmem:[%s1559 + $0x30] sm:$0xf]
      %v1567 = vld [vmem:[%s1559 + $0x38] sm:$0xf]
      %s1568 = scalar_lea.vmem %s1, 384
      %v1569 = vld [vmem:[%s1568] sm:$0xf]
      %v1570 = vld [vmem:[%s1568 + $0x4] sm:$0xf]
      %v1571 = vld [vmem:[%s1568 + $0x8] sm:$0xf]
      %v1572 = vld [vmem:[%s1568 + $0xc] sm:$0xf]
      %v1573 = vld [vmem:[%s1568 + $0x10] sm:$0xf]
      %v1574 = vld [vmem:[%s1568 + $0x14] sm:$0xf]
      %v1575 = vld [vmem:[%s1568 + $0x18] sm:$0xf]
      %v1576 = vld [vmem:[%s1568 + $0x1c] sm:$0xf]
      %v1577 = vld [vmem:[%s1568 + $0x20] sm:$0xf]
      %v1578 = vld [vmem:[%s1568 + $0x24] sm:$0xf]
      %v1579 = vld [vmem:[%s1568 + $0x28] sm:$0xf]
      %v1580 = vld [vmem:[%s1568 + $0x2c] sm:$0xf]
      %v1581 = vld [vmem:[%s1568 + $0x30] sm:$0xf]
      %v1582 = vld [vmem:[%s1568 + $0x34] sm:$0xf]
      %v1583 = vld [vmem:[%s1568 + $0x38] sm:$0xf]
      %v1584 = vld [vmem:[%s1568 + $0x3c] sm:$0xf]
      %v1593 = vunpack.c.l.b16 %v1560
      %v1594 = vunpack.c.l.b16 %v1561
      %v1595 = vunpack.c.l.b16 %v1562
      %v1596 = vunpack.c.l.b16 %v1563
      %v1597 = vunpack.c.l.b16 %v1564
      %v1598 = vunpack.c.l.b16 %v1565
      %v1599 = vunpack.c.l.b16 %v1566
      %v1600 = vunpack.c.l.b16 %v1567
      %v1601 = vpack.c.b16 %v1594, %v1593
      %v1602 = vpack.c.b16 %v1596, %v1595
      %v1603 = vpack.c.b16 %v1598, %v1597
      %v1604 = vpack.c.b16 %v1600, %v1599
      %v1625 = vunpack.c.l.b16 %v1569
      %v1626 = vunpack.c.l.b16 %v1570
      %v1627 = vunpack.c.l.b16 %v1571
      %v1628 = vunpack.c.l.b16 %v1572
      %v1629 = vunpack.c.l.b16 %v1573
      %v1630 = vunpack.c.l.b16 %v1574
      %v1631 = vunpack.c.l.b16 %v1575
      %v1632 = vunpack.c.l.b16 %v1576
      %v1633 = vunpack.c.l.b16 %v1577
      %v1634 = vunpack.c.l.b16 %v1578
      %v1635 = vunpack.c.l.b16 %v1579
      %v1636 = vunpack.c.l.b16 %v1580
      %v1637 = vunpack.c.l.b16 %v1581
      %v1638 = vunpack.c.l.b16 %v1582
      %v1639 = vunpack.c.l.b16 %v1583
      %v1640 = vunpack.c.l.b16 %v1584
      %v1641 = vpack.c.b16 %v1626, %v1625
      %v1642 = vpack.c.b16 %v1628, %v1627
      %v1643 = vpack.c.b16 %v1630, %v1629
      %v1644 = vpack.c.b16 %v1632, %v1631
      %v1645 = vpack.c.b16 %v1634, %v1633
      %v1646 = vpack.c.b16 %v1636, %v1635
      %v1647 = vpack.c.b16 %v1638, %v1637
      %v1648 = vpack.c.b16 %v1640, %v1639
      %1657 = vmatprep.subr.bf16.mxu0 0
      %1658 = vmatpush1.bf16.msra.mxu0 %v1648
      %1659 = vmatprep.subr.bf16.mxu0 0
      %1660 = vmatpush1.bf16.msra.mxu0 %v1647
      %1661 = vmatprep.subr.bf16.mxu0 0
      %1662 = vmatpush1.bf16.msra.mxu0 %v1646
      %1663 = vmatprep.subr.bf16.mxu0 0
      %1664 = vmatpush1.bf16.msra.mxu0 %v1645
      %1665 = vmatprep.subr.bf16.mxu0 0
      %1666 = vmatpush1.bf16.msra.mxu0 %v1644
      %1667 = vmatprep.subr.bf16.mxu0 0
      %1668 = vmatpush1.bf16.msra.mxu0 %v1643
      %1669 = vmatprep.subr.bf16.mxu0 0
      %1670 = vmatpush1.bf16.msra.mxu0 %v1642
      %1671 = vmatprep.subr.bf16.mxu0 0
      %1672 = vmatpush1.bf16.msra.mxu0 %v1641
      %1673 = vmatprep.subr.bf16.mxu0 0
      %1674 = vmatpush2.bf16.msra.mxu0 0
      %1675 = vmatprep.subr.bf16.mxu0 0
      %1676 = vmatpush2.bf16.msra.mxu0 0
      %1677 = vmatprep.subr.bf16.mxu0 0
      %1678 = vmatpush2.bf16.msra.mxu0 0
      %1679 = vmatprep.subr.bf16.mxu0 0
      %1680 = vmatpush2.bf16.msra.mxu0 0
      %1681 = vmatprep.subr.bf16.mxu0 0
      %1682 = vmatpush2.bf16.msra.mxu0 0
      %1683 = vmatprep.subr.bf16.mxu0 0
      %1684 = vmatpush2.bf16.msra.mxu0 0
      %1685 = vmatprep.subr.bf16.mxu0 0
      %1686 = vmatpush2.bf16.msra.mxu0 0
      %1687 = vmatprep.subr.bf16.mxu0 0
      %1688 = vmatpush2.bf16.msra.mxu0 0
      %1689 = vmatprep.mubr.bf16.mxu0 0
      %1690 = vmatmul.mubr.bf16.gmra.mxu0 %v1601
      %v1691 = vpop.f32.mrf.mxu0
      %v1692 = vadd.f32 0.0, %v1691
      %v1693 = vpop.f32.mrf.mxu0
      %v1694 = vpop.f32.mrf.mxu0
      %v1695 = vadd.f32 0.0, %v1694
      %v1696 = vpop.f32.mrf.mxu0
      %1697 = vmatprep.mubr.bf16.mxu0 0
      %1698 = vmatmul.mubr.bf16.gmra.mxu0 %v1602
      %v1699 = vpop.f32.mrf.mxu0
      %v1700 = vadd.f32 0.0, %v1699
      %v1701 = vpop.f32.mrf.mxu0
      %v1702 = vpop.f32.mrf.mxu0
      %v1703 = vadd.f32 0.0, %v1702
      %v1704 = vpop.f32.mrf.mxu0
      %1705 = vmatprep.mubr.bf16.mxu0 0
      %1706 = vmatmul.mubr.bf16.gmra.mxu0 %v1603
      %v1707 = vpop.f32.mrf.mxu0
      %v1708 = vadd.f32 0.0, %v1707
      %v1709 = vpop.f32.mrf.mxu0
      %v1710 = vpop.f32.mrf.mxu0
      %v1711 = vadd.f32 0.0, %v1710
      %v1712 = vpop.f32.mrf.mxu0
      %1713 = vmatprep.mubr.bf16.mxu0 0
      %1714 = vmatmul.mubr.bf16.gmra.mxu0 %v1604
      %v1715 = vpop.f32.mrf.mxu0
      %v1716 = vadd.f32 0.0, %v1715
      %v1717 = vpop.f32.mrf.mxu0
      %v1718 = vpop.f32.mrf.mxu0
      %v1719 = vadd.f32 0.0, %v1718
      %v1720 = vpop.f32.mrf.mxu0
      %1721 = vdwg.mxu0
      %v1722 = vadd.f32 %v1551, %v1692
      %v1723 = vadd.f32 %v1552, %v1695
      %v1724 = vadd.f32 %v1553, %v1700
      %v1725 = vadd.f32 %v1554, %v1703
      %v1726 = vadd.f32 %v1555, %v1708
      %v1727 = vadd.f32 %v1556, %v1711
      %v1728 = vadd.f32 %v1557, %v1716
      %v1729 = vadd.f32 %v1558, %v1719
      %v1730 = vld [vmem:[%s1559] sm:$0xf]
      %v1731 = vld [vmem:[%s1559 + $0x4] sm:$0x1]
      %v1732 = vld [vmem:[%s1559 + $0x8] sm:$0xf]
      %v1733 = vld [vmem:[%s1559 + $0xc] sm:$0x1]
      %v1734 = vld [vmem:[%s1559 + $0x10] sm:$0xf]
      %v1735 = vld [vmem:[%s1559 + $0x14] sm:$0x1]
      %v1736 = vld [vmem:[%s1559 + $0x18] sm:$0xf]
      %v1737 = vld [vmem:[%s1559 + $0x1c] sm:$0x1]
      %v1738 = vld [vmem:[%s1559 + $0x20] sm:$0xf]
      %v1739 = vld [vmem:[%s1559 + $0x24] sm:$0x1]
      %v1740 = vld [vmem:[%s1559 + $0x28] sm:$0xf]
      %v1741 = vld [vmem:[%s1559 + $0x2c] sm:$0x1]
      %v1742 = vld [vmem:[%s1559 + $0x30] sm:$0xf]
      %v1743 = vld [vmem:[%s1559 + $0x34] sm:$0x1]
      %v1744 = vld [vmem:[%s1559 + $0x38] sm:$0xf]
      %v1745 = vld [vmem:[%s1559 + $0x3c] sm:$0x1]
      %v1747 = vshrl.u32 %v1730, 16
      %v1749 = vrot.slane %v1747, 4
      %v1750 = vshll.u32 %v1730, 16
      %v1752 = vrot.slane %v1750, 5
      %v1753 = vor.u32 %v1749, %v1752
      %v1754 = vrot.slane %v1753, 4
      %v1756 = vshll.u32 %v1731, 16
      %v1758 = vrot.slane %v1756, 5
      %v1759 = vsel %vm287, %v1754, %v1758
      %v1761 = vshrl.u32 %v1732, 16
      %v1763 = vrot.slane %v1761, 4
      %v1764 = vshll.u32 %v1732, 16
      %v1766 = vrot.slane %v1764, 5
      %v1767 = vor.u32 %v1763, %v1766
      %v1768 = vrot.slane %v1767, 4
      %v1770 = vshll.u32 %v1733, 16
      %v1772 = vrot.slane %v1770, 5
      %v1773 = vsel %vm287, %v1768, %v1772
      %v1775 = vshrl.u32 %v1734, 16
      %v1777 = vrot.slane %v1775, 4
      %v1778 = vshll.u32 %v1734, 16
      %v1780 = vrot.slane %v1778, 5
      %v1781 = vor.u32 %v1777, %v1780
      %v1782 = vrot.slane %v1781, 4
      %v1784 = vshll.u32 %v1735, 16
      %v1786 = vrot.slane %v1784, 5
      %v1787 = vsel %vm287, %v1782, %v1786
      %v1789 = vshrl.u32 %v1736, 16
      %v1791 = vrot.slane %v1789, 4
      %v1792 = vshll.u32 %v1736, 16
      %v1794 = vrot.slane %v1792, 5
      %v1795 = vor.u32 %v1791, %v1794
      %v1796 = vrot.slane %v1795, 4
      %v1798 = vshll.u32 %v1737, 16
      %v1800 = vrot.slane %v1798, 5
      %v1801 = vsel %vm287, %v1796, %v1800
      %v1803 = vshrl.u32 %v1738, 16
      %v1805 = vrot.slane %v1803, 4
      %v1806 = vshll.u32 %v1738, 16
      %v1808 = vrot.slane %v1806, 5
      %v1809 = vor.u32 %v1805, %v1808
      %v1810 = vrot.slane %v1809, 4
      %v1812 = vshll.u32 %v1739, 16
      %v1814 = vrot.slane %v1812, 5
      %v1815 = vsel %vm287, %v1810, %v1814
      %v1817 = vshrl.u32 %v1740, 16
      %v1819 = vrot.slane %v1817, 4
      %v1820 = vshll.u32 %v1740, 16
      %v1822 = vrot.slane %v1820, 5
      %v1823 = vor.u32 %v1819, %v1822
      %v1824 = vrot.slane %v1823, 4
      %v1826 = vshll.u32 %v1741, 16
      %v1828 = vrot.slane %v1826, 5
      %v1829 = vsel %vm287, %v1824, %v1828
      %v1831 = vshrl.u32 %v1742, 16
      %v1833 = vrot.slane %v1831, 4
      %v1834 = vshll.u32 %v1742, 16
      %v1836 = vrot.slane %v1834, 5
      %v1837 = vor.u32 %v1833, %v1836
      %v1838 = vrot.slane %v1837, 4
      %v1840 = vshll.u32 %v1743, 16
      %v1842 = vrot.slane %v1840, 5
      %v1843 = vsel %vm287, %v1838, %v1842
      %v1845 = vshrl.u32 %v1744, 16
      %v1847 = vrot.slane %v1845, 4
      %v1848 = vshll.u32 %v1744, 16
      %v1850 = vrot.slane %v1848, 5
      %v1851 = vor.u32 %v1847, %v1850
      %v1852 = vrot.slane %v1851, 4
      %v1854 = vshll.u32 %v1745, 16
      %v1856 = vrot.slane %v1854, 5
      %v1857 = vsel %vm287, %v1852, %v1856
      %s1858 = scalar_lea.vmem %s1, 448
      %v1859 = vld [vmem:[%s1858] sm:$0xf]
      %v1860 = vld [vmem:[%s1858 + $0x4] sm:$0xf]
      %v1861 = vld [vmem:[%s1858 + $0x8] sm:$0xf]
      %v1862 = vld [vmem:[%s1858 + $0xc] sm:$0xf]
      %v1863 = vld [vmem:[%s1858 + $0x10] sm:$0xf]
      %v1864 = vld [vmem:[%s1858 + $0x14] sm:$0xf]
      %v1865 = vld [vmem:[%s1858 + $0x18] sm:$0xf]
      %v1866 = vld [vmem:[%s1858 + $0x1c] sm:$0xf]
      %v1867 = vld [vmem:[%s1858 + $0x20] sm:$0xf]
      %v1868 = vld [vmem:[%s1858 + $0x24] sm:$0xf]
      %v1869 = vld [vmem:[%s1858 + $0x28] sm:$0xf]
      %v1870 = vld [vmem:[%s1858 + $0x2c] sm:$0xf]
      %v1871 = vld [vmem:[%s1858 + $0x30] sm:$0xf]
      %v1872 = vld [vmem:[%s1858 + $0x34] sm:$0xf]
      %v1873 = vld [vmem:[%s1858 + $0x38] sm:$0xf]
      %v1874 = vld [vmem:[%s1858 + $0x3c] sm:$0xf]
      %v1875 = vunpack.c.l.b16 %v1759
      %v1876 = vunpack.c.l.b16 %v1773
      %v1877 = vunpack.c.l.b16 %v1787
      %v1878 = vunpack.c.l.b16 %v1801
      %v1879 = vunpack.c.l.b16 %v1815
      %v1880 = vunpack.c.l.b16 %v1829
      %v1881 = vunpack.c.l.b16 %v1843
      %v1882 = vunpack.c.l.b16 %v1857
      %v1883 = vpack.c.b16 %v1876, %v1875
      %v1884 = vpack.c.b16 %v1878, %v1877
      %v1885 = vpack.c.b16 %v1880, %v1879
      %v1886 = vpack.c.b16 %v1882, %v1881
      %v1907 = vunpack.c.l.b16 %v1859
      %v1908 = vunpack.c.l.b16 %v1860
      %v1909 = vunpack.c.l.b16 %v1861
      %v1910 = vunpack.c.l.b16 %v1862
      %v1911 = vunpack.c.l.b16 %v1863
      %v1912 = vunpack.c.l.b16 %v1864
      %v1913 = vunpack.c.l.b16 %v1865
      %v1914 = vunpack.c.l.b16 %v1866
      %v1915 = vunpack.c.l.b16 %v1867
      %v1916 = vunpack.c.l.b16 %v1868
      %v1917 = vunpack.c.l.b16 %v1869
      %v1918 = vunpack.c.l.b16 %v1870
      %v1919 = vunpack.c.l.b16 %v1871
      %v1920 = vunpack.c.l.b16 %v1872
      %v1921 = vunpack.c.l.b16 %v1873
      %v1922 = vunpack.c.l.b16 %v1874
      %v1923 = vpack.c.b16 %v1908, %v1907
      %v1924 = vpack.c.b16 %v1910, %v1909
      %v1925 = vpack.c.b16 %v1912, %v1911
      %v1926 = vpack.c.b16 %v1914, %v1913
      %v1927 = vpack.c.b16 %v1916, %v1915
      %v1928 = vpack.c.b16 %v1918, %v1917
      %v1929 = vpack.c.b16 %v1920, %v1919
      %v1930 = vpack.c.b16 %v1922, %v1921
      %1939 = vmatprep.subr.bf16.mxu0 0
      %1940 = vmatpush1.bf16.msra.mxu0 %v1930
      %1941 = vmatprep.subr.bf16.mxu0 0
      %1942 = vmatpush1.bf16.msra.mxu0 %v1929
      %1943 = vmatprep.subr.bf16.mxu0 0
      %1944 = vmatpush1.bf16.msra.mxu0 %v1928
      %1945 = vmatprep.subr.bf16.mxu0 0
      %1946 = vmatpush1.bf16.msra.mxu0 %v1927
      %1947 = vmatprep.subr.bf16.mxu0 0
      %1948 = vmatpush1.bf16.msra.mxu0 %v1926
      %1949 = vmatprep.subr.bf16.mxu0 0
      %1950 = vmatpush1.bf16.msra.mxu0 %v1925
      %1951 = vmatprep.subr.bf16.mxu0 0
      %1952 = vmatpush1.bf16.msra.mxu0 %v1924
      %1953 = vmatprep.subr.bf16.mxu0 0
      %1954 = vmatpush1.bf16.msra.mxu0 %v1923
      %1955 = vmatprep.subr.bf16.mxu0 0
      %1956 = vmatpush2.bf16.msra.mxu0 0
      %1957 = vmatprep.subr.bf16.mxu0 0
      %1958 = vmatpush2.bf16.msra.mxu0 0
      %1959 = vmatprep.subr.bf16.mxu0 0
      %1960 = vmatpush2.bf16.msra.mxu0 0
      %1961 = vmatprep.subr.bf16.mxu0 0
      %1962 = vmatpush2.bf16.msra.mxu0 0
      %1963 = vmatprep.subr.bf16.mxu0 0
      %1964 = vmatpush2.bf16.msra.mxu0 0
      %1965 = vmatprep.subr.bf16.mxu0 0
      %1966 = vmatpush2.bf16.msra.mxu0 0
      %1967 = vmatprep.subr.bf16.mxu0 0
      %1968 = vmatpush2.bf16.msra.mxu0 0
      %1969 = vmatprep.subr.bf16.mxu0 0
      %1970 = vmatpush2.bf16.msra.mxu0 0
      %1971 = vmatprep.mubr.bf16.mxu0 0
      %1972 = vmatmul.mubr.bf16.gmra.mxu0 %v1883
      %v1973 = vpop.f32.mrf.mxu0
      %v1974 = vadd.f32 0.0, %v1973
      %v1975 = vpop.f32.mrf.mxu0
      %v1976 = vpop.f32.mrf.mxu0
      %v1977 = vadd.f32 0.0, %v1976
      %v1978 = vpop.f32.mrf.mxu0
      %1979 = vmatprep.mubr.bf16.mxu0 0
      %1980 = vmatmul.mubr.bf16.gmra.mxu0 %v1884
      %v1981 = vpop.f32.mrf.mxu0
      %v1982 = vadd.f32 0.0, %v1981
      %v1983 = vpop.f32.mrf.mxu0
      %v1984 = vpop.f32.mrf.mxu0
      %v1985 = vadd.f32 0.0, %v1984
      %v1986 = vpop.f32.mrf.mxu0
      %1987 = vmatprep.mubr.bf16.mxu0 0
      %1988 = vmatmul.mubr.bf16.gmra.mxu0 %v1885
      %v1989 = vpop.f32.mrf.mxu0
      %v1990 = vadd.f32 0.0, %v1989
      %v1991 = vpop.f32.mrf.mxu0
      %v1992 = vpop.f32.mrf.mxu0
      %v1993 = vadd.f32 0.0, %v1992
      %v1994 = vpop.f32.mrf.mxu0
      %1995 = vmatprep.mubr.bf16.mxu0 0
      %1996 = vmatmul.mubr.bf16.gmra.mxu0 %v1886
      %v1997 = vpop.f32.mrf.mxu0
      %v1998 = vadd.f32 0.0, %v1997
      %v1999 = vpop.f32.mrf.mxu0
      %v2000 = vpop.f32.mrf.mxu0
      %v2001 = vadd.f32 0.0, %v2000
      %v2002 = vpop.f32.mrf.mxu0
      %2003 = vdwg.mxu0
      %v2004 = vadd.f32 %v1722, %v1974
      %v2005 = vadd.f32 %v1723, %v1977
      %v2006 = vadd.f32 %v1724, %v1982
      %v2007 = vadd.f32 %v1725, %v1985
      %v2008 = vadd.f32 %v1726, %v1990
      %v2009 = vadd.f32 %v1727, %v1993
      %v2010 = vadd.f32 %v1728, %v1998
      %v2011 = vadd.f32 %v1729, %v2001
      %v2012 = vld [vmem:[%s1559] sm:$0xe]
      %v2013 = vld [vmem:[%s1559 + $0x8] sm:$0xe]
      %v2014 = vld [vmem:[%s1559 + $0x10] sm:$0xe]
      %v2015 = vld [vmem:[%s1559 + $0x18] sm:$0xe]
      %v2016 = vld [vmem:[%s1559 + $0x20] sm:$0xe]
      %v2017 = vld [vmem:[%s1559 + $0x28] sm:$0xe]
      %v2018 = vld [vmem:[%s1559 + $0x30] sm:$0xe]
      %v2019 = vld [vmem:[%s1559 + $0x38] sm:$0xe]
      %v2036 = vrot.slane %v2012, 5
      %v2037 = vrot.slane %v2036, 4
      %v2038 = vrot.slane %v1731, 5
      %v2039 = vsel %vm709, %v2037, %v2038
      %v2040 = vrot.slane %v2013, 5
      %v2041 = vrot.slane %v2040, 4
      %v2042 = vrot.slane %v1733, 5
      %v2043 = vsel %vm709, %v2041, %v2042
      %v2044 = vrot.slane %v2014, 5
      %v2045 = vrot.slane %v2044, 4
      %v2046 = vrot.slane %v1735, 5
      %v2047 = vsel %vm709, %v2045, %v2046
      %v2048 = vrot.slane %v2015, 5
      %v2049 = vrot.slane %v2048, 4
      %v2050 = vrot.slane %v1737, 5
      %v2051 = vsel %vm709, %v2049, %v2050
      %v2052 = vrot.slane %v2016, 5
      %v2053 = vrot.slane %v2052, 4
      %v2054 = vrot.slane %v1739, 5
      %v2055 = vsel %vm709, %v2053, %v2054
      %v2056 = vrot.slane %v2017, 5
      %v2057 = vrot.slane %v2056, 4
      %v2058 = vrot.slane %v1741, 5
      %v2059 = vsel %vm709, %v2057, %v2058
      %v2060 = vrot.slane %v2018, 5
      %v2061 = vrot.slane %v2060, 4
      %v2062 = vrot.slane %v1743, 5
      %v2063 = vsel %vm709, %v2061, %v2062
      %v2064 = vrot.slane %v2019, 5
      %v2065 = vrot.slane %v2064, 4
      %v2066 = vrot.slane %v1745, 5
      %v2067 = vsel %vm709, %v2065, %v2066
      %s2068 = scalar_lea.vmem %s1, 512
      %v2069 = vld [vmem:[%s2068] sm:$0xf]
      %v2070 = vld [vmem:[%s2068 + $0x4] sm:$0xf]
      %v2071 = vld [vmem:[%s2068 + $0x8] sm:$0xf]
      %v2072 = vld [vmem:[%s2068 + $0xc] sm:$0xf]
      %v2073 = vld [vmem:[%s2068 + $0x10] sm:$0xf]
      %v2074 = vld [vmem:[%s2068 + $0x14] sm:$0xf]
      %v2075 = vld [vmem:[%s2068 + $0x18] sm:$0xf]
      %v2076 = vld [vmem:[%s2068 + $0x1c] sm:$0xf]
      %v2077 = vld [vmem:[%s2068 + $0x20] sm:$0xf]
      %v2078 = vld [vmem:[%s2068 + $0x24] sm:$0xf]
      %v2079 = vld [vmem:[%s2068 + $0x28] sm:$0xf]
      %v2080 = vld [vmem:[%s2068 + $0x2c] sm:$0xf]
      %v2081 = vld [vmem:[%s2068 + $0x30] sm:$0xf]
      %v2082 = vld [vmem:[%s2068 + $0x34] sm:$0xf]
      %v2083 = vld [vmem:[%s2068 + $0x38] sm:$0xf]
      %v2084 = vld [vmem:[%s2068 + $0x3c] sm:$0xf]
      %v2085 = vunpack.c.l.b16 %v2039
      %v2086 = vunpack.c.l.b16 %v2043
      %v2087 = vunpack.c.l.b16 %v2047
      %v2088 = vunpack.c.l.b16 %v2051
      %v2089 = vunpack.c.l.b16 %v2055
      %v2090 = vunpack.c.l.b16 %v2059
      %v2091 = vunpack.c.l.b16 %v2063
      %v2092 = vunpack.c.l.b16 %v2067
      %v2093 = vpack.c.b16 %v2086, %v2085
      %v2094 = vpack.c.b16 %v2088, %v2087
      %v2095 = vpack.c.b16 %v2090, %v2089
      %v2096 = vpack.c.b16 %v2092, %v2091
      %v2117 = vunpack.c.l.b16 %v2069
      %v2118 = vunpack.c.l.b16 %v2070
      %v2119 = vunpack.c.l.b16 %v2071
      %v2120 = vunpack.c.l.b16 %v2072
      %v2121 = vunpack.c.l.b16 %v2073
      %v2122 = vunpack.c.l.b16 %v2074
      %v2123 = vunpack.c.l.b16 %v2075
      %v2124 = vunpack.c.l.b16 %v2076
      %v2125 = vunpack.c.l.b16 %v2077
      %v2126 = vunpack.c.l.b16 %v2078
      %v2127 = vunpack.c.l.b16 %v2079
      %v2128 = vunpack.c.l.b16 %v2080
      %v2129 = vunpack.c.l.b16 %v2081
      %v2130 = vunpack.c.l.b16 %v2082
      %v2131 = vunpack.c.l.b16 %v2083
      %v2132 = vunpack.c.l.b16 %v2084
      %v2133 = vpack.c.b16 %v2118, %v2117
      %v2134 = vpack.c.b16 %v2120, %v2119
      %v2135 = vpack.c.b16 %v2122, %v2121
      %v2136 = vpack.c.b16 %v2124, %v2123
      %v2137 = vpack.c.b16 %v2126, %v2125
      %v2138 = vpack.c.b16 %v2128, %v2127
      %v2139 = vpack.c.b16 %v2130, %v2129
      %v2140 = vpack.c.b16 %v2132, %v2131
      %2149 = vmatprep.subr.bf16.mxu0 0
      %2150 = vmatpush1.bf16.msra.mxu0 %v2140
      %2151 = vmatprep.subr.bf16.mxu0 0
      %2152 = vmatpush1.bf16.msra.mxu0 %v2139
      %2153 = vmatprep.subr.bf16.mxu0 0
      %2154 = vmatpush1.bf16.msra.mxu0 %v2138
      %2155 = vmatprep.subr.bf16.mxu0 0
      %2156 = vmatpush1.bf16.msra.mxu0 %v2137
      %2157 = vmatprep.subr.bf16.mxu0 0
      %2158 = vmatpush1.bf16.msra.mxu0 %v2136
      %2159 = vmatprep.subr.bf16.mxu0 0
      %2160 = vmatpush1.bf16.msra.mxu0 %v2135
      %2161 = vmatprep.subr.bf16.mxu0 0
      %2162 = vmatpush1.bf16.msra.mxu0 %v2134
      %2163 = vmatprep.subr.bf16.mxu0 0
      %2164 = vmatpush1.bf16.msra.mxu0 %v2133
      %2165 = vmatprep.subr.bf16.mxu0 0
      %2166 = vmatpush2.bf16.msra.mxu0 0
      %2167 = vmatprep.subr.bf16.mxu0 0
      %2168 = vmatpush2.bf16.msra.mxu0 0
      %2169 = vmatprep.subr.bf16.mxu0 0
      %2170 = vmatpush2.bf16.msra.mxu0 0
      %2171 = vmatprep.subr.bf16.mxu0 0
      %2172 = vmatpush2.bf16.msra.mxu0 0
      %2173 = vmatprep.subr.bf16.mxu0 0
      %2174 = vmatpush2.bf16.msra.mxu0 0
      %2175 = vmatprep.subr.bf16.mxu0 0
      %2176 = vmatpush2.bf16.msra.mxu0 0
      %2177 = vmatprep.subr.bf16.mxu0 0
      %2178 = vmatpush2.bf16.msra.mxu0 0
      %2179 = vmatprep.subr.bf16.mxu0 0
      %2180 = vmatpush2.bf16.msra.mxu0 0
      %2181 = vmatprep.mubr.bf16.mxu0 0
      %2182 = vmatmul.mubr.bf16.gmra.mxu0 %v2093
      %v2183 = vpop.f32.mrf.mxu0
      %v2184 = vadd.f32 0.0, %v2183
      %v2185 = vpop.f32.mrf.mxu0
      %v2186 = vpop.f32.mrf.mxu0
      %v2187 = vadd.f32 0.0, %v2186
      %v2188 = vpop.f32.mrf.mxu0
      %2189 = vmatprep.mubr.bf16.mxu0 0
      %2190 = vmatmul.mubr.bf16.gmra.mxu0 %v2094
      %v2191 = vpop.f32.mrf.mxu0
      %v2192 = vadd.f32 0.0, %v2191
      %v2193 = vpop.f32.mrf.mxu0
      %v2194 = vpop.f32.mrf.mxu0
      %v2195 = vadd.f32 0.0, %v2194
      %v2196 = vpop.f32.mrf.mxu0
      %2197 = vmatprep.mubr.bf16.mxu0 0
      %2198 = vmatmul.mubr.bf16.gmra.mxu0 %v2095
      %v2199 = vpop.f32.mrf.mxu0
      %v2200 = vadd.f32 0.0, %v2199
      %v2201 = vpop.f32.mrf.mxu0
      %v2202 = vpop.f32.mrf.mxu0
      %v2203 = vadd.f32 0.0, %v2202
      %v2204 = vpop.f32.mrf.mxu0
      %2205 = vmatprep.mubr.bf16.mxu0 0
      %2206 = vmatmul.mubr.bf16.gmra.mxu0 %v2096
      %v2207 = vpop.f32.mrf.mxu0
      %v2208 = vadd.f32 0.0, %v2207
      %v2209 = vpop.f32.mrf.mxu0
      %v2210 = vpop.f32.mrf.mxu0
      %v2211 = vadd.f32 0.0, %v2210
      %v2212 = vpop.f32.mrf.mxu0
      %2213 = vdwg.mxu0
      %v2214 = vadd.f32 %v2004, %v2184
      %v2215 = vadd.f32 %v2005, %v2187
      %v2216 = vadd.f32 %v2006, %v2192
      %v2217 = vadd.f32 %v2007, %v2195
      %v2218 = vadd.f32 %v2008, %v2200
      %v2219 = vadd.f32 %v2009, %v2203
      %v2220 = vadd.f32 %v2010, %v2208
      %v2221 = vadd.f32 %v2011, %v2211
      %v2222 = vld [vmem:[%s2] sm:$0x1]
      %v2223 = vld [vmem:[%s3] sm:$0x1]
      %v2224 = vld [vmem:[%s4] sm:$0xff]
      %v2225 = vld [vmem:[%s4 + $0x8] sm:$0xff]
      %v2226 = vld [vmem:[%s4 + $0x10] sm:$0xff]
      %v2227 = vld [vmem:[%s4 + $0x18] sm:$0xff]
      %v2228 = vld [vmem:[%s4 + $0x20] sm:$0xff]
      %v2229 = vld [vmem:[%s4 + $0x28] sm:$0xff]
      %v2230 = vld [vmem:[%s4 + $0x30] sm:$0xff]
      %v2231 = vld [vmem:[%s4 + $0x38] sm:$0xff]
      %v2232 = vld [vmem:[%s4 + $0x40] sm:$0xff]
      %v2233 = vld [vmem:[%s4 + $0x48] sm:$0xff]
      %v2234 = vld [vmem:[%s4 + $0x50] sm:$0xff]
      %v2235 = vld [vmem:[%s4 + $0x58] sm:$0xff]
      %v2236 = vld [vmem:[%s4 + $0x60] sm:$0xff]
      %v2237 = vld [vmem:[%s4 + $0x68] sm:$0xff]
      %v2238 = vld [vmem:[%s4 + $0x70] sm:$0xff]
      %v2239 = vld [vmem:[%s4 + $0x78] sm:$0xff]
      %v2240 = vld [vmem:[%s5] sm:$0xff]
      %v2241 = vld [vmem:[%s5 + $0x8] sm:$0xff]
      %v2242 = vld [vmem:[%s5 + $0x10] sm:$0xff]
      %v2243 = vld [vmem:[%s5 + $0x18] sm:$0xff]
      %v2244 = vld [vmem:[%s5 + $0x20] sm:$0xff]
      %v2245 = vld [vmem:[%s5 + $0x28] sm:$0xff]
      %v2246 = vld [vmem:[%s5 + $0x30] sm:$0xff]
      %v2247 = vld [vmem:[%s5 + $0x38] sm:$0xff]
      %v2248 = vld [vmem:[%s5 + $0x40] sm:$0xff]
      %v2249 = vld [vmem:[%s5 + $0x48] sm:$0xff]
      %v2250 = vld [vmem:[%s5 + $0x50] sm:$0xff]
      %v2251 = vld [vmem:[%s5 + $0x58] sm:$0xff]
      %v2252 = vld [vmem:[%s5 + $0x60] sm:$0xff]
      %v2253 = vld [vmem:[%s5 + $0x68] sm:$0xff]
      %v2254 = vld [vmem:[%s5 + $0x70] sm:$0xff]
      %v2255 = vld [vmem:[%s5 + $0x78] sm:$0xff]
      %v2256 = vadd.f32 %v2214, %v2215
      %v2257 = vadd.f32 %v2256, %v2216
      %v2258 = vadd.f32 %v2257, %v2217
      %v2259 = vadd.f32 %v2258, %v2218
      %v2260 = vadd.f32 %v2259, %v2219
      %v2261 = vadd.f32 %v2260, %v2220
      %v2262 = vadd.f32 %v2261, %v2221
      %v2263 = vrot.slane %v2262, 4
      %v2264 = vadd.f32 %v2262, %v2263
      %v2265 = vrot.slane %v2264, 2
      %v2266 = vadd.f32 %v2264, %v2265
      %v2267 = vrot.slane %v2266, 1
      %v2268 = vadd.f32 %v2266, %v2267
      %v2269 = vmul.f32 %v2214, %v2214
      %v2270 = vmul.f32 %v2215, %v2215
      %v2271 = vmul.f32 %v2216, %v2216
      %v2272 = vmul.f32 %v2217, %v2217
      %v2273 = vmul.f32 %v2218, %v2218
      %v2274 = vmul.f32 %v2219, %v2219
      %v2275 = vmul.f32 %v2220, %v2220
      %v2276 = vmul.f32 %v2221, %v2221
      %v2277 = vadd.f32 %v2269, %v2270
      %v2278 = vadd.f32 %v2277, %v2271
      %v2279 = vadd.f32 %v2278, %v2272
      %v2280 = vadd.f32 %v2279, %v2273
      %v2281 = vadd.f32 %v2280, %v2274
      %v2282 = vadd.f32 %v2281, %v2275
      %v2283 = vadd.f32 %v2282, %v2276
      %v2284 = vrot.slane %v2283, 4
      %v2285 = vadd.f32 %v2283, %v2284
      %v2286 = vrot.slane %v2285, 2
      %v2287 = vadd.f32 %v2285, %v2286
      %v2288 = vrot.slane %v2287, 1
      %v2289 = vadd.f32 %v2287, %v2288
      %2290 = vmatprep.subr.mxu0 0.0
      %2291 = vmatpush1.msra.mxu0 %v2239
      %2292 = vmatprep.subr.mxu0 0.0
      %2293 = vmatpush1.msra.mxu0 %v2238
      %2294 = vmatprep.subr.mxu0 0.0
      %2295 = vmatpush1.msra.mxu0 %v2237
      %2296 = vmatprep.subr.mxu0 0.0
      %2297 = vmatpush1.msra.mxu0 %v2236
      %2298 = vmatprep.subr.mxu0 0.0
      %2299 = vmatpush1.msra.mxu0 %v2235
      %2300 = vmatprep.subr.mxu0 0.0
      %2301 = vmatpush1.msra.mxu0 %v2234
      %2302 = vmatprep.subr.mxu0 0.0
      %2303 = vmatpush1.msra.mxu0 %v2233
      %2304 = vmatprep.subr.mxu0 0.0
      %2305 = vmatpush1.msra.mxu0 %v2232
      %2306 = vmatprep.subr.mxu0 0.0
      %2307 = vmatpush1.msra.mxu0 %v2231
      %2308 = vmatprep.subr.mxu0 0.0
      %2309 = vmatpush1.msra.mxu0 %v2230
      %2310 = vmatprep.subr.mxu0 0.0
      %2311 = vmatpush1.msra.mxu0 %v2229
      %2312 = vmatprep.subr.mxu0 0.0
      %2313 = vmatpush1.msra.mxu0 %v2228
      %2314 = vmatprep.subr.mxu0 0.0
      %2315 = vmatpush1.msra.mxu0 %v2227
      %2316 = vmatprep.subr.mxu0 0.0
      %2317 = vmatpush1.msra.mxu0 %v2226
      %2318 = vmatprep.subr.mxu0 0.0
      %2319 = vmatpush1.msra.mxu0 %v2225
      %2320 = vmatprep.subr.mxu0 0.0
      %2321 = vmatpush1.msra.mxu0 %v2224
      %2322 = vmatprep.subr.mxu0 0.0
      %2323 = vmatpush2.msra.mxu0 0.0
      %2324 = vmatprep.subr.mxu0 0.0
      %2325 = vmatpush2.msra.mxu0 0.0
      %2326 = vmatprep.subr.mxu0 0.0
      %2327 = vmatpush2.msra.mxu0 0.0
      %2328 = vmatprep.subr.mxu0 0.0
      %2329 = vmatpush2.msra.mxu0 0.0
      %2330 = vmatprep.subr.mxu0 0.0
      %2331 = vmatpush2.msra.mxu0 0.0
      %2332 = vmatprep.subr.mxu0 0.0
      %2333 = vmatpush2.msra.mxu0 0.0
      %2334 = vmatprep.subr.mxu0 0.0
      %2335 = vmatpush2.msra.mxu0 0.0
      %2336 = vmatprep.subr.mxu0 0.0
      %2337 = vmatpush2.msra.mxu0 0.0
      %2338 = vmatprep.subr.mxu0 0.0
      %2339 = vmatpush2.msra.mxu0 0.0
      %2340 = vmatprep.subr.mxu0 0.0
      %2341 = vmatpush2.msra.mxu0 0.0
      %2342 = vmatprep.subr.mxu0 0.0
      %2343 = vmatpush2.msra.mxu0 0.0
      %2344 = vmatprep.subr.mxu0 0.0
      %2345 = vmatpush2.msra.mxu0 0.0
      %2346 = vmatprep.subr.mxu0 0.0
      %2347 = vmatpush2.msra.mxu0 0.0
      %2348 = vmatprep.subr.mxu0 0.0
      %2349 = vmatpush2.msra.mxu0 0.0
      %2350 = vmatprep.subr.mxu0 0.0
      %2351 = vmatpush2.msra.mxu0 0.0
      %2352 = vmatprep.subr.mxu0 0.0
      %2353 = vmatpush2.msra.mxu0 0.0
      %2354 = vmatprep.mubr.f32.mxu0 0.0
      %2355 = vmatmul.mubr.f32.gmra.mxu0 %v2268
      %v2356 = vpop.f32.mrf.mxu0
      %v2357 = vadd.f32 0.0, %v2356
      %v2358 = vpop.f32.mrf.mxu0
      %2359 = vdwg.mxu0
      %v2360 = vmul.f32 %v2357, 0.015625
      %2361 = vmatprep.subr.mxu0 0.0
      %2362 = vmatpush1.msra.mxu0 %v2239
      %2363 = vmatprep.subr.mxu0 0.0
      %2364 = vmatpush1.msra.mxu0 %v2238
      %2365 = vmatprep.subr.mxu0 0.0
      %2366 = vmatpush1.msra.mxu0 %v2237
      %2367 = vmatprep.subr.mxu0 0.0
      %2368 = vmatpush1.msra.mxu0 %v2236
      %2369 = vmatprep.subr.mxu0 0.0
      %2370 = vmatpush1.msra.mxu0 %v2235
      %2371 = vmatprep.subr.mxu0 0.0
      %2372 = vmatpush1.msra.mxu0 %v2234
      %2373 = vmatprep.subr.mxu0 0.0
      %2374 = vmatpush1.msra.mxu0 %v2233
      %2375 = vmatprep.subr.mxu0 0.0
      %2376 = vmatpush1.msra.mxu0 %v2232
      %2377 = vmatprep.subr.mxu0 0.0
      %2378 = vmatpush1.msra.mxu0 %v2231
      %2379 = vmatprep.subr.mxu0 0.0
      %2380 = vmatpush1.msra.mxu0 %v2230
      %2381 = vmatprep.subr.mxu0 0.0
      %2382 = vmatpush1.msra.mxu0 %v2229
      %2383 = vmatprep.subr.mxu0 0.0
      %2384 = vmatpush1.msra.mxu0 %v2228
      %2385 = vmatprep.subr.mxu0 0.0
      %2386 = vmatpush1.msra.mxu0 %v2227
      %2387 = vmatprep.subr.mxu0 0.0
      %2388 = vmatpush1.msra.mxu0 %v2226
      %2389 = vmatprep.subr.mxu0 0.0
      %2390 = vmatpush1.msra.mxu0 %v2225
      %2391 = vmatprep.subr.mxu0 0.0
      %2392 = vmatpush1.msra.mxu0 %v2224
      %2393 = vmatprep.subr.mxu0 0.0
      %2394 = vmatpush2.msra.mxu0 0.0
      %2395 = vmatprep.subr.mxu0 0.0
      %2396 = vmatpush2.msra.mxu0 0.0
      %2397 = vmatprep.subr.mxu0 0.0
      %2398 = vmatpush2.msra.mxu0 0.0
      %2399 = vmatprep.subr.mxu0 0.0
      %2400 = vmatpush2.msra.mxu0 0.0
      %2401 = vmatprep.subr.mxu0 0.0
      %2402 = vmatpush2.msra.mxu0 0.0
      %2403 = vmatprep.subr.mxu0 0.0
      %2404 = vmatpush2.msra.mxu0 0.0
      %2405 = vmatprep.subr.mxu0 0.0
      %2406 = vmatpush2.msra.mxu0 0.0
      %2407 = vmatprep.subr.mxu0 0.0
      %2408 = vmatpush2.msra.mxu0 0.0
      %2409 = vmatprep.subr.mxu0 0.0
      %2410 = vmatpush2.msra.mxu0 0.0
      %2411 = vmatprep.subr.mxu0 0.0
      %2412 = vmatpush2.msra.mxu0 0.0
      %2413 = vmatprep.subr.mxu0 0.0
      %2414 = vmatpush2.msra.mxu0 0.0
      %2415 = vmatprep.subr.mxu0 0.0
      %2416 = vmatpush2.msra.mxu0 0.0
      %2417 = vmatprep.subr.mxu0 0.0
      %2418 = vmatpush2.msra.mxu0 0.0
      %2419 = vmatprep.subr.mxu0 0.0
      %2420 = vmatpush2.msra.mxu0 0.0
      %2421 = vmatprep.subr.mxu0 0.0
      %2422 = vmatpush2.msra.mxu0 0.0
      %2423 = vmatprep.subr.mxu0 0.0
      %2424 = vmatpush2.msra.mxu0 0.0
      %2425 = vmatprep.mubr.f32.mxu0 0.0
      %2426 = vmatmul.mubr.f32.gmra.mxu0 %v2289
      %v2427 = vpop.f32.mrf.mxu0
      %v2428 = vadd.f32 0.0, %v2427
      %v2429 = vpop.f32.mrf.mxu0
      %2430 = vdwg.mxu0
      %v2431 = vmul.f32 %v2428, 0.015625
      %v2432 = vmul.f32 %v2360, %v2360
      %v2433 = vsub.f32 %v2431, %v2432
      %v2434 = vmax.f32 %v2433, 0.0
      %v2435 = vadd.f32 %v2434, 1e-05
      %v2436 = vrsqrt.pop %v2435
      %2437 = vmatprep.subr.mxu0 0.0
      %2438 = vmatpush1.msra.mxu0 %v2255
      %2439 = vmatprep.subr.mxu0 0.0
      %2440 = vmatpush1.msra.mxu0 %v2254
      %2441 = vmatprep.subr.mxu0 0.0
      %2442 = vmatpush1.msra.mxu0 %v2253
      %2443 = vmatprep.subr.mxu0 0.0
      %2444 = vmatpush1.msra.mxu0 %v2252
      %2445 = vmatprep.subr.mxu0 0.0
      %2446 = vmatpush1.msra.mxu0 %v2251
      %2447 = vmatprep.subr.mxu0 0.0
      %2448 = vmatpush1.msra.mxu0 %v2250
      %2449 = vmatprep.subr.mxu0 0.0
      %2450 = vmatpush1.msra.mxu0 %v2249
      %2451 = vmatprep.subr.mxu0 0.0
      %2452 = vmatpush1.msra.mxu0 %v2248
      %2453 = vmatprep.subr.mxu0 0.0
      %2454 = vmatpush1.msra.mxu0 %v2247
      %2455 = vmatprep.subr.mxu0 0.0
      %2456 = vmatpush1.msra.mxu0 %v2246
      %2457 = vmatprep.subr.mxu0 0.0
      %2458 = vmatpush1.msra.mxu0 %v2245
      %2459 = vmatprep.subr.mxu0 0.0
      %2460 = vmatpush1.msra.mxu0 %v2244
      %2461 = vmatprep.subr.mxu0 0.0
      %2462 = vmatpush1.msra.mxu0 %v2243
      %2463 = vmatprep.subr.mxu0 0.0
      %2464 = vmatpush1.msra.mxu0 %v2242
      %2465 = vmatprep.subr.mxu0 0.0
      %2466 = vmatpush1.msra.mxu0 %v2241
      %2467 = vmatprep.subr.mxu0 0.0
      %2468 = vmatpush1.msra.mxu0 %v2240
      %2469 = vmatprep.subr.mxu0 0.0
      %2470 = vmatpush2.msra.mxu0 0.0
      %2471 = vmatprep.subr.mxu0 0.0
      %2472 = vmatpush2.msra.mxu0 0.0
      %2473 = vmatprep.subr.mxu0 0.0
      %2474 = vmatpush2.msra.mxu0 0.0
      %2475 = vmatprep.subr.mxu0 0.0
      %2476 = vmatpush2.msra.mxu0 0.0
      %2477 = vmatprep.subr.mxu0 0.0
      %2478 = vmatpush2.msra.mxu0 0.0
      %2479 = vmatprep.subr.mxu0 0.0
      %2480 = vmatpush2.msra.mxu0 0.0
      %2481 = vmatprep.subr.mxu0 0.0
      %2482 = vmatpush2.msra.mxu0 0.0
      %2483 = vmatprep.subr.mxu0 0.0
      %2484 = vmatpush2.msra.mxu0 0.0
      %2485 = vmatprep.subr.mxu0 0.0
      %2486 = vmatpush2.msra.mxu0 0.0
      %2487 = vmatprep.subr.mxu0 0.0
      %2488 = vmatpush2.msra.mxu0 0.0
      %2489 = vmatprep.subr.mxu0 0.0
      %2490 = vmatpush2.msra.mxu0 0.0
      %2491 = vmatprep.subr.mxu0 0.0
      %2492 = vmatpush2.msra.mxu0 0.0
      %2493 = vmatprep.subr.mxu0 0.0
      %2494 = vmatpush2.msra.mxu0 0.0
      %2495 = vmatprep.subr.mxu0 0.0
      %2496 = vmatpush2.msra.mxu0 0.0
      %2497 = vmatprep.subr.mxu0 0.0
      %2498 = vmatpush2.msra.mxu0 0.0
      %2499 = vmatprep.subr.mxu0 0.0
      %2500 = vmatpush2.msra.mxu0 0.0
      %2501 = vmatprep.mubr.f32.mxu0 0.0
      %2502 = vmatmul.mubr.f32.gmra.mxu0 %v2360
      %v2503 = vpop.f32.mrf.mxu0
      %v2504 = vadd.f32 0.0, %v2503
      %v2505 = vpop.f32.mrf.mxu0
      %2506 = vdwg.mxu0
      %2507 = vmatprep.subr.mxu0 0.0
      %2508 = vmatpush1.msra.mxu0 %v2255
      %2509 = vmatprep.subr.mxu0 0.0
      %2510 = vmatpush1.msra.mxu0 %v2254
      %2511 = vmatprep.subr.mxu0 0.0
      %2512 = vmatpush1.msra.mxu0 %v2253
      %2513 = vmatprep.subr.mxu0 0.0
      %2514 = vmatpush1.msra.mxu0 %v2252
      %2515 = vmatprep.subr.mxu0 0.0
      %2516 = vmatpush1.msra.mxu0 %v2251
      %2517 = vmatprep.subr.mxu0 0.0
      %2518 = vmatpush1.msra.mxu0 %v2250
      %2519 = vmatprep.subr.mxu0 0.0
      %2520 = vmatpush1.msra.mxu0 %v2249
      %2521 = vmatprep.subr.mxu0 0.0
      %2522 = vmatpush1.msra.mxu0 %v2248
      %2523 = vmatprep.subr.mxu0 0.0
      %2524 = vmatpush1.msra.mxu0 %v2247
      %2525 = vmatprep.subr.mxu0 0.0
      %2526 = vmatpush1.msra.mxu0 %v2246
      %2527 = vmatprep.subr.mxu0 0.0
      %2528 = vmatpush1.msra.mxu0 %v2245
      %2529 = vmatprep.subr.mxu0 0.0
      %2530 = vmatpush1.msra.mxu0 %v2244
      %2531 = vmatprep.subr.mxu0 0.0
      %2532 = vmatpush1.msra.mxu0 %v2243
      %2533 = vmatprep.subr.mxu0 0.0
      %2534 = vmatpush1.msra.mxu0 %v2242
      %2535 = vmatprep.subr.mxu0 0.0
      %2536 = vmatpush1.msra.mxu0 %v2241
      %2537 = vmatprep.subr.mxu0 0.0
      %2538 = vmatpush1.msra.mxu0 %v2240
      %2539 = vmatprep.subr.mxu0 0.0
      %2540 = vmatpush2.msra.mxu0 0.0
      %2541 = vmatprep.subr.mxu0 0.0
      %2542 = vmatpush2.msra.mxu0 0.0
      %2543 = vmatprep.subr.mxu0 0.0
      %2544 = vmatpush2.msra.mxu0 0.0
      %2545 = vmatprep.subr.mxu0 0.0
      %2546 = vmatpush2.msra.mxu0 0.0
      %2547 = vmatprep.subr.mxu0 0.0
      %2548 = vmatpush2.msra.mxu0 0.0
      %2549 = vmatprep.subr.mxu0 0.0
      %2550 = vmatpush2.msra.mxu0 0.0
      %2551 = vmatprep.subr.mxu0 0.0
      %2552 = vmatpush2.msra.mxu0 0.0
      %2553 = vmatprep.subr.mxu0 0.0
      %2554 = vmatpush2.msra.mxu0 0.0
      %2555 = vmatprep.subr.mxu0 0.0
      %2556 = vmatpush2.msra.mxu0 0.0
      %2557 = vmatprep.subr.mxu0 0.0
      %2558 = vmatpush2.msra.mxu0 0.0
      %2559 = vmatprep.subr.mxu0 0.0
      %2560 = vmatpush2.msra.mxu0 0.0
      %2561 = vmatprep.subr.mxu0 0.0
      %2562 = vmatpush2.msra.mxu0 0.0
      %2563 = vmatprep.subr.mxu0 0.0
      %2564 = vmatpush2.msra.mxu0 0.0
      %2565 = vmatprep.subr.mxu0 0.0
      %2566 = vmatpush2.msra.mxu0 0.0
      %2567 = vmatprep.subr.mxu0 0.0
      %2568 = vmatpush2.msra.mxu0 0.0
      %2569 = vmatprep.subr.mxu0 0.0
      %2570 = vmatpush2.msra.mxu0 0.0
      %2571 = vmatprep.mubr.f32.mxu0 0.0
      %2572 = vmatmul.mubr.f32.gmra.mxu0 %v2436
      %v2573 = vpop.f32.mrf.mxu0
      %v2574 = vadd.f32 0.0, %v2573
      %v2575 = vpop.f32.mrf.mxu0
      %2576 = vdwg.mxu0
      %v2577 = vlaneseq
      %v2578 = vshrl.u32 %v2577, 7
      %v2579 = vsub.s32 0, %v2578
      %v2580 = vrot.slane %v2504, %v2579
      %v2581 = vsub.f32 %v2214, %v2580
      %v2582 = vsub.f32 %v2215, %v2580
      %v2583 = vsub.f32 %v2216, %v2580
      %v2584 = vsub.f32 %v2217, %v2580
      %v2585 = vsub.f32 %v2218, %v2580
      %v2586 = vsub.f32 %v2219, %v2580
      %v2587 = vsub.f32 %v2220, %v2580
      %v2588 = vsub.f32 %v2221, %v2580
      %v2589 = vmul.f32 %v2574, %v2222
      %v2590 = vlaneseq
      %v2591 = vshrl.u32 %v2590, 7
      %v2592 = vsub.s32 0, %v2591
      %v2593 = vrot.slane %v2589, %v2592
      %v2594 = vmul.f32 %v2581, %v2593
      %v2595 = vmul.f32 %v2582, %v2593
      %v2596 = vmul.f32 %v2583, %v2593
      %v2597 = vmul.f32 %v2584, %v2593
      %v2598 = vmul.f32 %v2585, %v2593
      %v2599 = vmul.f32 %v2586, %v2593
      %v2600 = vmul.f32 %v2587, %v2593
      %v2601 = vmul.f32 %v2588, %v2593
      %v2603 = vlaneseq
      %v2604 = vshrl.u32 %v2603, 7
      %v2605 = vsub.s32 0, %v2604
      %v2606 = vrot.slane %v2223, %v2605
      %v2608 = vadd.f32 %v2594, %v2606
      %v2609 = vadd.f32 %v2595, %v2606
      %v2610 = vadd.f32 %v2596, %v2606
      %v2611 = vadd.f32 %v2597, %v2606
      %v2612 = vadd.f32 %v2598, %v2606
      %v2613 = vadd.f32 %v2599, %v2606
      %v2614 = vadd.f32 %v2600, %v2606
      %v2615 = vadd.f32 %v2601, %v2606
      %v2616 = vmax.f32 %v2608, 0.0
      %v2617 = vmax.f32 %v2609, 0.0
      %v2618 = vmax.f32 %v2610, 0.0
      %v2619 = vmax.f32 %v2611, 0.0
      %v2620 = vmax.f32 %v2612, 0.0
      %v2621 = vmax.f32 %v2613, 0.0
      %v2622 = vmax.f32 %v2614, 0.0
      %v2623 = vmax.f32 %v2615, 0.0
      %v2624 = vpack.c.bf16 %v2617, %v2616
      %v2625 = vpack.c.bf16 %v2619, %v2618
      %v2626 = vpack.c.bf16 %v2621, %v2620
      %v2627 = vpack.c.bf16 %v2623, %v2622
      %v2632 = vunpack.c.l.b16 %v2624
      %v2633 = vunpack.c.h.b16 %v2624
      %v2634 = vunpack.c.l.b16 %v2625
      %v2635 = vunpack.c.h.b16 %v2625
      %v2636 = vunpack.c.l.b16 %v2626
      %v2637 = vunpack.c.h.b16 %v2626
      %v2638 = vunpack.c.l.b16 %v2627
      %v2639 = vunpack.c.h.b16 %v2627
      %v2640 = vpack.c.b16 %v2632, %v2632
      %v2641 = vpack.c.b16 %v2633, %v2633
      %v2642 = vpack.c.b16 %v2634, %v2634
      %v2643 = vpack.c.b16 %v2635, %v2635
      %v2644 = vpack.c.b16 %v2636, %v2636
      %v2645 = vpack.c.b16 %v2637, %v2637
      %v2646 = vpack.c.b16 %v2638, %v2638
      %v2647 = vpack.c.b16 %v2639, %v2639
      %2656 = vst [vmem:[%s251] sm:$0xf] %v2640
      %2657 = vst [vmem:[%s251 + $0x4] sm:$0xf] %v2641
      %2658 = vst [vmem:[%s251 + $0x8] sm:$0xf] %v2642
      %2659 = vst [vmem:[%s251 + $0xc] sm:$0xf] %v2643
      %2660 = vst [vmem:[%s251 + $0x10] sm:$0xf] %v2644
      %2661 = vst [vmem:[%s251 + $0x14] sm:$0xf] %v2645
      %2662 = vst [vmem:[%s251 + $0x18] sm:$0xf] %v2646
      %2663 = vst [vmem:[%s251 + $0x1c] sm:$0xf] %v2647
      %p2664 = scmp.lt.s32.totalorder %s17, 1
      %s2665 = scalar_select %p2664, %s17, 1
      %s2666 = smul.addr %s2665, 8
      %s2667 = smul.addr %s2666, 4
      %s2668 = scalar_lea.vmem %s6, %s2667
      // Predicated region
      $region45: #{_lambda_.12} parent=43 // pred_check
        %p2669 = pneg %p166
      $region46: #{_lambda_.12} parent=43 // pred_check_branch
        %2671 = sbr.rel (%p2669) target = $region48
      $region47: #{_lambda_.12} parent=43 // pred_region
        _
      $region48: #{_lambda_.12} parent=43 // pred_fallthru
        _
    $region44: #{_lambda_.12} parent=5 // pred_fallthru
      _
    %p2672 = scmp.le.s32.totalorder 2, %s12
    // Predicated region
    $region49: #{_lambda_.12} parent=5 // pred_check
      %p2673 = pneg %p2672
    $region50: #{_lambda_.12} parent=5 // pred_check_branch
      %2675 = sbr.rel (%p2673) target = $region52
    $region51: #{_lambda_.12} parent=5 // pred_region
      %s2676 = ssub.s32 %s12, 2
      // Predicated region
      $region53: #{_lambda_.12} parent=51 // pred_check
        %p2677 = pneg %p172
      $region54: #{_lambda_.12} parent=51 // pred_check_branch
        %2679 = sbr.rel (%p2677) target = $region56
      $region55: #{_lambda_.12} parent=51 // pred_region
        %p2680 = scmp.lt.s32.totalorder %s18, 1
        %s2681 = scalar_select %p2680, %s18, 1
        %s2682 = smul.addr %s2681, 8
        %s2683 = smul.addr %s2682, 4
        %s2684 = scalar_lea.vmem %s6, %s2683
      $region56: #{_lambda_.12} parent=51 // pred_fallthru
        _
    $region52: #{_lambda_.12} parent=5 // pred_fallthru
      _
  $region6: #{_lambda_.12} parent=0 // loop_footer
    %s16 = sadd.s32 1, %s12
  $region7: #{_lambda_.12} parent=0 // loop_footer_branch
    %11 = sbr.rel target = $region3
  $region8: #{_lambda_.12} parent=0 // loop_exit
    _

</llo_original>
